<compile_context>
chip_gen: v7x
topology: tpu7x:2x2x1
jax: 0.10.0
libtpu: 0.0.40
codegen_flags: <defaults>
</compile_context>

<pallas_src>
import functools

import jax
import jax.numpy as jnp
from jax import lax
from jax.experimental import pallas as pl
from jax.experimental.pallas import tpu as pltpu

_SLACK = 8  # spare zero rows after each flattened padded activation


# ------------------------------ static configs ------------------------------

def _layer_configs(h, w, channels):
    cfgs = []
    cin = 3
    for li, cout in enumerate((channels, channels * 2, channels * 4,
                               channels * 8)):
        pool = li < 3
        cfgs.append(dict(h=h, w=w, cin=cin, cout=cout, pool=pool))
        if pool:
            assert h % 2 == 0 and w % 2 == 0, "pooling path assumes even H/W"
            h //= 2
            w //= 2
        cin = cout
    return tuple(cfgs)


def _scratch_shapes(cfgs):
    shapes = []
    for cfg in cfgs:
        h, w, cin, cout = cfg["h"], cfg["w"], cfg["cin"], cfg["cout"]
        hp, wp = h + 2, w + 2
        m = h * wp
        shapes.append(pltpu.VMEM((m, 9 * cin), jnp.float32))   # im2col
        shapes.append(pltpu.VMEM((m, cout), jnp.float32))      # GEMM result
        if cfg["pool"]:
            ho, wo = h // 2, w // 2
            shapes.append(pltpu.VMEM((hp, wp, cout), jnp.float32))  # relu, 0-pad
            shapes.append(pltpu.VMEM((ho, wp, cout), jnp.float32))  # row-pooled
            shapes.append(pltpu.VMEM(((ho + 2) * (wo + 2) + _SLACK, cout),
                                     jnp.float32))              # next flat input
    return shapes


# --------------------------------- kernel -----------------------------------

def _encoder_kernel(cfgs, *refs):
    # refs: [flat input] + [w1,b1,...,w4,b4] + [conv1..conv4 outputs] + scratch
    xf_ref = refs[0]
    wb = refs[1:9]
    conv_refs = refs[9:13]
    scratch = refs[13:]

    cur = None  # flat, zero-padded activation of the current layer (VMEM ref)
    si = 0
    for li, cfg in enumerate(cfgs):
        h, w, cin, cout, pool = (cfg["h"], cfg["w"], cfg["cin"], cfg["cout"],
                                 cfg["pool"])
        hp, wp = h + 2, w + 2
        m = h * wp                       # GEMM rows (valid + 2 junk cols / row)
        w_ref, b_ref = wb[2 * li], wb[2 * li + 1]
        conv_ref = conv_refs[li]
        col_s, acc_s = scratch[si], scratch[si + 1]
        si += 2
        if pool:
            pp_s, rm_s, nxt_s = scratch[si], scratch[si + 1], scratch[si + 2]
            si += 3

        # --- im2col: tap k=(dy,dx) is one contiguous row-window of the flat
        #     padded input; 9 VMEM->VMEM window copies, no HBM traffic. ---
        for k in range(9):
            dy, dx = k // 3, k % 3
            off = dy * wp + dx
            if li == 0:
                tap = xf_ref[0, off:off + m, :]
            else:
                tap = cur[off:off + m, :]
            col_s[:, k * cin:(k + 1) * cin] = tap

        # --- one MXU GEMM, K = 9*Cin, f32 accumulation, + bias ---
        acc_s[...] = (jnp.dot(col_s[...], w_ref[...],
                              preferred_element_type=jnp.float32)
                      + b_ref[...])

        if pool:
            pp_s[...] = jnp.zeros_like(pp_s)
            nxt_s[...] = jnp.zeros_like(nxt_s)

        # --- drop junk pad columns, store conv output, build relu-padded pool
        #     input in VMEM ---
        for i in range(h):
            row = acc_s[i * wp:i * wp + w, :]              # (W, Cout) valid row
            conv_ref[0, i * w:(i + 1) * w, :] = row.astype(conv_ref.dtype)
            if pool:
                pp_s[i + 1, 1:w + 1, :] = jnp.maximum(row, 0.0)

        if pool:
            ho, wo = h // 2, w // 2
            wpn = wo + 2
            # rows: 3-window running max, then keep even rows (leading-dim
            # reshape -> layout no-op).
            m3 = jnp.maximum(jnp.maximum(pp_s[0:h], pp_s[1:h + 1]),
                             pp_s[2:h + 2])                # (H, Wp, Cout)
            rm_s[...] = m3.reshape(ho, 2, wp, cout)[:, 0]  # (Ho, Wp, Cout)
            # cols: stride-2 taps straight off the VMEM ref.
            pooled = jnp.maximum(
                jnp.maximum(rm_s[:, pl.ds(0, wo, stride=2), :],
                            rm_s[:, pl.ds(1, wo, stride=2), :]),
                rm_s[:, pl.ds(2, wo, stride=2), :])        # (Ho, Wo, Cout)
            # scatter pooled rows into the next layer's zero-padded flat input
            for u in range(ho):
                dst0 = (u + 1) * wpn + 1
                nxt_s[dst0:dst0 + wo, :] = pooled[u]
            cur = nxt_s


# --------------------------------- wrapper ----------------------------------

def encoder_forward(x_nchw, params):
    """Matches Encoder.forward: returns {'conv1'..'conv4'} in NCHW."""
    n, cin0, h, w = x_nchw.shape
    channels = params["w1"].shape[-1]
    cfgs = _layer_configs(h, w, channels)
    dtype = x_nchw.dtype

    # glue: NCHW -> NHWC, pad by 1, flatten spatial, add slack rows (1x copies)
    x_nhwc = jnp.transpose(x_nchw, (0, 2, 3, 1))
    xp = jnp.pad(x_nhwc, ((0, 0), (1, 1), (1, 1), (0, 0)))
    xf = xp.reshape(n, (h + 2) * (w + 2), cin0)
    xf = jnp.pad(xf, ((0, 0), (0, _SLACK), (0, 0)))
    mg1 = xf.shape[1]

    flat_args = [xf]
    in_specs = [pl.BlockSpec((1, mg1, cin0), lambda i: (i, 0, 0))]
    for li, cfg in enumerate(cfgs):
        cin, cout = cfg["cin"], cfg["cout"]
        wl = params[f"w{li + 1}"].reshape(9 * cin, cout).astype(jnp.float32)
        bl = params[f"b{li + 1}"].reshape(1, cout).astype(jnp.float32)
        flat_args += [wl, bl]
        in_specs += [pl.BlockSpec((9 * cin, cout), lambda i: (0, 0)),
                     pl.BlockSpec((1, cout), lambda i: (0, 0))]

    out_shape = tuple(
        jax.ShapeDtypeStruct((n, cfg["h"] * cfg["w"], cfg["cout"]), dtype)
        for cfg in cfgs)
    out_specs = [
        pl.BlockSpec((1, cfg["h"] * cfg["w"], cfg["cout"]), lambda i: (i, 0, 0))
        for cfg in cfgs]

    kernel = functools.partial(_encoder_kernel, cfgs)
    outs = pl.pallas_call(
        kernel,
        out_shape=out_shape,
        grid_spec=pltpu.PrefetchScalarGridSpec(
            num_scalar_prefetch=0,
            grid=(n,),
            in_specs=in_specs,
            out_specs=out_specs,
            scratch_shapes=_scratch_shapes(cfgs)),
        compiler_params=pltpu.CompilerParams(
            dimension_semantics=("parallel",)),
    )(*flat_args)

    outputs = {}
    for li, cfg in enumerate(cfgs):
        hh, ww, cout = cfg["h"], cfg["w"], cfg["cout"]
        o = outs[li].reshape(n, hh, ww, cout)            # free view
        outputs[f"conv{li + 1}"] = jnp.transpose(o, (0, 3, 1, 2))
    return outputs


# --------------------------------- params -----------------------------------

def init_encoder_params(key, channels):
    """Deterministic init mimicking nn.Conv2d default (kaiming-uniform-ish).

    Weights are stored in HWIO = (3, 3, Cin, Cout)."""
    chans = [(3, channels), (channels, channels * 2),
             (channels * 2, channels * 4), (channels * 4, channels * 8)]
    params = {}
    for idx, (cin, cout) in enumerate(chans, start=1):
        key, kw, kb = jax.random.split(key, 3)
        bound = 1.0 / jnp.sqrt(jnp.float32(cin * 9))
        params[f"w{idx}"] = jax.random.uniform(
            kw, (3, 3, cin, cout), jnp.float32, -bound, bound)
        params[f"b{idx}"] = jax.random.uniform(
            kb, (cout,), jnp.float32, -bound, bound)
    return params


# ----------------------------- pure-JAX reference ----------------------------

def _ref_conv(x_nhwc, w, b):
    y = lax.conv_general_dilated(
        x_nhwc, w, window_strides=(1, 1), padding=((1, 1), (1, 1)),
        dimension_numbers=("NHWC", "HWIO", "NHWC"))
    return y + b[None, None, None, :]


def _ref_pool(x_nhwc):
    return lax.reduce_window(
        jnp.maximum(x_nhwc, 0.0), -jnp.inf, lax.max,
        window_dimensions=(1, 3, 3, 1), window_strides=(1, 2, 2, 1),
        padding=((0, 0), (1, 1), (1, 1), (0, 0)))


def encoder_forward_ref(x_nchw, params):
    x = jnp.transpose(x_nchw, (0, 2, 3, 1))
    outputs = {}
    c1 = _ref_conv(x, params["w1"], params["b1"])
    outputs["conv1"] = jnp.transpose(c1, (0, 3, 1, 2))
    c2 = _ref_conv(_ref_pool(c1), params["w2"], params["b2"])
    outputs["conv2"] = jnp.transpose(c2, (0, 3, 1, 2))
    c3 = _ref_conv(_ref_pool(c2), params["w3"], params["b3"])
    outputs["conv3"] = jnp.transpose(c3, (0, 3, 1, 2))
    c4 = _ref_conv(_ref_pool(c3), params["w4"], params["b4"])
    outputs["conv4"] = jnp.transpose(c4, (0, 3, 1, 2))
    return outputs


# ----------------------------------- main ------------------------------------

if __name__ == "__main__":
    channels = 4
    key = jax.random.PRNGKey(0)
    key, kx = jax.random.split(key)
    x = jax.random.normal(kx, (2, 3, 16, 16), jnp.float32)  # NCHW, like PyTorch

    params = init_encoder_params(key, channels)

    out = jax.jit(encoder_forward)(x, params)
    out = jax.block_until_ready(out)

    # sanity vs. pure-JAX reference
    ref = jax.jit(encoder_forward_ref)(x, params)
    for name in ("conv1", "conv2", "conv3", "conv4"):
        assert out[name].shape == ref[name].shape, name
        assert jnp.allclose(out[name], ref[name], rtol=1e-4, atol=1e-5), name

    print("KERNEL_OK")
</pallas_src>

<mosaic_0001>
module attributes {stable_mosaic.version = 11 : i64} {
  func.func @_encoder_kernel(%arg0: i32, %arg1: memref<1x332x3xf32, #tpu.memory_space<vmem>>, %arg2: memref<27x4xf32, #tpu.memory_space<vmem>>, %arg3: memref<1x4xf32, #tpu.memory_space<vmem>>, %arg4: memref<36x8xf32, #tpu.memory_space<vmem>>, %arg5: memref<1x8xf32, #tpu.memory_space<vmem>>, %arg6: memref<72x16xf32, #tpu.memory_space<vmem>>, %arg7: memref<1x16xf32, #tpu.memory_space<vmem>>, %arg8: memref<144x32xf32, #tpu.memory_space<vmem>>, %arg9: memref<1x32xf32, #tpu.memory_space<vmem>>, %arg10: memref<1x256x4xf32, #tpu.memory_space<vmem>>, %arg11: memref<1x64x8xf32, #tpu.memory_space<vmem>>, %arg12: memref<1x16x16xf32, #tpu.memory_space<vmem>>, %arg13: memref<1x4x32xf32, #tpu.memory_space<vmem>>, %arg14: memref<288x27xf32, #tpu.memory_space<vmem>>, %arg15: memref<288x4xf32, #tpu.memory_space<vmem>>, %arg16: memref<18x18x4xf32, #tpu.memory_space<vmem>>, %arg17: memref<8x18x4xf32, #tpu.memory_space<vmem>>, %arg18: memref<108x4xf32, #tpu.memory_space<vmem>>, %arg19: memref<80x36xf32, #tpu.memory_space<vmem>>, %arg20: memref<80x8xf32, #tpu.memory_space<vmem>>, %arg21: memref<10x10x8xf32, #tpu.memory_space<vmem>>, %arg22: memref<4x10x8xf32, #tpu.memory_space<vmem>>, %arg23: memref<44x8xf32, #tpu.memory_space<vmem>>, %arg24: memref<24x72xf32, #tpu.memory_space<vmem>>, %arg25: memref<24x16xf32, #tpu.memory_space<vmem>>, %arg26: memref<6x6x16xf32, #tpu.memory_space<vmem>>, %arg27: memref<2x6x16xf32, #tpu.memory_space<vmem>>, %arg28: memref<24x16xf32, #tpu.memory_space<vmem>>, %arg29: memref<8x144xf32, #tpu.memory_space<vmem>>, %arg30: memref<8x32xf32, #tpu.memory_space<vmem>>) attributes {dimension_semantics = [#tpu.dimension_semantics<parallel>], iteration_bounds = array<i64: 2>, scalar_prefetch = 0 : i64, scratch_operands = 17 : i64, tpu.core_type = #tpu.core_type<tc>, window_params = [{transform_indices = @transform_0, window_bounds = array<i64: 1, 332, 3>}, {pipeline_mode = #tpu.pipeline_mode<synchronous>, transform_indices = @transform_1, window_bounds = array<i64: 27, 4>}, {pipeline_mode = #tpu.pipeline_mode<synchronous>, transform_indices = @transform_2, window_bounds = array<i64: 1, 4>}, {pipeline_mode = #tpu.pipeline_mode<synchronous>, transform_indices = @transform_3, window_bounds = array<i64: 36, 8>}, {pipeline_mode = #tpu.pipeline_mode<synchronous>, transform_indices = @transform_4, window_bounds = array<i64: 1, 8>}, {pipeline_mode = #tpu.pipeline_mode<synchronous>, transform_indices = @transform_5, window_bounds = array<i64: 72, 16>}, {pipeline_mode = #tpu.pipeline_mode<synchronous>, transform_indices = @transform_6, window_bounds = array<i64: 1, 16>}, {pipeline_mode = #tpu.pipeline_mode<synchronous>, transform_indices = @transform_7, window_bounds = array<i64: 144, 32>}, {pipeline_mode = #tpu.pipeline_mode<synchronous>, transform_indices = @transform_8, window_bounds = array<i64: 1, 32>}, {transform_indices = @transform_9, window_bounds = array<i64: 1, 256, 4>}, {transform_indices = @transform_10, window_bounds = array<i64: 1, 64, 8>}, {transform_indices = @transform_11, window_bounds = array<i64: 1, 16, 16>}, {transform_indices = @transform_12, window_bounds = array<i64: 1, 4, 32>}]} {
    %c0 = arith.constant 0 : index
    %c0_0 = arith.constant 0 : index
    %c0_1 = arith.constant 0 : index
    %0 = vector.load %arg1[%c0, %c0_0, %c0_1] : memref<1x332x3xf32, #tpu.memory_space<vmem>>, vector<1x288x3xf32>
    %1 = vector.shape_cast %0 : vector<1x288x3xf32> to vector<288x3xf32>
    %c0_2 = arith.constant 0 : index
    %c0_3 = arith.constant 0 : index
    %2 = vector.load %arg14[%c0_2, %c0_3] : memref<288x27xf32, #tpu.memory_space<vmem>>, vector<288x3xf32>
    tpu.vector_store %arg14[%c0_2, %c0_3], %1 {strides = array<i32>} : memref<288x27xf32, #tpu.memory_space<vmem>>, vector<288x3xf32>,
    %c0_4 = arith.constant 0 : index
    %c1 = arith.constant 1 : index
    %c0_5 = arith.constant 0 : index
    %3 = vector.load %arg1[%c0_4, %c1, %c0_5] : memref<1x332x3xf32, #tpu.memory_space<vmem>>, vector<1x288x3xf32>
    %4 = vector.shape_cast %3 : vector<1x288x3xf32> to vector<288x3xf32>
    %c0_6 = arith.constant 0 : index
    %c3 = arith.constant 3 : index
    %5 = vector.load %arg14[%c0_6, %c3] : memref<288x27xf32, #tpu.memory_space<vmem>>, vector<288x3xf32>
    tpu.vector_store %arg14[%c0_6, %c3], %4 {strides = array<i32>} : memref<288x27xf32, #tpu.memory_space<vmem>>, vector<288x3xf32>,
    %c0_7 = arith.constant 0 : index
    %c2 = arith.constant 2 : index
    %c0_8 = arith.constant 0 : index
    %6 = vector.load %arg1[%c0_7, %c2, %c0_8] : memref<1x332x3xf32, #tpu.memory_space<vmem>>, vector<1x288x3xf32>
    %7 = vector.shape_cast %6 : vector<1x288x3xf32> to vector<288x3xf32>
    %c0_9 = arith.constant 0 : index
    %c6 = arith.constant 6 : index
    %8 = vector.load %arg14[%c0_9, %c6] : memref<288x27xf32, #tpu.memory_space<vmem>>, vector<288x3xf32>
    tpu.vector_store %arg14[%c0_9, %c6], %7 {strides = array<i32>} : memref<288x27xf32, #tpu.memory_space<vmem>>, vector<288x3xf32>,
    %c0_10 = arith.constant 0 : index
    %c18 = arith.constant 18 : index
    %c0_11 = arith.constant 0 : index
    %9 = vector.load %arg1[%c0_10, %c18, %c0_11] : memref<1x332x3xf32, #tpu.memory_space<vmem>>, vector<1x288x3xf32>
    %10 = vector.shape_cast %9 : vector<1x288x3xf32> to vector<288x3xf32>
    %c0_12 = arith.constant 0 : index
    %c9 = arith.constant 9 : index
    %11 = vector.load %arg14[%c0_12, %c9] : memref<288x27xf32, #tpu.memory_space<vmem>>, vector<288x3xf32>
    tpu.vector_store %arg14[%c0_12, %c9], %10 {strides = array<i32>} : memref<288x27xf32, #tpu.memory_space<vmem>>, vector<288x3xf32>,
    %c0_13 = arith.constant 0 : index
    %c19 = arith.constant 19 : index
    %c0_14 = arith.constant 0 : index
    %12 = vector.load %arg1[%c0_13, %c19, %c0_14] : memref<1x332x3xf32, #tpu.memory_space<vmem>>, vector<1x288x3xf32>
    %13 = vector.shape_cast %12 : vector<1x288x3xf32> to vector<288x3xf32>
    %c0_15 = arith.constant 0 : index
    %c12 = arith.constant 12 : index
    %14 = vector.load %arg14[%c0_15, %c12] : memref<288x27xf32, #tpu.memory_space<vmem>>, vector<288x3xf32>
    tpu.vector_store %arg14[%c0_15, %c12], %13 {strides = array<i32>} : memref<288x27xf32, #tpu.memory_space<vmem>>, vector<288x3xf32>,
    %c0_16 = arith.constant 0 : index
    %c20 = arith.constant 20 : index
    %c0_17 = arith.constant 0 : index
    %15 = vector.load %arg1[%c0_16, %c20, %c0_17] : memref<1x332x3xf32, #tpu.memory_space<vmem>>, vector<1x288x3xf32>
    %16 = vector.shape_cast %15 : vector<1x288x3xf32> to vector<288x3xf32>
    %c0_18 = arith.constant 0 : index
    %c15 = arith.constant 15 : index
    %17 = vector.load %arg14[%c0_18, %c15] : memref<288x27xf32, #tpu.memory_space<vmem>>, vector<288x3xf32>
    tpu.vector_store %arg14[%c0_18, %c15], %16 {strides = array<i32>} : memref<288x27xf32, #tpu.memory_space<vmem>>, vector<288x3xf32>,
    %c0_19 = arith.constant 0 : index
    %c36 = arith.constant 36 : index
    %c0_20 = arith.constant 0 : index
    %18 = vector.load %arg1[%c0_19, %c36, %c0_20] : memref<1x332x3xf32, #tpu.memory_space<vmem>>, vector<1x288x3xf32>
    %19 = vector.shape_cast %18 : vector<1x288x3xf32> to vector<288x3xf32>
    %c0_21 = arith.constant 0 : index
    %c18_22 = arith.constant 18 : index
    %20 = vector.load %arg14[%c0_21, %c18_22] : memref<288x27xf32, #tpu.memory_space<vmem>>, vector<288x3xf32>
    tpu.vector_store %arg14[%c0_21, %c18_22], %19 {strides = array<i32>} : memref<288x27xf32, #tpu.memory_space<vmem>>, vector<288x3xf32>,
    %c0_23 = arith.constant 0 : index
    %c37 = arith.constant 37 : index
    %c0_24 = arith.constant 0 : index
    %21 = vector.load %arg1[%c0_23, %c37, %c0_24] : memref<1x332x3xf32, #tpu.memory_space<vmem>>, vector<1x288x3xf32>
    %22 = vector.shape_cast %21 : vector<1x288x3xf32> to vector<288x3xf32>
    %c0_25 = arith.constant 0 : index
    %c21 = arith.constant 21 : index
    %23 = vector.load %arg14[%c0_25, %c21] : memref<288x27xf32, #tpu.memory_space<vmem>>, vector<288x3xf32>
    tpu.vector_store %arg14[%c0_25, %c21], %22 {strides = array<i32>} : memref<288x27xf32, #tpu.memory_space<vmem>>, vector<288x3xf32>,
    %c0_26 = arith.constant 0 : index
    %c38 = arith.constant 38 : index
    %c0_27 = arith.constant 0 : index
    %24 = vector.load %arg1[%c0_26, %c38, %c0_27] : memref<1x332x3xf32, #tpu.memory_space<vmem>>, vector<1x288x3xf32>
    %25 = vector.shape_cast %24 : vector<1x288x3xf32> to vector<288x3xf32>
    %c0_28 = arith.constant 0 : index
    %c24 = arith.constant 24 : index
    %26 = vector.load %arg14[%c0_28, %c24] : memref<288x27xf32, #tpu.memory_space<vmem>>, vector<288x3xf32>
    tpu.vector_store %arg14[%c0_28, %c24], %25 {strides = array<i32>} : memref<288x27xf32, #tpu.memory_space<vmem>>, vector<288x3xf32>,
    %c0_29 = arith.constant 0 : index
    %c0_30 = arith.constant 0 : index
    %27 = vector.load %arg14[%c0_29, %c0_30] : memref<288x27xf32, #tpu.memory_space<vmem>>, vector<288x27xf32>
    %c0_31 = arith.constant 0 : index
    %c0_32 = arith.constant 0 : index
    %28 = vector.load %arg2[%c0_31, %c0_32] : memref<27x4xf32, #tpu.memory_space<vmem>>, vector<27x4xf32>
    %cst = arith.constant dense<0.000000e+00> : vector<288x4xf32>
    %29 = tpu.matmul %27, %28, %cst {dimension_numbers = #tpu.dot_dimension_numbers<[1], [0], [0], [1], [0, 0, 1, 1], [], []>} : vector<288x27xf32>, vector<27x4xf32>, vector<288x4xf32> -> vector<288x4xf32>
    %c0_33 = arith.constant 0 : index
    %c0_34 = arith.constant 0 : index
    %30 = vector.load %arg3[%c0_33, %c0_34] : memref<1x4xf32, #tpu.memory_space<vmem>>, vector<1x4xf32>
    %31 = vector.broadcast %30 : vector<1x4xf32> to vector<288x4xf32>
    %32 = arith.addf %29, %31 : vector<288x4xf32>
    %c0_35 = arith.constant 0 : index
    %c0_36 = arith.constant 0 : index
    %33 = vector.load %arg15[%c0_35, %c0_36] : memref<288x4xf32, #tpu.memory_space<vmem>>, vector<288x4xf32>
    tpu.vector_store %arg15[%c0_35, %c0_36], %32 {strides = array<i32>} : memref<288x4xf32, #tpu.memory_space<vmem>>, vector<288x4xf32>,
    %cst_37 = arith.constant 0.000000e+00 : f32
    %34 = vector.broadcast %cst_37 : f32 to vector<18x18x4xf32>
    %c0_38 = arith.constant 0 : index
    %c0_39 = arith.constant 0 : index
    %c0_40 = arith.constant 0 : index
    %35 = vector.load %arg16[%c0_38, %c0_39, %c0_40] : memref<18x18x4xf32, #tpu.memory_space<vmem>>, vector<18x18x4xf32>
    tpu.vector_store %arg16[%c0_38, %c0_39, %c0_40], %34 {strides = array<i32>} : memref<18x18x4xf32, #tpu.memory_space<vmem>>, vector<18x18x4xf32>,
    %cst_41 = arith.constant 0.000000e+00 : f32
    %36 = vector.broadcast %cst_41 : f32 to vector<108x4xf32>
    %c0_42 = arith.constant 0 : index
    %c0_43 = arith.constant 0 : index
    %37 = vector.load %arg18[%c0_42, %c0_43] : memref<108x4xf32, #tpu.memory_space<vmem>>, vector<108x4xf32>
    tpu.vector_store %arg18[%c0_42, %c0_43], %36 {strides = array<i32>} : memref<108x4xf32, #tpu.memory_space<vmem>>, vector<108x4xf32>,
    %c0_44 = arith.constant 0 : index
    %c0_45 = arith.constant 0 : index
    %38 = vector.load %arg15[%c0_44, %c0_45] : memref<288x4xf32, #tpu.memory_space<vmem>>, vector<16x4xf32>
    %c0_46 = arith.constant 0 : index
    %c0_47 = arith.constant 0 : index
    %c0_48 = arith.constant 0 : index
    %39 = vector.load %arg10[%c0_46, %c0_47, %c0_48] : memref<1x256x4xf32, #tpu.memory_space<vmem>>, vector<1x16x4xf32>
    %40 = vector.shape_cast %39 : vector<1x16x4xf32> to vector<16x4xf32>
    %41 = vector.shape_cast %38 : vector<16x4xf32> to vector<1x16x4xf32>
    tpu.vector_store %arg10[%c0_46, %c0_47, %c0_48], %41 {strides = array<i32>} : memref<1x256x4xf32, #tpu.memory_space<vmem>>, vector<1x16x4xf32>,
    %cst_49 = arith.constant 0.000000e+00 : f32
    %42 = vector.broadcast %cst_49 : f32 to vector<16x4xf32>
    %43 = arith.maximumf %38, %42 : vector<16x4xf32>
    %c1_50 = arith.constant 1 : index
    %c1_51 = arith.constant 1 : index
    %c0_52 = arith.constant 0 : index
    %44 = vector.load %arg16[%c1_50, %c1_51, %c0_52] : memref<18x18x4xf32, #tpu.memory_space<vmem>>, vector<1x16x4xf32>
    %45 = vector.shape_cast %44 : vector<1x16x4xf32> to vector<16x4xf32>
    %46 = vector.shape_cast %43 : vector<16x4xf32> to vector<1x16x4xf32>
    tpu.vector_store %arg16[%c1_50, %c1_51, %c0_52], %46 {strides = array<i32>} : memref<18x18x4xf32, #tpu.memory_space<vmem>>, vector<1x16x4xf32>,
    %c18_53 = arith.constant 18 : index
    %c0_54 = arith.constant 0 : index
    %47 = vector.load %arg15[%c18_53, %c0_54] : memref<288x4xf32, #tpu.memory_space<vmem>>, vector<16x4xf32>
    %c0_55 = arith.constant 0 : index
    %c16 = arith.constant 16 : index
    %c0_56 = arith.constant 0 : index
    %48 = vector.load %arg10[%c0_55, %c16, %c0_56] : memref<1x256x4xf32, #tpu.memory_space<vmem>>, vector<1x16x4xf32>
    %49 = vector.shape_cast %48 : vector<1x16x4xf32> to vector<16x4xf32>
    %50 = vector.shape_cast %47 : vector<16x4xf32> to vector<1x16x4xf32>
    tpu.vector_store %arg10[%c0_55, %c16, %c0_56], %50 {strides = array<i32>} : memref<1x256x4xf32, #tpu.memory_space<vmem>>, vector<1x16x4xf32>,
    %cst_57 = arith.constant 0.000000e+00 : f32
    %51 = vector.broadcast %cst_57 : f32 to vector<16x4xf32>
    %52 = arith.maximumf %47, %51 : vector<16x4xf32>
    %c2_58 = arith.constant 2 : index
    %c1_59 = arith.constant 1 : index
    %c0_60 = arith.constant 0 : index
    %53 = vector.load %arg16[%c2_58, %c1_59, %c0_60] : memref<18x18x4xf32, #tpu.memory_space<vmem>>, vector<1x16x4xf32>
    %54 = vector.shape_cast %53 : vector<1x16x4xf32> to vector<16x4xf32>
    %55 = vector.shape_cast %52 : vector<16x4xf32> to vector<1x16x4xf32>
    tpu.vector_store %arg16[%c2_58, %c1_59, %c0_60], %55 {strides = array<i32>} : memref<18x18x4xf32, #tpu.memory_space<vmem>>, vector<1x16x4xf32>,
    %c36_61 = arith.constant 36 : index
    %c0_62 = arith.constant 0 : index
    %56 = vector.load %arg15[%c36_61, %c0_62] : memref<288x4xf32, #tpu.memory_space<vmem>>, vector<16x4xf32>
    %c0_63 = arith.constant 0 : index
    %c32 = arith.constant 32 : index
    %c0_64 = arith.constant 0 : index
    %57 = vector.load %arg10[%c0_63, %c32, %c0_64] : memref<1x256x4xf32, #tpu.memory_space<vmem>>, vector<1x16x4xf32>
    %58 = vector.shape_cast %57 : vector<1x16x4xf32> to vector<16x4xf32>
    %59 = vector.shape_cast %56 : vector<16x4xf32> to vector<1x16x4xf32>
    tpu.vector_store %arg10[%c0_63, %c32, %c0_64], %59 {strides = array<i32>} : memref<1x256x4xf32, #tpu.memory_space<vmem>>, vector<1x16x4xf32>,
    %cst_65 = arith.constant 0.000000e+00 : f32
    %60 = vector.broadcast %cst_65 : f32 to vector<16x4xf32>
    %61 = arith.maximumf %56, %60 : vector<16x4xf32>
    %c3_66 = arith.constant 3 : index
    %c1_67 = arith.constant 1 : index
    %c0_68 = arith.constant 0 : index
    %62 = vector.load %arg16[%c3_66, %c1_67, %c0_68] : memref<18x18x4xf32, #tpu.memory_space<vmem>>, vector<1x16x4xf32>
    %63 = vector.shape_cast %62 : vector<1x16x4xf32> to vector<16x4xf32>
    %64 = vector.shape_cast %61 : vector<16x4xf32> to vector<1x16x4xf32>
    tpu.vector_store %arg16[%c3_66, %c1_67, %c0_68], %64 {strides = array<i32>} : memref<18x18x4xf32, #tpu.memory_space<vmem>>, vector<1x16x4xf32>,
    %c54 = arith.constant 54 : index
    %c0_69 = arith.constant 0 : index
    %65 = vector.load %arg15[%c54, %c0_69] : memref<288x4xf32, #tpu.memory_space<vmem>>, vector<16x4xf32>
    %c0_70 = arith.constant 0 : index
    %c48 = arith.constant 48 : index
    %c0_71 = arith.constant 0 : index
    %66 = vector.load %arg10[%c0_70, %c48, %c0_71] : memref<1x256x4xf32, #tpu.memory_space<vmem>>, vector<1x16x4xf32>
    %67 = vector.shape_cast %66 : vector<1x16x4xf32> to vector<16x4xf32>
    %68 = vector.shape_cast %65 : vector<16x4xf32> to vector<1x16x4xf32>
    tpu.vector_store %arg10[%c0_70, %c48, %c0_71], %68 {strides = array<i32>} : memref<1x256x4xf32, #tpu.memory_space<vmem>>, vector<1x16x4xf32>,
    %cst_72 = arith.constant 0.000000e+00 : f32
    %69 = vector.broadcast %cst_72 : f32 to vector<16x4xf32>
    %70 = arith.maximumf %65, %69 : vector<16x4xf32>
    %c4 = arith.constant 4 : index
    %c1_73 = arith.constant 1 : index
    %c0_74 = arith.constant 0 : index
    %71 = vector.load %arg16[%c4, %c1_73, %c0_74] : memref<18x18x4xf32, #tpu.memory_space<vmem>>, vector<1x16x4xf32>
    %72 = vector.shape_cast %71 : vector<1x16x4xf32> to vector<16x4xf32>
    %73 = vector.shape_cast %70 : vector<16x4xf32> to vector<1x16x4xf32>
    tpu.vector_store %arg16[%c4, %c1_73, %c0_74], %73 {strides = array<i32>} : memref<18x18x4xf32, #tpu.memory_space<vmem>>, vector<1x16x4xf32>,
    %c72 = arith.constant 72 : index
    %c0_75 = arith.constant 0 : index
    %74 = vector.load %arg15[%c72, %c0_75] : memref<288x4xf32, #tpu.memory_space<vmem>>, vector<16x4xf32>
    %c0_76 = arith.constant 0 : index
    %c64 = arith.constant 64 : index
    %c0_77 = arith.constant 0 : index
    %75 = vector.load %arg10[%c0_76, %c64, %c0_77] : memref<1x256x4xf32, #tpu.memory_space<vmem>>, vector<1x16x4xf32>
    %76 = vector.shape_cast %75 : vector<1x16x4xf32> to vector<16x4xf32>
    %77 = vector.shape_cast %74 : vector<16x4xf32> to vector<1x16x4xf32>
    tpu.vector_store %arg10[%c0_76, %c64, %c0_77], %77 {strides = array<i32>} : memref<1x256x4xf32, #tpu.memory_space<vmem>>, vector<1x16x4xf32>,
    %cst_78 = arith.constant 0.000000e+00 : f32
    %78 = vector.broadcast %cst_78 : f32 to vector<16x4xf32>
    %79 = arith.maximumf %74, %78 : vector<16x4xf32>
    %c5 = arith.constant 5 : index
    %c1_79 = arith.constant 1 : index
    %c0_80 = arith.constant 0 : index
    %80 = vector.load %arg16[%c5, %c1_79, %c0_80] : memref<18x18x4xf32, #tpu.memory_space<vmem>>, vector<1x16x4xf32>
    %81 = vector.shape_cast %80 : vector<1x16x4xf32> to vector<16x4xf32>
    %82 = vector.shape_cast %79 : vector<16x4xf32> to vector<1x16x4xf32>
    tpu.vector_store %arg16[%c5, %c1_79, %c0_80], %82 {strides = array<i32>} : memref<18x18x4xf32, #tpu.memory_space<vmem>>, vector<1x16x4xf32>,
    %c90 = arith.constant 90 : index
    %c0_81 = arith.constant 0 : index
    %83 = vector.load %arg15[%c90, %c0_81] : memref<288x4xf32, #tpu.memory_space<vmem>>, vector<16x4xf32>
    %c0_82 = arith.constant 0 : index
    %c80 = arith.constant 80 : index
    %c0_83 = arith.constant 0 : index
    %84 = vector.load %arg10[%c0_82, %c80, %c0_83] : memref<1x256x4xf32, #tpu.memory_space<vmem>>, vector<1x16x4xf32>
    %85 = vector.shape_cast %84 : vector<1x16x4xf32> to vector<16x4xf32>
    %86 = vector.shape_cast %83 : vector<16x4xf32> to vector<1x16x4xf32>
    tpu.vector_store %arg10[%c0_82, %c80, %c0_83], %86 {strides = array<i32>} : memref<1x256x4xf32, #tpu.memory_space<vmem>>, vector<1x16x4xf32>,
    %cst_84 = arith.constant 0.000000e+00 : f32
    %87 = vector.broadcast %cst_84 : f32 to vector<16x4xf32>
    %88 = arith.maximumf %83, %87 : vector<16x4xf32>
    %c6_85 = arith.constant 6 : index
    %c1_86 = arith.constant 1 : index
    %c0_87 = arith.constant 0 : index
    %89 = vector.load %arg16[%c6_85, %c1_86, %c0_87] : memref<18x18x4xf32, #tpu.memory_space<vmem>>, vector<1x16x4xf32>
    %90 = vector.shape_cast %89 : vector<1x16x4xf32> to vector<16x4xf32>
    %91 = vector.shape_cast %88 : vector<16x4xf32> to vector<1x16x4xf32>
    tpu.vector_store %arg16[%c6_85, %c1_86, %c0_87], %91 {strides = array<i32>} : memref<18x18x4xf32, #tpu.memory_space<vmem>>, vector<1x16x4xf32>,
    %c108 = arith.constant 108 : index
    %c0_88 = arith.constant 0 : index
    %92 = vector.load %arg15[%c108, %c0_88] : memref<288x4xf32, #tpu.memory_space<vmem>>, vector<16x4xf32>
    %c0_89 = arith.constant 0 : index
    %c96 = arith.constant 96 : index
    %c0_90 = arith.constant 0 : index
    %93 = vector.load %arg10[%c0_89, %c96, %c0_90] : memref<1x256x4xf32, #tpu.memory_space<vmem>>, vector<1x16x4xf32>
    %94 = vector.shape_cast %93 : vector<1x16x4xf32> to vector<16x4xf32>
    %95 = vector.shape_cast %92 : vector<16x4xf32> to vector<1x16x4xf32>
    tpu.vector_store %arg10[%c0_89, %c96, %c0_90], %95 {strides = array<i32>} : memref<1x256x4xf32, #tpu.memory_space<vmem>>, vector<1x16x4xf32>,
    %cst_91 = arith.constant 0.000000e+00 : f32
    %96 = vector.broadcast %cst_91 : f32 to vector<16x4xf32>
    %97 = arith.maximumf %92, %96 : vector<16x4xf32>
    %c7 = arith.constant 7 : index
    %c1_92 = arith.constant 1 : index
    %c0_93 = arith.constant 0 : index
    %98 = vector.load %arg16[%c7, %c1_92, %c0_93] : memref<18x18x4xf32, #tpu.memory_space<vmem>>, vector<1x16x4xf32>
    %99 = vector.shape_cast %98 : vector<1x16x4xf32> to vector<16x4xf32>
    %100 = vector.shape_cast %97 : vector<16x4xf32> to vector<1x16x4xf32>
    tpu.vector_store %arg16[%c7, %c1_92, %c0_93], %100 {strides = array<i32>} : memref<18x18x4xf32, #tpu.memory_space<vmem>>, vector<1x16x4xf32>,
    %c126 = arith.constant 126 : index
    %c0_94 = arith.constant 0 : index
    %101 = vector.load %arg15[%c126, %c0_94] : memref<288x4xf32, #tpu.memory_space<vmem>>, vector<16x4xf32>
    %c0_95 = arith.constant 0 : index
    %c112 = arith.constant 112 : index
    %c0_96 = arith.constant 0 : index
    %102 = vector.load %arg10[%c0_95, %c112, %c0_96] : memref<1x256x4xf32, #tpu.memory_space<vmem>>, vector<1x16x4xf32>
    %103 = vector.shape_cast %102 : vector<1x16x4xf32> to vector<16x4xf32>
    %104 = vector.shape_cast %101 : vector<16x4xf32> to vector<1x16x4xf32>
    tpu.vector_store %arg10[%c0_95, %c112, %c0_96], %104 {strides = array<i32>} : memref<1x256x4xf32, #tpu.memory_space<vmem>>, vector<1x16x4xf32>,
    %cst_97 = arith.constant 0.000000e+00 : f32
    %105 = vector.broadcast %cst_97 : f32 to vector<16x4xf32>
    %106 = arith.maximumf %101, %105 : vector<16x4xf32>
    %c8 = arith.constant 8 : index
    %c1_98 = arith.constant 1 : index
    %c0_99 = arith.constant 0 : index
    %107 = vector.load %arg16[%c8, %c1_98, %c0_99] : memref<18x18x4xf32, #tpu.memory_space<vmem>>, vector<1x16x4xf32>
    %108 = vector.shape_cast %107 : vector<1x16x4xf32> to vector<16x4xf32>
    %109 = vector.shape_cast %106 : vector<16x4xf32> to vector<1x16x4xf32>
    tpu.vector_store %arg16[%c8, %c1_98, %c0_99], %109 {strides = array<i32>} : memref<18x18x4xf32, #tpu.memory_space<vmem>>, vector<1x16x4xf32>,
    %c144 = arith.constant 144 : index
    %c0_100 = arith.constant 0 : index
    %110 = vector.load %arg15[%c144, %c0_100] : memref<288x4xf32, #tpu.memory_space<vmem>>, vector<16x4xf32>
    %c0_101 = arith.constant 0 : index
    %c128 = arith.constant 128 : index
    %c0_102 = arith.constant 0 : index
    %111 = vector.load %arg10[%c0_101, %c128, %c0_102] : memref<1x256x4xf32, #tpu.memory_space<vmem>>, vector<1x16x4xf32>
    %112 = vector.shape_cast %111 : vector<1x16x4xf32> to vector<16x4xf32>
    %113 = vector.shape_cast %110 : vector<16x4xf32> to vector<1x16x4xf32>
    tpu.vector_store %arg10[%c0_101, %c128, %c0_102], %113 {strides = array<i32>} : memref<1x256x4xf32, #tpu.memory_space<vmem>>, vector<1x16x4xf32>,
    %cst_103 = arith.constant 0.000000e+00 : f32
    %114 = vector.broadcast %cst_103 : f32 to vector<16x4xf32>
    %115 = arith.maximumf %110, %114 : vector<16x4xf32>
    %c9_104 = arith.constant 9 : index
    %c1_105 = arith.constant 1 : index
    %c0_106 = arith.constant 0 : index
    %116 = vector.load %arg16[%c9_104, %c1_105, %c0_106] : memref<18x18x4xf32, #tpu.memory_space<vmem>>, vector<1x16x4xf32>
    %117 = vector.shape_cast %116 : vector<1x16x4xf32> to vector<16x4xf32>
    %118 = vector.shape_cast %115 : vector<16x4xf32> to vector<1x16x4xf32>
    tpu.vector_store %arg16[%c9_104, %c1_105, %c0_106], %118 {strides = array<i32>} : memref<18x18x4xf32, #tpu.memory_space<vmem>>, vector<1x16x4xf32>,
    %c162 = arith.constant 162 : index
    %c0_107 = arith.constant 0 : index
    %119 = vector.load %arg15[%c162, %c0_107] : memref<288x4xf32, #tpu.memory_space<vmem>>, vector<16x4xf32>
    %c0_108 = arith.constant 0 : index
    %c144_109 = arith.constant 144 : index
    %c0_110 = arith.constant 0 : index
    %120 = vector.load %arg10[%c0_108, %c144_109, %c0_110] : memref<1x256x4xf32, #tpu.memory_space<vmem>>, vector<1x16x4xf32>
    %121 = vector.shape_cast %120 : vector<1x16x4xf32> to vector<16x4xf32>
    %122 = vector.shape_cast %119 : vector<16x4xf32> to vector<1x16x4xf32>
    tpu.vector_store %arg10[%c0_108, %c144_109, %c0_110], %122 {strides = array<i32>} : memref<1x256x4xf32, #tpu.memory_space<vmem>>, vector<1x16x4xf32>,
    %cst_111 = arith.constant 0.000000e+00 : f32
    %123 = vector.broadcast %cst_111 : f32 to vector<16x4xf32>
    %124 = arith.maximumf %119, %123 : vector<16x4xf32>
    %c10 = arith.constant 10 : index
    %c1_112 = arith.constant 1 : index
    %c0_113 = arith.constant 0 : index
    %125 = vector.load %arg16[%c10, %c1_112, %c0_113] : memref<18x18x4xf32, #tpu.memory_space<vmem>>, vector<1x16x4xf32>
    %126 = vector.shape_cast %125 : vector<1x16x4xf32> to vector<16x4xf32>
    %127 = vector.shape_cast %124 : vector<16x4xf32> to vector<1x16x4xf32>
    tpu.vector_store %arg16[%c10, %c1_112, %c0_113], %127 {strides = array<i32>} : memref<18x18x4xf32, #tpu.memory_space<vmem>>, vector<1x16x4xf32>,
    %c180 = arith.constant 180 : index
    %c0_114 = arith.constant 0 : index
    %128 = vector.load %arg15[%c180, %c0_114] : memref<288x4xf32, #tpu.memory_space<vmem>>, vector<16x4xf32>
    %c0_115 = arith.constant 0 : index
    %c160 = arith.constant 160 : index
    %c0_116 = arith.constant 0 : index
    %129 = vector.load %arg10[%c0_115, %c160, %c0_116] : memref<1x256x4xf32, #tpu.memory_space<vmem>>, vector<1x16x4xf32>
    %130 = vector.shape_cast %129 : vector<1x16x4xf32> to vector<16x4xf32>
    %131 = vector.shape_cast %128 : vector<16x4xf32> to vector<1x16x4xf32>
    tpu.vector_store %arg10[%c0_115, %c160, %c0_116], %131 {strides = array<i32>} : memref<1x256x4xf32, #tpu.memory_space<vmem>>, vector<1x16x4xf32>,
    %cst_117 = arith.constant 0.000000e+00 : f32
    %132 = vector.broadcast %cst_117 : f32 to vector<16x4xf32>
    %133 = arith.maximumf %128, %132 : vector<16x4xf32>
    %c11 = arith.constant 11 : index
    %c1_118 = arith.constant 1 : index
    %c0_119 = arith.constant 0 : index
    %134 = vector.load %arg16[%c11, %c1_118, %c0_119] : memref<18x18x4xf32, #tpu.memory_space<vmem>>, vector<1x16x4xf32>
    %135 = vector.shape_cast %134 : vector<1x16x4xf32> to vector<16x4xf32>
    %136 = vector.shape_cast %133 : vector<16x4xf32> to vector<1x16x4xf32>
    tpu.vector_store %arg16[%c11, %c1_118, %c0_119], %136 {strides = array<i32>} : memref<18x18x4xf32, #tpu.memory_space<vmem>>, vector<1x16x4xf32>,
    %c198 = arith.constant 198 : index
    %c0_120 = arith.constant 0 : index
    %137 = vector.load %arg15[%c198, %c0_120] : memref<288x4xf32, #tpu.memory_space<vmem>>, vector<16x4xf32>
    %c0_121 = arith.constant 0 : index
    %c176 = arith.constant 176 : index
    %c0_122 = arith.constant 0 : index
    %138 = vector.load %arg10[%c0_121, %c176, %c0_122] : memref<1x256x4xf32, #tpu.memory_space<vmem>>, vector<1x16x4xf32>
    %139 = vector.shape_cast %138 : vector<1x16x4xf32> to vector<16x4xf32>
    %140 = vector.shape_cast %137 : vector<16x4xf32> to vector<1x16x4xf32>
    tpu.vector_store %arg10[%c0_121, %c176, %c0_122], %140 {strides = array<i32>} : memref<1x256x4xf32, #tpu.memory_space<vmem>>, vector<1x16x4xf32>,
    %cst_123 = arith.constant 0.000000e+00 : f32
    %141 = vector.broadcast %cst_123 : f32 to vector<16x4xf32>
    %142 = arith.maximumf %137, %141 : vector<16x4xf32>
    %c12_124 = arith.constant 12 : index
    %c1_125 = arith.constant 1 : index
    %c0_126 = arith.constant 0 : index
    %143 = vector.load %arg16[%c12_124, %c1_125, %c0_126] : memref<18x18x4xf32, #tpu.memory_space<vmem>>, vector<1x16x4xf32>
    %144 = vector.shape_cast %143 : vector<1x16x4xf32> to vector<16x4xf32>
    %145 = vector.shape_cast %142 : vector<16x4xf32> to vector<1x16x4xf32>
    tpu.vector_store %arg16[%c12_124, %c1_125, %c0_126], %145 {strides = array<i32>} : memref<18x18x4xf32, #tpu.memory_space<vmem>>, vector<1x16x4xf32>,
    %c216 = arith.constant 216 : index
    %c0_127 = arith.constant 0 : index
    %146 = vector.load %arg15[%c216, %c0_127] : memref<288x4xf32, #tpu.memory_space<vmem>>, vector<16x4xf32>
    %c0_128 = arith.constant 0 : index
    %c192 = arith.constant 192 : index
    %c0_129 = arith.constant 0 : index
    %147 = vector.load %arg10[%c0_128, %c192, %c0_129] : memref<1x256x4xf32, #tpu.memory_space<vmem>>, vector<1x16x4xf32>
    %148 = vector.shape_cast %147 : vector<1x16x4xf32> to vector<16x4xf32>
    %149 = vector.shape_cast %146 : vector<16x4xf32> to vector<1x16x4xf32>
    tpu.vector_store %arg10[%c0_128, %c192, %c0_129], %149 {strides = array<i32>} : memref<1x256x4xf32, #tpu.memory_space<vmem>>, vector<1x16x4xf32>,
    %cst_130 = arith.constant 0.000000e+00 : f32
    %150 = vector.broadcast %cst_130 : f32 to vector<16x4xf32>
    %151 = arith.maximumf %146, %150 : vector<16x4xf32>
    %c13 = arith.constant 13 : index
    %c1_131 = arith.constant 1 : index
    %c0_132 = arith.constant 0 : index
    %152 = vector.load %arg16[%c13, %c1_131, %c0_132] : memref<18x18x4xf32, #tpu.memory_space<vmem>>, vector<1x16x4xf32>
    %153 = vector.shape_cast %152 : vector<1x16x4xf32> to vector<16x4xf32>
    %154 = vector.shape_cast %151 : vector<16x4xf32> to vector<1x16x4xf32>
    tpu.vector_store %arg16[%c13, %c1_131, %c0_132], %154 {strides = array<i32>} : memref<18x18x4xf32, #tpu.memory_space<vmem>>, vector<1x16x4xf32>,
    %c234 = arith.constant 234 : index
    %c0_133 = arith.constant 0 : index
    %155 = vector.load %arg15[%c234, %c0_133] : memref<288x4xf32, #tpu.memory_space<vmem>>, vector<16x4xf32>
    %c0_134 = arith.constant 0 : index
    %c208 = arith.constant 208 : index
    %c0_135 = arith.constant 0 : index
    %156 = vector.load %arg10[%c0_134, %c208, %c0_135] : memref<1x256x4xf32, #tpu.memory_space<vmem>>, vector<1x16x4xf32>
    %157 = vector.shape_cast %156 : vector<1x16x4xf32> to vector<16x4xf32>
    %158 = vector.shape_cast %155 : vector<16x4xf32> to vector<1x16x4xf32>
    tpu.vector_store %arg10[%c0_134, %c208, %c0_135], %158 {strides = array<i32>} : memref<1x256x4xf32, #tpu.memory_space<vmem>>, vector<1x16x4xf32>,
    %cst_136 = arith.constant 0.000000e+00 : f32
    %159 = vector.broadcast %cst_136 : f32 to vector<16x4xf32>
    %160 = arith.maximumf %155, %159 : vector<16x4xf32>
    %c14 = arith.constant 14 : index
    %c1_137 = arith.constant 1 : index
    %c0_138 = arith.constant 0 : index
    %161 = vector.load %arg16[%c14, %c1_137, %c0_138] : memref<18x18x4xf32, #tpu.memory_space<vmem>>, vector<1x16x4xf32>
    %162 = vector.shape_cast %161 : vector<1x16x4xf32> to vector<16x4xf32>
    %163 = vector.shape_cast %160 : vector<16x4xf32> to vector<1x16x4xf32>
    tpu.vector_store %arg16[%c14, %c1_137, %c0_138], %163 {strides = array<i32>} : memref<18x18x4xf32, #tpu.memory_space<vmem>>, vector<1x16x4xf32>,
    %c252 = arith.constant 252 : index
    %c0_139 = arith.constant 0 : index
    %164 = vector.load %arg15[%c252, %c0_139] : memref<288x4xf32, #tpu.memory_space<vmem>>, vector<16x4xf32>
    %c0_140 = arith.constant 0 : index
    %c224 = arith.constant 224 : index
    %c0_141 = arith.constant 0 : index
    %165 = vector.load %arg10[%c0_140, %c224, %c0_141] : memref<1x256x4xf32, #tpu.memory_space<vmem>>, vector<1x16x4xf32>
    %166 = vector.shape_cast %165 : vector<1x16x4xf32> to vector<16x4xf32>
    %167 = vector.shape_cast %164 : vector<16x4xf32> to vector<1x16x4xf32>
    tpu.vector_store %arg10[%c0_140, %c224, %c0_141], %167 {strides = array<i32>} : memref<1x256x4xf32, #tpu.memory_space<vmem>>, vector<1x16x4xf32>,
    %cst_142 = arith.constant 0.000000e+00 : f32
    %168 = vector.broadcast %cst_142 : f32 to vector<16x4xf32>
    %169 = arith.maximumf %164, %168 : vector<16x4xf32>
    %c15_143 = arith.constant 15 : index
    %c1_144 = arith.constant 1 : index
    %c0_145 = arith.constant 0 : index
    %170 = vector.load %arg16[%c15_143, %c1_144, %c0_145] : memref<18x18x4xf32, #tpu.memory_space<vmem>>, vector<1x16x4xf32>
    %171 = vector.shape_cast %170 : vector<1x16x4xf32> to vector<16x4xf32>
    %172 = vector.shape_cast %169 : vector<16x4xf32> to vector<1x16x4xf32>
    tpu.vector_store %arg16[%c15_143, %c1_144, %c0_145], %172 {strides = array<i32>} : memref<18x18x4xf32, #tpu.memory_space<vmem>>, vector<1x16x4xf32>,
    %c270 = arith.constant 270 : index
    %c0_146 = arith.constant 0 : index
    %173 = vector.load %arg15[%c270, %c0_146] : memref<288x4xf32, #tpu.memory_space<vmem>>, vector<16x4xf32>
    %c0_147 = arith.constant 0 : index
    %c240 = arith.constant 240 : index
    %c0_148 = arith.constant 0 : index
    %174 = vector.load %arg10[%c0_147, %c240, %c0_148] : memref<1x256x4xf32, #tpu.memory_space<vmem>>, vector<1x16x4xf32>
    %175 = vector.shape_cast %174 : vector<1x16x4xf32> to vector<16x4xf32>
    %176 = vector.shape_cast %173 : vector<16x4xf32> to vector<1x16x4xf32>
    tpu.vector_store %arg10[%c0_147, %c240, %c0_148], %176 {strides = array<i32>} : memref<1x256x4xf32, #tpu.memory_space<vmem>>, vector<1x16x4xf32>,
    %cst_149 = arith.constant 0.000000e+00 : f32
    %177 = vector.broadcast %cst_149 : f32 to vector<16x4xf32>
    %178 = arith.maximumf %173, %177 : vector<16x4xf32>
    %c16_150 = arith.constant 16 : index
    %c1_151 = arith.constant 1 : index
    %c0_152 = arith.constant 0 : index
    %179 = vector.load %arg16[%c16_150, %c1_151, %c0_152] : memref<18x18x4xf32, #tpu.memory_space<vmem>>, vector<1x16x4xf32>
    %180 = vector.shape_cast %179 : vector<1x16x4xf32> to vector<16x4xf32>
    %181 = vector.shape_cast %178 : vector<16x4xf32> to vector<1x16x4xf32>
    tpu.vector_store %arg16[%c16_150, %c1_151, %c0_152], %181 {strides = array<i32>} : memref<18x18x4xf32, #tpu.memory_space<vmem>>, vector<1x16x4xf32>,
    %c0_153 = arith.constant 0 : index
    %c0_154 = arith.constant 0 : index
    %c0_155 = arith.constant 0 : index
    %182 = vector.load %arg16[%c0_153, %c0_154, %c0_155] : memref<18x18x4xf32, #tpu.memory_space<vmem>>, vector<16x18x4xf32>
    %c1_156 = arith.constant 1 : index
    %c0_157 = arith.constant 0 : index
    %c0_158 = arith.constant 0 : index
    %183 = vector.load %arg16[%c1_156, %c0_157, %c0_158] : memref<18x18x4xf32, #tpu.memory_space<vmem>>, vector<16x18x4xf32>
    %184 = arith.maximumf %182, %183 : vector<16x18x4xf32>
    %c2_159 = arith.constant 2 : index
    %c0_160 = arith.constant 0 : index
    %c0_161 = arith.constant 0 : index
    %185 = vector.load %arg16[%c2_159, %c0_160, %c0_161] : memref<18x18x4xf32, #tpu.memory_space<vmem>>, vector<16x18x4xf32>
    %186 = arith.maximumf %184, %185 : vector<16x18x4xf32>
    %187 = vector.shape_cast %186 : vector<16x18x4xf32> to vector<8x2x18x4xf32>
    %188 = vector.extract_strided_slice %187 {offsets = [0, 0, 0, 0], sizes = [8, 1, 18, 4], strides = [1, 1, 1, 1]} : vector<8x2x18x4xf32> to vector<8x1x18x4xf32>
    %189 = vector.shape_cast %188 : vector<8x1x18x4xf32> to vector<8x18x4xf32>
    %c0_162 = arith.constant 0 : index
    %c0_163 = arith.constant 0 : index
    %c0_164 = arith.constant 0 : index
    %190 = vector.load %arg17[%c0_162, %c0_163, %c0_164] : memref<8x18x4xf32, #tpu.memory_space<vmem>>, vector<8x18x4xf32>
    tpu.vector_store %arg17[%c0_162, %c0_163, %c0_164], %189 {strides = array<i32>} : memref<8x18x4xf32, #tpu.memory_space<vmem>>, vector<8x18x4xf32>,
    %c0_165 = arith.constant 0 : index
    %c0_166 = arith.constant 0 : index
    %c0_167 = arith.constant 0 : index
    %191 = tpu.strided_load %arg17[%c0_165, %c0_166, %c0_167] {strides = array<i32: 1, 2, 1>} : memref<8x18x4xf32, #tpu.memory_space<vmem>>, vector<8x8x4xf32>
    %c0_168 = arith.constant 0 : index
    %c1_169 = arith.constant 1 : index
    %c0_170 = arith.constant 0 : index
    %192 = tpu.strided_load %arg17[%c0_168, %c1_169, %c0_170] {strides = array<i32: 1, 2, 1>} : memref<8x18x4xf32, #tpu.memory_space<vmem>>, vector<8x8x4xf32>
    %193 = arith.maximumf %191, %192 : vector<8x8x4xf32>
    %c0_171 = arith.constant 0 : index
    %c2_172 = arith.constant 2 : index
    %c0_173 = arith.constant 0 : index
    %194 = tpu.strided_load %arg17[%c0_171, %c2_172, %c0_173] {strides = array<i32: 1, 2, 1>} : memref<8x18x4xf32, #tpu.memory_space<vmem>>, vector<8x8x4xf32>
    %195 = arith.maximumf %193, %194 : vector<8x8x4xf32>
    %196 = vector.extract_strided_slice %195 {offsets = [0, 0, 0], sizes = [1, 8, 4], strides = [1, 1, 1]} : vector<8x8x4xf32> to vector<1x8x4xf32>
    %197 = vector.shape_cast %196 : vector<1x8x4xf32> to vector<8x4xf32>
    %c11_174 = arith.constant 11 : index
    %c0_175 = arith.constant 0 : index
    %198 = vector.load %arg18[%c11_174, %c0_175] : memref<108x4xf32, #tpu.memory_space<vmem>>, vector<8x4xf32>
    tpu.vector_store %arg18[%c11_174, %c0_175], %197 {strides = array<i32>} : memref<108x4xf32, #tpu.memory_space<vmem>>, vector<8x4xf32>,
    %199 = vector.extract_strided_slice %195 {offsets = [1, 0, 0], sizes = [1, 8, 4], strides = [1, 1, 1]} : vector<8x8x4xf32> to vector<1x8x4xf32>
    %200 = vector.shape_cast %199 : vector<1x8x4xf32> to vector<8x4xf32>
    %c21_176 = arith.constant 21 : index
    %c0_177 = arith.constant 0 : index
    %201 = vector.load %arg18[%c21_176, %c0_177] : memref<108x4xf32, #tpu.memory_space<vmem>>, vector<8x4xf32>
    tpu.vector_store %arg18[%c21_176, %c0_177], %200 {strides = array<i32>} : memref<108x4xf32, #tpu.memory_space<vmem>>, vector<8x4xf32>,
    %202 = vector.extract_strided_slice %195 {offsets = [2, 0, 0], sizes = [1, 8, 4], strides = [1, 1, 1]} : vector<8x8x4xf32> to vector<1x8x4xf32>
    %203 = vector.shape_cast %202 : vector<1x8x4xf32> to vector<8x4xf32>
    %c31 = arith.constant 31 : index
    %c0_178 = arith.constant 0 : index
    %204 = vector.load %arg18[%c31, %c0_178] : memref<108x4xf32, #tpu.memory_space<vmem>>, vector<8x4xf32>
    tpu.vector_store %arg18[%c31, %c0_178], %203 {strides = array<i32>} : memref<108x4xf32, #tpu.memory_space<vmem>>, vector<8x4xf32>,
    %205 = vector.extract_strided_slice %195 {offsets = [3, 0, 0], sizes = [1, 8, 4], strides = [1, 1, 1]} : vector<8x8x4xf32> to vector<1x8x4xf32>
    %206 = vector.shape_cast %205 : vector<1x8x4xf32> to vector<8x4xf32>
    %c41 = arith.constant 41 : index
    %c0_179 = arith.constant 0 : index
    %207 = vector.load %arg18[%c41, %c0_179] : memref<108x4xf32, #tpu.memory_space<vmem>>, vector<8x4xf32>
    tpu.vector_store %arg18[%c41, %c0_179], %206 {strides = array<i32>} : memref<108x4xf32, #tpu.memory_space<vmem>>, vector<8x4xf32>,
    %208 = vector.extract_strided_slice %195 {offsets = [4, 0, 0], sizes = [1, 8, 4], strides = [1, 1, 1]} : vector<8x8x4xf32> to vector<1x8x4xf32>
    %209 = vector.shape_cast %208 : vector<1x8x4xf32> to vector<8x4xf32>
    %c51 = arith.constant 51 : index
    %c0_180 = arith.constant 0 : index
    %210 = vector.load %arg18[%c51, %c0_180] : memref<108x4xf32, #tpu.memory_space<vmem>>, vector<8x4xf32>
    tpu.vector_store %arg18[%c51, %c0_180], %209 {strides = array<i32>} : memref<108x4xf32, #tpu.memory_space<vmem>>, vector<8x4xf32>,
    %211 = vector.extract_strided_slice %195 {offsets = [5, 0, 0], sizes = [1, 8, 4], strides = [1, 1, 1]} : vector<8x8x4xf32> to vector<1x8x4xf32>
    %212 = vector.shape_cast %211 : vector<1x8x4xf32> to vector<8x4xf32>
    %c61 = arith.constant 61 : index
    %c0_181 = arith.constant 0 : index
    %213 = vector.load %arg18[%c61, %c0_181] : memref<108x4xf32, #tpu.memory_space<vmem>>, vector<8x4xf32>
    tpu.vector_store %arg18[%c61, %c0_181], %212 {strides = array<i32>} : memref<108x4xf32, #tpu.memory_space<vmem>>, vector<8x4xf32>,
    %214 = vector.extract_strided_slice %195 {offsets = [6, 0, 0], sizes = [1, 8, 4], strides = [1, 1, 1]} : vector<8x8x4xf32> to vector<1x8x4xf32>
    %215 = vector.shape_cast %214 : vector<1x8x4xf32> to vector<8x4xf32>
    %c71 = arith.constant 71 : index
    %c0_182 = arith.constant 0 : index
    %216 = vector.load %arg18[%c71, %c0_182] : memref<108x4xf32, #tpu.memory_space<vmem>>, vector<8x4xf32>
    tpu.vector_store %arg18[%c71, %c0_182], %215 {strides = array<i32>} : memref<108x4xf32, #tpu.memory_space<vmem>>, vector<8x4xf32>,
    %217 = vector.extract_strided_slice %195 {offsets = [7, 0, 0], sizes = [1, 8, 4], strides = [1, 1, 1]} : vector<8x8x4xf32> to vector<1x8x4xf32>
    %218 = vector.shape_cast %217 : vector<1x8x4xf32> to vector<8x4xf32>
    %c81 = arith.constant 81 : index
    %c0_183 = arith.constant 0 : index
    %219 = vector.load %arg18[%c81, %c0_183] : memref<108x4xf32, #tpu.memory_space<vmem>>, vector<8x4xf32>
    tpu.vector_store %arg18[%c81, %c0_183], %218 {strides = array<i32>} : memref<108x4xf32, #tpu.memory_space<vmem>>, vector<8x4xf32>,
    %c0_184 = arith.constant 0 : index
    %c0_185 = arith.constant 0 : index
    %220 = vector.load %arg18[%c0_184, %c0_185] : memref<108x4xf32, #tpu.memory_space<vmem>>, vector<80x4xf32>
    %c0_186 = arith.constant 0 : index
    %c0_187 = arith.constant 0 : index
    %221 = vector.load %arg19[%c0_186, %c0_187] : memref<80x36xf32, #tpu.memory_space<vmem>>, vector<80x4xf32>
    tpu.vector_store %arg19[%c0_186, %c0_187], %220 {strides = array<i32>} : memref<80x36xf32, #tpu.memory_space<vmem>>, vector<80x4xf32>,
    %c1_188 = arith.constant 1 : index
    %c0_189 = arith.constant 0 : index
    %222 = vector.load %arg18[%c1_188, %c0_189] : memref<108x4xf32, #tpu.memory_space<vmem>>, vector<80x4xf32>
    %c0_190 = arith.constant 0 : index
    %c4_191 = arith.constant 4 : index
    %223 = vector.load %arg19[%c0_190, %c4_191] : memref<80x36xf32, #tpu.memory_space<vmem>>, vector<80x4xf32>
    tpu.vector_store %arg19[%c0_190, %c4_191], %222 {strides = array<i32>} : memref<80x36xf32, #tpu.memory_space<vmem>>, vector<80x4xf32>,
    %c2_192 = arith.constant 2 : index
    %c0_193 = arith.constant 0 : index
    %224 = vector.load %arg18[%c2_192, %c0_193] : memref<108x4xf32, #tpu.memory_space<vmem>>, vector<80x4xf32>
    %c0_194 = arith.constant 0 : index
    %c8_195 = arith.constant 8 : index
    %225 = vector.load %arg19[%c0_194, %c8_195] : memref<80x36xf32, #tpu.memory_space<vmem>>, vector<80x4xf32>
    tpu.vector_store %arg19[%c0_194, %c8_195], %224 {strides = array<i32>} : memref<80x36xf32, #tpu.memory_space<vmem>>, vector<80x4xf32>,
    %c10_196 = arith.constant 10 : index
    %c0_197 = arith.constant 0 : index
    %226 = vector.load %arg18[%c10_196, %c0_197] : memref<108x4xf32, #tpu.memory_space<vmem>>, vector<80x4xf32>
    %c0_198 = arith.constant 0 : index
    %c12_199 = arith.constant 12 : index
    %227 = vector.load %arg19[%c0_198, %c12_199] : memref<80x36xf32, #tpu.memory_space<vmem>>, vector<80x4xf32>
    tpu.vector_store %arg19[%c0_198, %c12_199], %226 {strides = array<i32>} : memref<80x36xf32, #tpu.memory_space<vmem>>, vector<80x4xf32>,
    %c11_200 = arith.constant 11 : index
    %c0_201 = arith.constant 0 : index
    %228 = vector.load %arg18[%c11_200, %c0_201] : memref<108x4xf32, #tpu.memory_space<vmem>>, vector<80x4xf32>
    %c0_202 = arith.constant 0 : index
    %c16_203 = arith.constant 16 : index
    %229 = vector.load %arg19[%c0_202, %c16_203] : memref<80x36xf32, #tpu.memory_space<vmem>>, vector<80x4xf32>
    tpu.vector_store %arg19[%c0_202, %c16_203], %228 {strides = array<i32>} : memref<80x36xf32, #tpu.memory_space<vmem>>, vector<80x4xf32>,
    %c12_204 = arith.constant 12 : index
    %c0_205 = arith.constant 0 : index
    %230 = vector.load %arg18[%c12_204, %c0_205] : memref<108x4xf32, #tpu.memory_space<vmem>>, vector<80x4xf32>
    %c0_206 = arith.constant 0 : index
    %c20_207 = arith.constant 20 : index
    %231 = vector.load %arg19[%c0_206, %c20_207] : memref<80x36xf32, #tpu.memory_space<vmem>>, vector<80x4xf32>
    tpu.vector_store %arg19[%c0_206, %c20_207], %230 {strides = array<i32>} : memref<80x36xf32, #tpu.memory_space<vmem>>, vector<80x4xf32>,
    %c20_208 = arith.constant 20 : index
    %c0_209 = arith.constant 0 : index
    %232 = vector.load %arg18[%c20_208, %c0_209] : memref<108x4xf32, #tpu.memory_space<vmem>>, vector<80x4xf32>
    %c0_210 = arith.constant 0 : index
    %c24_211 = arith.constant 24 : index
    %233 = vector.load %arg19[%c0_210, %c24_211] : memref<80x36xf32, #tpu.memory_space<vmem>>, vector<80x4xf32>
    tpu.vector_store %arg19[%c0_210, %c24_211], %232 {strides = array<i32>} : memref<80x36xf32, #tpu.memory_space<vmem>>, vector<80x4xf32>,
    %c21_212 = arith.constant 21 : index
    %c0_213 = arith.constant 0 : index
    %234 = vector.load %arg18[%c21_212, %c0_213] : memref<108x4xf32, #tpu.memory_space<vmem>>, vector<80x4xf32>
    %c0_214 = arith.constant 0 : index
    %c28 = arith.constant 28 : index
    %235 = vector.load %arg19[%c0_214, %c28] : memref<80x36xf32, #tpu.memory_space<vmem>>, vector<80x4xf32>
    tpu.vector_store %arg19[%c0_214, %c28], %234 {strides = array<i32>} : memref<80x36xf32, #tpu.memory_space<vmem>>, vector<80x4xf32>,
    %c22 = arith.constant 22 : index
    %c0_215 = arith.constant 0 : index
    %236 = vector.load %arg18[%c22, %c0_215] : memref<108x4xf32, #tpu.memory_space<vmem>>, vector<80x4xf32>
    %c0_216 = arith.constant 0 : index
    %c32_217 = arith.constant 32 : index
    %237 = vector.load %arg19[%c0_216, %c32_217] : memref<80x36xf32, #tpu.memory_space<vmem>>, vector<80x4xf32>
    tpu.vector_store %arg19[%c0_216, %c32_217], %236 {strides = array<i32>} : memref<80x36xf32, #tpu.memory_space<vmem>>, vector<80x4xf32>,
    %c0_218 = arith.constant 0 : index
    %c0_219 = arith.constant 0 : index
    %238 = vector.load %arg19[%c0_218, %c0_219] : memref<80x36xf32, #tpu.memory_space<vmem>>, vector<80x36xf32>
    %c0_220 = arith.constant 0 : index
    %c0_221 = arith.constant 0 : index
    %239 = vector.load %arg4[%c0_220, %c0_221] : memref<36x8xf32, #tpu.memory_space<vmem>>, vector<36x8xf32>
    %cst_222 = arith.constant dense<0.000000e+00> : vector<80x8xf32>
    %240 = tpu.matmul %238, %239, %cst_222 {dimension_numbers = #tpu.dot_dimension_numbers<[1], [0], [0], [1], [0, 0, 1, 1], [], []>} : vector<80x36xf32>, vector<36x8xf32>, vector<80x8xf32> -> vector<80x8xf32>
    %c0_223 = arith.constant 0 : index
    %c0_224 = arith.constant 0 : index
    %241 = vector.load %arg5[%c0_223, %c0_224] : memref<1x8xf32, #tpu.memory_space<vmem>>, vector<1x8xf32>
    %242 = vector.broadcast %241 : vector<1x8xf32> to vector<80x8xf32>
    %243 = arith.addf %240, %242 : vector<80x8xf32>
    %c0_225 = arith.constant 0 : index
    %c0_226 = arith.constant 0 : index
    %244 = vector.load %arg20[%c0_225, %c0_226] : memref<80x8xf32, #tpu.memory_space<vmem>>, vector<80x8xf32>
    tpu.vector_store %arg20[%c0_225, %c0_226], %243 {strides = array<i32>} : memref<80x8xf32, #tpu.memory_space<vmem>>, vector<80x8xf32>,
    %cst_227 = arith.constant 0.000000e+00 : f32
    %245 = vector.broadcast %cst_227 : f32 to vector<10x10x8xf32>
    %c0_228 = arith.constant 0 : index
    %c0_229 = arith.constant 0 : index
    %c0_230 = arith.constant 0 : index
    %246 = vector.load %arg21[%c0_228, %c0_229, %c0_230] : memref<10x10x8xf32, #tpu.memory_space<vmem>>, vector<10x10x8xf32>
    tpu.vector_store %arg21[%c0_228, %c0_229, %c0_230], %245 {strides = array<i32>} : memref<10x10x8xf32, #tpu.memory_space<vmem>>, vector<10x10x8xf32>,
    %cst_231 = arith.constant 0.000000e+00 : f32
    %247 = vector.broadcast %cst_231 : f32 to vector<44x8xf32>
    %c0_232 = arith.constant 0 : index
    %c0_233 = arith.constant 0 : index
    %248 = vector.load %arg23[%c0_232, %c0_233] : memref<44x8xf32, #tpu.memory_space<vmem>>, vector<44x8xf32>
    tpu.vector_store %arg23[%c0_232, %c0_233], %247 {strides = array<i32>} : memref<44x8xf32, #tpu.memory_space<vmem>>, vector<44x8xf32>,
    %c0_234 = arith.constant 0 : index
    %c0_235 = arith.constant 0 : index
    %249 = vector.load %arg20[%c0_234, %c0_235] : memref<80x8xf32, #tpu.memory_space<vmem>>, vector<8x8xf32>
    %c0_236 = arith.constant 0 : index
    %c0_237 = arith.constant 0 : index
    %c0_238 = arith.constant 0 : index
    %250 = vector.load %arg11[%c0_236, %c0_237, %c0_238] : memref<1x64x8xf32, #tpu.memory_space<vmem>>, vector<1x8x8xf32>
    %251 = vector.shape_cast %250 : vector<1x8x8xf32> to vector<8x8xf32>
    %252 = vector.shape_cast %249 : vector<8x8xf32> to vector<1x8x8xf32>
    tpu.vector_store %arg11[%c0_236, %c0_237, %c0_238], %252 {strides = array<i32>} : memref<1x64x8xf32, #tpu.memory_space<vmem>>, vector<1x8x8xf32>,
    %cst_239 = arith.constant 0.000000e+00 : f32
    %253 = vector.broadcast %cst_239 : f32 to vector<8x8xf32>
    %254 = arith.maximumf %249, %253 : vector<8x8xf32>
    %c1_240 = arith.constant 1 : index
    %c1_241 = arith.constant 1 : index
    %c0_242 = arith.constant 0 : index
    %255 = vector.load %arg21[%c1_240, %c1_241, %c0_242] : memref<10x10x8xf32, #tpu.memory_space<vmem>>, vector<1x8x8xf32>
    %256 = vector.shape_cast %255 : vector<1x8x8xf32> to vector<8x8xf32>
    %257 = vector.shape_cast %254 : vector<8x8xf32> to vector<1x8x8xf32>
    tpu.vector_store %arg21[%c1_240, %c1_241, %c0_242], %257 {strides = array<i32>} : memref<10x10x8xf32, #tpu.memory_space<vmem>>, vector<1x8x8xf32>,
    %c10_243 = arith.constant 10 : index
    %c0_244 = arith.constant 0 : index
    %258 = vector.load %arg20[%c10_243, %c0_244] : memref<80x8xf32, #tpu.memory_space<vmem>>, vector<8x8xf32>
    %c0_245 = arith.constant 0 : index
    %c8_246 = arith.constant 8 : index
    %c0_247 = arith.constant 0 : index
    %259 = vector.load %arg11[%c0_245, %c8_246, %c0_247] : memref<1x64x8xf32, #tpu.memory_space<vmem>>, vector<1x8x8xf32>
    %260 = vector.shape_cast %259 : vector<1x8x8xf32> to vector<8x8xf32>
    %261 = vector.shape_cast %258 : vector<8x8xf32> to vector<1x8x8xf32>
    tpu.vector_store %arg11[%c0_245, %c8_246, %c0_247], %261 {strides = array<i32>} : memref<1x64x8xf32, #tpu.memory_space<vmem>>, vector<1x8x8xf32>,
    %cst_248 = arith.constant 0.000000e+00 : f32
    %262 = vector.broadcast %cst_248 : f32 to vector<8x8xf32>
    %263 = arith.maximumf %258, %262 : vector<8x8xf32>
    %c2_249 = arith.constant 2 : index
    %c1_250 = arith.constant 1 : index
    %c0_251 = arith.constant 0 : index
    %264 = vector.load %arg21[%c2_249, %c1_250, %c0_251] : memref<10x10x8xf32, #tpu.memory_space<vmem>>, vector<1x8x8xf32>
    %265 = vector.shape_cast %264 : vector<1x8x8xf32> to vector<8x8xf32>
    %266 = vector.shape_cast %263 : vector<8x8xf32> to vector<1x8x8xf32>
    tpu.vector_store %arg21[%c2_249, %c1_250, %c0_251], %266 {strides = array<i32>} : memref<10x10x8xf32, #tpu.memory_space<vmem>>, vector<1x8x8xf32>,
    %c20_252 = arith.constant 20 : index
    %c0_253 = arith.constant 0 : index
    %267 = vector.load %arg20[%c20_252, %c0_253] : memref<80x8xf32, #tpu.memory_space<vmem>>, vector<8x8xf32>
    %c0_254 = arith.constant 0 : index
    %c16_255 = arith.constant 16 : index
    %c0_256 = arith.constant 0 : index
    %268 = vector.load %arg11[%c0_254, %c16_255, %c0_256] : memref<1x64x8xf32, #tpu.memory_space<vmem>>, vector<1x8x8xf32>
    %269 = vector.shape_cast %268 : vector<1x8x8xf32> to vector<8x8xf32>
    %270 = vector.shape_cast %267 : vector<8x8xf32> to vector<1x8x8xf32>
    tpu.vector_store %arg11[%c0_254, %c16_255, %c0_256], %270 {strides = array<i32>} : memref<1x64x8xf32, #tpu.memory_space<vmem>>, vector<1x8x8xf32>,
    %cst_257 = arith.constant 0.000000e+00 : f32
    %271 = vector.broadcast %cst_257 : f32 to vector<8x8xf32>
    %272 = arith.maximumf %267, %271 : vector<8x8xf32>
    %c3_258 = arith.constant 3 : index
    %c1_259 = arith.constant 1 : index
    %c0_260 = arith.constant 0 : index
    %273 = vector.load %arg21[%c3_258, %c1_259, %c0_260] : memref<10x10x8xf32, #tpu.memory_space<vmem>>, vector<1x8x8xf32>
    %274 = vector.shape_cast %273 : vector<1x8x8xf32> to vector<8x8xf32>
    %275 = vector.shape_cast %272 : vector<8x8xf32> to vector<1x8x8xf32>
    tpu.vector_store %arg21[%c3_258, %c1_259, %c0_260], %275 {strides = array<i32>} : memref<10x10x8xf32, #tpu.memory_space<vmem>>, vector<1x8x8xf32>,
    %c30 = arith.constant 30 : index
    %c0_261 = arith.constant 0 : index
    %276 = vector.load %arg20[%c30, %c0_261] : memref<80x8xf32, #tpu.memory_space<vmem>>, vector<8x8xf32>
    %c0_262 = arith.constant 0 : index
    %c24_263 = arith.constant 24 : index
    %c0_264 = arith.constant 0 : index
    %277 = vector.load %arg11[%c0_262, %c24_263, %c0_264] : memref<1x64x8xf32, #tpu.memory_space<vmem>>, vector<1x8x8xf32>
    %278 = vector.shape_cast %277 : vector<1x8x8xf32> to vector<8x8xf32>
    %279 = vector.shape_cast %276 : vector<8x8xf32> to vector<1x8x8xf32>
    tpu.vector_store %arg11[%c0_262, %c24_263, %c0_264], %279 {strides = array<i32>} : memref<1x64x8xf32, #tpu.memory_space<vmem>>, vector<1x8x8xf32>,
    %cst_265 = arith.constant 0.000000e+00 : f32
    %280 = vector.broadcast %cst_265 : f32 to vector<8x8xf32>
    %281 = arith.maximumf %276, %280 : vector<8x8xf32>
    %c4_266 = arith.constant 4 : index
    %c1_267 = arith.constant 1 : index
    %c0_268 = arith.constant 0 : index
    %282 = vector.load %arg21[%c4_266, %c1_267, %c0_268] : memref<10x10x8xf32, #tpu.memory_space<vmem>>, vector<1x8x8xf32>
    %283 = vector.shape_cast %282 : vector<1x8x8xf32> to vector<8x8xf32>
    %284 = vector.shape_cast %281 : vector<8x8xf32> to vector<1x8x8xf32>
    tpu.vector_store %arg21[%c4_266, %c1_267, %c0_268], %284 {strides = array<i32>} : memref<10x10x8xf32, #tpu.memory_space<vmem>>, vector<1x8x8xf32>,
    %c40 = arith.constant 40 : index
    %c0_269 = arith.constant 0 : index
    %285 = vector.load %arg20[%c40, %c0_269] : memref<80x8xf32, #tpu.memory_space<vmem>>, vector<8x8xf32>
    %c0_270 = arith.constant 0 : index
    %c32_271 = arith.constant 32 : index
    %c0_272 = arith.constant 0 : index
    %286 = vector.load %arg11[%c0_270, %c32_271, %c0_272] : memref<1x64x8xf32, #tpu.memory_space<vmem>>, vector<1x8x8xf32>
    %287 = vector.shape_cast %286 : vector<1x8x8xf32> to vector<8x8xf32>
    %288 = vector.shape_cast %285 : vector<8x8xf32> to vector<1x8x8xf32>
    tpu.vector_store %arg11[%c0_270, %c32_271, %c0_272], %288 {strides = array<i32>} : memref<1x64x8xf32, #tpu.memory_space<vmem>>, vector<1x8x8xf32>,
    %cst_273 = arith.constant 0.000000e+00 : f32
    %289 = vector.broadcast %cst_273 : f32 to vector<8x8xf32>
    %290 = arith.maximumf %285, %289 : vector<8x8xf32>
    %c5_274 = arith.constant 5 : index
    %c1_275 = arith.constant 1 : index
    %c0_276 = arith.constant 0 : index
    %291 = vector.load %arg21[%c5_274, %c1_275, %c0_276] : memref<10x10x8xf32, #tpu.memory_space<vmem>>, vector<1x8x8xf32>
    %292 = vector.shape_cast %291 : vector<1x8x8xf32> to vector<8x8xf32>
    %293 = vector.shape_cast %290 : vector<8x8xf32> to vector<1x8x8xf32>
    tpu.vector_store %arg21[%c5_274, %c1_275, %c0_276], %293 {strides = array<i32>} : memref<10x10x8xf32, #tpu.memory_space<vmem>>, vector<1x8x8xf32>,
    %c50 = arith.constant 50 : index
    %c0_277 = arith.constant 0 : index
    %294 = vector.load %arg20[%c50, %c0_277] : memref<80x8xf32, #tpu.memory_space<vmem>>, vector<8x8xf32>
    %c0_278 = arith.constant 0 : index
    %c40_279 = arith.constant 40 : index
    %c0_280 = arith.constant 0 : index
    %295 = vector.load %arg11[%c0_278, %c40_279, %c0_280] : memref<1x64x8xf32, #tpu.memory_space<vmem>>, vector<1x8x8xf32>
    %296 = vector.shape_cast %295 : vector<1x8x8xf32> to vector<8x8xf32>
    %297 = vector.shape_cast %294 : vector<8x8xf32> to vector<1x8x8xf32>
    tpu.vector_store %arg11[%c0_278, %c40_279, %c0_280], %297 {strides = array<i32>} : memref<1x64x8xf32, #tpu.memory_space<vmem>>, vector<1x8x8xf32>,
    %cst_281 = arith.constant 0.000000e+00 : f32
    %298 = vector.broadcast %cst_281 : f32 to vector<8x8xf32>
    %299 = arith.maximumf %294, %298 : vector<8x8xf32>
    %c6_282 = arith.constant 6 : index
    %c1_283 = arith.constant 1 : index
    %c0_284 = arith.constant 0 : index
    %300 = vector.load %arg21[%c6_282, %c1_283, %c0_284] : memref<10x10x8xf32, #tpu.memory_space<vmem>>, vector<1x8x8xf32>
    %301 = vector.shape_cast %300 : vector<1x8x8xf32> to vector<8x8xf32>
    %302 = vector.shape_cast %299 : vector<8x8xf32> to vector<1x8x8xf32>
    tpu.vector_store %arg21[%c6_282, %c1_283, %c0_284], %302 {strides = array<i32>} : memref<10x10x8xf32, #tpu.memory_space<vmem>>, vector<1x8x8xf32>,
    %c60 = arith.constant 60 : index
    %c0_285 = arith.constant 0 : index
    %303 = vector.load %arg20[%c60, %c0_285] : memref<80x8xf32, #tpu.memory_space<vmem>>, vector<8x8xf32>
    %c0_286 = arith.constant 0 : index
    %c48_287 = arith.constant 48 : index
    %c0_288 = arith.constant 0 : index
    %304 = vector.load %arg11[%c0_286, %c48_287, %c0_288] : memref<1x64x8xf32, #tpu.memory_space<vmem>>, vector<1x8x8xf32>
    %305 = vector.shape_cast %304 : vector<1x8x8xf32> to vector<8x8xf32>
    %306 = vector.shape_cast %303 : vector<8x8xf32> to vector<1x8x8xf32>
    tpu.vector_store %arg11[%c0_286, %c48_287, %c0_288], %306 {strides = array<i32>} : memref<1x64x8xf32, #tpu.memory_space<vmem>>, vector<1x8x8xf32>,
    %cst_289 = arith.constant 0.000000e+00 : f32
    %307 = vector.broadcast %cst_289 : f32 to vector<8x8xf32>
    %308 = arith.maximumf %303, %307 : vector<8x8xf32>
    %c7_290 = arith.constant 7 : index
    %c1_291 = arith.constant 1 : index
    %c0_292 = arith.constant 0 : index
    %309 = vector.load %arg21[%c7_290, %c1_291, %c0_292] : memref<10x10x8xf32, #tpu.memory_space<vmem>>, vector<1x8x8xf32>
    %310 = vector.shape_cast %309 : vector<1x8x8xf32> to vector<8x8xf32>
    %311 = vector.shape_cast %308 : vector<8x8xf32> to vector<1x8x8xf32>
    tpu.vector_store %arg21[%c7_290, %c1_291, %c0_292], %311 {strides = array<i32>} : memref<10x10x8xf32, #tpu.memory_space<vmem>>, vector<1x8x8xf32>,
    %c70 = arith.constant 70 : index
    %c0_293 = arith.constant 0 : index
    %312 = vector.load %arg20[%c70, %c0_293] : memref<80x8xf32, #tpu.memory_space<vmem>>, vector<8x8xf32>
    %c0_294 = arith.constant 0 : index
    %c56 = arith.constant 56 : index
    %c0_295 = arith.constant 0 : index
    %313 = vector.load %arg11[%c0_294, %c56, %c0_295] : memref<1x64x8xf32, #tpu.memory_space<vmem>>, vector<1x8x8xf32>
    %314 = vector.shape_cast %313 : vector<1x8x8xf32> to vector<8x8xf32>
    %315 = vector.shape_cast %312 : vector<8x8xf32> to vector<1x8x8xf32>
    tpu.vector_store %arg11[%c0_294, %c56, %c0_295], %315 {strides = array<i32>} : memref<1x64x8xf32, #tpu.memory_space<vmem>>, vector<1x8x8xf32>,
    %cst_296 = arith.constant 0.000000e+00 : f32
    %316 = vector.broadcast %cst_296 : f32 to vector<8x8xf32>
    %317 = arith.maximumf %312, %316 : vector<8x8xf32>
    %c8_297 = arith.constant 8 : index
    %c1_298 = arith.constant 1 : index
    %c0_299 = arith.constant 0 : index
    %318 = vector.load %arg21[%c8_297, %c1_298, %c0_299] : memref<10x10x8xf32, #tpu.memory_space<vmem>>, vector<1x8x8xf32>
    %319 = vector.shape_cast %318 : vector<1x8x8xf32> to vector<8x8xf32>
    %320 = vector.shape_cast %317 : vector<8x8xf32> to vector<1x8x8xf32>
    tpu.vector_store %arg21[%c8_297, %c1_298, %c0_299], %320 {strides = array<i32>} : memref<10x10x8xf32, #tpu.memory_space<vmem>>, vector<1x8x8xf32>,
    %c0_300 = arith.constant 0 : index
    %c0_301 = arith.constant 0 : index
    %c0_302 = arith.constant 0 : index
    %321 = vector.load %arg21[%c0_300, %c0_301, %c0_302] : memref<10x10x8xf32, #tpu.memory_space<vmem>>, vector<8x10x8xf32>
    %c1_303 = arith.constant 1 : index
    %c0_304 = arith.constant 0 : index
    %c0_305 = arith.constant 0 : index
    %322 = vector.load %arg21[%c1_303, %c0_304, %c0_305] : memref<10x10x8xf32, #tpu.memory_space<vmem>>, vector<8x10x8xf32>
    %323 = arith.maximumf %321, %322 : vector<8x10x8xf32>
    %c2_306 = arith.constant 2 : index
    %c0_307 = arith.constant 0 : index
    %c0_308 = arith.constant 0 : index
    %324 = vector.load %arg21[%c2_306, %c0_307, %c0_308] : memref<10x10x8xf32, #tpu.memory_space<vmem>>, vector<8x10x8xf32>
    %325 = arith.maximumf %323, %324 : vector<8x10x8xf32>
    %326 = vector.shape_cast %325 : vector<8x10x8xf32> to vector<4x2x10x8xf32>
    %327 = vector.extract_strided_slice %326 {offsets = [0, 0, 0, 0], sizes = [4, 1, 10, 8], strides = [1, 1, 1, 1]} : vector<4x2x10x8xf32> to vector<4x1x10x8xf32>
    %328 = vector.shape_cast %327 : vector<4x1x10x8xf32> to vector<4x10x8xf32>
    %c0_309 = arith.constant 0 : index
    %c0_310 = arith.constant 0 : index
    %c0_311 = arith.constant 0 : index
    %329 = vector.load %arg22[%c0_309, %c0_310, %c0_311] : memref<4x10x8xf32, #tpu.memory_space<vmem>>, vector<4x10x8xf32>
    tpu.vector_store %arg22[%c0_309, %c0_310, %c0_311], %328 {strides = array<i32>} : memref<4x10x8xf32, #tpu.memory_space<vmem>>, vector<4x10x8xf32>,
    %c0_312 = arith.constant 0 : index
    %c0_313 = arith.constant 0 : index
    %c0_314 = arith.constant 0 : index
    %330 = tpu.strided_load %arg22[%c0_312, %c0_313, %c0_314] {strides = array<i32: 1, 2, 1>} : memref<4x10x8xf32, #tpu.memory_space<vmem>>, vector<4x4x8xf32>
    %c0_315 = arith.constant 0 : index
    %c1_316 = arith.constant 1 : index
    %c0_317 = arith.constant 0 : index
    %331 = tpu.strided_load %arg22[%c0_315, %c1_316, %c0_317] {strides = array<i32: 1, 2, 1>} : memref<4x10x8xf32, #tpu.memory_space<vmem>>, vector<4x4x8xf32>
    %332 = arith.maximumf %330, %331 : vector<4x4x8xf32>
    %c0_318 = arith.constant 0 : index
    %c2_319 = arith.constant 2 : index
    %c0_320 = arith.constant 0 : index
    %333 = tpu.strided_load %arg22[%c0_318, %c2_319, %c0_320] {strides = array<i32: 1, 2, 1>} : memref<4x10x8xf32, #tpu.memory_space<vmem>>, vector<4x4x8xf32>
    %334 = arith.maximumf %332, %333 : vector<4x4x8xf32>
    %335 = vector.extract_strided_slice %334 {offsets = [0, 0, 0], sizes = [1, 4, 8], strides = [1, 1, 1]} : vector<4x4x8xf32> to vector<1x4x8xf32>
    %336 = vector.shape_cast %335 : vector<1x4x8xf32> to vector<4x8xf32>
    %c7_321 = arith.constant 7 : index
    %c0_322 = arith.constant 0 : index
    %337 = vector.load %arg23[%c7_321, %c0_322] : memref<44x8xf32, #tpu.memory_space<vmem>>, vector<4x8xf32>
    tpu.vector_store %arg23[%c7_321, %c0_322], %336 {strides = array<i32>} : memref<44x8xf32, #tpu.memory_space<vmem>>, vector<4x8xf32>,
    %338 = vector.extract_strided_slice %334 {offsets = [1, 0, 0], sizes = [1, 4, 8], strides = [1, 1, 1]} : vector<4x4x8xf32> to vector<1x4x8xf32>
    %339 = vector.shape_cast %338 : vector<1x4x8xf32> to vector<4x8xf32>
    %c13_323 = arith.constant 13 : index
    %c0_324 = arith.constant 0 : index
    %340 = vector.load %arg23[%c13_323, %c0_324] : memref<44x8xf32, #tpu.memory_space<vmem>>, vector<4x8xf32>
    tpu.vector_store %arg23[%c13_323, %c0_324], %339 {strides = array<i32>} : memref<44x8xf32, #tpu.memory_space<vmem>>, vector<4x8xf32>,
    %341 = vector.extract_strided_slice %334 {offsets = [2, 0, 0], sizes = [1, 4, 8], strides = [1, 1, 1]} : vector<4x4x8xf32> to vector<1x4x8xf32>
    %342 = vector.shape_cast %341 : vector<1x4x8xf32> to vector<4x8xf32>
    %c19_325 = arith.constant 19 : index
    %c0_326 = arith.constant 0 : index
    %343 = vector.load %arg23[%c19_325, %c0_326] : memref<44x8xf32, #tpu.memory_space<vmem>>, vector<4x8xf32>
    tpu.vector_store %arg23[%c19_325, %c0_326], %342 {strides = array<i32>} : memref<44x8xf32, #tpu.memory_space<vmem>>, vector<4x8xf32>,
    %344 = vector.extract_strided_slice %334 {offsets = [3, 0, 0], sizes = [1, 4, 8], strides = [1, 1, 1]} : vector<4x4x8xf32> to vector<1x4x8xf32>
    %345 = vector.shape_cast %344 : vector<1x4x8xf32> to vector<4x8xf32>
    %c25 = arith.constant 25 : index
    %c0_327 = arith.constant 0 : index
    %346 = vector.load %arg23[%c25, %c0_327] : memref<44x8xf32, #tpu.memory_space<vmem>>, vector<4x8xf32>
    tpu.vector_store %arg23[%c25, %c0_327], %345 {strides = array<i32>} : memref<44x8xf32, #tpu.memory_space<vmem>>, vector<4x8xf32>,
    %c0_328 = arith.constant 0 : index
    %c0_329 = arith.constant 0 : index
    %347 = vector.load %arg23[%c0_328, %c0_329] : memref<44x8xf32, #tpu.memory_space<vmem>>, vector<24x8xf32>
    %c0_330 = arith.constant 0 : index
    %c0_331 = arith.constant 0 : index
    %348 = vector.load %arg24[%c0_330, %c0_331] : memref<24x72xf32, #tpu.memory_space<vmem>>, vector<24x8xf32>
    tpu.vector_store %arg24[%c0_330, %c0_331], %347 {strides = array<i32>} : memref<24x72xf32, #tpu.memory_space<vmem>>, vector<24x8xf32>,
    %c1_332 = arith.constant 1 : index
    %c0_333 = arith.constant 0 : index
    %349 = vector.load %arg23[%c1_332, %c0_333] : memref<44x8xf32, #tpu.memory_space<vmem>>, vector<24x8xf32>
    %c0_334 = arith.constant 0 : index
    %c8_335 = arith.constant 8 : index
    %350 = vector.load %arg24[%c0_334, %c8_335] : memref<24x72xf32, #tpu.memory_space<vmem>>, vector<24x8xf32>
    tpu.vector_store %arg24[%c0_334, %c8_335], %349 {strides = array<i32>} : memref<24x72xf32, #tpu.memory_space<vmem>>, vector<24x8xf32>,
    %c2_336 = arith.constant 2 : index
    %c0_337 = arith.constant 0 : index
    %351 = vector.load %arg23[%c2_336, %c0_337] : memref<44x8xf32, #tpu.memory_space<vmem>>, vector<24x8xf32>
    %c0_338 = arith.constant 0 : index
    %c16_339 = arith.constant 16 : index
    %352 = vector.load %arg24[%c0_338, %c16_339] : memref<24x72xf32, #tpu.memory_space<vmem>>, vector<24x8xf32>
    tpu.vector_store %arg24[%c0_338, %c16_339], %351 {strides = array<i32>} : memref<24x72xf32, #tpu.memory_space<vmem>>, vector<24x8xf32>,
    %c6_340 = arith.constant 6 : index
    %c0_341 = arith.constant 0 : index
    %353 = vector.load %arg23[%c6_340, %c0_341] : memref<44x8xf32, #tpu.memory_space<vmem>>, vector<24x8xf32>
    %c0_342 = arith.constant 0 : index
    %c24_343 = arith.constant 24 : index
    %354 = vector.load %arg24[%c0_342, %c24_343] : memref<24x72xf32, #tpu.memory_space<vmem>>, vector<24x8xf32>
    tpu.vector_store %arg24[%c0_342, %c24_343], %353 {strides = array<i32>} : memref<24x72xf32, #tpu.memory_space<vmem>>, vector<24x8xf32>,
    %c7_344 = arith.constant 7 : index
    %c0_345 = arith.constant 0 : index
    %355 = vector.load %arg23[%c7_344, %c0_345] : memref<44x8xf32, #tpu.memory_space<vmem>>, vector<24x8xf32>
    %c0_346 = arith.constant 0 : index
    %c32_347 = arith.constant 32 : index
    %356 = vector.load %arg24[%c0_346, %c32_347] : memref<24x72xf32, #tpu.memory_space<vmem>>, vector<24x8xf32>
    tpu.vector_store %arg24[%c0_346, %c32_347], %355 {strides = array<i32>} : memref<24x72xf32, #tpu.memory_space<vmem>>, vector<24x8xf32>,
    %c8_348 = arith.constant 8 : index
    %c0_349 = arith.constant 0 : index
    %357 = vector.load %arg23[%c8_348, %c0_349] : memref<44x8xf32, #tpu.memory_space<vmem>>, vector<24x8xf32>
    %c0_350 = arith.constant 0 : index
    %c40_351 = arith.constant 40 : index
    %358 = vector.load %arg24[%c0_350, %c40_351] : memref<24x72xf32, #tpu.memory_space<vmem>>, vector<24x8xf32>
    tpu.vector_store %arg24[%c0_350, %c40_351], %357 {strides = array<i32>} : memref<24x72xf32, #tpu.memory_space<vmem>>, vector<24x8xf32>,
    %c12_352 = arith.constant 12 : index
    %c0_353 = arith.constant 0 : index
    %359 = vector.load %arg23[%c12_352, %c0_353] : memref<44x8xf32, #tpu.memory_space<vmem>>, vector<24x8xf32>
    %c0_354 = arith.constant 0 : index
    %c48_355 = arith.constant 48 : index
    %360 = vector.load %arg24[%c0_354, %c48_355] : memref<24x72xf32, #tpu.memory_space<vmem>>, vector<24x8xf32>
    tpu.vector_store %arg24[%c0_354, %c48_355], %359 {strides = array<i32>} : memref<24x72xf32, #tpu.memory_space<vmem>>, vector<24x8xf32>,
    %c13_356 = arith.constant 13 : index
    %c0_357 = arith.constant 0 : index
    %361 = vector.load %arg23[%c13_356, %c0_357] : memref<44x8xf32, #tpu.memory_space<vmem>>, vector<24x8xf32>
    %c0_358 = arith.constant 0 : index
    %c56_359 = arith.constant 56 : index
    %362 = vector.load %arg24[%c0_358, %c56_359] : memref<24x72xf32, #tpu.memory_space<vmem>>, vector<24x8xf32>
    tpu.vector_store %arg24[%c0_358, %c56_359], %361 {strides = array<i32>} : memref<24x72xf32, #tpu.memory_space<vmem>>, vector<24x8xf32>,
    %c14_360 = arith.constant 14 : index
    %c0_361 = arith.constant 0 : index
    %363 = vector.load %arg23[%c14_360, %c0_361] : memref<44x8xf32, #tpu.memory_space<vmem>>, vector<24x8xf32>
    %c0_362 = arith.constant 0 : index
    %c64_363 = arith.constant 64 : index
    %364 = vector.load %arg24[%c0_362, %c64_363] : memref<24x72xf32, #tpu.memory_space<vmem>>, vector<24x8xf32>
    tpu.vector_store %arg24[%c0_362, %c64_363], %363 {strides = array<i32>} : memref<24x72xf32, #tpu.memory_space<vmem>>, vector<24x8xf32>,
    %c0_364 = arith.constant 0 : index
    %c0_365 = arith.constant 0 : index
    %365 = vector.load %arg24[%c0_364, %c0_365] : memref<24x72xf32, #tpu.memory_space<vmem>>, vector<24x72xf32>
    %c0_366 = arith.constant 0 : index
    %c0_367 = arith.constant 0 : index
    %366 = vector.load %arg6[%c0_366, %c0_367] : memref<72x16xf32, #tpu.memory_space<vmem>>, vector<72x16xf32>
    %cst_368 = arith.constant dense<0.000000e+00> : vector<24x16xf32>
    %367 = tpu.matmul %365, %366, %cst_368 {dimension_numbers = #tpu.dot_dimension_numbers<[1], [0], [0], [1], [0, 0, 1, 1], [], []>} : vector<24x72xf32>, vector<72x16xf32>, vector<24x16xf32> -> vector<24x16xf32>
    %c0_369 = arith.constant 0 : index
    %c0_370 = arith.constant 0 : index
    %368 = vector.load %arg7[%c0_369, %c0_370] : memref<1x16xf32, #tpu.memory_space<vmem>>, vector<1x16xf32>
    %369 = vector.broadcast %368 : vector<1x16xf32> to vector<24x16xf32>
    %370 = arith.addf %367, %369 : vector<24x16xf32>
    %c0_371 = arith.constant 0 : index
    %c0_372 = arith.constant 0 : index
    %371 = vector.load %arg25[%c0_371, %c0_372] : memref<24x16xf32, #tpu.memory_space<vmem>>, vector<24x16xf32>
    tpu.vector_store %arg25[%c0_371, %c0_372], %370 {strides = array<i32>} : memref<24x16xf32, #tpu.memory_space<vmem>>, vector<24x16xf32>,
    %cst_373 = arith.constant 0.000000e+00 : f32
    %372 = vector.broadcast %cst_373 : f32 to vector<6x6x16xf32>
    %c0_374 = arith.constant 0 : index
    %c0_375 = arith.constant 0 : index
    %c0_376 = arith.constant 0 : index
    %373 = vector.load %arg26[%c0_374, %c0_375, %c0_376] : memref<6x6x16xf32, #tpu.memory_space<vmem>>, vector<6x6x16xf32>
    tpu.vector_store %arg26[%c0_374, %c0_375, %c0_376], %372 {strides = array<i32>} : memref<6x6x16xf32, #tpu.memory_space<vmem>>, vector<6x6x16xf32>,
    %cst_377 = arith.constant 0.000000e+00 : f32
    %374 = vector.broadcast %cst_377 : f32 to vector<24x16xf32>
    %c0_378 = arith.constant 0 : index
    %c0_379 = arith.constant 0 : index
    %375 = vector.load %arg28[%c0_378, %c0_379] : memref<24x16xf32, #tpu.memory_space<vmem>>, vector<24x16xf32>
    tpu.vector_store %arg28[%c0_378, %c0_379], %374 {strides = array<i32>} : memref<24x16xf32, #tpu.memory_space<vmem>>, vector<24x16xf32>,
    %c0_380 = arith.constant 0 : index
    %c0_381 = arith.constant 0 : index
    %376 = vector.load %arg25[%c0_380, %c0_381] : memref<24x16xf32, #tpu.memory_space<vmem>>, vector<4x16xf32>
    %c0_382 = arith.constant 0 : index
    %c0_383 = arith.constant 0 : index
    %c0_384 = arith.constant 0 : index
    %377 = vector.load %arg12[%c0_382, %c0_383, %c0_384] : memref<1x16x16xf32, #tpu.memory_space<vmem>>, vector<1x4x16xf32>
    %378 = vector.shape_cast %377 : vector<1x4x16xf32> to vector<4x16xf32>
    %379 = vector.shape_cast %376 : vector<4x16xf32> to vector<1x4x16xf32>
    tpu.vector_store %arg12[%c0_382, %c0_383, %c0_384], %379 {strides = array<i32>} : memref<1x16x16xf32, #tpu.memory_space<vmem>>, vector<1x4x16xf32>,
    %cst_385 = arith.constant 0.000000e+00 : f32
    %380 = vector.broadcast %cst_385 : f32 to vector<4x16xf32>
    %381 = arith.maximumf %376, %380 : vector<4x16xf32>
    %c1_386 = arith.constant 1 : index
    %c1_387 = arith.constant 1 : index
    %c0_388 = arith.constant 0 : index
    %382 = vector.load %arg26[%c1_386, %c1_387, %c0_388] : memref<6x6x16xf32, #tpu.memory_space<vmem>>, vector<1x4x16xf32>
    %383 = vector.shape_cast %382 : vector<1x4x16xf32> to vector<4x16xf32>
    %384 = vector.shape_cast %381 : vector<4x16xf32> to vector<1x4x16xf32>
    tpu.vector_store %arg26[%c1_386, %c1_387, %c0_388], %384 {strides = array<i32>} : memref<6x6x16xf32, #tpu.memory_space<vmem>>, vector<1x4x16xf32>,
    %c6_389 = arith.constant 6 : index
    %c0_390 = arith.constant 0 : index
    %385 = vector.load %arg25[%c6_389, %c0_390] : memref<24x16xf32, #tpu.memory_space<vmem>>, vector<4x16xf32>
    %c0_391 = arith.constant 0 : index
    %c4_392 = arith.constant 4 : index
    %c0_393 = arith.constant 0 : index
    %386 = vector.load %arg12[%c0_391, %c4_392, %c0_393] : memref<1x16x16xf32, #tpu.memory_space<vmem>>, vector<1x4x16xf32>
    %387 = vector.shape_cast %386 : vector<1x4x16xf32> to vector<4x16xf32>
    %388 = vector.shape_cast %385 : vector<4x16xf32> to vector<1x4x16xf32>
    tpu.vector_store %arg12[%c0_391, %c4_392, %c0_393], %388 {strides = array<i32>} : memref<1x16x16xf32, #tpu.memory_space<vmem>>, vector<1x4x16xf32>,
    %cst_394 = arith.constant 0.000000e+00 : f32
    %389 = vector.broadcast %cst_394 : f32 to vector<4x16xf32>
    %390 = arith.maximumf %385, %389 : vector<4x16xf32>
    %c2_395 = arith.constant 2 : index
    %c1_396 = arith.constant 1 : index
    %c0_397 = arith.constant 0 : index
    %391 = vector.load %arg26[%c2_395, %c1_396, %c0_397] : memref<6x6x16xf32, #tpu.memory_space<vmem>>, vector<1x4x16xf32>
    %392 = vector.shape_cast %391 : vector<1x4x16xf32> to vector<4x16xf32>
    %393 = vector.shape_cast %390 : vector<4x16xf32> to vector<1x4x16xf32>
    tpu.vector_store %arg26[%c2_395, %c1_396, %c0_397], %393 {strides = array<i32>} : memref<6x6x16xf32, #tpu.memory_space<vmem>>, vector<1x4x16xf32>,
    %c12_398 = arith.constant 12 : index
    %c0_399 = arith.constant 0 : index
    %394 = vector.load %arg25[%c12_398, %c0_399] : memref<24x16xf32, #tpu.memory_space<vmem>>, vector<4x16xf32>
    %c0_400 = arith.constant 0 : index
    %c8_401 = arith.constant 8 : index
    %c0_402 = arith.constant 0 : index
    %395 = vector.load %arg12[%c0_400, %c8_401, %c0_402] : memref<1x16x16xf32, #tpu.memory_space<vmem>>, vector<1x4x16xf32>
    %396 = vector.shape_cast %395 : vector<1x4x16xf32> to vector<4x16xf32>
    %397 = vector.shape_cast %394 : vector<4x16xf32> to vector<1x4x16xf32>
    tpu.vector_store %arg12[%c0_400, %c8_401, %c0_402], %397 {strides = array<i32>} : memref<1x16x16xf32, #tpu.memory_space<vmem>>, vector<1x4x16xf32>,
    %cst_403 = arith.constant 0.000000e+00 : f32
    %398 = vector.broadcast %cst_403 : f32 to vector<4x16xf32>
    %399 = arith.maximumf %394, %398 : vector<4x16xf32>
    %c3_404 = arith.constant 3 : index
    %c1_405 = arith.constant 1 : index
    %c0_406 = arith.constant 0 : index
    %400 = vector.load %arg26[%c3_404, %c1_405, %c0_406] : memref<6x6x16xf32, #tpu.memory_space<vmem>>, vector<1x4x16xf32>
    %401 = vector.shape_cast %400 : vector<1x4x16xf32> to vector<4x16xf32>
    %402 = vector.shape_cast %399 : vector<4x16xf32> to vector<1x4x16xf32>
    tpu.vector_store %arg26[%c3_404, %c1_405, %c0_406], %402 {strides = array<i32>} : memref<6x6x16xf32, #tpu.memory_space<vmem>>, vector<1x4x16xf32>,
    %c18_407 = arith.constant 18 : index
    %c0_408 = arith.constant 0 : index
    %403 = vector.load %arg25[%c18_407, %c0_408] : memref<24x16xf32, #tpu.memory_space<vmem>>, vector<4x16xf32>
    %c0_409 = arith.constant 0 : index
    %c12_410 = arith.constant 12 : index
    %c0_411 = arith.constant 0 : index
    %404 = vector.load %arg12[%c0_409, %c12_410, %c0_411] : memref<1x16x16xf32, #tpu.memory_space<vmem>>, vector<1x4x16xf32>
    %405 = vector.shape_cast %404 : vector<1x4x16xf32> to vector<4x16xf32>
    %406 = vector.shape_cast %403 : vector<4x16xf32> to vector<1x4x16xf32>
    tpu.vector_store %arg12[%c0_409, %c12_410, %c0_411], %406 {strides = array<i32>} : memref<1x16x16xf32, #tpu.memory_space<vmem>>, vector<1x4x16xf32>,
    %cst_412 = arith.constant 0.000000e+00 : f32
    %407 = vector.broadcast %cst_412 : f32 to vector<4x16xf32>
    %408 = arith.maximumf %403, %407 : vector<4x16xf32>
    %c4_413 = arith.constant 4 : index
    %c1_414 = arith.constant 1 : index
    %c0_415 = arith.constant 0 : index
    %409 = vector.load %arg26[%c4_413, %c1_414, %c0_415] : memref<6x6x16xf32, #tpu.memory_space<vmem>>, vector<1x4x16xf32>
    %410 = vector.shape_cast %409 : vector<1x4x16xf32> to vector<4x16xf32>
    %411 = vector.shape_cast %408 : vector<4x16xf32> to vector<1x4x16xf32>
    tpu.vector_store %arg26[%c4_413, %c1_414, %c0_415], %411 {strides = array<i32>} : memref<6x6x16xf32, #tpu.memory_space<vmem>>, vector<1x4x16xf32>,
    %c0_416 = arith.constant 0 : index
    %c0_417 = arith.constant 0 : index
    %c0_418 = arith.constant 0 : index
    %412 = vector.load %arg26[%c0_416, %c0_417, %c0_418] : memref<6x6x16xf32, #tpu.memory_space<vmem>>, vector<4x6x16xf32>
    %c1_419 = arith.constant 1 : index
    %c0_420 = arith.constant 0 : index
    %c0_421 = arith.constant 0 : index
    %413 = vector.load %arg26[%c1_419, %c0_420, %c0_421] : memref<6x6x16xf32, #tpu.memory_space<vmem>>, vector<4x6x16xf32>
    %414 = arith.maximumf %412, %413 : vector<4x6x16xf32>
    %c2_422 = arith.constant 2 : index
    %c0_423 = arith.constant 0 : index
    %c0_424 = arith.constant 0 : index
    %415 = vector.load %arg26[%c2_422, %c0_423, %c0_424] : memref<6x6x16xf32, #tpu.memory_space<vmem>>, vector<4x6x16xf32>
    %416 = arith.maximumf %414, %415 : vector<4x6x16xf32>
    %417 = vector.shape_cast %416 : vector<4x6x16xf32> to vector<2x2x6x16xf32>
    %418 = vector.extract_strided_slice %417 {offsets = [0, 0, 0, 0], sizes = [2, 1, 6, 16], strides = [1, 1, 1, 1]} : vector<2x2x6x16xf32> to vector<2x1x6x16xf32>
    %419 = vector.shape_cast %418 : vector<2x1x6x16xf32> to vector<2x6x16xf32>
    %c0_425 = arith.constant 0 : index
    %c0_426 = arith.constant 0 : index
    %c0_427 = arith.constant 0 : index
    %420 = vector.load %arg27[%c0_425, %c0_426, %c0_427] : memref<2x6x16xf32, #tpu.memory_space<vmem>>, vector<2x6x16xf32>
    tpu.vector_store %arg27[%c0_425, %c0_426, %c0_427], %419 {strides = array<i32>} : memref<2x6x16xf32, #tpu.memory_space<vmem>>, vector<2x6x16xf32>,
    %c0_428 = arith.constant 0 : index
    %c0_429 = arith.constant 0 : index
    %c0_430 = arith.constant 0 : index
    %421 = tpu.strided_load %arg27[%c0_428, %c0_429, %c0_430] {strides = array<i32: 1, 2, 1>} : memref<2x6x16xf32, #tpu.memory_space<vmem>>, vector<2x2x16xf32>
    %c0_431 = arith.constant 0 : index
    %c1_432 = arith.constant 1 : index
    %c0_433 = arith.constant 0 : index
    %422 = tpu.strided_load %arg27[%c0_431, %c1_432, %c0_433] {strides = array<i32: 1, 2, 1>} : memref<2x6x16xf32, #tpu.memory_space<vmem>>, vector<2x2x16xf32>
    %423 = arith.maximumf %421, %422 : vector<2x2x16xf32>
    %c0_434 = arith.constant 0 : index
    %c2_435 = arith.constant 2 : index
    %c0_436 = arith.constant 0 : index
    %424 = tpu.strided_load %arg27[%c0_434, %c2_435, %c0_436] {strides = array<i32: 1, 2, 1>} : memref<2x6x16xf32, #tpu.memory_space<vmem>>, vector<2x2x16xf32>
    %425 = arith.maximumf %423, %424 : vector<2x2x16xf32>
    %426 = vector.extract_strided_slice %425 {offsets = [0, 0, 0], sizes = [1, 2, 16], strides = [1, 1, 1]} : vector<2x2x16xf32> to vector<1x2x16xf32>
    %427 = vector.shape_cast %426 : vector<1x2x16xf32> to vector<2x16xf32>
    %c5_437 = arith.constant 5 : index
    %c0_438 = arith.constant 0 : index
    %428 = vector.load %arg28[%c5_437, %c0_438] : memref<24x16xf32, #tpu.memory_space<vmem>>, vector<2x16xf32>
    tpu.vector_store %arg28[%c5_437, %c0_438], %427 {strides = array<i32>} : memref<24x16xf32, #tpu.memory_space<vmem>>, vector<2x16xf32>,
    %429 = vector.extract_strided_slice %425 {offsets = [1, 0, 0], sizes = [1, 2, 16], strides = [1, 1, 1]} : vector<2x2x16xf32> to vector<1x2x16xf32>
    %430 = vector.shape_cast %429 : vector<1x2x16xf32> to vector<2x16xf32>
    %c9_439 = arith.constant 9 : index
    %c0_440 = arith.constant 0 : index
    %431 = vector.load %arg28[%c9_439, %c0_440] : memref<24x16xf32, #tpu.memory_space<vmem>>, vector<2x16xf32>
    tpu.vector_store %arg28[%c9_439, %c0_440], %430 {strides = array<i32>} : memref<24x16xf32, #tpu.memory_space<vmem>>, vector<2x16xf32>,
    %c0_441 = arith.constant 0 : index
    %c0_442 = arith.constant 0 : index
    %432 = vector.load %arg28[%c0_441, %c0_442] : memref<24x16xf32, #tpu.memory_space<vmem>>, vector<8x16xf32>
    %c0_443 = arith.constant 0 : index
    %c0_444 = arith.constant 0 : index
    %433 = vector.load %arg29[%c0_443, %c0_444] : memref<8x144xf32, #tpu.memory_space<vmem>>, vector<8x16xf32>
    tpu.vector_store %arg29[%c0_443, %c0_444], %432 {strides = array<i32>} : memref<8x144xf32, #tpu.memory_space<vmem>>, vector<8x16xf32>,
    %c1_445 = arith.constant 1 : index
    %c0_446 = arith.constant 0 : index
    %434 = vector.load %arg28[%c1_445, %c0_446] : memref<24x16xf32, #tpu.memory_space<vmem>>, vector<8x16xf32>
    %c0_447 = arith.constant 0 : index
    %c16_448 = arith.constant 16 : index
    %435 = vector.load %arg29[%c0_447, %c16_448] : memref<8x144xf32, #tpu.memory_space<vmem>>, vector<8x16xf32>
    tpu.vector_store %arg29[%c0_447, %c16_448], %434 {strides = array<i32>} : memref<8x144xf32, #tpu.memory_space<vmem>>, vector<8x16xf32>,
    %c2_449 = arith.constant 2 : index
    %c0_450 = arith.constant 0 : index
    %436 = vector.load %arg28[%c2_449, %c0_450] : memref<24x16xf32, #tpu.memory_space<vmem>>, vector<8x16xf32>
    %c0_451 = arith.constant 0 : index
    %c32_452 = arith.constant 32 : index
    %437 = vector.load %arg29[%c0_451, %c32_452] : memref<8x144xf32, #tpu.memory_space<vmem>>, vector<8x16xf32>
    tpu.vector_store %arg29[%c0_451, %c32_452], %436 {strides = array<i32>} : memref<8x144xf32, #tpu.memory_space<vmem>>, vector<8x16xf32>,
    %c4_453 = arith.constant 4 : index
    %c0_454 = arith.constant 0 : index
    %438 = vector.load %arg28[%c4_453, %c0_454] : memref<24x16xf32, #tpu.memory_space<vmem>>, vector<8x16xf32>
    %c0_455 = arith.constant 0 : index
    %c48_456 = arith.constant 48 : index
    %439 = vector.load %arg29[%c0_455, %c48_456] : memref<8x144xf32, #tpu.memory_space<vmem>>, vector<8x16xf32>
    tpu.vector_store %arg29[%c0_455, %c48_456], %438 {strides = array<i32>} : memref<8x144xf32, #tpu.memory_space<vmem>>, vector<8x16xf32>,
    %c5_457 = arith.constant 5 : index
    %c0_458 = arith.constant 0 : index
    %440 = vector.load %arg28[%c5_457, %c0_458] : memref<24x16xf32, #tpu.memory_space<vmem>>, vector<8x16xf32>
    %c0_459 = arith.constant 0 : index
    %c64_460 = arith.constant 64 : index
    %441 = vector.load %arg29[%c0_459, %c64_460] : memref<8x144xf32, #tpu.memory_space<vmem>>, vector<8x16xf32>
    tpu.vector_store %arg29[%c0_459, %c64_460], %440 {strides = array<i32>} : memref<8x144xf32, #tpu.memory_space<vmem>>, vector<8x16xf32>,
    %c6_461 = arith.constant 6 : index
    %c0_462 = arith.constant 0 : index
    %442 = vector.load %arg28[%c6_461, %c0_462] : memref<24x16xf32, #tpu.memory_space<vmem>>, vector<8x16xf32>
    %c0_463 = arith.constant 0 : index
    %c80_464 = arith.constant 80 : index
    %443 = vector.load %arg29[%c0_463, %c80_464] : memref<8x144xf32, #tpu.memory_space<vmem>>, vector<8x16xf32>
    tpu.vector_store %arg29[%c0_463, %c80_464], %442 {strides = array<i32>} : memref<8x144xf32, #tpu.memory_space<vmem>>, vector<8x16xf32>,
    %c8_465 = arith.constant 8 : index
    %c0_466 = arith.constant 0 : index
    %444 = vector.load %arg28[%c8_465, %c0_466] : memref<24x16xf32, #tpu.memory_space<vmem>>, vector<8x16xf32>
    %c0_467 = arith.constant 0 : index
    %c96_468 = arith.constant 96 : index
    %445 = vector.load %arg29[%c0_467, %c96_468] : memref<8x144xf32, #tpu.memory_space<vmem>>, vector<8x16xf32>
    tpu.vector_store %arg29[%c0_467, %c96_468], %444 {strides = array<i32>} : memref<8x144xf32, #tpu.memory_space<vmem>>, vector<8x16xf32>,
    %c9_469 = arith.constant 9 : index
    %c0_470 = arith.constant 0 : index
    %446 = vector.load %arg28[%c9_469, %c0_470] : memref<24x16xf32, #tpu.memory_space<vmem>>, vector<8x16xf32>
    %c0_471 = arith.constant 0 : index
    %c112_472 = arith.constant 112 : index
    %447 = vector.load %arg29[%c0_471, %c112_472] : memref<8x144xf32, #tpu.memory_space<vmem>>, vector<8x16xf32>
    tpu.vector_store %arg29[%c0_471, %c112_472], %446 {strides = array<i32>} : memref<8x144xf32, #tpu.memory_space<vmem>>, vector<8x16xf32>,
    %c10_473 = arith.constant 10 : index
    %c0_474 = arith.constant 0 : index
    %448 = vector.load %arg28[%c10_473, %c0_474] : memref<24x16xf32, #tpu.memory_space<vmem>>, vector<8x16xf32>
    %c0_475 = arith.constant 0 : index
    %c128_476 = arith.constant 128 : index
    %449 = vector.load %arg29[%c0_475, %c128_476] : memref<8x144xf32, #tpu.memory_space<vmem>>, vector<8x16xf32>
    tpu.vector_store %arg29[%c0_475, %c128_476], %448 {strides = array<i32>} : memref<8x144xf32, #tpu.memory_space<vmem>>, vector<8x16xf32>,
    %c0_477 = arith.constant 0 : index
    %c0_478 = arith.constant 0 : index
    %450 = vector.load %arg29[%c0_477, %c0_478] : memref<8x144xf32, #tpu.memory_space<vmem>>, vector<8x144xf32>
    %c0_479 = arith.constant 0 : index
    %c0_480 = arith.constant 0 : index
    %451 = vector.load %arg8[%c0_479, %c0_480] : memref<144x32xf32, #tpu.memory_space<vmem>>, vector<144x32xf32>
    %cst_481 = arith.constant dense<0.000000e+00> : vector<8x32xf32>
    %452 = tpu.matmul %450, %451, %cst_481 {dimension_numbers = #tpu.dot_dimension_numbers<[1], [0], [0], [1], [0, 0, 1, 1], [], []>} : vector<8x144xf32>, vector<144x32xf32>, vector<8x32xf32> -> vector<8x32xf32>
    %c0_482 = arith.constant 0 : index
    %c0_483 = arith.constant 0 : index
    %453 = vector.load %arg9[%c0_482, %c0_483] : memref<1x32xf32, #tpu.memory_space<vmem>>, vector<1x32xf32>
    %454 = vector.broadcast %453 : vector<1x32xf32> to vector<8x32xf32>
    %455 = arith.addf %452, %454 : vector<8x32xf32>
    %c0_484 = arith.constant 0 : index
    %c0_485 = arith.constant 0 : index
    %456 = vector.load %arg30[%c0_484, %c0_485] : memref<8x32xf32, #tpu.memory_space<vmem>>, vector<8x32xf32>
    tpu.vector_store %arg30[%c0_484, %c0_485], %455 {strides = array<i32>} : memref<8x32xf32, #tpu.memory_space<vmem>>, vector<8x32xf32>,
    %c0_486 = arith.constant 0 : index
    %c0_487 = arith.constant 0 : index
    %457 = vector.load %arg30[%c0_486, %c0_487] : memref<8x32xf32, #tpu.memory_space<vmem>>, vector<2x32xf32>
    %c0_488 = arith.constant 0 : index
    %c0_489 = arith.constant 0 : index
    %c0_490 = arith.constant 0 : index
    %458 = vector.load %arg13[%c0_488, %c0_489, %c0_490] : memref<1x4x32xf32, #tpu.memory_space<vmem>>, vector<1x2x32xf32>
    %459 = vector.shape_cast %458 : vector<1x2x32xf32> to vector<2x32xf32>
    %460 = vector.shape_cast %457 : vector<2x32xf32> to vector<1x2x32xf32>
    tpu.vector_store %arg13[%c0_488, %c0_489, %c0_490], %460 {strides = array<i32>} : memref<1x4x32xf32, #tpu.memory_space<vmem>>, vector<1x2x32xf32>,
    %c4_491 = arith.constant 4 : index
    %c0_492 = arith.constant 0 : index
    %461 = vector.load %arg30[%c4_491, %c0_492] : memref<8x32xf32, #tpu.memory_space<vmem>>, vector<2x32xf32>
    %c0_493 = arith.constant 0 : index
    %c2_494 = arith.constant 2 : index
    %c0_495 = arith.constant 0 : index
    %462 = vector.load %arg13[%c0_493, %c2_494, %c0_495] : memref<1x4x32xf32, #tpu.memory_space<vmem>>, vector<1x2x32xf32>
    %463 = vector.shape_cast %462 : vector<1x2x32xf32> to vector<2x32xf32>
    %464 = vector.shape_cast %461 : vector<2x32xf32> to vector<1x2x32xf32>
    tpu.vector_store %arg13[%c0_493, %c2_494, %c0_495], %464 {strides = array<i32>} : memref<1x4x32xf32, #tpu.memory_space<vmem>>, vector<1x2x32xf32>,
    return
  }
  func.func @transform_0(%arg0: i32) -> (i32, i32, i32) {
    %c0_i32 = arith.constant 0 : i32
    %c0_i32_0 = arith.constant 0 : i32
    %c0_i32_1 = arith.constant 0 : i32
    return %arg0, %c0_i32, %c0_i32_0 : i32, i32, i32
  }
  func.func @transform_1(%arg0: i32) -> (i32, i32) {
    %c0_i32 = arith.constant 0 : i32
    %c0_i32_0 = arith.constant 0 : i32
    %c0_i32_1 = arith.constant 0 : i32
    return %c0_i32, %c0_i32_0 : i32, i32
  }
  func.func @transform_2(%arg0: i32) -> (i32, i32) {
    %c0_i32 = arith.constant 0 : i32
    %c0_i32_0 = arith.constant 0 : i32
    %c0_i32_1 = arith.constant 0 : i32
    return %c0_i32, %c0_i32_0 : i32, i32
  }
  func.func @transform_3(%arg0: i32) -> (i32, i32) {
    %c0_i32 = arith.constant 0 : i32
    %c0_i32_0 = arith.constant 0 : i32
    %c0_i32_1 = arith.constant 0 : i32
    return %c0_i32, %c0_i32_0 : i32, i32
  }
  func.func @transform_4(%arg0: i32) -> (i32, i32) {
    %c0_i32 = arith.constant 0 : i32
    %c0_i32_0 = arith.constant 0 : i32
    %c0_i32_1 = arith.constant 0 : i32
    return %c0_i32, %c0_i32_0 : i32, i32
  }
  func.func @transform_5(%arg0: i32) -> (i32, i32) {
    %c0_i32 = arith.constant 0 : i32
    %c0_i32_0 = arith.constant 0 : i32
    %c0_i32_1 = arith.constant 0 : i32
    return %c0_i32, %c0_i32_0 : i32, i32
  }
  func.func @transform_6(%arg0: i32) -> (i32, i32) {
    %c0_i32 = arith.constant 0 : i32
    %c0_i32_0 = arith.constant 0 : i32
    %c0_i32_1 = arith.constant 0 : i32
    return %c0_i32, %c0_i32_0 : i32, i32
  }
  func.func @transform_7(%arg0: i32) -> (i32, i32) {
    %c0_i32 = arith.constant 0 : i32
    %c0_i32_0 = arith.constant 0 : i32
    %c0_i32_1 = arith.constant 0 : i32
    return %c0_i32, %c0_i32_0 : i32, i32
  }
  func.func @transform_8(%arg0: i32) -> (i32, i32) {
    %c0_i32 = arith.constant 0 : i32
    %c0_i32_0 = arith.constant 0 : i32
    %c0_i32_1 = arith.constant 0 : i32
    return %c0_i32, %c0_i32_0 : i32, i32
  }
  func.func @transform_9(%arg0: i32) -> (i32, i32, i32) {
    %c0_i32 = arith.constant 0 : i32
    %c0_i32_0 = arith.constant 0 : i32
    %c0_i32_1 = arith.constant 0 : i32
    return %arg0, %c0_i32, %c0_i32_0 : i32, i32, i32
  }
  func.func @transform_10(%arg0: i32) -> (i32, i32, i32) {
    %c0_i32 = arith.constant 0 : i32
    %c0_i32_0 = arith.constant 0 : i32
    %c0_i32_1 = arith.constant 0 : i32
    return %arg0, %c0_i32, %c0_i32_0 : i32, i32, i32
  }
  func.func @transform_11(%arg0: i32) -> (i32, i32, i32) {
    %c0_i32 = arith.constant 0 : i32
    %c0_i32_0 = arith.constant 0 : i32
    %c0_i32_1 = arith.constant 0 : i32
    return %arg0, %c0_i32, %c0_i32_0 : i32, i32, i32
  }
  func.func @transform_12(%arg0: i32) -> (i32, i32, i32) {
    %c0_i32 = arith.constant 0 : i32
    %c0_i32_0 = arith.constant 0 : i32
    %c0_i32_1 = arith.constant 0 : i32
    return %arg0, %c0_i32, %c0_i32_0 : i32, i32, i32
  }
}

</mosaic_0001>

<llo_original>
// kernel: encoder_forward.1
$region0: #{encoder_forward.1}
  #allocation0 [shape = 'u32[]', space=smem, size = 0x4, offset = 0x4, fixed_abs, tag = 'smem constant byte address 0x4 - core index']
  #allocation1 [shape = 'u32[144,128]{1,0:T(1,128)}', space=vmem, size = 0x12000, scoped, tag = 'internal scratch']
  #allocation2 [shape = 'f32[288,27]{1,0:T(8,128)}', space=vmem, size = 0x24000, scoped, tag = 'scratch operand']
  #allocation3 [shape = 'f32[288,4]{1,0:T(8,128)}', space=vmem, size = 0x24000, scoped, tag = 'scratch operand']
  #allocation4 [shape = 'f32[18,18,4]{2,1,0:T(8,128)}', space=vmem, size = 0x36000, scoped, tag = 'scratch operand']
  #allocation5 [shape = 'f32[8,18,4]{2,1,0:T(8,128)}', space=vmem, size = 0x18000, scoped, tag = 'scratch operand']
  #allocation6 [shape = 'f32[108,4]{1,0:T(8,128)}', space=vmem, size = 0xe000, scoped, tag = 'scratch operand']
  #allocation7 [shape = 'f32[80,36]{1,0:T(8,128)}', space=vmem, size = 0xa000, scoped, tag = 'scratch operand']
  #allocation8 [shape = 'f32[80,8]{1,0:T(8,128)}', space=vmem, size = 0xa000, scoped, tag = 'scratch operand']
  #allocation9 [shape = 'f32[10,10,8]{2,1,0:T(8,128)}', space=vmem, size = 0x14000, scoped, tag = 'scratch operand']
  #allocation10 [shape = 'f32[4,10,8]{2,1,0:T(8,128)}', space=vmem, size = 0x8000, scoped, tag = 'scratch operand']
  #allocation11 [shape = 'f32[44,8]{1,0:T(8,128)}', space=vmem, size = 0x6000, scoped, tag = 'scratch operand']
  #allocation12 [shape = 'f32[24,72]{1,0:T(8,128)}', space=vmem, size = 0x3000, scoped, tag = 'scratch operand']
  #allocation13 [shape = 'f32[24,16]{1,0:T(8,128)}', space=vmem, size = 0x3000, scoped, tag = 'scratch operand']
  #allocation14 [shape = 'f32[6,6,16]{2,1,0:T(8,128)}', space=vmem, size = 0x6000, scoped, tag = 'scratch operand']
  #allocation15 [shape = 'f32[2,6,16]{2,1,0:T(8,128)}', space=vmem, size = 0x2000, scoped, tag = 'scratch operand']
  #allocation16 [shape = 'f32[24,16]{1,0:T(8,128)}', space=vmem, size = 0x3000, scoped, tag = 'scratch operand']
  #allocation17 [shape = 'f32[8,144]{1,0:T(8,128)}', space=vmem, size = 0x2000, scoped, tag = 'scratch operand']
  #allocation18 [shape = 'f32[8,32]{1,0:T(8,128)}', space=vmem, size = 0x1000, scoped, tag = 'scratch operand']
  %s0 = inlined_call_operand.vmem [shape: f32[2,332,3], index: 0, kind: input, shape index: {}]
  %s1 = inlined_call_operand.vmem [shape: f32[27,4], index: 1, kind: input, shape index: {}]
  %s2 = inlined_call_operand.vmem [shape: f32[1,4], index: 2, kind: input, shape index: {}]
  %s3 = inlined_call_operand.vmem [shape: f32[36,8], index: 3, kind: input, shape index: {}]
  %s4 = inlined_call_operand.vmem [shape: f32[1,8], index: 4, kind: input, shape index: {}]
  %s5 = inlined_call_operand.vmem [shape: f32[72,16], index: 5, kind: input, shape index: {}]
  %s6 = inlined_call_operand.vmem [shape: f32[1,16], index: 6, kind: input, shape index: {}]
  %s7 = inlined_call_operand.vmem [shape: f32[144,32], index: 7, kind: input, shape index: {}]
  %s8 = inlined_call_operand.vmem [shape: f32[1,32], index: 8, kind: input, shape index: {}]
  %s9 = inlined_call_operand.vmem [shape: f32[2,256,4], index: 9, kind: output, shape index: {0}]
  %s10 = inlined_call_operand.vmem [shape: f32[2,64,8], index: 10, kind: output, shape index: {1}]
  %s11 = inlined_call_operand.hbm [shape: f32[2,16,16], index: 11, kind: output, shape index: {2}]
  %s12 = inlined_call_operand.hbm [shape: f32[2,4,32], index: 12, kind: output, shape index: {3}]
  %13 = xla_tuple %s9, %s10, %s11, %s12
  %s14 = sld [smem:[#allocation0]]
  $region93: #{encoder_forward.1} parent=0
    _
  %s16 = ssub.s32 1, %s14
  %s17 = scalar_select 0, %s16, %s14
  $region1: #{encoder_forward.1} parent=0
    #allocation19 [shape = 'u8[16384]{0}', space=vmem, size = 0x4000, scoped, tag = 'output window, operand 2']
    #allocation20 [shape = 's32[2]{0}', space=sflag, size = 0x8, scoped, tag = 'scoped memory for encoder_forward.1']
    #allocation21 [shape = 'u8[4096]{0}', space=vmem, size = 0x1000, scoped, tag = 'output window, operand 3']
    #allocation22 [shape = 's32[2]{0}', space=sflag, size = 0x8, scoped, tag = 'scoped memory for encoder_forward.1']
    %18 = vsyncpa [#allocation20], 0
    %s19 = scalar_lea.sflag [#allocation20], 1
    %20 = vsyncpa %s19, 0
    %21 = vsyncpa [#allocation22], 0
    %s22 = scalar_lea.sflag [#allocation22], 1
    %23 = vsyncpa %s22, 0
    loop: start=0, step=1, limit=4
    $region2: #{encoder_forward.1} parent=1 // loop_pre_header
      _
    $region3: #{encoder_forward.1} parent=1 // loop_header
      %s25 = sphi 0, %s29
      %p26 = scmp.ge.s32.totalorder %s25, 4
      %s35 = sphi 0, %s37
      %s38 = sphi 0, %s35
      %s39 = sphi 0, %s38
      %s55 = sphi 0, %s39
      %s59 = sphi 0, %s59
      %s61 = sphi 0, %s59
      %s62 = sphi 0, %s61
      %s76 = sphi 0, %s62
      %s80 = sphi 0, %s80
      %s82 = sphi 0, %s80
      %s83 = sphi 0, %s82
      %s97 = sphi 0, %s83
      %s101 = sphi 0, %s101
      %s103 = sphi 0, %s101
      %s104 = sphi 0, %s103
      %s118 = sphi 0, %s104
      %s122 = sphi 0, %s122
      %s124 = sphi 0, %s122
      %s125 = sphi 0, %s124
      %s139 = sphi 0, %s125
      %s143 = sphi 0, %s143
      %s145 = sphi 0, %s143
      %s146 = sphi 0, %s145
      %s160 = sphi 0, %s146
      %s164 = sphi 0, %s164
      %s166 = sphi 0, %s164
      %s167 = sphi 0, %s166
      %s181 = sphi 0, %s167
      %s185 = sphi 0, %s185
      %s187 = sphi 0, %s185
      %s188 = sphi 0, %s187
      %s202 = sphi 0, %s188
      %s206 = sphi 0, %s206
      %s208 = sphi 0, %s206
      %s209 = sphi 0, %s208
      %s223 = sphi 0, %s209
      %s229 = sphi 0, %s231
      %s232 = sphi 0, %s229
      %s233 = sphi 0, %s232
      %s249 = sphi 0, %s233
      %s255 = sphi 0, %s257
      %s258 = sphi 0, %s255
      %s259 = sphi 0, %s258
      %s275 = sphi 0, %s259
      %s281 = sphi 0, %s283
      %s284 = sphi 0, %s281
      %s285 = sphi 0, %s284
      %s301 = sphi 0, %s285
      %s307 = sphi 0, %s309
      %s310 = sphi 0, %s307
      %s311 = sphi 0, %s310
      %s327 = sphi 0, %s311
    $region4: #{encoder_forward.1} parent=1 // loop_header_branch
      %28 = sbr.rel (%p26) target = $region8
    $region5: #{encoder_forward.1} parent=1 // loop_body
      %s30 = ssub.s32 %s25, 1
      %s31 = ssub.s32 %s25, 2
      %s32 = sadd.s32 %s25, 1
      %s33 = ssub.s32 %s25, %s32
      %p34 = scmp.eq.s32.totalorder %s33, 0
      %s36 = sadd.s32 %s35, 1
      %s37 = scalar_select %p34, %s35, %s36
      %p40 = pneg %p34
      %p41 = scmp.eq.s32.totalorder %s25, 1
      %p42 = por %p40, %p41
      %p43 = scmp.ne.s32.totalorder %s35, %s38
      %p44 = scmp.eq.s32.totalorder %s25, 0
      %p45 = por %p43, %p44
      %p46 = scmp.ne.s32.totalorder %s35, %s38
      %p47 = scmp.eq.s32.totalorder %s30, 1
      %p48 = por %p46, %p47
      %p49 = scmp.ne.s32.totalorder %s38, %s39
      %p50 = scmp.eq.s32.totalorder %s30, 0
      %p51 = por %p49, %p50
      %p52 = scmp.ne.s32.totalorder %s38, %s39
      %p53 = scmp.eq.s32.totalorder %s31, 1
      %p54 = por %p52, %p53
      %p56 = scmp.ne.s32.totalorder %s39, %s55
      %p57 = scmp.eq.s32.totalorder %s31, 0
      %p58 = por %p56, %p57
      %s60 = sadd.s32 %s59, 1
      %p63 = scmp.eq.s32.totalorder %s25, 1
      %p64 = scmp.ne.s32.totalorder %s59, %s61
      %p65 = scmp.eq.s32.totalorder %s25, 0
      %p66 = por %p64, %p65
      %p67 = scmp.ne.s32.totalorder %s59, %s61
      %p68 = scmp.eq.s32.totalorder %s30, 1
      %p69 = por %p67, %p68
      %p70 = scmp.ne.s32.totalorder %s61, %s62
      %p71 = scmp.eq.s32.totalorder %s30, 0
      %p72 = por %p70, %p71
      %p73 = scmp.ne.s32.totalorder %s61, %s62
      %p74 = scmp.eq.s32.totalorder %s31, 1
      %p75 = por %p73, %p74
      %p77 = scmp.ne.s32.totalorder %s62, %s76
      %p78 = scmp.eq.s32.totalorder %s31, 0
      %p79 = por %p77, %p78
      %s81 = sadd.s32 %s80, 1
      %p84 = scmp.eq.s32.totalorder %s25, 1
      %p85 = scmp.ne.s32.totalorder %s80, %s82
      %p86 = scmp.eq.s32.totalorder %s25, 0
      %p87 = por %p85, %p86
      %p88 = scmp.ne.s32.totalorder %s80, %s82
      %p89 = scmp.eq.s32.totalorder %s30, 1
      %p90 = por %p88, %p89
      %p91 = scmp.ne.s32.totalorder %s82, %s83
      %p92 = scmp.eq.s32.totalorder %s30, 0
      %p93 = por %p91, %p92
      %p94 = scmp.ne.s32.totalorder %s82, %s83
      %p95 = scmp.eq.s32.totalorder %s31, 1
      %p96 = por %p94, %p95
      %p98 = scmp.ne.s32.totalorder %s83, %s97
      %p99 = scmp.eq.s32.totalorder %s31, 0
      %p100 = por %p98, %p99
      %s102 = sadd.s32 %s101, 1
      %p105 = scmp.eq.s32.totalorder %s25, 1
      %p106 = scmp.ne.s32.totalorder %s101, %s103
      %p107 = scmp.eq.s32.totalorder %s25, 0
      %p108 = por %p106, %p107
      %p109 = scmp.ne.s32.totalorder %s101, %s103
      %p110 = scmp.eq.s32.totalorder %s30, 1
      %p111 = por %p109, %p110
      %p112 = scmp.ne.s32.totalorder %s103, %s104
      %p113 = scmp.eq.s32.totalorder %s30, 0
      %p114 = por %p112, %p113
      %p115 = scmp.ne.s32.totalorder %s103, %s104
      %p116 = scmp.eq.s32.totalorder %s31, 1
      %p117 = por %p115, %p116
      %p119 = scmp.ne.s32.totalorder %s104, %s118
      %p120 = scmp.eq.s32.totalorder %s31, 0
      %p121 = por %p119, %p120
      %s123 = sadd.s32 %s122, 1
      %p126 = scmp.eq.s32.totalorder %s25, 1
      %p127 = scmp.ne.s32.totalorder %s122, %s124
      %p128 = scmp.eq.s32.totalorder %s25, 0
      %p129 = por %p127, %p128
      %p130 = scmp.ne.s32.totalorder %s122, %s124
      %p131 = scmp.eq.s32.totalorder %s30, 1
      %p132 = por %p130, %p131
      %p133 = scmp.ne.s32.totalorder %s124, %s125
      %p134 = scmp.eq.s32.totalorder %s30, 0
      %p135 = por %p133, %p134
      %p136 = scmp.ne.s32.totalorder %s124, %s125
      %p137 = scmp.eq.s32.totalorder %s31, 1
      %p138 = por %p136, %p137
      %p140 = scmp.ne.s32.totalorder %s125, %s139
      %p141 = scmp.eq.s32.totalorder %s31, 0
      %p142 = por %p140, %p141
      %s144 = sadd.s32 %s143, 1
      %p147 = scmp.eq.s32.totalorder %s25, 1
      %p148 = scmp.ne.s32.totalorder %s143, %s145
      %p149 = scmp.eq.s32.totalorder %s25, 0
      %p150 = por %p148, %p149
      %p151 = scmp.ne.s32.totalorder %s143, %s145
      %p152 = scmp.eq.s32.totalorder %s30, 1
      %p153 = por %p151, %p152
      %p154 = scmp.ne.s32.totalorder %s145, %s146
      %p155 = scmp.eq.s32.totalorder %s30, 0
      %p156 = por %p154, %p155
      %p157 = scmp.ne.s32.totalorder %s145, %s146
      %p158 = scmp.eq.s32.totalorder %s31, 1
      %p159 = por %p157, %p158
      %p161 = scmp.ne.s32.totalorder %s146, %s160
      %p162 = scmp.eq.s32.totalorder %s31, 0
      %p163 = por %p161, %p162
      %s165 = sadd.s32 %s164, 1
      %p168 = scmp.eq.s32.totalorder %s25, 1
      %p169 = scmp.ne.s32.totalorder %s164, %s166
      %p170 = scmp.eq.s32.totalorder %s25, 0
      %p171 = por %p169, %p170
      %p172 = scmp.ne.s32.totalorder %s164, %s166
      %p173 = scmp.eq.s32.totalorder %s30, 1
      %p174 = por %p172, %p173
      %p175 = scmp.ne.s32.totalorder %s166, %s167
      %p176 = scmp.eq.s32.totalorder %s30, 0
      %p177 = por %p175, %p176
      %p178 = scmp.ne.s32.totalorder %s166, %s167
      %p179 = scmp.eq.s32.totalorder %s31, 1
      %p180 = por %p178, %p179
      %p182 = scmp.ne.s32.totalorder %s167, %s181
      %p183 = scmp.eq.s32.totalorder %s31, 0
      %p184 = por %p182, %p183
      %s186 = sadd.s32 %s185, 1
      %p189 = scmp.eq.s32.totalorder %s25, 1
      %p190 = scmp.ne.s32.totalorder %s185, %s187
      %p191 = scmp.eq.s32.totalorder %s25, 0
      %p192 = por %p190, %p191
      %p193 = scmp.ne.s32.totalorder %s185, %s187
      %p194 = scmp.eq.s32.totalorder %s30, 1
      %p195 = por %p193, %p194
      %p196 = scmp.ne.s32.totalorder %s187, %s188
      %p197 = scmp.eq.s32.totalorder %s30, 0
      %p198 = por %p196, %p197
      %p199 = scmp.ne.s32.totalorder %s187, %s188
      %p200 = scmp.eq.s32.totalorder %s31, 1
      %p201 = por %p199, %p200
      %p203 = scmp.ne.s32.totalorder %s188, %s202
      %p204 = scmp.eq.s32.totalorder %s31, 0
      %p205 = por %p203, %p204
      %s207 = sadd.s32 %s206, 1
      %p210 = scmp.eq.s32.totalorder %s25, 1
      %p211 = scmp.ne.s32.totalorder %s206, %s208
      %p212 = scmp.eq.s32.totalorder %s25, 0
      %p213 = por %p211, %p212
      %p214 = scmp.ne.s32.totalorder %s206, %s208
      %p215 = scmp.eq.s32.totalorder %s30, 1
      %p216 = por %p214, %p215
      %p217 = scmp.ne.s32.totalorder %s208, %s209
      %p218 = scmp.eq.s32.totalorder %s30, 0
      %p219 = por %p217, %p218
      %p220 = scmp.ne.s32.totalorder %s208, %s209
      %p221 = scmp.eq.s32.totalorder %s31, 1
      %p222 = por %p220, %p221
      %p224 = scmp.ne.s32.totalorder %s209, %s223
      %p225 = scmp.eq.s32.totalorder %s31, 0
      %p226 = por %p224, %p225
      %s227 = ssub.s32 %s25, %s32
      %p228 = scmp.eq.s32.totalorder %s227, 0
      %s230 = sadd.s32 %s229, 1
      %s231 = scalar_select %p228, %s229, %s230
      %p234 = pneg %p228
      %p235 = scmp.eq.s32.totalorder %s25, 1
      %p236 = por %p234, %p235
      %p237 = scmp.ne.s32.totalorder %s229, %s232
      %p238 = scmp.eq.s32.totalorder %s25, 0
      %p239 = por %p237, %p238
      %p240 = scmp.ne.s32.totalorder %s229, %s232
      %p241 = scmp.eq.s32.totalorder %s30, 1
      %p242 = por %p240, %p241
      %p243 = scmp.ne.s32.totalorder %s232, %s233
      %p244 = scmp.eq.s32.totalorder %s30, 0
      %p245 = por %p243, %p244
      %p246 = scmp.ne.s32.totalorder %s232, %s233
      %p247 = scmp.eq.s32.totalorder %s31, 1
      %p248 = por %p246, %p247
      %p250 = scmp.ne.s32.totalorder %s233, %s249
      %p251 = scmp.eq.s32.totalorder %s31, 0
      %p252 = por %p250, %p251
      %s253 = ssub.s32 %s25, %s32
      %p254 = scmp.eq.s32.totalorder %s253, 0
      %s256 = sadd.s32 %s255, 1
      %s257 = scalar_select %p254, %s255, %s256
      %p260 = pneg %p254
      %p261 = scmp.eq.s32.totalorder %s25, 1
      %p262 = por %p260, %p261
      %p263 = scmp.ne.s32.totalorder %s255, %s258
      %p264 = scmp.eq.s32.totalorder %s25, 0
      %p265 = por %p263, %p264
      %p266 = scmp.ne.s32.totalorder %s255, %s258
      %p267 = scmp.eq.s32.totalorder %s30, 1
      %p268 = por %p266, %p267
      %p269 = scmp.ne.s32.totalorder %s258, %s259
      %p270 = scmp.eq.s32.totalorder %s30, 0
      %p271 = por %p269, %p270
      %p272 = scmp.ne.s32.totalorder %s258, %s259
      %p273 = scmp.eq.s32.totalorder %s31, 1
      %p274 = por %p272, %p273
      %p276 = scmp.ne.s32.totalorder %s259, %s275
      %p277 = scmp.eq.s32.totalorder %s31, 0
      %p278 = por %p276, %p277
      %s279 = ssub.s32 %s25, %s32
      %p280 = scmp.eq.s32.totalorder %s279, 0
      %s282 = sadd.s32 %s281, 1
      %s283 = scalar_select %p280, %s281, %s282
      %p286 = pneg %p280
      %p287 = scmp.eq.s32.totalorder %s25, 1
      %p288 = por %p286, %p287
      %p289 = scmp.ne.s32.totalorder %s281, %s284
      %p290 = scmp.eq.s32.totalorder %s25, 0
      %p291 = por %p289, %p290
      %p292 = scmp.ne.s32.totalorder %s281, %s284
      %p293 = scmp.eq.s32.totalorder %s30, 1
      %p294 = por %p292, %p293
      %p295 = scmp.ne.s32.totalorder %s284, %s285
      %p296 = scmp.eq.s32.totalorder %s30, 0
      %p297 = por %p295, %p296
      %p298 = scmp.ne.s32.totalorder %s284, %s285
      %p299 = scmp.eq.s32.totalorder %s31, 1
      %p300 = por %p298, %p299
      %p302 = scmp.ne.s32.totalorder %s285, %s301
      %p303 = scmp.eq.s32.totalorder %s31, 0
      %p304 = por %p302, %p303
      %s305 = ssub.s32 %s25, %s32
      %p306 = scmp.eq.s32.totalorder %s305, 0
      %s308 = sadd.s32 %s307, 1
      %s309 = scalar_select %p306, %s307, %s308
      %p312 = pneg %p306
      %p313 = scmp.eq.s32.totalorder %s25, 1
      %p314 = por %p312, %p313
      %p315 = scmp.ne.s32.totalorder %s307, %s310
      %p316 = scmp.eq.s32.totalorder %s25, 0
      %p317 = por %p315, %p316
      %p318 = scmp.ne.s32.totalorder %s307, %s310
      %p319 = scmp.eq.s32.totalorder %s30, 1
      %p320 = por %p318, %p319
      %p321 = scmp.ne.s32.totalorder %s310, %s311
      %p322 = scmp.eq.s32.totalorder %s30, 0
      %p323 = por %p321, %p322
      %p324 = scmp.ne.s32.totalorder %s310, %s311
      %p325 = scmp.eq.s32.totalorder %s31, 1
      %p326 = por %p324, %p325
      %p328 = scmp.ne.s32.totalorder %s311, %s327
      %p329 = scmp.eq.s32.totalorder %s31, 0
      %p330 = por %p328, %p329
      %p331 = scmp.le.s32.totalorder 1, %s25
      %p332 = scmp.lt.s32.totalorder %s25, 3
      %p333 = pnand %p331, %p332
      %p334 = pneg %p333
      // Predicated region
      $region9: #{encoder_forward.1} parent=5 // pred_check
        _
      $region10: #{encoder_forward.1} parent=5 // pred_check_branch
        %336 = sbr.rel (%p333) target = $region12
      $region11: #{encoder_forward.1} parent=5 // pred_region
        %s337 = ssub.s32 %s25, 1
        // Predicated region
        $region13: #{encoder_forward.1} parent=11 // pred_check
          %p338 = pneg %p72
        $region14: #{encoder_forward.1} parent=11 // pred_check_branch
          %340 = sbr.rel (%p338) target = $region16
        $region15: #{encoder_forward.1} parent=11 // pred_region
          _
        $region16: #{encoder_forward.1} parent=11 // pred_fallthru
          _
        // Predicated region
        $region17: #{encoder_forward.1} parent=11 // pred_check
          %p341 = pneg %p93
        $region18: #{encoder_forward.1} parent=11 // pred_check_branch
          %343 = sbr.rel (%p341) target = $region20
        $region19: #{encoder_forward.1} parent=11 // pred_region
          _
        $region20: #{encoder_forward.1} parent=11 // pred_fallthru
          _
        // Predicated region
        $region21: #{encoder_forward.1} parent=11 // pred_check
          %p344 = pneg %p114
        $region22: #{encoder_forward.1} parent=11 // pred_check_branch
          %346 = sbr.rel (%p344) target = $region24
        $region23: #{encoder_forward.1} parent=11 // pred_region
          _
        $region24: #{encoder_forward.1} parent=11 // pred_fallthru
          _
        // Predicated region
        $region25: #{encoder_forward.1} parent=11 // pred_check
          %p347 = pneg %p135
        $region26: #{encoder_forward.1} parent=11 // pred_check_branch
          %349 = sbr.rel (%p347) target = $region28
        $region27: #{encoder_forward.1} parent=11 // pred_region
          _
        $region28: #{encoder_forward.1} parent=11 // pred_fallthru
          _
        // Predicated region
        $region29: #{encoder_forward.1} parent=11 // pred_check
          %p350 = pneg %p156
        $region30: #{encoder_forward.1} parent=11 // pred_check_branch
          %352 = sbr.rel (%p350) target = $region32
        $region31: #{encoder_forward.1} parent=11 // pred_region
          _
        $region32: #{encoder_forward.1} parent=11 // pred_fallthru
          _
        // Predicated region
        $region33: #{encoder_forward.1} parent=11 // pred_check
          %p353 = pneg %p177
        $region34: #{encoder_forward.1} parent=11 // pred_check_branch
          %355 = sbr.rel (%p353) target = $region36
        $region35: #{encoder_forward.1} parent=11 // pred_region
          _
        $region36: #{encoder_forward.1} parent=11 // pred_fallthru
          _
        // Predicated region
        $region37: #{encoder_forward.1} parent=11 // pred_check
          %p356 = pneg %p198
        $region38: #{encoder_forward.1} parent=11 // pred_check_branch
          %358 = sbr.rel (%p356) target = $region40
        $region39: #{encoder_forward.1} parent=11 // pred_region
          _
        $region40: #{encoder_forward.1} parent=11 // pred_fallthru
          _
        // Predicated region
        $region41: #{encoder_forward.1} parent=11 // pred_check
          %p359 = pneg %p219
        $region42: #{encoder_forward.1} parent=11 // pred_check_branch
          %361 = sbr.rel (%p359) target = $region44
        $region43: #{encoder_forward.1} parent=11 // pred_region
          _
        $region44: #{encoder_forward.1} parent=11 // pred_fallthru
          _
      $region12: #{encoder_forward.1} parent=5 // pred_fallthru
        _
      %p362 = scmp.lt.s32.totalorder %s25, 2
      // Predicated region
      $region45: #{encoder_forward.1} parent=5 // pred_check
        %p363 = pneg %p362
      $region46: #{encoder_forward.1} parent=5 // pred_check_branch
        %365 = sbr.rel (%p363) target = $region48
      $region47: #{encoder_forward.1} parent=5 // pred_region
        // Predicated region
        $region49: #{encoder_forward.1} parent=47 // pred_check
          %p366 = pneg %p45
        $region50: #{encoder_forward.1} parent=47 // pred_check_branch
          %368 = sbr.rel (%p366) target = $region52
        $region51: #{encoder_forward.1} parent=47 // pred_region
          %p369 = scmp.lt.s32.totalorder %s25, 1
          %s370 = scalar_select %p369, %s25, 1
          %s371 = smul.addr %s370, 42
          %s372 = smul.addr %s371, 8
          %s373 = scalar_lea.vmem %s0, %s372
        $region52: #{encoder_forward.1} parent=47 // pred_fallthru
          _
      $region48: #{encoder_forward.1} parent=5 // pred_fallthru
        _
      %p374 = scmp.le.s32.totalorder 1, %s25
      %p375 = scmp.lt.s32.totalorder %s25, 3
      %p376 = pnand %p374, %p375
      %p377 = pneg %p376
      // Predicated region
      $region53: #{encoder_forward.1} parent=5 // pred_check
        _
      $region54: #{encoder_forward.1} parent=5 // pred_check_branch
        %379 = sbr.rel (%p376) target = $region56
      $region55: #{encoder_forward.1} parent=5 // pred_region
        %s380 = ssub.s32 %s25, 1
        %p381 = scmp.lt.s32.totalorder %s30, 1
        %s382 = scalar_select %p381, %s30, 1
        %s383 = smul.addr %s382, 42
        %s384 = smul.addr %s383, 8
        %s385 = scalar_lea.vmem %s0, %s384
        %p386 = pneg %p51
        %p387 = pneg %p48
        %p388 = pneg %p72
        %p389 = pneg %p69
        %p390 = pneg %p93
        %p391 = pneg %p90
        %p392 = pneg %p114
        %p393 = pneg %p111
        %p394 = pneg %p135
        %p395 = pneg %p132
        %p396 = pneg %p156
        %p397 = pneg %p153
        %p398 = pneg %p177
        %p399 = pneg %p174
        %p400 = pneg %p198
        %p401 = pneg %p195
        %p402 = pneg %p219
        %p403 = pneg %p216
        %p404 = pneg %p245
        %p405 = pneg %p242
        %p406 = scmp.lt.s32.totalorder %s30, 1
        %s407 = scalar_select %p406, %s30, 1
        %s408 = smul.addr %s407, 32
        %s409 = smul.addr %s408, 8
        %s410 = scalar_lea.vmem %s9, %s409
        %p411 = pneg %p271
        %p412 = pneg %p268
        %p413 = scmp.lt.s32.totalorder %s30, 1
        %s414 = scalar_select %p413, %s30, 1
        %s415 = smul.addr %s414, 8
        %s416 = smul.addr %s415, 8
        %s417 = scalar_lea.vmem %s10, %s416
        %p418 = pneg %p297
        %p419 = pneg %p294
        %s420 = sand.u32 %s284, 1
        %s421 = scalar_lea.sflag [#allocation20], %s420
        %s422 = sand.u32 %s284, 1
        %s423 = smul.addr %s422, 16
        %s424 = scalar_lea.vmem [#allocation19], %s423
        %p425 = pneg %p323
        %p426 = pneg %p320
        %s427 = sand.u32 %s310, 1
        %s428 = scalar_lea.sflag [#allocation22], %s427
        %s429 = sand.u32 %s310, 1
        %s430 = smul.addr %s429, 4
        %s431 = scalar_lea.vmem [#allocation21], %s430
        %p432 = scmp.lt.s32.totalorder %s30, 1
        %s433 = scalar_select %p432, %s30, 1
        %s434 = smul.addr %s433, 42
        %s435 = smul.addr %s434, 8
        %s436 = scalar_lea.vmem %s0, %s435
        %p437 = scmp.lt.s32.totalorder %s30, 1
        %s438 = scalar_select %p437, %s30, 1
        %s439 = smul.addr %s438, 32
        %s440 = smul.addr %s439, 8
        %s441 = scalar_lea.vmem %s9, %s440
        %p442 = scmp.lt.s32.totalorder %s30, 1
        %s443 = scalar_select %p442, %s30, 1
        %s444 = smul.addr %s443, 8
        %s445 = smul.addr %s444, 8
        %s446 = scalar_lea.vmem %s10, %s445
        %v447 = vld [vmem:[%s436] sm:$0xff]
        %v448 = vld [vmem:[%s436 + $0x8] sm:$0xff]
        %v449 = vld [vmem:[%s436 + $0x10] sm:$0xff]
        %v450 = vld [vmem:[%s436 + $0x18] sm:$0xff]
        %v451 = vld [vmem:[%s436 + $0x20] sm:$0xff]
        %v452 = vld [vmem:[%s436 + $0x28] sm:$0xff]
        %v453 = vld [vmem:[%s436 + $0x30] sm:$0xff]
        %v454 = vld [vmem:[%s436 + $0x38] sm:$0xff]
        %v455 = vld [vmem:[%s436 + $0x40] sm:$0xff]
        %v456 = vld [vmem:[%s436 + $0x48] sm:$0xff]
        %v457 = vld [vmem:[%s436 + $0x50] sm:$0xff]
        %v458 = vld [vmem:[%s436 + $0x58] sm:$0xff]
        %v459 = vld [vmem:[%s436 + $0x60] sm:$0xff]
        %v460 = vld [vmem:[%s436 + $0x68] sm:$0xff]
        %v461 = vld [vmem:[%s436 + $0x70] sm:$0xff]
        %v462 = vld [vmem:[%s436 + $0x78] sm:$0xff]
        %v463 = vld [vmem:[%s436 + $0x80] sm:$0xff]
        %v464 = vld [vmem:[%s436 + $0x88] sm:$0xff]
        %v465 = vld [vmem:[%s436 + $0x90] sm:$0xff]
        %v466 = vld [vmem:[%s436 + $0x98] sm:$0xff]
        %v467 = vld [vmem:[%s436 + $0xa0] sm:$0xff]
        %v468 = vld [vmem:[%s436 + $0xa8] sm:$0xff]
        %v469 = vld [vmem:[%s436 + $0xb0] sm:$0xff]
        %v470 = vld [vmem:[%s436 + $0xb8] sm:$0xff]
        %v471 = vld [vmem:[%s436 + $0xc0] sm:$0xff]
        %v472 = vld [vmem:[%s436 + $0xc8] sm:$0xff]
        %v473 = vld [vmem:[%s436 + $0xd0] sm:$0xff]
        %v474 = vld [vmem:[%s436 + $0xd8] sm:$0xff]
        %v475 = vld [vmem:[%s436 + $0xe0] sm:$0xff]
        %v476 = vld [vmem:[%s436 + $0xe8] sm:$0xff]
        %v477 = vld [vmem:[%s436 + $0xf0] sm:$0xff]
        %v478 = vld [vmem:[%s436 + $0xf8] sm:$0xff]
        %v479 = vld [vmem:[%s436 + $0x100] sm:$0xff]
        %v480 = vld [vmem:[%s436 + $0x108] sm:$0xff]
        %v481 = vld [vmem:[%s436 + $0x110] sm:$0xff]
        %v482 = vld [vmem:[%s436 + $0x118] sm:$0xff]
        %vm483 = vcmask 23552
        %484 = vst.msk [vmem:[#allocation2] sm:$0xff] %vm483, %v447
        %485 = vst.msk [vmem:[#allocation2 + $0x8] sm:$0xff] %vm483, %v448
        %486 = vst.msk [vmem:[#allocation2 + $0x10] sm:$0xff] %vm483, %v449
        %487 = vst.msk [vmem:[#allocation2 + $0x18] sm:$0xff] %vm483, %v450
        %488 = vst.msk [vmem:[#allocation2 + $0x20] sm:$0xff] %vm483, %v451
        %489 = vst.msk [vmem:[#allocation2 + $0x28] sm:$0xff] %vm483, %v452
        %490 = vst.msk [vmem:[#allocation2 + $0x30] sm:$0xff] %vm483, %v453
        %491 = vst.msk [vmem:[#allocation2 + $0x38] sm:$0xff] %vm483, %v454
        %492 = vst.msk [vmem:[#allocation2 + $0x40] sm:$0xff] %vm483, %v455
        %493 = vst.msk [vmem:[#allocation2 + $0x48] sm:$0xff] %vm483, %v456
        %494 = vst.msk [vmem:[#allocation2 + $0x50] sm:$0xff] %vm483, %v457
        %495 = vst.msk [vmem:[#allocation2 + $0x58] sm:$0xff] %vm483, %v458
        %496 = vst.msk [vmem:[#allocation2 + $0x60] sm:$0xff] %vm483, %v459
        %497 = vst.msk [vmem:[#allocation2 + $0x68] sm:$0xff] %vm483, %v460
        %498 = vst.msk [vmem:[#allocation2 + $0x70] sm:$0xff] %vm483, %v461
        %499 = vst.msk [vmem:[#allocation2 + $0x78] sm:$0xff] %vm483, %v462
        %500 = vst.msk [vmem:[#allocation2 + $0x80] sm:$0xff] %vm483, %v463
        %501 = vst.msk [vmem:[#allocation2 + $0x88] sm:$0xff] %vm483, %v464
        %502 = vst.msk [vmem:[#allocation2 + $0x90] sm:$0xff] %vm483, %v465
        %503 = vst.msk [vmem:[#allocation2 + $0x98] sm:$0xff] %vm483, %v466
        %504 = vst.msk [vmem:[#allocation2 + $0xa0] sm:$0xff] %vm483, %v467
        %505 = vst.msk [vmem:[#allocation2 + $0xa8] sm:$0xff] %vm483, %v468
        %506 = vst.msk [vmem:[#allocation2 + $0xb0] sm:$0xff] %vm483, %v469
        %507 = vst.msk [vmem:[#allocation2 + $0xb8] sm:$0xff] %vm483, %v470
        %508 = vst.msk [vmem:[#allocation2 + $0xc0] sm:$0xff] %vm483, %v471
        %509 = vst.msk [vmem:[#allocation2 + $0xc8] sm:$0xff] %vm483, %v472
        %510 = vst.msk [vmem:[#allocation2 + $0xd0] sm:$0xff] %vm483, %v473
        %511 = vst.msk [vmem:[#allocation2 + $0xd8] sm:$0xff] %vm483, %v474
        %512 = vst.msk [vmem:[#allocation2 + $0xe0] sm:$0xff] %vm483, %v475
        %513 = vst.msk [vmem:[#allocation2 + $0xe8] sm:$0xff] %vm483, %v476
        %514 = vst.msk [vmem:[#allocation2 + $0xf0] sm:$0xff] %vm483, %v477
        %515 = vst.msk [vmem:[#allocation2 + $0xf8] sm:$0xff] %vm483, %v478
        %516 = vst.msk [vmem:[#allocation2 + $0x100] sm:$0xff] %vm483, %v479
        %517 = vst.msk [vmem:[#allocation2 + $0x108] sm:$0xff] %vm483, %v480
        %518 = vst.msk [vmem:[#allocation2 + $0x110] sm:$0xff] %vm483, %v481
        %519 = vst.msk [vmem:[#allocation2 + $0x118] sm:$0xff] %vm483, %v482
        %v520 = vld [vmem:[%s436 + $0x1] sm:$0xff]
        %v521 = vld [vmem:[%s436 + $0x9] sm:$0xff]
        %v522 = vld [vmem:[%s436 + $0x11] sm:$0xff]
        %v523 = vld [vmem:[%s436 + $0x19] sm:$0xff]
        %v524 = vld [vmem:[%s436 + $0x21] sm:$0xff]
        %v525 = vld [vmem:[%s436 + $0x29] sm:$0xff]
        %v526 = vld [vmem:[%s436 + $0x31] sm:$0xff]
        %v527 = vld [vmem:[%s436 + $0x39] sm:$0xff]
        %v528 = vld [vmem:[%s436 + $0x41] sm:$0xff]
        %v529 = vld [vmem:[%s436 + $0x49] sm:$0xff]
        %v530 = vld [vmem:[%s436 + $0x51] sm:$0xff]
        %v531 = vld [vmem:[%s436 + $0x59] sm:$0xff]
        %v532 = vld [vmem:[%s436 + $0x61] sm:$0xff]
        %v533 = vld [vmem:[%s436 + $0x69] sm:$0xff]
        %v534 = vld [vmem:[%s436 + $0x71] sm:$0xff]
        %v535 = vld [vmem:[%s436 + $0x79] sm:$0xff]
        %v536 = vld [vmem:[%s436 + $0x81] sm:$0xff]
        %v537 = vld [vmem:[%s436 + $0x89] sm:$0xff]
        %v538 = vld [vmem:[%s436 + $0x91] sm:$0xff]
        %v539 = vld [vmem:[%s436 + $0x99] sm:$0xff]
        %v540 = vld [vmem:[%s436 + $0xa1] sm:$0xff]
        %v541 = vld [vmem:[%s436 + $0xa9] sm:$0xff]
        %v542 = vld [vmem:[%s436 + $0xb1] sm:$0xff]
        %v543 = vld [vmem:[%s436 + $0xb9] sm:$0xff]
        %v544 = vld [vmem:[%s436 + $0xc1] sm:$0xff]
        %v545 = vld [vmem:[%s436 + $0xc9] sm:$0xff]
        %v546 = vld [vmem:[%s436 + $0xd1] sm:$0xff]
        %v547 = vld [vmem:[%s436 + $0xd9] sm:$0xff]
        %v548 = vld [vmem:[%s436 + $0xe1] sm:$0xff]
        %v549 = vld [vmem:[%s436 + $0xe9] sm:$0xff]
        %v550 = vld [vmem:[%s436 + $0xf1] sm:$0xff]
        %v551 = vld [vmem:[%s436 + $0xf9] sm:$0xff]
        %v552 = vld [vmem:[%s436 + $0x101] sm:$0xff]
        %v553 = vld [vmem:[%s436 + $0x109] sm:$0xff]
        %v554 = vld [vmem:[%s436 + $0x111] sm:$0xff]
        %v555 = vld [vmem:[%s436 + $0x119] sm:$0xff]
        %592 = vrot.lane.b32.xlu0 %v520, 3
        %v593 = vpop.permute.xlu0 %592
        %594 = vrot.lane.b32.xlu0 %v521, 3
        %v595 = vpop.permute.xlu0 %594
        %596 = vrot.lane.b32.xlu0 %v522, 3
        %v597 = vpop.permute.xlu0 %596
        %598 = vrot.lane.b32.xlu0 %v523, 3
        %v599 = vpop.permute.xlu0 %598
        %600 = vrot.lane.b32.xlu0 %v524, 3
        %v601 = vpop.permute.xlu0 %600
        %602 = vrot.lane.b32.xlu0 %v525, 3
        %v603 = vpop.permute.xlu0 %602
        %604 = vrot.lane.b32.xlu0 %v526, 3
        %v605 = vpop.permute.xlu0 %604
        %606 = vrot.lane.b32.xlu0 %v527, 3
        %v607 = vpop.permute.xlu0 %606
        %608 = vrot.lane.b32.xlu0 %v528, 3
        %v609 = vpop.permute.xlu0 %608
        %610 = vrot.lane.b32.xlu0 %v529, 3
        %v611 = vpop.permute.xlu0 %610
        %612 = vrot.lane.b32.xlu0 %v530, 3
        %v613 = vpop.permute.xlu0 %612
        %614 = vrot.lane.b32.xlu0 %v531, 3
        %v615 = vpop.permute.xlu0 %614
        %616 = vrot.lane.b32.xlu0 %v532, 3
        %v617 = vpop.permute.xlu0 %616
        %618 = vrot.lane.b32.xlu0 %v533, 3
        %v619 = vpop.permute.xlu0 %618
        %620 = vrot.lane.b32.xlu0 %v534, 3
        %v621 = vpop.permute.xlu0 %620
        %622 = vrot.lane.b32.xlu0 %v535, 3
        %v623 = vpop.permute.xlu0 %622
        %624 = vrot.lane.b32.xlu0 %v536, 3
        %v625 = vpop.permute.xlu0 %624
        %626 = vrot.lane.b32.xlu0 %v537, 3
        %v627 = vpop.permute.xlu0 %626
        %628 = vrot.lane.b32.xlu0 %v538, 3
        %v629 = vpop.permute.xlu0 %628
        %630 = vrot.lane.b32.xlu0 %v539, 3
        %v631 = vpop.permute.xlu0 %630
        %632 = vrot.lane.b32.xlu0 %v540, 3
        %v633 = vpop.permute.xlu0 %632
        %634 = vrot.lane.b32.xlu0 %v541, 3
        %v635 = vpop.permute.xlu0 %634
        %636 = vrot.lane.b32.xlu0 %v542, 3
        %v637 = vpop.permute.xlu0 %636
        %638 = vrot.lane.b32.xlu0 %v543, 3
        %v639 = vpop.permute.xlu0 %638
        %640 = vrot.lane.b32.xlu0 %v544, 3
        %v641 = vpop.permute.xlu0 %640
        %642 = vrot.lane.b32.xlu0 %v545, 3
        %v643 = vpop.permute.xlu0 %642
        %644 = vrot.lane.b32.xlu0 %v546, 3
        %v645 = vpop.permute.xlu0 %644
        %646 = vrot.lane.b32.xlu0 %v547, 3
        %v647 = vpop.permute.xlu0 %646
        %648 = vrot.lane.b32.xlu0 %v548, 3
        %v649 = vpop.permute.xlu0 %648
        %650 = vrot.lane.b32.xlu0 %v549, 3
        %v651 = vpop.permute.xlu0 %650
        %652 = vrot.lane.b32.xlu0 %v550, 3
        %v653 = vpop.permute.xlu0 %652
        %654 = vrot.lane.b32.xlu0 %v551, 3
        %v655 = vpop.permute.xlu0 %654
        %656 = vrot.lane.b32.xlu0 %v552, 3
        %v657 = vpop.permute.xlu0 %656
        %658 = vrot.lane.b32.xlu0 %v553, 3
        %v659 = vpop.permute.xlu0 %658
        %660 = vrot.lane.b32.xlu0 %v554, 3
        %v661 = vpop.permute.xlu0 %660
        %662 = vrot.lane.b32.xlu0 %v555, 3
        %v663 = vpop.permute.xlu0 %662
        %vm700 = vcmask 48152
        %701 = vst.msk [vmem:[#allocation2] sm:$0xff] %vm700, %v593
        %702 = vst.msk [vmem:[#allocation2 + $0x8] sm:$0xff] %vm700, %v595
        %703 = vst.msk [vmem:[#allocation2 + $0x10] sm:$0xff] %vm700, %v597
        %704 = vst.msk [vmem:[#allocation2 + $0x18] sm:$0xff] %vm700, %v599
        %705 = vst.msk [vmem:[#allocation2 + $0x20] sm:$0xff] %vm700, %v601
        %706 = vst.msk [vmem:[#allocation2 + $0x28] sm:$0xff] %vm700, %v603
        %707 = vst.msk [vmem:[#allocation2 + $0x30] sm:$0xff] %vm700, %v605
        %708 = vst.msk [vmem:[#allocation2 + $0x38] sm:$0xff] %vm700, %v607
        %709 = vst.msk [vmem:[#allocation2 + $0x40] sm:$0xff] %vm700, %v609
        %710 = vst.msk [vmem:[#allocation2 + $0x48] sm:$0xff] %vm700, %v611
        %711 = vst.msk [vmem:[#allocation2 + $0x50] sm:$0xff] %vm700, %v613
        %712 = vst.msk [vmem:[#allocation2 + $0x58] sm:$0xff] %vm700, %v615
        %713 = vst.msk [vmem:[#allocation2 + $0x60] sm:$0xff] %vm700, %v617
        %714 = vst.msk [vmem:[#allocation2 + $0x68] sm:$0xff] %vm700, %v619
        %715 = vst.msk [vmem:[#allocation2 + $0x70] sm:$0xff] %vm700, %v621
        %716 = vst.msk [vmem:[#allocation2 + $0x78] sm:$0xff] %vm700, %v623
        %717 = vst.msk [vmem:[#allocation2 + $0x80] sm:$0xff] %vm700, %v625
        %718 = vst.msk [vmem:[#allocation2 + $0x88] sm:$0xff] %vm700, %v627
        %719 = vst.msk [vmem:[#allocation2 + $0x90] sm:$0xff] %vm700, %v629
        %720 = vst.msk [vmem:[#allocation2 + $0x98] sm:$0xff] %vm700, %v631
        %721 = vst.msk [vmem:[#allocation2 + $0xa0] sm:$0xff] %vm700, %v633
        %722 = vst.msk [vmem:[#allocation2 + $0xa8] sm:$0xff] %vm700, %v635
        %723 = vst.msk [vmem:[#allocation2 + $0xb0] sm:$0xff] %vm700, %v637
        %724 = vst.msk [vmem:[#allocation2 + $0xb8] sm:$0xff] %vm700, %v639
        %725 = vst.msk [vmem:[#allocation2 + $0xc0] sm:$0xff] %vm700, %v641
        %726 = vst.msk [vmem:[#allocation2 + $0xc8] sm:$0xff] %vm700, %v643
        %727 = vst.msk [vmem:[#allocation2 + $0xd0] sm:$0xff] %vm700, %v645
        %728 = vst.msk [vmem:[#allocation2 + $0xd8] sm:$0xff] %vm700, %v647
        %729 = vst.msk [vmem:[#allocation2 + $0xe0] sm:$0xff] %vm700, %v649
        %730 = vst.msk [vmem:[#allocation2 + $0xe8] sm:$0xff] %vm700, %v651
        %731 = vst.msk [vmem:[#allocation2 + $0xf0] sm:$0xff] %vm700, %v653
        %732 = vst.msk [vmem:[#allocation2 + $0xf8] sm:$0xff] %vm700, %v655
        %733 = vst.msk [vmem:[#allocation2 + $0x100] sm:$0xff] %vm700, %v657
        %734 = vst.msk [vmem:[#allocation2 + $0x108] sm:$0xff] %vm700, %v659
        %735 = vst.msk [vmem:[#allocation2 + $0x110] sm:$0xff] %vm700, %v661
        %736 = vst.msk [vmem:[#allocation2 + $0x118] sm:$0xff] %vm700, %v663
        %v737 = vld [vmem:[%s436 + $0x2] sm:$0xff]
        %v738 = vld [vmem:[%s436 + $0xa] sm:$0xff]
        %v739 = vld [vmem:[%s436 + $0x12] sm:$0xff]
        %v740 = vld [vmem:[%s436 + $0x1a] sm:$0xff]
        %v741 = vld [vmem:[%s436 + $0x22] sm:$0xff]
        %v742 = vld [vmem:[%s436 + $0x2a] sm:$0xff]
        %v743 = vld [vmem:[%s436 + $0x32] sm:$0xff]
        %v744 = vld [vmem:[%s436 + $0x3a] sm:$0xff]
        %v745 = vld [vmem:[%s436 + $0x42] sm:$0xff]
        %v746 = vld [vmem:[%s436 + $0x4a] sm:$0xff]
        %v747 = vld [vmem:[%s436 + $0x52] sm:$0xff]
        %v748 = vld [vmem:[%s436 + $0x5a] sm:$0xff]
        %v749 = vld [vmem:[%s436 + $0x62] sm:$0xff]
        %v750 = vld [vmem:[%s436 + $0x6a] sm:$0xff]
        %v751 = vld [vmem:[%s436 + $0x72] sm:$0xff]
        %v752 = vld [vmem:[%s436 + $0x7a] sm:$0xff]
        %v753 = vld [vmem:[%s436 + $0x82] sm:$0xff]
        %v754 = vld [vmem:[%s436 + $0x8a] sm:$0xff]
        %v755 = vld [vmem:[%s436 + $0x92] sm:$0xff]
        %v756 = vld [vmem:[%s436 + $0x9a] sm:$0xff]
        %v757 = vld [vmem:[%s436 + $0xa2] sm:$0xff]
        %v758 = vld [vmem:[%s436 + $0xaa] sm:$0xff]
        %v759 = vld [vmem:[%s436 + $0xb2] sm:$0xff]
        %v760 = vld [vmem:[%s436 + $0xba] sm:$0xff]
        %v761 = vld [vmem:[%s436 + $0xc2] sm:$0xff]
        %v762 = vld [vmem:[%s436 + $0xca] sm:$0xff]
        %v763 = vld [vmem:[%s436 + $0xd2] sm:$0xff]
        %v764 = vld [vmem:[%s436 + $0xda] sm:$0xff]
        %v765 = vld [vmem:[%s436 + $0xe2] sm:$0xff]
        %v766 = vld [vmem:[%s436 + $0xea] sm:$0xff]
        %v767 = vld [vmem:[%s436 + $0xf2] sm:$0xff]
        %v768 = vld [vmem:[%s436 + $0xfa] sm:$0xff]
        %v769 = vld [vmem:[%s436 + $0x102] sm:$0xff]
        %v770 = vld [vmem:[%s436 + $0x10a] sm:$0xff]
        %v771 = vld [vmem:[%s436 + $0x112] sm:$0xff]
        %v772 = vld [vmem:[%s436 + $0x11a] sm:$0xff]
        %809 = vrot.lane.b32.xlu0 %v737, 6
        %v810 = vpop.permute.xlu0 %809
        %811 = vrot.lane.b32.xlu0 %v738, 6
        %v812 = vpop.permute.xlu0 %811
        %813 = vrot.lane.b32.xlu0 %v739, 6
        %v814 = vpop.permute.xlu0 %813
        %815 = vrot.lane.b32.xlu0 %v740, 6
        %v816 = vpop.permute.xlu0 %815
        %817 = vrot.lane.b32.xlu0 %v741, 6
        %v818 = vpop.permute.xlu0 %817
        %819 = vrot.lane.b32.xlu0 %v742, 6
        %v820 = vpop.permute.xlu0 %819
        %821 = vrot.lane.b32.xlu0 %v743, 6
        %v822 = vpop.permute.xlu0 %821
        %823 = vrot.lane.b32.xlu0 %v744, 6
        %v824 = vpop.permute.xlu0 %823
        %825 = vrot.lane.b32.xlu0 %v745, 6
        %v826 = vpop.permute.xlu0 %825
        %827 = vrot.lane.b32.xlu0 %v746, 6
        %v828 = vpop.permute.xlu0 %827
        %829 = vrot.lane.b32.xlu0 %v747, 6
        %v830 = vpop.permute.xlu0 %829
        %831 = vrot.lane.b32.xlu0 %v748, 6
        %v832 = vpop.permute.xlu0 %831
        %833 = vrot.lane.b32.xlu0 %v749, 6
        %v834 = vpop.permute.xlu0 %833
        %835 = vrot.lane.b32.xlu0 %v750, 6
        %v836 = vpop.permute.xlu0 %835
        %837 = vrot.lane.b32.xlu0 %v751, 6
        %v838 = vpop.permute.xlu0 %837
        %839 = vrot.lane.b32.xlu0 %v752, 6
        %v840 = vpop.permute.xlu0 %839
        %841 = vrot.lane.b32.xlu0 %v753, 6
        %v842 = vpop.permute.xlu0 %841
        %843 = vrot.lane.b32.xlu0 %v754, 6
        %v844 = vpop.permute.xlu0 %843
        %845 = vrot.lane.b32.xlu0 %v755, 6
        %v846 = vpop.permute.xlu0 %845
        %847 = vrot.lane.b32.xlu0 %v756, 6
        %v848 = vpop.permute.xlu0 %847
        %849 = vrot.lane.b32.xlu0 %v757, 6
        %v850 = vpop.permute.xlu0 %849
        %851 = vrot.lane.b32.xlu0 %v758, 6
        %v852 = vpop.permute.xlu0 %851
        %853 = vrot.lane.b32.xlu0 %v759, 6
        %v854 = vpop.permute.xlu0 %853
        %855 = vrot.lane.b32.xlu0 %v760, 6
        %v856 = vpop.permute.xlu0 %855
        %857 = vrot.lane.b32.xlu0 %v761, 6
        %v858 = vpop.permute.xlu0 %857
        %859 = vrot.lane.b32.xlu0 %v762, 6
        %v860 = vpop.permute.xlu0 %859
        %861 = vrot.lane.b32.xlu0 %v763, 6
        %v862 = vpop.permute.xlu0 %861
        %863 = vrot.lane.b32.xlu0 %v764, 6
        %v864 = vpop.permute.xlu0 %863
        %865 = vrot.lane.b32.xlu0 %v765, 6
        %v866 = vpop.permute.xlu0 %865
        %867 = vrot.lane.b32.xlu0 %v766, 6
        %v868 = vpop.permute.xlu0 %867
        %869 = vrot.lane.b32.xlu0 %v767, 6
        %v870 = vpop.permute.xlu0 %869
        %871 = vrot.lane.b32.xlu0 %v768, 6
        %v872 = vpop.permute.xlu0 %871
        %873 = vrot.lane.b32.xlu0 %v769, 6
        %v874 = vpop.permute.xlu0 %873
        %875 = vrot.lane.b32.xlu0 %v770, 6
        %v876 = vpop.permute.xlu0 %875
        %877 = vrot.lane.b32.xlu0 %v771, 6
        %v878 = vpop.permute.xlu0 %877
        %879 = vrot.lane.b32.xlu0 %v772, 6
        %v880 = vpop.permute.xlu0 %879
        %vm917 = vcmask 72752
        %918 = vst.msk [vmem:[#allocation2] sm:$0xff] %vm917, %v810
        %919 = vst.msk [vmem:[#allocation2 + $0x8] sm:$0xff] %vm917, %v812
        %920 = vst.msk [vmem:[#allocation2 + $0x10] sm:$0xff] %vm917, %v814
        %921 = vst.msk [vmem:[#allocation2 + $0x18] sm:$0xff] %vm917, %v816
        %922 = vst.msk [vmem:[#allocation2 + $0x20] sm:$0xff] %vm917, %v818
        %923 = vst.msk [vmem:[#allocation2 + $0x28] sm:$0xff] %vm917, %v820
        %924 = vst.msk [vmem:[#allocation2 + $0x30] sm:$0xff] %vm917, %v822
        %925 = vst.msk [vmem:[#allocation2 + $0x38] sm:$0xff] %vm917, %v824
        %926 = vst.msk [vmem:[#allocation2 + $0x40] sm:$0xff] %vm917, %v826
        %927 = vst.msk [vmem:[#allocation2 + $0x48] sm:$0xff] %vm917, %v828
        %928 = vst.msk [vmem:[#allocation2 + $0x50] sm:$0xff] %vm917, %v830
        %929 = vst.msk [vmem:[#allocation2 + $0x58] sm:$0xff] %vm917, %v832
        %930 = vst.msk [vmem:[#allocation2 + $0x60] sm:$0xff] %vm917, %v834
        %931 = vst.msk [vmem:[#allocation2 + $0x68] sm:$0xff] %vm917, %v836
        %932 = vst.msk [vmem:[#allocation2 + $0x70] sm:$0xff] %vm917, %v838
        %933 = vst.msk [vmem:[#allocation2 + $0x78] sm:$0xff] %vm917, %v840
        %934 = vst.msk [vmem:[#allocation2 + $0x80] sm:$0xff] %vm917, %v842
        %935 = vst.msk [vmem:[#allocation2 + $0x88] sm:$0xff] %vm917, %v844
        %936 = vst.msk [vmem:[#allocation2 + $0x90] sm:$0xff] %vm917, %v846
        %937 = vst.msk [vmem:[#allocation2 + $0x98] sm:$0xff] %vm917, %v848
        %938 = vst.msk [vmem:[#allocation2 + $0xa0] sm:$0xff] %vm917, %v850
        %939 = vst.msk [vmem:[#allocation2 + $0xa8] sm:$0xff] %vm917, %v852
        %940 = vst.msk [vmem:[#allocation2 + $0xb0] sm:$0xff] %vm917, %v854
        %941 = vst.msk [vmem:[#allocation2 + $0xb8] sm:$0xff] %vm917, %v856
        %942 = vst.msk [vmem:[#allocation2 + $0xc0] sm:$0xff] %vm917, %v858
        %943 = vst.msk [vmem:[#allocation2 + $0xc8] sm:$0xff] %vm917, %v860
        %944 = vst.msk [vmem:[#allocation2 + $0xd0] sm:$0xff] %vm917, %v862
        %945 = vst.msk [vmem:[#allocation2 + $0xd8] sm:$0xff] %vm917, %v864
        %946 = vst.msk [vmem:[#allocation2 + $0xe0] sm:$0xff] %vm917, %v866
        %947 = vst.msk [vmem:[#allocation2 + $0xe8] sm:$0xff] %vm917, %v868
        %948 = vst.msk [vmem:[#allocation2 + $0xf0] sm:$0xff] %vm917, %v870
        %949 = vst.msk [vmem:[#allocation2 + $0xf8] sm:$0xff] %vm917, %v872
        %950 = vst.msk [vmem:[#allocation2 + $0x100] sm:$0xff] %vm917, %v874
        %951 = vst.msk [vmem:[#allocation2 + $0x108] sm:$0xff] %vm917, %v876
        %952 = vst.msk [vmem:[#allocation2 + $0x110] sm:$0xff] %vm917, %v878
        %953 = vst.msk [vmem:[#allocation2 + $0x118] sm:$0xff] %vm917, %v880
        %v954 = vld [vmem:[%s436 + $0x12] sm:$0xff]
        %v955 = vld [vmem:[%s436 + $0x1a] sm:$0xff]
        %v956 = vld [vmem:[%s436 + $0x22] sm:$0xff]
        %v957 = vld [vmem:[%s436 + $0x2a] sm:$0xff]
        %v958 = vld [vmem:[%s436 + $0x32] sm:$0xff]
        %v959 = vld [vmem:[%s436 + $0x3a] sm:$0xff]
        %v960 = vld [vmem:[%s436 + $0x42] sm:$0xff]
        %v961 = vld [vmem:[%s436 + $0x4a] sm:$0xff]
        %v962 = vld [vmem:[%s436 + $0x52] sm:$0xff]
        %v963 = vld [vmem:[%s436 + $0x5a] sm:$0xff]
        %v964 = vld [vmem:[%s436 + $0x62] sm:$0xff]
        %v965 = vld [vmem:[%s436 + $0x6a] sm:$0xff]
        %v966 = vld [vmem:[%s436 + $0x72] sm:$0xff]
        %v967 = vld [vmem:[%s436 + $0x7a] sm:$0xff]
        %v968 = vld [vmem:[%s436 + $0x82] sm:$0xff]
        %v969 = vld [vmem:[%s436 + $0x8a] sm:$0xff]
        %v970 = vld [vmem:[%s436 + $0x92] sm:$0xff]
        %v971 = vld [vmem:[%s436 + $0x9a] sm:$0xff]
        %v972 = vld [vmem:[%s436 + $0xa2] sm:$0xff]
        %v973 = vld [vmem:[%s436 + $0xaa] sm:$0xff]
        %v974 = vld [vmem:[%s436 + $0xb2] sm:$0xff]
        %v975 = vld [vmem:[%s436 + $0xba] sm:$0xff]
        %v976 = vld [vmem:[%s436 + $0xc2] sm:$0xff]
        %v977 = vld [vmem:[%s436 + $0xca] sm:$0xff]
        %v978 = vld [vmem:[%s436 + $0xd2] sm:$0xff]
        %v979 = vld [vmem:[%s436 + $0xda] sm:$0xff]
        %v980 = vld [vmem:[%s436 + $0xe2] sm:$0xff]
        %v981 = vld [vmem:[%s436 + $0xea] sm:$0xff]
        %v982 = vld [vmem:[%s436 + $0xf2] sm:$0xff]
        %v983 = vld [vmem:[%s436 + $0xfa] sm:$0xff]
        %v984 = vld [vmem:[%s436 + $0x102] sm:$0xff]
        %v985 = vld [vmem:[%s436 + $0x10a] sm:$0xff]
        %v986 = vld [vmem:[%s436 + $0x112] sm:$0xff]
        %v987 = vld [vmem:[%s436 + $0x11a] sm:$0xff]
        %v988 = vld [vmem:[%s436 + $0x122] sm:$0xff]
        %v989 = vld [vmem:[%s436 + $0x12a] sm:$0xff]
        %1026 = vrot.lane.b32.xlu0 %v954, 9
        %v1027 = vpop.permute.xlu0 %1026
        %1028 = vrot.lane.b32.xlu0 %v955, 9
        %v1029 = vpop.permute.xlu0 %1028
        %1030 = vrot.lane.b32.xlu0 %v956, 9
        %v1031 = vpop.permute.xlu0 %1030
        %1032 = vrot.lane.b32.xlu0 %v957, 9
        %v1033 = vpop.permute.xlu0 %1032
        %1034 = vrot.lane.b32.xlu0 %v958, 9
        %v1035 = vpop.permute.xlu0 %1034
        %1036 = vrot.lane.b32.xlu0 %v959, 9
        %v1037 = vpop.permute.xlu0 %1036
        %1038 = vrot.lane.b32.xlu0 %v960, 9
        %v1039 = vpop.permute.xlu0 %1038
        %1040 = vrot.lane.b32.xlu0 %v961, 9
        %v1041 = vpop.permute.xlu0 %1040
        %1042 = vrot.lane.b32.xlu0 %v962, 9
        %v1043 = vpop.permute.xlu0 %1042
        %1044 = vrot.lane.b32.xlu0 %v963, 9
        %v1045 = vpop.permute.xlu0 %1044
        %1046 = vrot.lane.b32.xlu0 %v964, 9
        %v1047 = vpop.permute.xlu0 %1046
        %1048 = vrot.lane.b32.xlu0 %v965, 9
        %v1049 = vpop.permute.xlu0 %1048
        %1050 = vrot.lane.b32.xlu0 %v966, 9
        %v1051 = vpop.permute.xlu0 %1050
        %1052 = vrot.lane.b32.xlu0 %v967, 9
        %v1053 = vpop.permute.xlu0 %1052
        %1054 = vrot.lane.b32.xlu0 %v968, 9
        %v1055 = vpop.permute.xlu0 %1054
        %1056 = vrot.lane.b32.xlu0 %v969, 9
        %v1057 = vpop.permute.xlu0 %1056
        %1058 = vrot.lane.b32.xlu0 %v970, 9
        %v1059 = vpop.permute.xlu0 %1058
        %1060 = vrot.lane.b32.xlu0 %v971, 9
        %v1061 = vpop.permute.xlu0 %1060
        %1062 = vrot.lane.b32.xlu0 %v972, 9
        %v1063 = vpop.permute.xlu0 %1062
        %1064 = vrot.lane.b32.xlu0 %v973, 9
        %v1065 = vpop.permute.xlu0 %1064
        %1066 = vrot.lane.b32.xlu0 %v974, 9
        %v1067 = vpop.permute.xlu0 %1066
        %1068 = vrot.lane.b32.xlu0 %v975, 9
        %v1069 = vpop.permute.xlu0 %1068
        %1070 = vrot.lane.b32.xlu0 %v976, 9
        %v1071 = vpop.permute.xlu0 %1070
        %1072 = vrot.lane.b32.xlu0 %v977, 9
        %v1073 = vpop.permute.xlu0 %1072
        %1074 = vrot.lane.b32.xlu0 %v978, 9
        %v1075 = vpop.permute.xlu0 %1074
        %1076 = vrot.lane.b32.xlu0 %v979, 9
        %v1077 = vpop.permute.xlu0 %1076
        %1078 = vrot.lane.b32.xlu0 %v980, 9
        %v1079 = vpop.permute.xlu0 %1078
        %1080 = vrot.lane.b32.xlu0 %v981, 9
        %v1081 = vpop.permute.xlu0 %1080
        %1082 = vrot.lane.b32.xlu0 %v982, 9
        %v1083 = vpop.permute.xlu0 %1082
        %1084 = vrot.lane.b32.xlu0 %v983, 9
        %v1085 = vpop.permute.xlu0 %1084
        %1086 = vrot.lane.b32.xlu0 %v984, 9
        %v1087 = vpop.permute.xlu0 %1086
        %1088 = vrot.lane.b32.xlu0 %v985, 9
        %v1089 = vpop.permute.xlu0 %1088
        %1090 = vrot.lane.b32.xlu0 %v986, 9
        %v1091 = vpop.permute.xlu0 %1090
        %1092 = vrot.lane.b32.xlu0 %v987, 9
        %v1093 = vpop.permute.xlu0 %1092
        %1094 = vrot.lane.b32.xlu0 %v988, 9
        %v1095 = vpop.permute.xlu0 %1094
        %1096 = vrot.lane.b32.xlu0 %v989, 9
        %v1097 = vpop.permute.xlu0 %1096
        %vm1134 = vcmask 97352
        %1135 = vst.msk [vmem:[#allocation2] sm:$0xff] %vm1134, %v1027
        %1136 = vst.msk [vmem:[#allocation2 + $0x8] sm:$0xff] %vm1134, %v1029
        %1137 = vst.msk [vmem:[#allocation2 + $0x10] sm:$0xff] %vm1134, %v1031
        %1138 = vst.msk [vmem:[#allocation2 + $0x18] sm:$0xff] %vm1134, %v1033
        %1139 = vst.msk [vmem:[#allocation2 + $0x20] sm:$0xff] %vm1134, %v1035
        %1140 = vst.msk [vmem:[#allocation2 + $0x28] sm:$0xff] %vm1134, %v1037
        %1141 = vst.msk [vmem:[#allocation2 + $0x30] sm:$0xff] %vm1134, %v1039
        %1142 = vst.msk [vmem:[#allocation2 + $0x38] sm:$0xff] %vm1134, %v1041
        %1143 = vst.msk [vmem:[#allocation2 + $0x40] sm:$0xff] %vm1134, %v1043
        %1144 = vst.msk [vmem:[#allocation2 + $0x48] sm:$0xff] %vm1134, %v1045
        %1145 = vst.msk [vmem:[#allocation2 + $0x50] sm:$0xff] %vm1134, %v1047
        %1146 = vst.msk [vmem:[#allocation2 + $0x58] sm:$0xff] %vm1134, %v1049
        %1147 = vst.msk [vmem:[#allocation2 + $0x60] sm:$0xff] %vm1134, %v1051
        %1148 = vst.msk [vmem:[#allocation2 + $0x68] sm:$0xff] %vm1134, %v1053
        %1149 = vst.msk [vmem:[#allocation2 + $0x70] sm:$0xff] %vm1134, %v1055
        %1150 = vst.msk [vmem:[#allocation2 + $0x78] sm:$0xff] %vm1134, %v1057
        %1151 = vst.msk [vmem:[#allocation2 + $0x80] sm:$0xff] %vm1134, %v1059
        %1152 = vst.msk [vmem:[#allocation2 + $0x88] sm:$0xff] %vm1134, %v1061
        %1153 = vst.msk [vmem:[#allocation2 + $0x90] sm:$0xff] %vm1134, %v1063
        %1154 = vst.msk [vmem:[#allocation2 + $0x98] sm:$0xff] %vm1134, %v1065
        %1155 = vst.msk [vmem:[#allocation2 + $0xa0] sm:$0xff] %vm1134, %v1067
        %1156 = vst.msk [vmem:[#allocation2 + $0xa8] sm:$0xff] %vm1134, %v1069
        %1157 = vst.msk [vmem:[#allocation2 + $0xb0] sm:$0xff] %vm1134, %v1071
        %1158 = vst.msk [vmem:[#allocation2 + $0xb8] sm:$0xff] %vm1134, %v1073
        %1159 = vst.msk [vmem:[#allocation2 + $0xc0] sm:$0xff] %vm1134, %v1075
        %1160 = vst.msk [vmem:[#allocation2 + $0xc8] sm:$0xff] %vm1134, %v1077
        %1161 = vst.msk [vmem:[#allocation2 + $0xd0] sm:$0xff] %vm1134, %v1079
        %1162 = vst.msk [vmem:[#allocation2 + $0xd8] sm:$0xff] %vm1134, %v1081
        %1163 = vst.msk [vmem:[#allocation2 + $0xe0] sm:$0xff] %vm1134, %v1083
        %1164 = vst.msk [vmem:[#allocation2 + $0xe8] sm:$0xff] %vm1134, %v1085
        %1165 = vst.msk [vmem:[#allocation2 + $0xf0] sm:$0xff] %vm1134, %v1087
        %1166 = vst.msk [vmem:[#allocation2 + $0xf8] sm:$0xff] %vm1134, %v1089
        %1167 = vst.msk [vmem:[#allocation2 + $0x100] sm:$0xff] %vm1134, %v1091
        %1168 = vst.msk [vmem:[#allocation2 + $0x108] sm:$0xff] %vm1134, %v1093
        %1169 = vst.msk [vmem:[#allocation2 + $0x110] sm:$0xff] %vm1134, %v1095
        %1170 = vst.msk [vmem:[#allocation2 + $0x118] sm:$0xff] %vm1134, %v1097
        %v1171 = vld [vmem:[%s436 + $0x13] sm:$0xff]
        %v1172 = vld [vmem:[%s436 + $0x1b] sm:$0xff]
        %v1173 = vld [vmem:[%s436 + $0x23] sm:$0xff]
        %v1174 = vld [vmem:[%s436 + $0x2b] sm:$0xff]
        %v1175 = vld [vmem:[%s436 + $0x33] sm:$0xff]
        %v1176 = vld [vmem:[%s436 + $0x3b] sm:$0xff]
        %v1177 = vld [vmem:[%s436 + $0x43] sm:$0xff]
        %v1178 = vld [vmem:[%s436 + $0x4b] sm:$0xff]
        %v1179 = vld [vmem:[%s436 + $0x53] sm:$0xff]
        %v1180 = vld [vmem:[%s436 + $0x5b] sm:$0xff]
        %v1181 = vld [vmem:[%s436 + $0x63] sm:$0xff]
        %v1182 = vld [vmem:[%s436 + $0x6b] sm:$0xff]
        %v1183 = vld [vmem:[%s436 + $0x73] sm:$0xff]
        %v1184 = vld [vmem:[%s436 + $0x7b] sm:$0xff]
        %v1185 = vld [vmem:[%s436 + $0x83] sm:$0xff]
        %v1186 = vld [vmem:[%s436 + $0x8b] sm:$0xff]
        %v1187 = vld [vmem:[%s436 + $0x93] sm:$0xff]
        %v1188 = vld [vmem:[%s436 + $0x9b] sm:$0xff]
        %v1189 = vld [vmem:[%s436 + $0xa3] sm:$0xff]
        %v1190 = vld [vmem:[%s436 + $0xab] sm:$0xff]
        %v1191 = vld [vmem:[%s436 + $0xb3] sm:$0xff]
        %v1192 = vld [vmem:[%s436 + $0xbb] sm:$0xff]
        %v1193 = vld [vmem:[%s436 + $0xc3] sm:$0xff]
        %v1194 = vld [vmem:[%s436 + $0xcb] sm:$0xff]
        %v1195 = vld [vmem:[%s436 + $0xd3] sm:$0xff]
        %v1196 = vld [vmem:[%s436 + $0xdb] sm:$0xff]
        %v1197 = vld [vmem:[%s436 + $0xe3] sm:$0xff]
        %v1198 = vld [vmem:[%s436 + $0xeb] sm:$0xff]
        %v1199 = vld [vmem:[%s436 + $0xf3] sm:$0xff]
        %v1200 = vld [vmem:[%s436 + $0xfb] sm:$0xff]
        %v1201 = vld [vmem:[%s436 + $0x103] sm:$0xff]
        %v1202 = vld [vmem:[%s436 + $0x10b] sm:$0xff]
        %v1203 = vld [vmem:[%s436 + $0x113] sm:$0xff]
        %v1204 = vld [vmem:[%s436 + $0x11b] sm:$0xff]
        %v1205 = vld [vmem:[%s436 + $0x123] sm:$0xff]
        %v1206 = vld [vmem:[%s436 + $0x12b] sm:$0xff]
        %1243 = vrot.lane.b32.xlu0 %v1171, 12
        %v1244 = vpop.permute.xlu0 %1243
        %1245 = vrot.lane.b32.xlu0 %v1172, 12
        %v1246 = vpop.permute.xlu0 %1245
        %1247 = vrot.lane.b32.xlu0 %v1173, 12
        %v1248 = vpop.permute.xlu0 %1247
        %1249 = vrot.lane.b32.xlu0 %v1174, 12
        %v1250 = vpop.permute.xlu0 %1249
        %1251 = vrot.lane.b32.xlu0 %v1175, 12
        %v1252 = vpop.permute.xlu0 %1251
        %1253 = vrot.lane.b32.xlu0 %v1176, 12
        %v1254 = vpop.permute.xlu0 %1253
        %1255 = vrot.lane.b32.xlu0 %v1177, 12
        %v1256 = vpop.permute.xlu0 %1255
        %1257 = vrot.lane.b32.xlu0 %v1178, 12
        %v1258 = vpop.permute.xlu0 %1257
        %1259 = vrot.lane.b32.xlu0 %v1179, 12
        %v1260 = vpop.permute.xlu0 %1259
        %1261 = vrot.lane.b32.xlu0 %v1180, 12
        %v1262 = vpop.permute.xlu0 %1261
        %1263 = vrot.lane.b32.xlu0 %v1181, 12
        %v1264 = vpop.permute.xlu0 %1263
        %1265 = vrot.lane.b32.xlu0 %v1182, 12
        %v1266 = vpop.permute.xlu0 %1265
        %1267 = vrot.lane.b32.xlu0 %v1183, 12
        %v1268 = vpop.permute.xlu0 %1267
        %1269 = vrot.lane.b32.xlu0 %v1184, 12
        %v1270 = vpop.permute.xlu0 %1269
        %1271 = vrot.lane.b32.xlu0 %v1185, 12
        %v1272 = vpop.permute.xlu0 %1271
        %1273 = vrot.lane.b32.xlu0 %v1186, 12
        %v1274 = vpop.permute.xlu0 %1273
        %1275 = vrot.lane.b32.xlu0 %v1187, 12
        %v1276 = vpop.permute.xlu0 %1275
        %1277 = vrot.lane.b32.xlu0 %v1188, 12
        %v1278 = vpop.permute.xlu0 %1277
        %1279 = vrot.lane.b32.xlu0 %v1189, 12
        %v1280 = vpop.permute.xlu0 %1279
        %1281 = vrot.lane.b32.xlu0 %v1190, 12
        %v1282 = vpop.permute.xlu0 %1281
        %1283 = vrot.lane.b32.xlu0 %v1191, 12
        %v1284 = vpop.permute.xlu0 %1283
        %1285 = vrot.lane.b32.xlu0 %v1192, 12
        %v1286 = vpop.permute.xlu0 %1285
        %1287 = vrot.lane.b32.xlu0 %v1193, 12
        %v1288 = vpop.permute.xlu0 %1287
        %1289 = vrot.lane.b32.xlu0 %v1194, 12
        %v1290 = vpop.permute.xlu0 %1289
        %1291 = vrot.lane.b32.xlu0 %v1195, 12
        %v1292 = vpop.permute.xlu0 %1291
        %1293 = vrot.lane.b32.xlu0 %v1196, 12
        %v1294 = vpop.permute.xlu0 %1293
        %1295 = vrot.lane.b32.xlu0 %v1197, 12
        %v1296 = vpop.permute.xlu0 %1295
        %1297 = vrot.lane.b32.xlu0 %v1198, 12
        %v1298 = vpop.permute.xlu0 %1297
        %1299 = vrot.lane.b32.xlu0 %v1199, 12
        %v1300 = vpop.permute.xlu0 %1299
        %1301 = vrot.lane.b32.xlu0 %v1200, 12
        %v1302 = vpop.permute.xlu0 %1301
        %1303 = vrot.lane.b32.xlu0 %v1201, 12
        %v1304 = vpop.permute.xlu0 %1303
        %1305 = vrot.lane.b32.xlu0 %v1202, 12
        %v1306 = vpop.permute.xlu0 %1305
        %1307 = vrot.lane.b32.xlu0 %v1203, 12
        %v1308 = vpop.permute.xlu0 %1307
        %1309 = vrot.lane.b32.xlu0 %v1204, 12
        %v1310 = vpop.permute.xlu0 %1309
        %1311 = vrot.lane.b32.xlu0 %v1205, 12
        %v1312 = vpop.permute.xlu0 %1311
        %1313 = vrot.lane.b32.xlu0 %v1206, 12
        %v1314 = vpop.permute.xlu0 %1313
        %vm1351 = vcmask 121952
        %1352 = vst.msk [vmem:[#allocation2] sm:$0xff] %vm1351, %v1244
        %1353 = vst.msk [vmem:[#allocation2 + $0x8] sm:$0xff] %vm1351, %v1246
        %1354 = vst.msk [vmem:[#allocation2 + $0x10] sm:$0xff] %vm1351, %v1248
        %1355 = vst.msk [vmem:[#allocation2 + $0x18] sm:$0xff] %vm1351, %v1250
        %1356 = vst.msk [vmem:[#allocation2 + $0x20] sm:$0xff] %vm1351, %v1252
        %1357 = vst.msk [vmem:[#allocation2 + $0x28] sm:$0xff] %vm1351, %v1254
        %1358 = vst.msk [vmem:[#allocation2 + $0x30] sm:$0xff] %vm1351, %v1256
        %1359 = vst.msk [vmem:[#allocation2 + $0x38] sm:$0xff] %vm1351, %v1258
        %1360 = vst.msk [vmem:[#allocation2 + $0x40] sm:$0xff] %vm1351, %v1260
        %1361 = vst.msk [vmem:[#allocation2 + $0x48] sm:$0xff] %vm1351, %v1262
        %1362 = vst.msk [vmem:[#allocation2 + $0x50] sm:$0xff] %vm1351, %v1264
        %1363 = vst.msk [vmem:[#allocation2 + $0x58] sm:$0xff] %vm1351, %v1266
        %1364 = vst.msk [vmem:[#allocation2 + $0x60] sm:$0xff] %vm1351, %v1268
        %1365 = vst.msk [vmem:[#allocation2 + $0x68] sm:$0xff] %vm1351, %v1270
        %1366 = vst.msk [vmem:[#allocation2 + $0x70] sm:$0xff] %vm1351, %v1272
        %1367 = vst.msk [vmem:[#allocation2 + $0x78] sm:$0xff] %vm1351, %v1274
        %1368 = vst.msk [vmem:[#allocation2 + $0x80] sm:$0xff] %vm1351, %v1276
        %1369 = vst.msk [vmem:[#allocation2 + $0x88] sm:$0xff] %vm1351, %v1278
        %1370 = vst.msk [vmem:[#allocation2 + $0x90] sm:$0xff] %vm1351, %v1280
        %1371 = vst.msk [vmem:[#allocation2 + $0x98] sm:$0xff] %vm1351, %v1282
        %1372 = vst.msk [vmem:[#allocation2 + $0xa0] sm:$0xff] %vm1351, %v1284
        %1373 = vst.msk [vmem:[#allocation2 + $0xa8] sm:$0xff] %vm1351, %v1286
        %1374 = vst.msk [vmem:[#allocation2 + $0xb0] sm:$0xff] %vm1351, %v1288
        %1375 = vst.msk [vmem:[#allocation2 + $0xb8] sm:$0xff] %vm1351, %v1290
        %1376 = vst.msk [vmem:[#allocation2 + $0xc0] sm:$0xff] %vm1351, %v1292
        %1377 = vst.msk [vmem:[#allocation2 + $0xc8] sm:$0xff] %vm1351, %v1294
        %1378 = vst.msk [vmem:[#allocation2 + $0xd0] sm:$0xff] %vm1351, %v1296
        %1379 = vst.msk [vmem:[#allocation2 + $0xd8] sm:$0xff] %vm1351, %v1298
        %1380 = vst.msk [vmem:[#allocation2 + $0xe0] sm:$0xff] %vm1351, %v1300
        %1381 = vst.msk [vmem:[#allocation2 + $0xe8] sm:$0xff] %vm1351, %v1302
        %1382 = vst.msk [vmem:[#allocation2 + $0xf0] sm:$0xff] %vm1351, %v1304
        %1383 = vst.msk [vmem:[#allocation2 + $0xf8] sm:$0xff] %vm1351, %v1306
        %1384 = vst.msk [vmem:[#allocation2 + $0x100] sm:$0xff] %vm1351, %v1308
        %1385 = vst.msk [vmem:[#allocation2 + $0x108] sm:$0xff] %vm1351, %v1310
        %1386 = vst.msk [vmem:[#allocation2 + $0x110] sm:$0xff] %vm1351, %v1312
        %1387 = vst.msk [vmem:[#allocation2 + $0x118] sm:$0xff] %vm1351, %v1314
        %v1388 = vld [vmem:[%s436 + $0x14] sm:$0xff]
        %v1389 = vld [vmem:[%s436 + $0x1c] sm:$0xff]
        %v1390 = vld [vmem:[%s436 + $0x24] sm:$0xff]
        %v1391 = vld [vmem:[%s436 + $0x2c] sm:$0xff]
        %v1392 = vld [vmem:[%s436 + $0x34] sm:$0xff]
        %v1393 = vld [vmem:[%s436 + $0x3c] sm:$0xff]
        %v1394 = vld [vmem:[%s436 + $0x44] sm:$0xff]
        %v1395 = vld [vmem:[%s436 + $0x4c] sm:$0xff]
        %v1396 = vld [vmem:[%s436 + $0x54] sm:$0xff]
        %v1397 = vld [vmem:[%s436 + $0x5c] sm:$0xff]
        %v1398 = vld [vmem:[%s436 + $0x64] sm:$0xff]
        %v1399 = vld [vmem:[%s436 + $0x6c] sm:$0xff]
        %v1400 = vld [vmem:[%s436 + $0x74] sm:$0xff]
        %v1401 = vld [vmem:[%s436 + $0x7c] sm:$0xff]
        %v1402 = vld [vmem:[%s436 + $0x84] sm:$0xff]
        %v1403 = vld [vmem:[%s436 + $0x8c] sm:$0xff]
        %v1404 = vld [vmem:[%s436 + $0x94] sm:$0xff]
        %v1405 = vld [vmem:[%s436 + $0x9c] sm:$0xff]
        %v1406 = vld [vmem:[%s436 + $0xa4] sm:$0xff]
        %v1407 = vld [vmem:[%s436 + $0xac] sm:$0xff]
        %v1408 = vld [vmem:[%s436 + $0xb4] sm:$0xff]
        %v1409 = vld [vmem:[%s436 + $0xbc] sm:$0xff]
        %v1410 = vld [vmem:[%s436 + $0xc4] sm:$0xff]
        %v1411 = vld [vmem:[%s436 + $0xcc] sm:$0xff]
        %v1412 = vld [vmem:[%s436 + $0xd4] sm:$0xff]
        %v1413 = vld [vmem:[%s436 + $0xdc] sm:$0xff]
        %v1414 = vld [vmem:[%s436 + $0xe4] sm:$0xff]
        %v1415 = vld [vmem:[%s436 + $0xec] sm:$0xff]
        %v1416 = vld [vmem:[%s436 + $0xf4] sm:$0xff]
        %v1417 = vld [vmem:[%s436 + $0xfc] sm:$0xff]
        %v1418 = vld [vmem:[%s436 + $0x104] sm:$0xff]
        %v1419 = vld [vmem:[%s436 + $0x10c] sm:$0xff]
        %v1420 = vld [vmem:[%s436 + $0x114] sm:$0xff]
        %v1421 = vld [vmem:[%s436 + $0x11c] sm:$0xff]
        %v1422 = vld [vmem:[%s436 + $0x124] sm:$0xff]
        %v1423 = vld [vmem:[%s436 + $0x12c] sm:$0xff]
        %1460 = vrot.lane.b32.xlu0 %v1388, 15
        %v1461 = vpop.permute.xlu0 %1460
        %1462 = vrot.lane.b32.xlu0 %v1389, 15
        %v1463 = vpop.permute.xlu0 %1462
        %1464 = vrot.lane.b32.xlu0 %v1390, 15
        %v1465 = vpop.permute.xlu0 %1464
        %1466 = vrot.lane.b32.xlu0 %v1391, 15
        %v1467 = vpop.permute.xlu0 %1466
        %1468 = vrot.lane.b32.xlu0 %v1392, 15
        %v1469 = vpop.permute.xlu0 %1468
        %1470 = vrot.lane.b32.xlu0 %v1393, 15
        %v1471 = vpop.permute.xlu0 %1470
        %1472 = vrot.lane.b32.xlu0 %v1394, 15
        %v1473 = vpop.permute.xlu0 %1472
        %1474 = vrot.lane.b32.xlu0 %v1395, 15
        %v1475 = vpop.permute.xlu0 %1474
        %1476 = vrot.lane.b32.xlu0 %v1396, 15
        %v1477 = vpop.permute.xlu0 %1476
        %1478 = vrot.lane.b32.xlu0 %v1397, 15
        %v1479 = vpop.permute.xlu0 %1478
        %1480 = vrot.lane.b32.xlu0 %v1398, 15
        %v1481 = vpop.permute.xlu0 %1480
        %1482 = vrot.lane.b32.xlu0 %v1399, 15
        %v1483 = vpop.permute.xlu0 %1482
        %1484 = vrot.lane.b32.xlu0 %v1400, 15
        %v1485 = vpop.permute.xlu0 %1484
        %1486 = vrot.lane.b32.xlu0 %v1401, 15
        %v1487 = vpop.permute.xlu0 %1486
        %1488 = vrot.lane.b32.xlu0 %v1402, 15
        %v1489 = vpop.permute.xlu0 %1488
        %1490 = vrot.lane.b32.xlu0 %v1403, 15
        %v1491 = vpop.permute.xlu0 %1490
        %1492 = vrot.lane.b32.xlu0 %v1404, 15
        %v1493 = vpop.permute.xlu0 %1492
        %1494 = vrot.lane.b32.xlu0 %v1405, 15
        %v1495 = vpop.permute.xlu0 %1494
        %1496 = vrot.lane.b32.xlu0 %v1406, 15
        %v1497 = vpop.permute.xlu0 %1496
        %1498 = vrot.lane.b32.xlu0 %v1407, 15
        %v1499 = vpop.permute.xlu0 %1498
        %1500 = vrot.lane.b32.xlu0 %v1408, 15
        %v1501 = vpop.permute.xlu0 %1500
        %1502 = vrot.lane.b32.xlu0 %v1409, 15
        %v1503 = vpop.permute.xlu0 %1502
        %1504 = vrot.lane.b32.xlu0 %v1410, 15
        %v1505 = vpop.permute.xlu0 %1504
        %1506 = vrot.lane.b32.xlu0 %v1411, 15
        %v1507 = vpop.permute.xlu0 %1506
        %1508 = vrot.lane.b32.xlu0 %v1412, 15
        %v1509 = vpop.permute.xlu0 %1508
        %1510 = vrot.lane.b32.xlu0 %v1413, 15
        %v1511 = vpop.permute.xlu0 %1510
        %1512 = vrot.lane.b32.xlu0 %v1414, 15
        %v1513 = vpop.permute.xlu0 %1512
        %1514 = vrot.lane.b32.xlu0 %v1415, 15
        %v1515 = vpop.permute.xlu0 %1514
        %1516 = vrot.lane.b32.xlu0 %v1416, 15
        %v1517 = vpop.permute.xlu0 %1516
        %1518 = vrot.lane.b32.xlu0 %v1417, 15
        %v1519 = vpop.permute.xlu0 %1518
        %1520 = vrot.lane.b32.xlu0 %v1418, 15
        %v1521 = vpop.permute.xlu0 %1520
        %1522 = vrot.lane.b32.xlu0 %v1419, 15
        %v1523 = vpop.permute.xlu0 %1522
        %1524 = vrot.lane.b32.xlu0 %v1420, 15
        %v1525 = vpop.permute.xlu0 %1524
        %1526 = vrot.lane.b32.xlu0 %v1421, 15
        %v1527 = vpop.permute.xlu0 %1526
        %1528 = vrot.lane.b32.xlu0 %v1422, 15
        %v1529 = vpop.permute.xlu0 %1528
        %1530 = vrot.lane.b32.xlu0 %v1423, 15
        %v1531 = vpop.permute.xlu0 %1530
        %vm1568 = vcmask 146552
        %1569 = vst.msk [vmem:[#allocation2] sm:$0xff] %vm1568, %v1461
        %1570 = vst.msk [vmem:[#allocation2 + $0x8] sm:$0xff] %vm1568, %v1463
        %1571 = vst.msk [vmem:[#allocation2 + $0x10] sm:$0xff] %vm1568, %v1465
        %1572 = vst.msk [vmem:[#allocation2 + $0x18] sm:$0xff] %vm1568, %v1467
        %1573 = vst.msk [vmem:[#allocation2 + $0x20] sm:$0xff] %vm1568, %v1469
        %1574 = vst.msk [vmem:[#allocation2 + $0x28] sm:$0xff] %vm1568, %v1471
        %1575 = vst.msk [vmem:[#allocation2 + $0x30] sm:$0xff] %vm1568, %v1473
        %1576 = vst.msk [vmem:[#allocation2 + $0x38] sm:$0xff] %vm1568, %v1475
        %1577 = vst.msk [vmem:[#allocation2 + $0x40] sm:$0xff] %vm1568, %v1477
        %1578 = vst.msk [vmem:[#allocation2 + $0x48] sm:$0xff] %vm1568, %v1479
        %1579 = vst.msk [vmem:[#allocation2 + $0x50] sm:$0xff] %vm1568, %v1481
        %1580 = vst.msk [vmem:[#allocation2 + $0x58] sm:$0xff] %vm1568, %v1483
        %1581 = vst.msk [vmem:[#allocation2 + $0x60] sm:$0xff] %vm1568, %v1485
        %1582 = vst.msk [vmem:[#allocation2 + $0x68] sm:$0xff] %vm1568, %v1487
        %1583 = vst.msk [vmem:[#allocation2 + $0x70] sm:$0xff] %vm1568, %v1489
        %1584 = vst.msk [vmem:[#allocation2 + $0x78] sm:$0xff] %vm1568, %v1491
        %1585 = vst.msk [vmem:[#allocation2 + $0x80] sm:$0xff] %vm1568, %v1493
        %1586 = vst.msk [vmem:[#allocation2 + $0x88] sm:$0xff] %vm1568, %v1495
        %1587 = vst.msk [vmem:[#allocation2 + $0x90] sm:$0xff] %vm1568, %v1497
        %1588 = vst.msk [vmem:[#allocation2 + $0x98] sm:$0xff] %vm1568, %v1499
        %1589 = vst.msk [vmem:[#allocation2 + $0xa0] sm:$0xff] %vm1568, %v1501
        %1590 = vst.msk [vmem:[#allocation2 + $0xa8] sm:$0xff] %vm1568, %v1503
        %1591 = vst.msk [vmem:[#allocation2 + $0xb0] sm:$0xff] %vm1568, %v1505
        %1592 = vst.msk [vmem:[#allocation2 + $0xb8] sm:$0xff] %vm1568, %v1507
        %1593 = vst.msk [vmem:[#allocation2 + $0xc0] sm:$0xff] %vm1568, %v1509
        %1594 = vst.msk [vmem:[#allocation2 + $0xc8] sm:$0xff] %vm1568, %v1511
        %1595 = vst.msk [vmem:[#allocation2 + $0xd0] sm:$0xff] %vm1568, %v1513
        %1596 = vst.msk [vmem:[#allocation2 + $0xd8] sm:$0xff] %vm1568, %v1515
        %1597 = vst.msk [vmem:[#allocation2 + $0xe0] sm:$0xff] %vm1568, %v1517
        %1598 = vst.msk [vmem:[#allocation2 + $0xe8] sm:$0xff] %vm1568, %v1519
        %1599 = vst.msk [vmem:[#allocation2 + $0xf0] sm:$0xff] %vm1568, %v1521
        %1600 = vst.msk [vmem:[#allocation2 + $0xf8] sm:$0xff] %vm1568, %v1523
        %1601 = vst.msk [vmem:[#allocation2 + $0x100] sm:$0xff] %vm1568, %v1525
        %1602 = vst.msk [vmem:[#allocation2 + $0x108] sm:$0xff] %vm1568, %v1527
        %1603 = vst.msk [vmem:[#allocation2 + $0x110] sm:$0xff] %vm1568, %v1529
        %1604 = vst.msk [vmem:[#allocation2 + $0x118] sm:$0xff] %vm1568, %v1531
        %v1605 = vld [vmem:[%s436 + $0x24] sm:$0xff]
        %v1606 = vld [vmem:[%s436 + $0x2c] sm:$0xff]
        %v1607 = vld [vmem:[%s436 + $0x34] sm:$0xff]
        %v1608 = vld [vmem:[%s436 + $0x3c] sm:$0xff]
        %v1609 = vld [vmem:[%s436 + $0x44] sm:$0xff]
        %v1610 = vld [vmem:[%s436 + $0x4c] sm:$0xff]
        %v1611 = vld [vmem:[%s436 + $0x54] sm:$0xff]
        %v1612 = vld [vmem:[%s436 + $0x5c] sm:$0xff]
        %v1613 = vld [vmem:[%s436 + $0x64] sm:$0xff]
        %v1614 = vld [vmem:[%s436 + $0x6c] sm:$0xff]
        %v1615 = vld [vmem:[%s436 + $0x74] sm:$0xff]
        %v1616 = vld [vmem:[%s436 + $0x7c] sm:$0xff]
        %v1617 = vld [vmem:[%s436 + $0x84] sm:$0xff]
        %v1618 = vld [vmem:[%s436 + $0x8c] sm:$0xff]
        %v1619 = vld [vmem:[%s436 + $0x94] sm:$0xff]
        %v1620 = vld [vmem:[%s436 + $0x9c] sm:$0xff]
        %v1621 = vld [vmem:[%s436 + $0xa4] sm:$0xff]
        %v1622 = vld [vmem:[%s436 + $0xac] sm:$0xff]
        %v1623 = vld [vmem:[%s436 + $0xb4] sm:$0xff]
        %v1624 = vld [vmem:[%s436 + $0xbc] sm:$0xff]
        %v1625 = vld [vmem:[%s436 + $0xc4] sm:$0xff]
        %v1626 = vld [vmem:[%s436 + $0xcc] sm:$0xff]
        %v1627 = vld [vmem:[%s436 + $0xd4] sm:$0xff]
        %v1628 = vld [vmem:[%s436 + $0xdc] sm:$0xff]
        %v1629 = vld [vmem:[%s436 + $0xe4] sm:$0xff]
        %v1630 = vld [vmem:[%s436 + $0xec] sm:$0xff]
        %v1631 = vld [vmem:[%s436 + $0xf4] sm:$0xff]
        %v1632 = vld [vmem:[%s436 + $0xfc] sm:$0xff]
        %v1633 = vld [vmem:[%s436 + $0x104] sm:$0xff]
        %v1634 = vld [vmem:[%s436 + $0x10c] sm:$0xff]
        %v1635 = vld [vmem:[%s436 + $0x114] sm:$0xff]
        %v1636 = vld [vmem:[%s436 + $0x11c] sm:$0xff]
        %v1637 = vld [vmem:[%s436 + $0x124] sm:$0xff]
        %v1638 = vld [vmem:[%s436 + $0x12c] sm:$0xff]
        %v1639 = vld [vmem:[%s436 + $0x134] sm:$0xff]
        %v1640 = vld [vmem:[%s436 + $0x13c] sm:$0xff]
        %1677 = vrot.lane.b32.xlu0 %v1605, 18
        %v1678 = vpop.permute.xlu0 %1677
        %1679 = vrot.lane.b32.xlu0 %v1606, 18
        %v1680 = vpop.permute.xlu0 %1679
        %1681 = vrot.lane.b32.xlu0 %v1607, 18
        %v1682 = vpop.permute.xlu0 %1681
        %1683 = vrot.lane.b32.xlu0 %v1608, 18
        %v1684 = vpop.permute.xlu0 %1683
        %1685 = vrot.lane.b32.xlu0 %v1609, 18
        %v1686 = vpop.permute.xlu0 %1685
        %1687 = vrot.lane.b32.xlu0 %v1610, 18
        %v1688 = vpop.permute.xlu0 %1687
        %1689 = vrot.lane.b32.xlu0 %v1611, 18
        %v1690 = vpop.permute.xlu0 %1689
        %1691 = vrot.lane.b32.xlu0 %v1612, 18
        %v1692 = vpop.permute.xlu0 %1691
        %1693 = vrot.lane.b32.xlu0 %v1613, 18
        %v1694 = vpop.permute.xlu0 %1693
        %1695 = vrot.lane.b32.xlu0 %v1614, 18
        %v1696 = vpop.permute.xlu0 %1695
        %1697 = vrot.lane.b32.xlu0 %v1615, 18
        %v1698 = vpop.permute.xlu0 %1697
        %1699 = vrot.lane.b32.xlu0 %v1616, 18
        %v1700 = vpop.permute.xlu0 %1699
        %1701 = vrot.lane.b32.xlu0 %v1617, 18
        %v1702 = vpop.permute.xlu0 %1701
        %1703 = vrot.lane.b32.xlu0 %v1618, 18
        %v1704 = vpop.permute.xlu0 %1703
        %1705 = vrot.lane.b32.xlu0 %v1619, 18
        %v1706 = vpop.permute.xlu0 %1705
        %1707 = vrot.lane.b32.xlu0 %v1620, 18
        %v1708 = vpop.permute.xlu0 %1707
        %1709 = vrot.lane.b32.xlu0 %v1621, 18
        %v1710 = vpop.permute.xlu0 %1709
        %1711 = vrot.lane.b32.xlu0 %v1622, 18
        %v1712 = vpop.permute.xlu0 %1711
        %1713 = vrot.lane.b32.xlu0 %v1623, 18
        %v1714 = vpop.permute.xlu0 %1713
        %1715 = vrot.lane.b32.xlu0 %v1624, 18
        %v1716 = vpop.permute.xlu0 %1715
        %1717 = vrot.lane.b32.xlu0 %v1625, 18
        %v1718 = vpop.permute.xlu0 %1717
        %1719 = vrot.lane.b32.xlu0 %v1626, 18
        %v1720 = vpop.permute.xlu0 %1719
        %1721 = vrot.lane.b32.xlu0 %v1627, 18
        %v1722 = vpop.permute.xlu0 %1721
        %1723 = vrot.lane.b32.xlu0 %v1628, 18
        %v1724 = vpop.permute.xlu0 %1723
        %1725 = vrot.lane.b32.xlu0 %v1629, 18
        %v1726 = vpop.permute.xlu0 %1725
        %1727 = vrot.lane.b32.xlu0 %v1630, 18
        %v1728 = vpop.permute.xlu0 %1727
        %1729 = vrot.lane.b32.xlu0 %v1631, 18
        %v1730 = vpop.permute.xlu0 %1729
        %1731 = vrot.lane.b32.xlu0 %v1632, 18
        %v1732 = vpop.permute.xlu0 %1731
        %1733 = vrot.lane.b32.xlu0 %v1633, 18
        %v1734 = vpop.permute.xlu0 %1733
        %1735 = vrot.lane.b32.xlu0 %v1634, 18
        %v1736 = vpop.permute.xlu0 %1735
        %1737 = vrot.lane.b32.xlu0 %v1635, 18
        %v1738 = vpop.permute.xlu0 %1737
        %1739 = vrot.lane.b32.xlu0 %v1636, 18
        %v1740 = vpop.permute.xlu0 %1739
        %1741 = vrot.lane.b32.xlu0 %v1637, 18
        %v1742 = vpop.permute.xlu0 %1741
        %1743 = vrot.lane.b32.xlu0 %v1638, 18
        %v1744 = vpop.permute.xlu0 %1743
        %1745 = vrot.lane.b32.xlu0 %v1639, 18
        %v1746 = vpop.permute.xlu0 %1745
        %1747 = vrot.lane.b32.xlu0 %v1640, 18
        %v1748 = vpop.permute.xlu0 %1747
        %vm1785 = vcmask 171152
        %1786 = vst.msk [vmem:[#allocation2] sm:$0xff] %vm1785, %v1678
        %1787 = vst.msk [vmem:[#allocation2 + $0x8] sm:$0xff] %vm1785, %v1680
        %1788 = vst.msk [vmem:[#allocation2 + $0x10] sm:$0xff] %vm1785, %v1682
        %1789 = vst.msk [vmem:[#allocation2 + $0x18] sm:$0xff] %vm1785, %v1684
        %1790 = vst.msk [vmem:[#allocation2 + $0x20] sm:$0xff] %vm1785, %v1686
        %1791 = vst.msk [vmem:[#allocation2 + $0x28] sm:$0xff] %vm1785, %v1688
        %1792 = vst.msk [vmem:[#allocation2 + $0x30] sm:$0xff] %vm1785, %v1690
        %1793 = vst.msk [vmem:[#allocation2 + $0x38] sm:$0xff] %vm1785, %v1692
        %1794 = vst.msk [vmem:[#allocation2 + $0x40] sm:$0xff] %vm1785, %v1694
        %1795 = vst.msk [vmem:[#allocation2 + $0x48] sm:$0xff] %vm1785, %v1696
        %1796 = vst.msk [vmem:[#allocation2 + $0x50] sm:$0xff] %vm1785, %v1698
        %1797 = vst.msk [vmem:[#allocation2 + $0x58] sm:$0xff] %vm1785, %v1700
        %1798 = vst.msk [vmem:[#allocation2 + $0x60] sm:$0xff] %vm1785, %v1702
        %1799 = vst.msk [vmem:[#allocation2 + $0x68] sm:$0xff] %vm1785, %v1704
        %1800 = vst.msk [vmem:[#allocation2 + $0x70] sm:$0xff] %vm1785, %v1706
        %1801 = vst.msk [vmem:[#allocation2 + $0x78] sm:$0xff] %vm1785, %v1708
        %1802 = vst.msk [vmem:[#allocation2 + $0x80] sm:$0xff] %vm1785, %v1710
        %1803 = vst.msk [vmem:[#allocation2 + $0x88] sm:$0xff] %vm1785, %v1712
        %1804 = vst.msk [vmem:[#allocation2 + $0x90] sm:$0xff] %vm1785, %v1714
        %1805 = vst.msk [vmem:[#allocation2 + $0x98] sm:$0xff] %vm1785, %v1716
        %1806 = vst.msk [vmem:[#allocation2 + $0xa0] sm:$0xff] %vm1785, %v1718
        %1807 = vst.msk [vmem:[#allocation2 + $0xa8] sm:$0xff] %vm1785, %v1720
        %1808 = vst.msk [vmem:[#allocation2 + $0xb0] sm:$0xff] %vm1785, %v1722
        %1809 = vst.msk [vmem:[#allocation2 + $0xb8] sm:$0xff] %vm1785, %v1724
        %1810 = vst.msk [vmem:[#allocation2 + $0xc0] sm:$0xff] %vm1785, %v1726
        %1811 = vst.msk [vmem:[#allocation2 + $0xc8] sm:$0xff] %vm1785, %v1728
        %1812 = vst.msk [vmem:[#allocation2 + $0xd0] sm:$0xff] %vm1785, %v1730
        %1813 = vst.msk [vmem:[#allocation2 + $0xd8] sm:$0xff] %vm1785, %v1732
        %1814 = vst.msk [vmem:[#allocation2 + $0xe0] sm:$0xff] %vm1785, %v1734
        %1815 = vst.msk [vmem:[#allocation2 + $0xe8] sm:$0xff] %vm1785, %v1736
        %1816 = vst.msk [vmem:[#allocation2 + $0xf0] sm:$0xff] %vm1785, %v1738
        %1817 = vst.msk [vmem:[#allocation2 + $0xf8] sm:$0xff] %vm1785, %v1740
        %1818 = vst.msk [vmem:[#allocation2 + $0x100] sm:$0xff] %vm1785, %v1742
        %1819 = vst.msk [vmem:[#allocation2 + $0x108] sm:$0xff] %vm1785, %v1744
        %1820 = vst.msk [vmem:[#allocation2 + $0x110] sm:$0xff] %vm1785, %v1746
        %1821 = vst.msk [vmem:[#allocation2 + $0x118] sm:$0xff] %vm1785, %v1748
        %v1822 = vld [vmem:[%s436 + $0x25] sm:$0xff]
        %v1823 = vld [vmem:[%s436 + $0x2d] sm:$0xff]
        %v1824 = vld [vmem:[%s436 + $0x35] sm:$0xff]
        %v1825 = vld [vmem:[%s436 + $0x3d] sm:$0xff]
        %v1826 = vld [vmem:[%s436 + $0x45] sm:$0xff]
        %v1827 = vld [vmem:[%s436 + $0x4d] sm:$0xff]
        %v1828 = vld [vmem:[%s436 + $0x55] sm:$0xff]
        %v1829 = vld [vmem:[%s436 + $0x5d] sm:$0xff]
        %v1830 = vld [vmem:[%s436 + $0x65] sm:$0xff]
        %v1831 = vld [vmem:[%s436 + $0x6d] sm:$0xff]
        %v1832 = vld [vmem:[%s436 + $0x75] sm:$0xff]
        %v1833 = vld [vmem:[%s436 + $0x7d] sm:$0xff]
        %v1834 = vld [vmem:[%s436 + $0x85] sm:$0xff]
        %v1835 = vld [vmem:[%s436 + $0x8d] sm:$0xff]
        %v1836 = vld [vmem:[%s436 + $0x95] sm:$0xff]
        %v1837 = vld [vmem:[%s436 + $0x9d] sm:$0xff]
        %v1838 = vld [vmem:[%s436 + $0xa5] sm:$0xff]
        %v1839 = vld [vmem:[%s436 + $0xad] sm:$0xff]
        %v1840 = vld [vmem:[%s436 + $0xb5] sm:$0xff]
        %v1841 = vld [vmem:[%s436 + $0xbd] sm:$0xff]
        %v1842 = vld [vmem:[%s436 + $0xc5] sm:$0xff]
        %v1843 = vld [vmem:[%s436 + $0xcd] sm:$0xff]
        %v1844 = vld [vmem:[%s436 + $0xd5] sm:$0xff]
        %v1845 = vld [vmem:[%s436 + $0xdd] sm:$0xff]
        %v1846 = vld [vmem:[%s436 + $0xe5] sm:$0xff]
        %v1847 = vld [vmem:[%s436 + $0xed] sm:$0xff]
        %v1848 = vld [vmem:[%s436 + $0xf5] sm:$0xff]
        %v1849 = vld [vmem:[%s436 + $0xfd] sm:$0xff]
        %v1850 = vld [vmem:[%s436 + $0x105] sm:$0xff]
        %v1851 = vld [vmem:[%s436 + $0x10d] sm:$0xff]
        %v1852 = vld [vmem:[%s436 + $0x115] sm:$0xff]
        %v1853 = vld [vmem:[%s436 + $0x11d] sm:$0xff]
        %v1854 = vld [vmem:[%s436 + $0x125] sm:$0xff]
        %v1855 = vld [vmem:[%s436 + $0x12d] sm:$0xff]
        %v1856 = vld [vmem:[%s436 + $0x135] sm:$0xff]
        %v1857 = vld [vmem:[%s436 + $0x13d] sm:$0xff]
        %1894 = vrot.lane.b32.xlu0 %v1822, 21
        %v1895 = vpop.permute.xlu0 %1894
        %1896 = vrot.lane.b32.xlu0 %v1823, 21
        %v1897 = vpop.permute.xlu0 %1896
        %1898 = vrot.lane.b32.xlu0 %v1824, 21
        %v1899 = vpop.permute.xlu0 %1898
        %1900 = vrot.lane.b32.xlu0 %v1825, 21
        %v1901 = vpop.permute.xlu0 %1900
        %1902 = vrot.lane.b32.xlu0 %v1826, 21
        %v1903 = vpop.permute.xlu0 %1902
        %1904 = vrot.lane.b32.xlu0 %v1827, 21
        %v1905 = vpop.permute.xlu0 %1904
        %1906 = vrot.lane.b32.xlu0 %v1828, 21
        %v1907 = vpop.permute.xlu0 %1906
        %1908 = vrot.lane.b32.xlu0 %v1829, 21
        %v1909 = vpop.permute.xlu0 %1908
        %1910 = vrot.lane.b32.xlu0 %v1830, 21
        %v1911 = vpop.permute.xlu0 %1910
        %1912 = vrot.lane.b32.xlu0 %v1831, 21
        %v1913 = vpop.permute.xlu0 %1912
        %1914 = vrot.lane.b32.xlu0 %v1832, 21
        %v1915 = vpop.permute.xlu0 %1914
        %1916 = vrot.lane.b32.xlu0 %v1833, 21
        %v1917 = vpop.permute.xlu0 %1916
        %1918 = vrot.lane.b32.xlu0 %v1834, 21
        %v1919 = vpop.permute.xlu0 %1918
        %1920 = vrot.lane.b32.xlu0 %v1835, 21
        %v1921 = vpop.permute.xlu0 %1920
        %1922 = vrot.lane.b32.xlu0 %v1836, 21
        %v1923 = vpop.permute.xlu0 %1922
        %1924 = vrot.lane.b32.xlu0 %v1837, 21
        %v1925 = vpop.permute.xlu0 %1924
        %1926 = vrot.lane.b32.xlu0 %v1838, 21
        %v1927 = vpop.permute.xlu0 %1926
        %1928 = vrot.lane.b32.xlu0 %v1839, 21
        %v1929 = vpop.permute.xlu0 %1928
        %1930 = vrot.lane.b32.xlu0 %v1840, 21
        %v1931 = vpop.permute.xlu0 %1930
        %1932 = vrot.lane.b32.xlu0 %v1841, 21
        %v1933 = vpop.permute.xlu0 %1932
        %1934 = vrot.lane.b32.xlu0 %v1842, 21
        %v1935 = vpop.permute.xlu0 %1934
        %1936 = vrot.lane.b32.xlu0 %v1843, 21
        %v1937 = vpop.permute.xlu0 %1936
        %1938 = vrot.lane.b32.xlu0 %v1844, 21
        %v1939 = vpop.permute.xlu0 %1938
        %1940 = vrot.lane.b32.xlu0 %v1845, 21
        %v1941 = vpop.permute.xlu0 %1940
        %1942 = vrot.lane.b32.xlu0 %v1846, 21
        %v1943 = vpop.permute.xlu0 %1942
        %1944 = vrot.lane.b32.xlu0 %v1847, 21
        %v1945 = vpop.permute.xlu0 %1944
        %1946 = vrot.lane.b32.xlu0 %v1848, 21
        %v1947 = vpop.permute.xlu0 %1946
        %1948 = vrot.lane.b32.xlu0 %v1849, 21
        %v1949 = vpop.permute.xlu0 %1948
        %1950 = vrot.lane.b32.xlu0 %v1850, 21
        %v1951 = vpop.permute.xlu0 %1950
        %1952 = vrot.lane.b32.xlu0 %v1851, 21
        %v1953 = vpop.permute.xlu0 %1952
        %1954 = vrot.lane.b32.xlu0 %v1852, 21
        %v1955 = vpop.permute.xlu0 %1954
        %1956 = vrot.lane.b32.xlu0 %v1853, 21
        %v1957 = vpop.permute.xlu0 %1956
        %1958 = vrot.lane.b32.xlu0 %v1854, 21
        %v1959 = vpop.permute.xlu0 %1958
        %1960 = vrot.lane.b32.xlu0 %v1855, 21
        %v1961 = vpop.permute.xlu0 %1960
        %1962 = vrot.lane.b32.xlu0 %v1856, 21
        %v1963 = vpop.permute.xlu0 %1962
        %1964 = vrot.lane.b32.xlu0 %v1857, 21
        %v1965 = vpop.permute.xlu0 %1964
        %vm2002 = vcmask 195752
        %2003 = vst.msk [vmem:[#allocation2] sm:$0xff] %vm2002, %v1895
        %2004 = vst.msk [vmem:[#allocation2 + $0x8] sm:$0xff] %vm2002, %v1897
        %2005 = vst.msk [vmem:[#allocation2 + $0x10] sm:$0xff] %vm2002, %v1899
        %2006 = vst.msk [vmem:[#allocation2 + $0x18] sm:$0xff] %vm2002, %v1901
        %2007 = vst.msk [vmem:[#allocation2 + $0x20] sm:$0xff] %vm2002, %v1903
        %2008 = vst.msk [vmem:[#allocation2 + $0x28] sm:$0xff] %vm2002, %v1905
        %2009 = vst.msk [vmem:[#allocation2 + $0x30] sm:$0xff] %vm2002, %v1907
        %2010 = vst.msk [vmem:[#allocation2 + $0x38] sm:$0xff] %vm2002, %v1909
        %2011 = vst.msk [vmem:[#allocation2 + $0x40] sm:$0xff] %vm2002, %v1911
        %2012 = vst.msk [vmem:[#allocation2 + $0x48] sm:$0xff] %vm2002, %v1913
        %2013 = vst.msk [vmem:[#allocation2 + $0x50] sm:$0xff] %vm2002, %v1915
        %2014 = vst.msk [vmem:[#allocation2 + $0x58] sm:$0xff] %vm2002, %v1917
        %2015 = vst.msk [vmem:[#allocation2 + $0x60] sm:$0xff] %vm2002, %v1919
        %2016 = vst.msk [vmem:[#allocation2 + $0x68] sm:$0xff] %vm2002, %v1921
        %2017 = vst.msk [vmem:[#allocation2 + $0x70] sm:$0xff] %vm2002, %v1923
        %2018 = vst.msk [vmem:[#allocation2 + $0x78] sm:$0xff] %vm2002, %v1925
        %2019 = vst.msk [vmem:[#allocation2 + $0x80] sm:$0xff] %vm2002, %v1927
        %2020 = vst.msk [vmem:[#allocation2 + $0x88] sm:$0xff] %vm2002, %v1929
        %2021 = vst.msk [vmem:[#allocation2 + $0x90] sm:$0xff] %vm2002, %v1931
        %2022 = vst.msk [vmem:[#allocation2 + $0x98] sm:$0xff] %vm2002, %v1933
        %2023 = vst.msk [vmem:[#allocation2 + $0xa0] sm:$0xff] %vm2002, %v1935
        %2024 = vst.msk [vmem:[#allocation2 + $0xa8] sm:$0xff] %vm2002, %v1937
        %2025 = vst.msk [vmem:[#allocation2 + $0xb0] sm:$0xff] %vm2002, %v1939
        %2026 = vst.msk [vmem:[#allocation2 + $0xb8] sm:$0xff] %vm2002, %v1941
        %2027 = vst.msk [vmem:[#allocation2 + $0xc0] sm:$0xff] %vm2002, %v1943
        %2028 = vst.msk [vmem:[#allocation2 + $0xc8] sm:$0xff] %vm2002, %v1945
        %2029 = vst.msk [vmem:[#allocation2 + $0xd0] sm:$0xff] %vm2002, %v1947
        %2030 = vst.msk [vmem:[#allocation2 + $0xd8] sm:$0xff] %vm2002, %v1949
        %2031 = vst.msk [vmem:[#allocation2 + $0xe0] sm:$0xff] %vm2002, %v1951
        %2032 = vst.msk [vmem:[#allocation2 + $0xe8] sm:$0xff] %vm2002, %v1953
        %2033 = vst.msk [vmem:[#allocation2 + $0xf0] sm:$0xff] %vm2002, %v1955
        %2034 = vst.msk [vmem:[#allocation2 + $0xf8] sm:$0xff] %vm2002, %v1957
        %2035 = vst.msk [vmem:[#allocation2 + $0x100] sm:$0xff] %vm2002, %v1959
        %2036 = vst.msk [vmem:[#allocation2 + $0x108] sm:$0xff] %vm2002, %v1961
        %2037 = vst.msk [vmem:[#allocation2 + $0x110] sm:$0xff] %vm2002, %v1963
        %2038 = vst.msk [vmem:[#allocation2 + $0x118] sm:$0xff] %vm2002, %v1965
        %v2039 = vld [vmem:[%s436 + $0x26] sm:$0xff]
        %v2040 = vld [vmem:[%s436 + $0x2e] sm:$0xff]
        %v2041 = vld [vmem:[%s436 + $0x36] sm:$0xff]
        %v2042 = vld [vmem:[%s436 + $0x3e] sm:$0xff]
        %v2043 = vld [vmem:[%s436 + $0x46] sm:$0xff]
        %v2044 = vld [vmem:[%s436 + $0x4e] sm:$0xff]
        %v2045 = vld [vmem:[%s436 + $0x56] sm:$0xff]
        %v2046 = vld [vmem:[%s436 + $0x5e] sm:$0xff]
        %v2047 = vld [vmem:[%s436 + $0x66] sm:$0xff]
        %v2048 = vld [vmem:[%s436 + $0x6e] sm:$0xff]
        %v2049 = vld [vmem:[%s436 + $0x76] sm:$0xff]
        %v2050 = vld [vmem:[%s436 + $0x7e] sm:$0xff]
        %v2051 = vld [vmem:[%s436 + $0x86] sm:$0xff]
        %v2052 = vld [vmem:[%s436 + $0x8e] sm:$0xff]
        %v2053 = vld [vmem:[%s436 + $0x96] sm:$0xff]
        %v2054 = vld [vmem:[%s436 + $0x9e] sm:$0xff]
        %v2055 = vld [vmem:[%s436 + $0xa6] sm:$0xff]
        %v2056 = vld [vmem:[%s436 + $0xae] sm:$0xff]
        %v2057 = vld [vmem:[%s436 + $0xb6] sm:$0xff]
        %v2058 = vld [vmem:[%s436 + $0xbe] sm:$0xff]
        %v2059 = vld [vmem:[%s436 + $0xc6] sm:$0xff]
        %v2060 = vld [vmem:[%s436 + $0xce] sm:$0xff]
        %v2061 = vld [vmem:[%s436 + $0xd6] sm:$0xff]
        %v2062 = vld [vmem:[%s436 + $0xde] sm:$0xff]
        %v2063 = vld [vmem:[%s436 + $0xe6] sm:$0xff]
        %v2064 = vld [vmem:[%s436 + $0xee] sm:$0xff]
        %v2065 = vld [vmem:[%s436 + $0xf6] sm:$0xff]
        %v2066 = vld [vmem:[%s436 + $0xfe] sm:$0xff]
        %v2067 = vld [vmem:[%s436 + $0x106] sm:$0xff]
        %v2068 = vld [vmem:[%s436 + $0x10e] sm:$0xff]
        %v2069 = vld [vmem:[%s436 + $0x116] sm:$0xff]
        %v2070 = vld [vmem:[%s436 + $0x11e] sm:$0xff]
        %v2071 = vld [vmem:[%s436 + $0x126] sm:$0xff]
        %v2072 = vld [vmem:[%s436 + $0x12e] sm:$0xff]
        %v2073 = vld [vmem:[%s436 + $0x136] sm:$0xff]
        %v2074 = vld [vmem:[%s436 + $0x13e] sm:$0xff]
        %2111 = vrot.lane.b32.xlu0 %v2039, 24
        %v2112 = vpop.permute.xlu0 %2111
        %2113 = vrot.lane.b32.xlu0 %v2040, 24
        %v2114 = vpop.permute.xlu0 %2113
        %2115 = vrot.lane.b32.xlu0 %v2041, 24
        %v2116 = vpop.permute.xlu0 %2115
        %2117 = vrot.lane.b32.xlu0 %v2042, 24
        %v2118 = vpop.permute.xlu0 %2117
        %2119 = vrot.lane.b32.xlu0 %v2043, 24
        %v2120 = vpop.permute.xlu0 %2119
        %2121 = vrot.lane.b32.xlu0 %v2044, 24
        %v2122 = vpop.permute.xlu0 %2121
        %2123 = vrot.lane.b32.xlu0 %v2045, 24
        %v2124 = vpop.permute.xlu0 %2123
        %2125 = vrot.lane.b32.xlu0 %v2046, 24
        %v2126 = vpop.permute.xlu0 %2125
        %2127 = vrot.lane.b32.xlu0 %v2047, 24
        %v2128 = vpop.permute.xlu0 %2127
        %2129 = vrot.lane.b32.xlu0 %v2048, 24
        %v2130 = vpop.permute.xlu0 %2129
        %2131 = vrot.lane.b32.xlu0 %v2049, 24
        %v2132 = vpop.permute.xlu0 %2131
        %2133 = vrot.lane.b32.xlu0 %v2050, 24
        %v2134 = vpop.permute.xlu0 %2133
        %2135 = vrot.lane.b32.xlu0 %v2051, 24
        %v2136 = vpop.permute.xlu0 %2135
        %2137 = vrot.lane.b32.xlu0 %v2052, 24
        %v2138 = vpop.permute.xlu0 %2137
        %2139 = vrot.lane.b32.xlu0 %v2053, 24
        %v2140 = vpop.permute.xlu0 %2139
        %2141 = vrot.lane.b32.xlu0 %v2054, 24
        %v2142 = vpop.permute.xlu0 %2141
        %2143 = vrot.lane.b32.xlu0 %v2055, 24
        %v2144 = vpop.permute.xlu0 %2143
        %2145 = vrot.lane.b32.xlu0 %v2056, 24
        %v2146 = vpop.permute.xlu0 %2145
        %2147 = vrot.lane.b32.xlu0 %v2057, 24
        %v2148 = vpop.permute.xlu0 %2147
        %2149 = vrot.lane.b32.xlu0 %v2058, 24
        %v2150 = vpop.permute.xlu0 %2149
        %2151 = vrot.lane.b32.xlu0 %v2059, 24
        %v2152 = vpop.permute.xlu0 %2151
        %2153 = vrot.lane.b32.xlu0 %v2060, 24
        %v2154 = vpop.permute.xlu0 %2153
        %2155 = vrot.lane.b32.xlu0 %v2061, 24
        %v2156 = vpop.permute.xlu0 %2155
        %2157 = vrot.lane.b32.xlu0 %v2062, 24
        %v2158 = vpop.permute.xlu0 %2157
        %2159 = vrot.lane.b32.xlu0 %v2063, 24
        %v2160 = vpop.permute.xlu0 %2159
        %2161 = vrot.lane.b32.xlu0 %v2064, 24
        %v2162 = vpop.permute.xlu0 %2161
        %2163 = vrot.lane.b32.xlu0 %v2065, 24
        %v2164 = vpop.permute.xlu0 %2163
        %2165 = vrot.lane.b32.xlu0 %v2066, 24
        %v2166 = vpop.permute.xlu0 %2165
        %2167 = vrot.lane.b32.xlu0 %v2067, 24
        %v2168 = vpop.permute.xlu0 %2167
        %2169 = vrot.lane.b32.xlu0 %v2068, 24
        %v2170 = vpop.permute.xlu0 %2169
        %2171 = vrot.lane.b32.xlu0 %v2069, 24
        %v2172 = vpop.permute.xlu0 %2171
        %2173 = vrot.lane.b32.xlu0 %v2070, 24
        %v2174 = vpop.permute.xlu0 %2173
        %2175 = vrot.lane.b32.xlu0 %v2071, 24
        %v2176 = vpop.permute.xlu0 %2175
        %2177 = vrot.lane.b32.xlu0 %v2072, 24
        %v2178 = vpop.permute.xlu0 %2177
        %2179 = vrot.lane.b32.xlu0 %v2073, 24
        %v2180 = vpop.permute.xlu0 %2179
        %2181 = vrot.lane.b32.xlu0 %v2074, 24
        %v2182 = vpop.permute.xlu0 %2181
        %vm2219 = vcmask 220352
        %2220 = vst.msk [vmem:[#allocation2] sm:$0xff] %vm2219, %v2112
        %2221 = vst.msk [vmem:[#allocation2 + $0x8] sm:$0xff] %vm2219, %v2114
        %2222 = vst.msk [vmem:[#allocation2 + $0x10] sm:$0xff] %vm2219, %v2116
        %2223 = vst.msk [vmem:[#allocation2 + $0x18] sm:$0xff] %vm2219, %v2118
        %2224 = vst.msk [vmem:[#allocation2 + $0x20] sm:$0xff] %vm2219, %v2120
        %2225 = vst.msk [vmem:[#allocation2 + $0x28] sm:$0xff] %vm2219, %v2122
        %2226 = vst.msk [vmem:[#allocation2 + $0x30] sm:$0xff] %vm2219, %v2124
        %2227 = vst.msk [vmem:[#allocation2 + $0x38] sm:$0xff] %vm2219, %v2126
        %2228 = vst.msk [vmem:[#allocation2 + $0x40] sm:$0xff] %vm2219, %v2128
        %2229 = vst.msk [vmem:[#allocation2 + $0x48] sm:$0xff] %vm2219, %v2130
        %2230 = vst.msk [vmem:[#allocation2 + $0x50] sm:$0xff] %vm2219, %v2132
        %2231 = vst.msk [vmem:[#allocation2 + $0x58] sm:$0xff] %vm2219, %v2134
        %2232 = vst.msk [vmem:[#allocation2 + $0x60] sm:$0xff] %vm2219, %v2136
        %2233 = vst.msk [vmem:[#allocation2 + $0x68] sm:$0xff] %vm2219, %v2138
        %2234 = vst.msk [vmem:[#allocation2 + $0x70] sm:$0xff] %vm2219, %v2140
        %2235 = vst.msk [vmem:[#allocation2 + $0x78] sm:$0xff] %vm2219, %v2142
        %2236 = vst.msk [vmem:[#allocation2 + $0x80] sm:$0xff] %vm2219, %v2144
        %2237 = vst.msk [vmem:[#allocation2 + $0x88] sm:$0xff] %vm2219, %v2146
        %2238 = vst.msk [vmem:[#allocation2 + $0x90] sm:$0xff] %vm2219, %v2148
        %2239 = vst.msk [vmem:[#allocation2 + $0x98] sm:$0xff] %vm2219, %v2150
        %2240 = vst.msk [vmem:[#allocation2 + $0xa0] sm:$0xff] %vm2219, %v2152
        %2241 = vst.msk [vmem:[#allocation2 + $0xa8] sm:$0xff] %vm2219, %v2154
        %2242 = vst.msk [vmem:[#allocation2 + $0xb0] sm:$0xff] %vm2219, %v2156
        %2243 = vst.msk [vmem:[#allocation2 + $0xb8] sm:$0xff] %vm2219, %v2158
        %2244 = vst.msk [vmem:[#allocation2 + $0xc0] sm:$0xff] %vm2219, %v2160
        %2245 = vst.msk [vmem:[#allocation2 + $0xc8] sm:$0xff] %vm2219, %v2162
        %2246 = vst.msk [vmem:[#allocation2 + $0xd0] sm:$0xff] %vm2219, %v2164
        %2247 = vst.msk [vmem:[#allocation2 + $0xd8] sm:$0xff] %vm2219, %v2166
        %2248 = vst.msk [vmem:[#allocation2 + $0xe0] sm:$0xff] %vm2219, %v2168
        %2249 = vst.msk [vmem:[#allocation2 + $0xe8] sm:$0xff] %vm2219, %v2170
        %2250 = vst.msk [vmem:[#allocation2 + $0xf0] sm:$0xff] %vm2219, %v2172
        %2251 = vst.msk [vmem:[#allocation2 + $0xf8] sm:$0xff] %vm2219, %v2174
        %2252 = vst.msk [vmem:[#allocation2 + $0x100] sm:$0xff] %vm2219, %v2176
        %2253 = vst.msk [vmem:[#allocation2 + $0x108] sm:$0xff] %vm2219, %v2178
        %2254 = vst.msk [vmem:[#allocation2 + $0x110] sm:$0xff] %vm2219, %v2180
        %2255 = vst.msk [vmem:[#allocation2 + $0x118] sm:$0xff] %vm2219, %v2182
        %v2256 = vld [vmem:[#allocation2] sm:$0xff]
        %v2257 = vld [vmem:[#allocation2 + $0x8] sm:$0xff]
        %v2258 = vld [vmem:[#allocation2 + $0x10] sm:$0xff]
        %v2259 = vld [vmem:[#allocation2 + $0x18] sm:$0xff]
        %v2260 = vld [vmem:[#allocation2 + $0x20] sm:$0xff]
        %v2261 = vld [vmem:[#allocation2 + $0x28] sm:$0xff]
        %v2262 = vld [vmem:[#allocation2 + $0x30] sm:$0xff]
        %v2263 = vld [vmem:[#allocation2 + $0x38] sm:$0xff]
        %v2264 = vld [vmem:[#allocation2 + $0x40] sm:$0xff]
        %v2265 = vld [vmem:[#allocation2 + $0x48] sm:$0xff]
        %v2266 = vld [vmem:[#allocation2 + $0x50] sm:$0xff]
        %v2267 = vld [vmem:[#allocation2 + $0x58] sm:$0xff]
        %v2268 = vld [vmem:[#allocation2 + $0x60] sm:$0xff]
        %v2269 = vld [vmem:[#allocation2 + $0x68] sm:$0xff]
        %v2270 = vld [vmem:[#allocation2 + $0x70] sm:$0xff]
        %v2271 = vld [vmem:[#allocation2 + $0x78] sm:$0xff]
        %v2272 = vld [vmem:[#allocation2 + $0x80] sm:$0xff]
        %v2273 = vld [vmem:[#allocation2 + $0x88] sm:$0xff]
        %v2274 = vld [vmem:[#allocation2 + $0x90] sm:$0xff]
        %v2275 = vld [vmem:[#allocation2 + $0x98] sm:$0xff]
        %v2276 = vld [vmem:[#allocation2 + $0xa0] sm:$0xff]
        %v2277 = vld [vmem:[#allocation2 + $0xa8] sm:$0xff]
        %v2278 = vld [vmem:[#allocation2 + $0xb0] sm:$0xff]
        %v2279 = vld [vmem:[#allocation2 + $0xb8] sm:$0xff]
        %v2280 = vld [vmem:[#allocation2 + $0xc0] sm:$0xff]
        %v2281 = vld [vmem:[#allocation2 + $0xc8] sm:$0xff]
        %v2282 = vld [vmem:[#allocation2 + $0xd0] sm:$0xff]
        %v2283 = vld [vmem:[#allocation2 + $0xd8] sm:$0xff]
        %v2284 = vld [vmem:[#allocation2 + $0xe0] sm:$0xff]
        %v2285 = vld [vmem:[#allocation2 + $0xe8] sm:$0xff]
        %v2286 = vld [vmem:[#allocation2 + $0xf0] sm:$0xff]
        %v2287 = vld [vmem:[#allocation2 + $0xf8] sm:$0xff]
        %v2288 = vld [vmem:[#allocation2 + $0x100] sm:$0xff]
        %v2289 = vld [vmem:[#allocation2 + $0x108] sm:$0xff]
        %v2290 = vld [vmem:[#allocation2 + $0x110] sm:$0xff]
        %v2291 = vld [vmem:[#allocation2 + $0x118] sm:$0xff]
        %v2292 = vld [vmem:[%s1] sm:$0xff]
        %v2293 = vld [vmem:[%s1 + $0x8] sm:$0xff]
        %v2294 = vld [vmem:[%s1 + $0x10] sm:$0xff]
        %v2295 = vld [vmem:[%s1 + $0x18] sm:$0x7]
        %v2296 = vld [vmem:[%s2] sm:$0x1]
        %v2298 = vlaneseq
        %v2299 = vshrl.u32 %v2298, 7
        %v2300 = vsub.s32 0, %v2299
        %v2301 = vrot.slane %v2296, %v2300
        %vm2303 = vcmask 220160
        %v2305 = vsel %vm2303, %v2256, 0
        %v2308 = vsel %vm2303, %v2257, 0
        %v2311 = vsel %vm2303, %v2258, 0
        %v2314 = vsel %vm2303, %v2259, 0
        %v2317 = vsel %vm2303, %v2260, 0
        %v2320 = vsel %vm2303, %v2261, 0
        %v2323 = vsel %vm2303, %v2262, 0
        %v2326 = vsel %vm2303, %v2263, 0
        %v2329 = vsel %vm2303, %v2264, 0
        %v2332 = vsel %vm2303, %v2265, 0
        %v2335 = vsel %vm2303, %v2266, 0
        %v2338 = vsel %vm2303, %v2267, 0
        %v2341 = vsel %vm2303, %v2268, 0
        %v2344 = vsel %vm2303, %v2269, 0
        %v2347 = vsel %vm2303, %v2270, 0
        %v2350 = vsel %vm2303, %v2271, 0
        %v2353 = vsel %vm2303, %v2272, 0
        %v2356 = vsel %vm2303, %v2273, 0
        %v2359 = vsel %vm2303, %v2274, 0
        %v2362 = vsel %vm2303, %v2275, 0
        %v2365 = vsel %vm2303, %v2276, 0
        %v2368 = vsel %vm2303, %v2277, 0
        %v2371 = vsel %vm2303, %v2278, 0
        %v2374 = vsel %vm2303, %v2279, 0
        %v2377 = vsel %vm2303, %v2280, 0
        %v2380 = vsel %vm2303, %v2281, 0
        %v2383 = vsel %vm2303, %v2282, 0
        %v2386 = vsel %vm2303, %v2283, 0
        %v2389 = vsel %vm2303, %v2284, 0
        %v2392 = vsel %vm2303, %v2285, 0
        %v2395 = vsel %vm2303, %v2286, 0
        %v2398 = vsel %vm2303, %v2287, 0
        %v2401 = vsel %vm2303, %v2288, 0
        %v2404 = vsel %vm2303, %v2289, 0
        %v2407 = vsel %vm2303, %v2290, 0
        %v2410 = vsel %vm2303, %v2291, 0
        %vm2412 = vcmask 1042432
        %v2414 = vsel %vm2412, %v2295, 0
        %2416 = vmatprep.subr.mxu0 0.0
        %2417 = vmatpush1.msra.mxu0 %v2292
        %2418 = vmatprep.subr.mxu0 0.0
        %2419 = vmatpush1.msra.mxu0 %v2293
        %2420 = vmatprep.subr.mxu0 0.0
        %2421 = vmatpush1.msra.mxu0 %v2294
        %2422 = vmatprep.subr.mxu0 0.0
        %2423 = vmatpush1.msra.mxu0 %v2414
        %2424 = vmatprep.subr.mxu0 0.0
        %2425 = vmatpush1.msra.mxu0 0.0
        %2426 = vmatprep.subr.mxu0 0.0
        %2427 = vmatpush1.msra.mxu0 0.0
        %2428 = vmatprep.subr.mxu0 0.0
        %2429 = vmatpush1.msra.mxu0 0.0
        %2430 = vmatprep.subr.mxu0 0.0
        %2431 = vmatpush1.msra.mxu0 0.0
        %2432 = vmatprep.subr.mxu0 0.0
        %2433 = vmatpush1.msra.mxu0 0.0
        %2434 = vmatprep.subr.mxu0 0.0
        %2435 = vmatpush1.msra.mxu0 0.0
        %2436 = vmatprep.subr.mxu0 0.0
        %2437 = vmatpush1.msra.mxu0 0.0
        %2438 = vmatprep.subr.mxu0 0.0
        %2439 = vmatpush1.msra.mxu0 0.0
        %2440 = vmatprep.subr.mxu0 0.0
        %2441 = vmatpush1.msra.mxu0 0.0
        %2442 = vmatprep.subr.mxu0 0.0
        %2443 = vmatpush1.msra.mxu0 0.0
        %2444 = vmatprep.subr.mxu0 0.0
        %2445 = vmatpush1.msra.mxu0 0.0
        %2446 = vmatprep.subr.mxu0 0.0
        %2447 = vmatpush1.msra.mxu0 0.0
        %2448 = vmatprep.subr.mxu0 0.0
        %2449 = vmatpush1.msra.mxu0 0.0
        %2450 = vmatprep.subr.mxu0 0.0
        %2451 = vmatpush1.msra.mxu0 0.0
        %2452 = vmatprep.subr.mxu0 0.0
        %2453 = vmatpush1.msra.mxu0 0.0
        %2454 = vmatprep.subr.mxu0 0.0
        %2455 = vmatpush1.msra.mxu0 0.0
        %2456 = vmatprep.subr.mxu0 0.0
        %2457 = vmatpush1.msra.mxu0 0.0
        %2458 = vmatprep.subr.mxu0 0.0
        %2459 = vmatpush1.msra.mxu0 0.0
        %2460 = vmatprep.subr.mxu0 0.0
        %2461 = vmatpush1.msra.mxu0 0.0
        %2462 = vmatprep.subr.mxu0 0.0
        %2463 = vmatpush1.msra.mxu0 0.0
        %2464 = vmatprep.subr.mxu0 0.0
        %2465 = vmatpush1.msra.mxu0 0.0
        %2466 = vmatprep.subr.mxu0 0.0
        %2467 = vmatpush1.msra.mxu0 0.0
        %2468 = vmatprep.subr.mxu0 0.0
        %2469 = vmatpush1.msra.mxu0 0.0
        %2470 = vmatprep.subr.mxu0 0.0
        %2471 = vmatpush1.msra.mxu0 0.0
        %2472 = vmatprep.subr.mxu0 0.0
        %2473 = vmatpush1.msra.mxu0 0.0
        %2474 = vmatprep.subr.mxu0 0.0
        %2475 = vmatpush1.msra.mxu0 0.0
        %2476 = vmatprep.subr.mxu0 0.0
        %2477 = vmatpush1.msra.mxu0 0.0
        %2478 = vmatprep.subr.mxu0 0.0
        %2479 = vmatpush1.msra.mxu0 0.0
        %2480 = vmatprep.mubr.f32.mxu0 0.0
        %2481 = vmatmul.mubr.f32.gmra.mrb[0].mxu0 %v2305
        %v2482 = vpop.f32.mrb[0].mxu0
        %v2483 = vadd.f32 %v2301, %v2482
        %v2484 = vpop.f32.mrb[0].mxu0
        %2485 = vmatprep.mubr.f32.mxu0 0.0
        %2486 = vmatmul.mubr.f32.gmra.mrb[0].mxu0 %v2308
        %v2487 = vpop.f32.mrb[0].mxu0
        %v2488 = vadd.f32 %v2301, %v2487
        %v2489 = vpop.f32.mrb[0].mxu0
        %2490 = vmatprep.mubr.f32.mxu0 0.0
        %2491 = vmatmul.mubr.f32.gmra.mrb[0].mxu0 %v2311
        %v2492 = vpop.f32.mrb[0].mxu0
        %v2493 = vadd.f32 %v2301, %v2492
        %v2494 = vpop.f32.mrb[0].mxu0
        %2495 = vmatprep.mubr.f32.mxu0 0.0
        %2496 = vmatmul.mubr.f32.gmra.mrb[0].mxu0 %v2314
        %v2497 = vpop.f32.mrb[0].mxu0
        %v2498 = vadd.f32 %v2301, %v2497
        %v2499 = vpop.f32.mrb[0].mxu0
        %2500 = vmatprep.mubr.f32.mxu0 0.0
        %2501 = vmatmul.mubr.f32.gmra.mrb[0].mxu0 %v2317
        %v2502 = vpop.f32.mrb[0].mxu0
        %v2503 = vadd.f32 %v2301, %v2502
        %v2504 = vpop.f32.mrb[0].mxu0
        %2505 = vmatprep.mubr.f32.mxu0 0.0
        %2506 = vmatmul.mubr.f32.gmra.mrb[0].mxu0 %v2320
        %v2507 = vpop.f32.mrb[0].mxu0
        %v2508 = vadd.f32 %v2301, %v2507
        %v2509 = vpop.f32.mrb[0].mxu0
        %2510 = vmatprep.mubr.f32.mxu0 0.0
        %2511 = vmatmul.mubr.f32.gmra.mrb[0].mxu0 %v2323
        %v2512 = vpop.f32.mrb[0].mxu0
        %v2513 = vadd.f32 %v2301, %v2512
        %v2514 = vpop.f32.mrb[0].mxu0
        %2515 = vmatprep.mubr.f32.mxu0 0.0
        %2516 = vmatmul.mubr.f32.gmra.mrb[0].mxu0 %v2326
        %v2517 = vpop.f32.mrb[0].mxu0
        %v2518 = vadd.f32 %v2301, %v2517
        %v2519 = vpop.f32.mrb[0].mxu0
        %2520 = vmatprep.mubr.f32.mxu0 0.0
        %2521 = vmatmul.mubr.f32.gmra.mrb[0].mxu0 %v2329
        %v2522 = vpop.f32.mrb[0].mxu0
        %v2523 = vadd.f32 %v2301, %v2522
        %v2524 = vpop.f32.mrb[0].mxu0
        %2525 = vmatprep.mubr.f32.mxu0 0.0
        %2526 = vmatmul.mubr.f32.gmra.mrb[0].mxu0 %v2332
        %v2527 = vpop.f32.mrb[0].mxu0
        %v2528 = vadd.f32 %v2301, %v2527
        %v2529 = vpop.f32.mrb[0].mxu0
        %2530 = vmatprep.mubr.f32.mxu0 0.0
        %2531 = vmatmul.mubr.f32.gmra.mrb[0].mxu0 %v2335
        %v2532 = vpop.f32.mrb[0].mxu0
        %v2533 = vadd.f32 %v2301, %v2532
        %v2534 = vpop.f32.mrb[0].mxu0
        %2535 = vmatprep.mubr.f32.mxu0 0.0
        %2536 = vmatmul.mubr.f32.gmra.mrb[0].mxu0 %v2338
        %v2537 = vpop.f32.mrb[0].mxu0
        %v2538 = vadd.f32 %v2301, %v2537
        %v2539 = vpop.f32.mrb[0].mxu0
        %2540 = vmatprep.mubr.f32.mxu0 0.0
        %2541 = vmatmul.mubr.f32.gmra.mrb[0].mxu0 %v2341
        %v2542 = vpop.f32.mrb[0].mxu0
        %v2543 = vadd.f32 %v2301, %v2542
        %v2544 = vpop.f32.mrb[0].mxu0
        %2545 = vmatprep.mubr.f32.mxu0 0.0
        %2546 = vmatmul.mubr.f32.gmra.mrb[0].mxu0 %v2344
        %v2547 = vpop.f32.mrb[0].mxu0
        %v2548 = vadd.f32 %v2301, %v2547
        %v2549 = vpop.f32.mrb[0].mxu0
        %2550 = vmatprep.mubr.f32.mxu0 0.0
        %2551 = vmatmul.mubr.f32.gmra.mrb[0].mxu0 %v2347
        %v2552 = vpop.f32.mrb[0].mxu0
        %v2553 = vadd.f32 %v2301, %v2552
        %v2554 = vpop.f32.mrb[0].mxu0
        %2555 = vmatprep.mubr.f32.mxu0 0.0
        %2556 = vmatmul.mubr.f32.gmra.mrb[0].mxu0 %v2350
        %v2557 = vpop.f32.mrb[0].mxu0
        %v2558 = vadd.f32 %v2301, %v2557
        %v2559 = vpop.f32.mrb[0].mxu0
        %2560 = vmatprep.mubr.f32.mxu0 0.0
        %2561 = vmatmul.mubr.f32.gmra.mrb[0].mxu0 %v2353
        %v2562 = vpop.f32.mrb[0].mxu0
        %v2563 = vadd.f32 %v2301, %v2562
        %v2564 = vpop.f32.mrb[0].mxu0
        %2565 = vmatprep.mubr.f32.mxu0 0.0
        %2566 = vmatmul.mubr.f32.gmra.mrb[0].mxu0 %v2356
        %v2567 = vpop.f32.mrb[0].mxu0
        %v2568 = vadd.f32 %v2301, %v2567
        %v2569 = vpop.f32.mrb[0].mxu0
        %2570 = vmatprep.mubr.f32.mxu0 0.0
        %2571 = vmatmul.mubr.f32.gmra.mrb[0].mxu0 %v2359
        %v2572 = vpop.f32.mrb[0].mxu0
        %v2573 = vadd.f32 %v2301, %v2572
        %v2574 = vpop.f32.mrb[0].mxu0
        %2575 = vmatprep.mubr.f32.mxu0 0.0
        %2576 = vmatmul.mubr.f32.gmra.mrb[0].mxu0 %v2362
        %v2577 = vpop.f32.mrb[0].mxu0
        %v2578 = vadd.f32 %v2301, %v2577
        %v2579 = vpop.f32.mrb[0].mxu0
        %2580 = vmatprep.mubr.f32.mxu0 0.0
        %2581 = vmatmul.mubr.f32.gmra.mrb[0].mxu0 %v2365
        %v2582 = vpop.f32.mrb[0].mxu0
        %v2583 = vadd.f32 %v2301, %v2582
        %v2584 = vpop.f32.mrb[0].mxu0
        %2585 = vmatprep.mubr.f32.mxu0 0.0
        %2586 = vmatmul.mubr.f32.gmra.mrb[0].mxu0 %v2368
        %v2587 = vpop.f32.mrb[0].mxu0
        %v2588 = vadd.f32 %v2301, %v2587
        %v2589 = vpop.f32.mrb[0].mxu0
        %2590 = vmatprep.mubr.f32.mxu0 0.0
        %2591 = vmatmul.mubr.f32.gmra.mrb[0].mxu0 %v2371
        %v2592 = vpop.f32.mrb[0].mxu0
        %v2593 = vadd.f32 %v2301, %v2592
        %v2594 = vpop.f32.mrb[0].mxu0
        %2595 = vmatprep.mubr.f32.mxu0 0.0
        %2596 = vmatmul.mubr.f32.gmra.mrb[0].mxu0 %v2374
        %v2597 = vpop.f32.mrb[0].mxu0
        %v2598 = vadd.f32 %v2301, %v2597
        %v2599 = vpop.f32.mrb[0].mxu0
        %2600 = vmatprep.mubr.f32.mxu0 0.0
        %2601 = vmatmul.mubr.f32.gmra.mrb[0].mxu0 %v2377
        %v2602 = vpop.f32.mrb[0].mxu0
        %v2603 = vadd.f32 %v2301, %v2602
        %v2604 = vpop.f32.mrb[0].mxu0
        %2605 = vmatprep.mubr.f32.mxu0 0.0
        %2606 = vmatmul.mubr.f32.gmra.mrb[0].mxu0 %v2380
        %v2607 = vpop.f32.mrb[0].mxu0
        %v2608 = vadd.f32 %v2301, %v2607
        %v2609 = vpop.f32.mrb[0].mxu0
        %2610 = vmatprep.mubr.f32.mxu0 0.0
        %2611 = vmatmul.mubr.f32.gmra.mrb[0].mxu0 %v2383
        %v2612 = vpop.f32.mrb[0].mxu0
        %v2613 = vadd.f32 %v2301, %v2612
        %v2614 = vpop.f32.mrb[0].mxu0
        %2615 = vmatprep.mubr.f32.mxu0 0.0
        %2616 = vmatmul.mubr.f32.gmra.mrb[0].mxu0 %v2386
        %v2617 = vpop.f32.mrb[0].mxu0
        %v2618 = vadd.f32 %v2301, %v2617
        %v2619 = vpop.f32.mrb[0].mxu0
        %2620 = vmatprep.mubr.f32.mxu0 0.0
        %2621 = vmatmul.mubr.f32.gmra.mrb[0].mxu0 %v2389
        %v2622 = vpop.f32.mrb[0].mxu0
        %v2623 = vadd.f32 %v2301, %v2622
        %v2624 = vpop.f32.mrb[0].mxu0
        %2625 = vmatprep.mubr.f32.mxu0 0.0
        %2626 = vmatmul.mubr.f32.gmra.mrb[0].mxu0 %v2392
        %v2627 = vpop.f32.mrb[0].mxu0
        %v2628 = vadd.f32 %v2301, %v2627
        %v2629 = vpop.f32.mrb[0].mxu0
        %2630 = vmatprep.mubr.f32.mxu0 0.0
        %2631 = vmatmul.mubr.f32.gmra.mrb[0].mxu0 %v2395
        %v2632 = vpop.f32.mrb[0].mxu0
        %v2633 = vadd.f32 %v2301, %v2632
        %v2634 = vpop.f32.mrb[0].mxu0
        %2635 = vmatprep.mubr.f32.mxu0 0.0
        %2636 = vmatmul.mubr.f32.gmra.mrb[0].mxu0 %v2398
        %v2637 = vpop.f32.mrb[0].mxu0
        %v2638 = vadd.f32 %v2301, %v2637
        %v2639 = vpop.f32.mrb[0].mxu0
        %2640 = vmatprep.mubr.f32.mxu0 0.0
        %2641 = vmatmul.mubr.f32.gmra.mrb[0].mxu0 %v2401
        %v2642 = vpop.f32.mrb[0].mxu0
        %v2643 = vadd.f32 %v2301, %v2642
        %v2644 = vpop.f32.mrb[0].mxu0
        %2645 = vmatprep.mubr.f32.mxu0 0.0
        %2646 = vmatmul.mubr.f32.gmra.mrb[0].mxu0 %v2404
        %v2647 = vpop.f32.mrb[0].mxu0
        %v2648 = vadd.f32 %v2301, %v2647
        %v2649 = vpop.f32.mrb[0].mxu0
        %2650 = vmatprep.mubr.f32.mxu0 0.0
        %2651 = vmatmul.mubr.f32.gmra.mrb[0].mxu0 %v2407
        %v2652 = vpop.f32.mrb[0].mxu0
        %v2653 = vadd.f32 %v2301, %v2652
        %v2654 = vpop.f32.mrb[0].mxu0
        %2655 = vmatprep.mubr.f32.mxu0 0.0
        %2656 = vmatmul.mubr.f32.gmra.mrb[0].mxu0 %v2410
        %v2657 = vpop.f32.mrb[0].mxu0
        %v2658 = vadd.f32 %v2301, %v2657
        %v2659 = vpop.f32.mrb[0].mxu0
        %2660 = vdwg.mxu0
        %vm2661 = vcmask 31744
        %2662 = vst.msk [vmem:[#allocation3] sm:$0xff] %vm2661, %v2483
        %2663 = vst.msk [vmem:[#allocation3 + $0x8] sm:$0xff] %vm2661, %v2488
        %2664 = vst.msk [vmem:[#allocation3 + $0x10] sm:$0xff] %vm2661, %v2493
        %2665 = vst.msk [vmem:[#allocation3 + $0x18] sm:$0xff] %vm2661, %v2498
        %2666 = vst.msk [vmem:[#allocation3 + $0x20] sm:$0xff] %vm2661, %v2503
        %2667 = vst.msk [vmem:[#allocation3 + $0x28] sm:$0xff] %vm2661, %v2508
        %2668 = vst.msk [vmem:[#allocation3 + $0x30] sm:$0xff] %vm2661, %v2513
        %2669 = vst.msk [vmem:[#allocation3 + $0x38] sm:$0xff] %vm2661, %v2518
        %2670 = vst.msk [vmem:[#allocation3 + $0x40] sm:$0xff] %vm2661, %v2523
        %2671 = vst.msk [vmem:[#allocation3 + $0x48] sm:$0xff] %vm2661, %v2528
        %2672 = vst.msk [vmem:[#allocation3 + $0x50] sm:$0xff] %vm2661, %v2533
        %2673 = vst.msk [vmem:[#allocation3 + $0x58] sm:$0xff] %vm2661, %v2538
        %2674 = vst.msk [vmem:[#allocation3 + $0x60] sm:$0xff] %vm2661, %v2543
        %2675 = vst.msk [vmem:[#allocation3 + $0x68] sm:$0xff] %vm2661, %v2548
        %2676 = vst.msk [vmem:[#allocation3 + $0x70] sm:$0xff] %vm2661, %v2553
        %2677 = vst.msk [vmem:[#allocation3 + $0x78] sm:$0xff] %vm2661, %v2558
        %2678 = vst.msk [vmem:[#allocation3 + $0x80] sm:$0xff] %vm2661, %v2563
        %2679 = vst.msk [vmem:[#allocation3 + $0x88] sm:$0xff] %vm2661, %v2568
        %2680 = vst.msk [vmem:[#allocation3 + $0x90] sm:$0xff] %vm2661, %v2573
        %2681 = vst.msk [vmem:[#allocation3 + $0x98] sm:$0xff] %vm2661, %v2578
        %2682 = vst.msk [vmem:[#allocation3 + $0xa0] sm:$0xff] %vm2661, %v2583
        %2683 = vst.msk [vmem:[#allocation3 + $0xa8] sm:$0xff] %vm2661, %v2588
        %2684 = vst.msk [vmem:[#allocation3 + $0xb0] sm:$0xff] %vm2661, %v2593
        %2685 = vst.msk [vmem:[#allocation3 + $0xb8] sm:$0xff] %vm2661, %v2598
        %2686 = vst.msk [vmem:[#allocation3 + $0xc0] sm:$0xff] %vm2661, %v2603
        %2687 = vst.msk [vmem:[#allocation3 + $0xc8] sm:$0xff] %vm2661, %v2608
        %2688 = vst.msk [vmem:[#allocation3 + $0xd0] sm:$0xff] %vm2661, %v2613
        %2689 = vst.msk [vmem:[#allocation3 + $0xd8] sm:$0xff] %vm2661, %v2618
        %2690 = vst.msk [vmem:[#allocation3 + $0xe0] sm:$0xff] %vm2661, %v2623
        %2691 = vst.msk [vmem:[#allocation3 + $0xe8] sm:$0xff] %vm2661, %v2628
        %2692 = vst.msk [vmem:[#allocation3 + $0xf0] sm:$0xff] %vm2661, %v2633
        %2693 = vst.msk [vmem:[#allocation3 + $0xf8] sm:$0xff] %vm2661, %v2638
        %2694 = vst.msk [vmem:[#allocation3 + $0x100] sm:$0xff] %vm2661, %v2643
        %2695 = vst.msk [vmem:[#allocation3 + $0x108] sm:$0xff] %vm2661, %v2648
        %2696 = vst.msk [vmem:[#allocation3 + $0x110] sm:$0xff] %vm2661, %v2653
        %2697 = vst.msk [vmem:[#allocation3 + $0x118] sm:$0xff] %vm2661, %v2658
        %2698 = vst.msk [vmem:[#allocation4] sm:$0xff] %vm2661, 0.0
        %2699 = vst.msk [vmem:[#allocation4 + $0x8] sm:$0xff] %vm2661, 0.0
        %vm2700 = vcmask 25600
        %2701 = vst.msk [vmem:[#allocation4 + $0x10] sm:$0x3] %vm2700, 0.0
        %2702 = vst.msk [vmem:[#allocation4 + $0x18] sm:$0xff] %vm2661, 0.0
        %2703 = vst.msk [vmem:[#allocation4 + $0x20] sm:$0xff] %vm2661, 0.0
        %2704 = vst.msk [vmem:[#allocation4 + $0x28] sm:$0x3] %vm2700, 0.0
        %2705 = vst.msk [vmem:[#allocation4 + $0x30] sm:$0xff] %vm2661, 0.0
        %2706 = vst.msk [vmem:[#allocation4 + $0x38] sm:$0xff] %vm2661, 0.0
        %2707 = vst.msk [vmem:[#allocation4 + $0x40] sm:$0x3] %vm2700, 0.0
        %2708 = vst.msk [vmem:[#allocation4 + $0x48] sm:$0xff] %vm2661, 0.0
        %2709 = vst.msk [vmem:[#allocation4 + $0x50] sm:$0xff] %vm2661, 0.0
        %2710 = vst.msk [vmem:[#allocation4 + $0x58] sm:$0x3] %vm2700, 0.0
        %2711 = vst.msk [vmem:[#allocation4 + $0x60] sm:$0xff] %vm2661, 0.0
        %2712 = vst.msk [vmem:[#allocation4 + $0x68] sm:$0xff] %vm2661, 0.0
        %2713 = vst.msk [vmem:[#allocation4 + $0x70] sm:$0x3] %vm2700, 0.0
        %2714 = vst.msk [vmem:[#allocation4 + $0x78] sm:$0xff] %vm2661, 0.0
        %2715 = vst.msk [vmem:[#allocation4 + $0x80] sm:$0xff] %vm2661, 0.0
        %2716 = vst.msk [vmem:[#allocation4 + $0x88] sm:$0x3] %vm2700, 0.0
        %2717 = vst.msk [vmem:[#allocation4 + $0x90] sm:$0xff] %vm2661, 0.0
        %2718 = vst.msk [vmem:[#allocation4 + $0x98] sm:$0xff] %vm2661, 0.0
        %2719 = vst.msk [vmem:[#allocation4 + $0xa0] sm:$0x3] %vm2700, 0.0
        %2720 = vst.msk [vmem:[#allocation4 + $0xa8] sm:$0xff] %vm2661, 0.0
        %2721 = vst.msk [vmem:[#allocation4 + $0xb0] sm:$0xff] %vm2661, 0.0
        %2722 = vst.msk [vmem:[#allocation4 + $0xb8] sm:$0x3] %vm2700, 0.0
        %2723 = vst.msk [vmem:[#allocation4 + $0xc0] sm:$0xff] %vm2661, 0.0
        %2724 = vst.msk [vmem:[#allocation4 + $0xc8] sm:$0xff] %vm2661, 0.0
        %2725 = vst.msk [vmem:[#allocation4 + $0xd0] sm:$0x3] %vm2700, 0.0
        %2726 = vst.msk [vmem:[#allocation4 + $0xd8] sm:$0xff] %vm2661, 0.0
        %2727 = vst.msk [vmem:[#allocation4 + $0xe0] sm:$0xff] %vm2661, 0.0
        %2728 = vst.msk [vmem:[#allocation4 + $0xe8] sm:$0x3] %vm2700, 0.0
        %2729 = vst.msk [vmem:[#allocation4 + $0xf0] sm:$0xff] %vm2661, 0.0
        %2730 = vst.msk [vmem:[#allocation4 + $0xf8] sm:$0xff] %vm2661, 0.0
        %2731 = vst.msk [vmem:[#allocation4 + $0x100] sm:$0x3] %vm2700, 0.0
        %2732 = vst.msk [vmem:[#allocation4 + $0x108] sm:$0xff] %vm2661, 0.0
        %2733 = vst.msk [vmem:[#allocation4 + $0x110] sm:$0xff] %vm2661, 0.0
        %2734 = vst.msk [vmem:[#allocation4 + $0x118] sm:$0x3] %vm2700, 0.0
        %2735 = vst.msk [vmem:[#allocation4 + $0x120] sm:$0xff] %vm2661, 0.0
        %2736 = vst.msk [vmem:[#allocation4 + $0x128] sm:$0xff] %vm2661, 0.0
        %2737 = vst.msk [vmem:[#allocation4 + $0x130] sm:$0x3] %vm2700, 0.0
        %2738 = vst.msk [vmem:[#allocation4 + $0x138] sm:$0xff] %vm2661, 0.0
        %2739 = vst.msk [vmem:[#allocation4 + $0x140] sm:$0xff] %vm2661, 0.0
        %2740 = vst.msk [vmem:[#allocation4 + $0x148] sm:$0x3] %vm2700, 0.0
        %2741 = vst.msk [vmem:[#allocation4 + $0x150] sm:$0xff] %vm2661, 0.0
        %2742 = vst.msk [vmem:[#allocation4 + $0x158] sm:$0xff] %vm2661, 0.0
        %2743 = vst.msk [vmem:[#allocation4 + $0x160] sm:$0x3] %vm2700, 0.0
        %2744 = vst.msk [vmem:[#allocation4 + $0x168] sm:$0xff] %vm2661, 0.0
        %2745 = vst.msk [vmem:[#allocation4 + $0x170] sm:$0xff] %vm2661, 0.0
        %2746 = vst.msk [vmem:[#allocation4 + $0x178] sm:$0x3] %vm2700, 0.0
        %2747 = vst.msk [vmem:[#allocation4 + $0x180] sm:$0xff] %vm2661, 0.0
        %2748 = vst.msk [vmem:[#allocation4 + $0x188] sm:$0xff] %vm2661, 0.0
        %2749 = vst.msk [vmem:[#allocation4 + $0x190] sm:$0x3] %vm2700, 0.0
        %2750 = vst.msk [vmem:[#allocation4 + $0x198] sm:$0xff] %vm2661, 0.0
        %2751 = vst.msk [vmem:[#allocation4 + $0x1a0] sm:$0xff] %vm2661, 0.0
        %2752 = vst.msk [vmem:[#allocation4 + $0x1a8] sm:$0x3] %vm2700, 0.0
        %2753 = vst.msk [vmem:[#allocation6] sm:$0xff] %vm2661, 0.0
        %2754 = vst.msk [vmem:[#allocation6 + $0x8] sm:$0xff] %vm2661, 0.0
        %2755 = vst.msk [vmem:[#allocation6 + $0x10] sm:$0xff] %vm2661, 0.0
        %2756 = vst.msk [vmem:[#allocation6 + $0x18] sm:$0xff] %vm2661, 0.0
        %2757 = vst.msk [vmem:[#allocation6 + $0x20] sm:$0xff] %vm2661, 0.0
        %2758 = vst.msk [vmem:[#allocation6 + $0x28] sm:$0xff] %vm2661, 0.0
        %2759 = vst.msk [vmem:[#allocation6 + $0x30] sm:$0xff] %vm2661, 0.0
        %2760 = vst.msk [vmem:[#allocation6 + $0x38] sm:$0xff] %vm2661, 0.0
        %2761 = vst.msk [vmem:[#allocation6 + $0x40] sm:$0xff] %vm2661, 0.0
        %2762 = vst.msk [vmem:[#allocation6 + $0x48] sm:$0xff] %vm2661, 0.0
        %2763 = vst.msk [vmem:[#allocation6 + $0x50] sm:$0xff] %vm2661, 0.0
        %2764 = vst.msk [vmem:[#allocation6 + $0x58] sm:$0xff] %vm2661, 0.0
        %2765 = vst.msk [vmem:[#allocation6 + $0x60] sm:$0xff] %vm2661, 0.0
        %vm2766 = vcmask 27648
        %2767 = vst.msk [vmem:[#allocation6 + $0x68] sm:$0xf] %vm2766, 0.0
        %v2768 = vld [vmem:[#allocation3] sm:$0xff]
        %v2769 = vld [vmem:[#allocation3 + $0x8] sm:$0xff]
        %2770 = vst.msk [vmem:[%s441] sm:$0xff] %vm2661, %v2768
        %2771 = vst.msk [vmem:[%s441 + $0x8] sm:$0xff] %vm2661, %v2769
        %v2772 = vmax.f32 %v2768, 0.0
        %v2773 = vmax.f32 %v2769, 0.0
        %s2774 = scalar_lea.vmem [#allocation4], 24
        %2775 = vst.msk [vmem:[%s2774 + $0x1] sm:$0xff] %vm2661, %v2772
        %2776 = vst.msk [vmem:[%s2774 + $0x9] sm:$0xff] %vm2661, %v2773
        %v2777 = vld [vmem:[#allocation3 + $0x12] sm:$0xff]
        %v2778 = vld [vmem:[#allocation3 + $0x1a] sm:$0xff]
        %2779 = vst.msk [vmem:[%s441 + $0x10] sm:$0xff] %vm2661, %v2777
        %2780 = vst.msk [vmem:[%s441 + $0x18] sm:$0xff] %vm2661, %v2778
        %v2781 = vmax.f32 %v2777, 0.0
        %v2782 = vmax.f32 %v2778, 0.0
        %s2783 = scalar_lea.vmem [#allocation4], 48
        %2784 = vst.msk [vmem:[%s2783 + $0x1] sm:$0xff] %vm2661, %v2781
        %2785 = vst.msk [vmem:[%s2783 + $0x9] sm:$0xff] %vm2661, %v2782
        %v2786 = vld [vmem:[#allocation3 + $0x24] sm:$0xff]
        %v2787 = vld [vmem:[#allocation3 + $0x2c] sm:$0xff]
        %2788 = vst.msk [vmem:[%s441 + $0x20] sm:$0xff] %vm2661, %v2786
        %2789 = vst.msk [vmem:[%s441 + $0x28] sm:$0xff] %vm2661, %v2787
        %v2790 = vmax.f32 %v2786, 0.0
        %v2791 = vmax.f32 %v2787, 0.0
        %s2792 = scalar_lea.vmem [#allocation4], 72
        %2793 = vst.msk [vmem:[%s2792 + $0x1] sm:$0xff] %vm2661, %v2790
        %2794 = vst.msk [vmem:[%s2792 + $0x9] sm:$0xff] %vm2661, %v2791
        %v2795 = vld [vmem:[#allocation3 + $0x36] sm:$0xff]
        %v2796 = vld [vmem:[#allocation3 + $0x3e] sm:$0xff]
        %2797 = vst.msk [vmem:[%s441 + $0x30] sm:$0xff] %vm2661, %v2795
        %2798 = vst.msk [vmem:[%s441 + $0x38] sm:$0xff] %vm2661, %v2796
        %v2799 = vmax.f32 %v2795, 0.0
        %v2800 = vmax.f32 %v2796, 0.0
        %s2801 = scalar_lea.vmem [#allocation4], 96
        %2802 = vst.msk [vmem:[%s2801 + $0x1] sm:$0xff] %vm2661, %v2799
        %2803 = vst.msk [vmem:[%s2801 + $0x9] sm:$0xff] %vm2661, %v2800
        %v2804 = vld [vmem:[#allocation3 + $0x48] sm:$0xff]
        %v2805 = vld [vmem:[#allocation3 + $0x50] sm:$0xff]
        %2806 = vst.msk [vmem:[%s441 + $0x40] sm:$0xff] %vm2661, %v2804
        %2807 = vst.msk [vmem:[%s441 + $0x48] sm:$0xff] %vm2661, %v2805
        %v2808 = vmax.f32 %v2804, 0.0
        %v2809 = vmax.f32 %v2805, 0.0
        %s2810 = scalar_lea.vmem [#allocation4], 120
        %2811 = vst.msk [vmem:[%s2810 + $0x1] sm:$0xff] %vm2661, %v2808
        %2812 = vst.msk [vmem:[%s2810 + $0x9] sm:$0xff] %vm2661, %v2809
        %v2813 = vld [vmem:[#allocation3 + $0x5a] sm:$0xff]
        %v2814 = vld [vmem:[#allocation3 + $0x62] sm:$0xff]
        %2815 = vst.msk [vmem:[%s441 + $0x50] sm:$0xff] %vm2661, %v2813
        %2816 = vst.msk [vmem:[%s441 + $0x58] sm:$0xff] %vm2661, %v2814
        %v2817 = vmax.f32 %v2813, 0.0
        %v2818 = vmax.f32 %v2814, 0.0
        %s2819 = scalar_lea.vmem [#allocation4], 144
        %2820 = vst.msk [vmem:[%s2819 + $0x1] sm:$0xff] %vm2661, %v2817
        %2821 = vst.msk [vmem:[%s2819 + $0x9] sm:$0xff] %vm2661, %v2818
        %v2822 = vld [vmem:[#allocation3 + $0x6c] sm:$0xff]
        %v2823 = vld [vmem:[#allocation3 + $0x74] sm:$0xff]
        %2824 = vst.msk [vmem:[%s441 + $0x60] sm:$0xff] %vm2661, %v2822
        %2825 = vst.msk [vmem:[%s441 + $0x68] sm:$0xff] %vm2661, %v2823
        %v2826 = vmax.f32 %v2822, 0.0
        %v2827 = vmax.f32 %v2823, 0.0
        %s2828 = scalar_lea.vmem [#allocation4], 168
        %2829 = vst.msk [vmem:[%s2828 + $0x1] sm:$0xff] %vm2661, %v2826
        %2830 = vst.msk [vmem:[%s2828 + $0x9] sm:$0xff] %vm2661, %v2827
        %v2831 = vld [vmem:[#allocation3 + $0x7e] sm:$0xff]
        %v2832 = vld [vmem:[#allocation3 + $0x86] sm:$0xff]
        %2833 = vst.msk [vmem:[%s441 + $0x70] sm:$0xff] %vm2661, %v2831
        %2834 = vst.msk [vmem:[%s441 + $0x78] sm:$0xff] %vm2661, %v2832
        %v2835 = vmax.f32 %v2831, 0.0
        %v2836 = vmax.f32 %v2832, 0.0
        %s2837 = scalar_lea.vmem [#allocation4], 192
        %2838 = vst.msk [vmem:[%s2837 + $0x1] sm:$0xff] %vm2661, %v2835
        %2839 = vst.msk [vmem:[%s2837 + $0x9] sm:$0xff] %vm2661, %v2836
        %v2840 = vld [vmem:[#allocation3 + $0x90] sm:$0xff]
        %v2841 = vld [vmem:[#allocation3 + $0x98] sm:$0xff]
        %2842 = vst.msk [vmem:[%s441 + $0x80] sm:$0xff] %vm2661, %v2840
        %2843 = vst.msk [vmem:[%s441 + $0x88] sm:$0xff] %vm2661, %v2841
        %v2844 = vmax.f32 %v2840, 0.0
        %v2845 = vmax.f32 %v2841, 0.0
        %s2846 = scalar_lea.vmem [#allocation4], 216
        %2847 = vst.msk [vmem:[%s2846 + $0x1] sm:$0xff] %vm2661, %v2844
        %2848 = vst.msk [vmem:[%s2846 + $0x9] sm:$0xff] %vm2661, %v2845
        %v2849 = vld [vmem:[#allocation3 + $0xa2] sm:$0xff]
        %v2850 = vld [vmem:[#allocation3 + $0xaa] sm:$0xff]
        %2851 = vst.msk [vmem:[%s441 + $0x90] sm:$0xff] %vm2661, %v2849
        %2852 = vst.msk [vmem:[%s441 + $0x98] sm:$0xff] %vm2661, %v2850
        %v2853 = vmax.f32 %v2849, 0.0
        %v2854 = vmax.f32 %v2850, 0.0
        %s2855 = scalar_lea.vmem [#allocation4], 240
        %2856 = vst.msk [vmem:[%s2855 + $0x1] sm:$0xff] %vm2661, %v2853
        %2857 = vst.msk [vmem:[%s2855 + $0x9] sm:$0xff] %vm2661, %v2854
        %v2858 = vld [vmem:[#allocation3 + $0xb4] sm:$0xff]
        %v2859 = vld [vmem:[#allocation3 + $0xbc] sm:$0xff]
        %2860 = vst.msk [vmem:[%s441 + $0xa0] sm:$0xff] %vm2661, %v2858
        %2861 = vst.msk [vmem:[%s441 + $0xa8] sm:$0xff] %vm2661, %v2859
        %v2862 = vmax.f32 %v2858, 0.0
        %v2863 = vmax.f32 %v2859, 0.0
        %s2864 = scalar_lea.vmem [#allocation4], 264
        %2865 = vst.msk [vmem:[%s2864 + $0x1] sm:$0xff] %vm2661, %v2862
        %2866 = vst.msk [vmem:[%s2864 + $0x9] sm:$0xff] %vm2661, %v2863
        %v2867 = vld [vmem:[#allocation3 + $0xc6] sm:$0xff]
        %v2868 = vld [vmem:[#allocation3 + $0xce] sm:$0xff]
        %2869 = vst.msk [vmem:[%s441 + $0xb0] sm:$0xff] %vm2661, %v2867
        %2870 = vst.msk [vmem:[%s441 + $0xb8] sm:$0xff] %vm2661, %v2868
        %v2871 = vmax.f32 %v2867, 0.0
        %v2872 = vmax.f32 %v2868, 0.0
        %s2873 = scalar_lea.vmem [#allocation4], 288
        %2874 = vst.msk [vmem:[%s2873 + $0x1] sm:$0xff] %vm2661, %v2871
        %2875 = vst.msk [vmem:[%s2873 + $0x9] sm:$0xff] %vm2661, %v2872
        %v2876 = vld [vmem:[#allocation3 + $0xd8] sm:$0xff]
        %v2877 = vld [vmem:[#allocation3 + $0xe0] sm:$0xff]
        %2878 = vst.msk [vmem:[%s441 + $0xc0] sm:$0xff] %vm2661, %v2876
        %2879 = vst.msk [vmem:[%s441 + $0xc8] sm:$0xff] %vm2661, %v2877
        %v2880 = vmax.f32 %v2876, 0.0
        %v2881 = vmax.f32 %v2877, 0.0
        %s2882 = scalar_lea.vmem [#allocation4], 312
        %2883 = vst.msk [vmem:[%s2882 + $0x1] sm:$0xff] %vm2661, %v2880
        %2884 = vst.msk [vmem:[%s2882 + $0x9] sm:$0xff] %vm2661, %v2881
        %v2885 = vld [vmem:[#allocation3 + $0xea] sm:$0xff]
        %v2886 = vld [vmem:[#allocation3 + $0xf2] sm:$0xff]
        %2887 = vst.msk [vmem:[%s441 + $0xd0] sm:$0xff] %vm2661, %v2885
        %2888 = vst.msk [vmem:[%s441 + $0xd8] sm:$0xff] %vm2661, %v2886
        %v2889 = vmax.f32 %v2885, 0.0
        %v2890 = vmax.f32 %v2886, 0.0
        %s2891 = scalar_lea.vmem [#allocation4], 336
        %2892 = vst.msk [vmem:[%s2891 + $0x1] sm:$0xff] %vm2661, %v2889
        %2893 = vst.msk [vmem:[%s2891 + $0x9] sm:$0xff] %vm2661, %v2890
        %v2894 = vld [vmem:[#allocation3 + $0xfc] sm:$0xff]
        %v2895 = vld [vmem:[#allocation3 + $0x104] sm:$0xff]
        %2896 = vst.msk [vmem:[%s441 + $0xe0] sm:$0xff] %vm2661, %v2894
        %2897 = vst.msk [vmem:[%s441 + $0xe8] sm:$0xff] %vm2661, %v2895
        %v2898 = vmax.f32 %v2894, 0.0
        %v2899 = vmax.f32 %v2895, 0.0
        %s2900 = scalar_lea.vmem [#allocation4], 360
        %2901 = vst.msk [vmem:[%s2900 + $0x1] sm:$0xff] %vm2661, %v2898
        %2902 = vst.msk [vmem:[%s2900 + $0x9] sm:$0xff] %vm2661, %v2899
        %v2903 = vld [vmem:[#allocation3 + $0x10e] sm:$0xff]
        %v2904 = vld [vmem:[#allocation3 + $0x116] sm:$0xff]
        %2905 = vst.msk [vmem:[%s441 + $0xf0] sm:$0xff] %vm2661, %v2903
        %2906 = vst.msk [vmem:[%s441 + $0xf8] sm:$0xff] %vm2661, %v2904
        %v2907 = vmax.f32 %v2903, 0.0
        %v2908 = vmax.f32 %v2904, 0.0
        %s2909 = scalar_lea.vmem [#allocation4], 384
        %2910 = vst.msk [vmem:[%s2909 + $0x1] sm:$0xff] %vm2661, %v2907
        %2911 = vst.msk [vmem:[%s2909 + $0x9] sm:$0xff] %vm2661, %v2908
        %v2912 = vld [vmem:[#allocation4] sm:$0xff]
        %v2913 = vld [vmem:[#allocation4 + $0x8] sm:$0xff]
        %v2914 = vld [vmem:[#allocation4 + $0x10] sm:$0x3]
        %v2915 = vld [vmem:[#allocation4 + $0x30] sm:$0xff]
        %v2916 = vld [vmem:[#allocation4 + $0x38] sm:$0xff]
        %v2917 = vld [vmem:[#allocation4 + $0x40] sm:$0x3]
        %v2918 = vld [vmem:[#allocation4 + $0x60] sm:$0xff]
        %v2919 = vld [vmem:[#allocation4 + $0x68] sm:$0xff]
        %v2920 = vld [vmem:[#allocation4 + $0x70] sm:$0x3]
        %v2921 = vld [vmem:[#allocation4 + $0x90] sm:$0xff]
        %v2922 = vld [vmem:[#allocation4 + $0x98] sm:$0xff]
        %v2923 = vld [vmem:[#allocation4 + $0xa0] sm:$0x3]
        %v2924 = vld [vmem:[#allocation4 + $0xc0] sm:$0xff]
        %v2925 = vld [vmem:[#allocation4 + $0xc8] sm:$0xff]
        %v2926 = vld [vmem:[#allocation4 + $0xd0] sm:$0x3]
        %v2927 = vld [vmem:[#allocation4 + $0xf0] sm:$0xff]
        %v2928 = vld [vmem:[#allocation4 + $0xf8] sm:$0xff]
        %v2929 = vld [vmem:[#allocation4 + $0x100] sm:$0x3]
        %v2930 = vld [vmem:[#allocation4 + $0x120] sm:$0xff]
        %v2931 = vld [vmem:[#allocation4 + $0x128] sm:$0xff]
        %v2932 = vld [vmem:[#allocation4 + $0x130] sm:$0x3]
        %v2933 = vld [vmem:[#allocation4 + $0x150] sm:$0xff]
        %v2934 = vld [vmem:[#allocation4 + $0x158] sm:$0xff]
        %v2935 = vld [vmem:[#allocation4 + $0x160] sm:$0x3]
        %v2936 = vld [vmem:[%s2774] sm:$0xff]
        %v2937 = vld [vmem:[%s2774 + $0x8] sm:$0xff]
        %v2938 = vld [vmem:[%s2774 + $0x10] sm:$0x3]
        %v2939 = vld [vmem:[%s2774 + $0x30] sm:$0xff]
        %v2940 = vld [vmem:[%s2774 + $0x38] sm:$0xff]
        %v2941 = vld [vmem:[%s2774 + $0x40] sm:$0x3]
        %v2942 = vld [vmem:[%s2774 + $0x60] sm:$0xff]
        %v2943 = vld [vmem:[%s2774 + $0x68] sm:$0xff]
        %v2944 = vld [vmem:[%s2774 + $0x70] sm:$0x3]
        %v2945 = vld [vmem:[%s2774 + $0x90] sm:$0xff]
        %v2946 = vld [vmem:[%s2774 + $0x98] sm:$0xff]
        %v2947 = vld [vmem:[%s2774 + $0xa0] sm:$0x3]
        %v2948 = vld [vmem:[%s2774 + $0xc0] sm:$0xff]
        %v2949 = vld [vmem:[%s2774 + $0xc8] sm:$0xff]
        %v2950 = vld [vmem:[%s2774 + $0xd0] sm:$0x3]
        %v2951 = vld [vmem:[%s2774 + $0xf0] sm:$0xff]
        %v2952 = vld [vmem:[%s2774 + $0xf8] sm:$0xff]
        %v2953 = vld [vmem:[%s2774 + $0x100] sm:$0x3]
        %v2954 = vld [vmem:[%s2774 + $0x120] sm:$0xff]
        %v2955 = vld [vmem:[%s2774 + $0x128] sm:$0xff]
        %v2956 = vld [vmem:[%s2774 + $0x130] sm:$0x3]
        %v2957 = vld [vmem:[%s2774 + $0x150] sm:$0xff]
        %v2958 = vld [vmem:[%s2774 + $0x158] sm:$0xff]
        %v2959 = vld [vmem:[%s2774 + $0x160] sm:$0x3]
        %v2960 = vmax.f32 %v2912, %v2936
        %v2961 = vmax.f32 %v2913, %v2937
        %v2962 = vmax.f32 %v2914, %v2938
        %v2963 = vmax.f32 %v2915, %v2939
        %v2964 = vmax.f32 %v2916, %v2940
        %v2965 = vmax.f32 %v2917, %v2941
        %v2966 = vmax.f32 %v2918, %v2942
        %v2967 = vmax.f32 %v2919, %v2943
        %v2968 = vmax.f32 %v2920, %v2944
        %v2969 = vmax.f32 %v2921, %v2945
        %v2970 = vmax.f32 %v2922, %v2946
        %v2971 = vmax.f32 %v2923, %v2947
        %v2972 = vmax.f32 %v2924, %v2948
        %v2973 = vmax.f32 %v2925, %v2949
        %v2974 = vmax.f32 %v2926, %v2950
        %v2975 = vmax.f32 %v2927, %v2951
        %v2976 = vmax.f32 %v2928, %v2952
        %v2977 = vmax.f32 %v2929, %v2953
        %v2978 = vmax.f32 %v2930, %v2954
        %v2979 = vmax.f32 %v2931, %v2955
        %v2980 = vmax.f32 %v2932, %v2956
        %v2981 = vmax.f32 %v2933, %v2957
        %v2982 = vmax.f32 %v2934, %v2958
        %v2983 = vmax.f32 %v2935, %v2959
        %v2984 = vld [vmem:[%s2783] sm:$0xff]
        %v2985 = vld [vmem:[%s2783 + $0x8] sm:$0xff]
        %v2986 = vld [vmem:[%s2783 + $0x10] sm:$0x3]
        %v2987 = vld [vmem:[%s2783 + $0x30] sm:$0xff]
        %v2988 = vld [vmem:[%s2783 + $0x38] sm:$0xff]
        %v2989 = vld [vmem:[%s2783 + $0x40] sm:$0x3]
        %v2990 = vld [vmem:[%s2783 + $0x60] sm:$0xff]
        %v2991 = vld [vmem:[%s2783 + $0x68] sm:$0xff]
        %v2992 = vld [vmem:[%s2783 + $0x70] sm:$0x3]
        %v2993 = vld [vmem:[%s2783 + $0x90] sm:$0xff]
        %v2994 = vld [vmem:[%s2783 + $0x98] sm:$0xff]
        %v2995 = vld [vmem:[%s2783 + $0xa0] sm:$0x3]
        %v2996 = vld [vmem:[%s2783 + $0xc0] sm:$0xff]
        %v2997 = vld [vmem:[%s2783 + $0xc8] sm:$0xff]
        %v2998 = vld [vmem:[%s2783 + $0xd0] sm:$0x3]
        %v2999 = vld [vmem:[%s2783 + $0xf0] sm:$0xff]
        %v3000 = vld [vmem:[%s2783 + $0xf8] sm:$0xff]
        %v3001 = vld [vmem:[%s2783 + $0x100] sm:$0x3]
        %v3002 = vld [vmem:[%s2783 + $0x120] sm:$0xff]
        %v3003 = vld [vmem:[%s2783 + $0x128] sm:$0xff]
        %v3004 = vld [vmem:[%s2783 + $0x130] sm:$0x3]
        %v3005 = vld [vmem:[%s2783 + $0x150] sm:$0xff]
        %v3006 = vld [vmem:[%s2783 + $0x158] sm:$0xff]
        %v3007 = vld [vmem:[%s2783 + $0x160] sm:$0x3]
        %v3008 = vmax.f32 %v2960, %v2984
        %v3009 = vmax.f32 %v2961, %v2985
        %v3010 = vmax.f32 %v2962, %v2986
        %v3011 = vmax.f32 %v2963, %v2987
        %v3012 = vmax.f32 %v2964, %v2988
        %v3013 = vmax.f32 %v2965, %v2989
        %v3014 = vmax.f32 %v2966, %v2990
        %v3015 = vmax.f32 %v2967, %v2991
        %v3016 = vmax.f32 %v2968, %v2992
        %v3017 = vmax.f32 %v2969, %v2993
        %v3018 = vmax.f32 %v2970, %v2994
        %v3019 = vmax.f32 %v2971, %v2995
        %v3020 = vmax.f32 %v2972, %v2996
        %v3021 = vmax.f32 %v2973, %v2997
        %v3022 = vmax.f32 %v2974, %v2998
        %v3023 = vmax.f32 %v2975, %v2999
        %v3024 = vmax.f32 %v2976, %v3000
        %v3025 = vmax.f32 %v2977, %v3001
        %v3026 = vmax.f32 %v2978, %v3002
        %v3027 = vmax.f32 %v2979, %v3003
        %v3028 = vmax.f32 %v2980, %v3004
        %v3029 = vmax.f32 %v2981, %v3005
        %v3030 = vmax.f32 %v2982, %v3006
        %v3031 = vmax.f32 %v2983, %v3007
        %3032 = vst.msk [vmem:[#allocation5] sm:$0xff] %vm2661, %v3008
        %3033 = vst.msk [vmem:[#allocation5 + $0x8] sm:$0xff] %vm2661, %v3009
        %3034 = vst.msk [vmem:[#allocation5 + $0x10] sm:$0x3] %vm2700, %v3010
        %3035 = vst.msk [vmem:[#allocation5 + $0x18] sm:$0xff] %vm2661, %v3011
        %3036 = vst.msk [vmem:[#allocation5 + $0x20] sm:$0xff] %vm2661, %v3012
        %3037 = vst.msk [vmem:[#allocation5 + $0x28] sm:$0x3] %vm2700, %v3013
        %3038 = vst.msk [vmem:[#allocation5 + $0x30] sm:$0xff] %vm2661, %v3014
        %3039 = vst.msk [vmem:[#allocation5 + $0x38] sm:$0xff] %vm2661, %v3015
        %3040 = vst.msk [vmem:[#allocation5 + $0x40] sm:$0x3] %vm2700, %v3016
        %3041 = vst.msk [vmem:[#allocation5 + $0x48] sm:$0xff] %vm2661, %v3017
        %3042 = vst.msk [vmem:[#allocation5 + $0x50] sm:$0xff] %vm2661, %v3018
        %3043 = vst.msk [vmem:[#allocation5 + $0x58] sm:$0x3] %vm2700, %v3019
        %3044 = vst.msk [vmem:[#allocation5 + $0x60] sm:$0xff] %vm2661, %v3020
        %3045 = vst.msk [vmem:[#allocation5 + $0x68] sm:$0xff] %vm2661, %v3021
        %3046 = vst.msk [vmem:[#allocation5 + $0x70] sm:$0x3] %vm2700, %v3022
        %3047 = vst.msk [vmem:[#allocation5 + $0x78] sm:$0xff] %vm2661, %v3023
        %3048 = vst.msk [vmem:[#allocation5 + $0x80] sm:$0xff] %vm2661, %v3024
        %3049 = vst.msk [vmem:[#allocation5 + $0x88] sm:$0x3] %vm2700, %v3025
        %3050 = vst.msk [vmem:[#allocation5 + $0x90] sm:$0xff] %vm2661, %v3026
        %3051 = vst.msk [vmem:[#allocation5 + $0x98] sm:$0xff] %vm2661, %v3027
        %3052 = vst.msk [vmem:[#allocation5 + $0xa0] sm:$0x3] %vm2700, %v3028
        %3053 = vst.msk [vmem:[#allocation5 + $0xa8] sm:$0xff] %vm2661, %v3029
        %3054 = vst.msk [vmem:[#allocation5 + $0xb0] sm:$0xff] %vm2661, %v3030
        %3055 = vst.msk [vmem:[#allocation5 + $0xb8] sm:$0x3] %vm2700, %v3031
        %v3056 = vld [vmem:[#allocation5] ss:$2 sm:$0xff]
        %s3057 = scalar_lea.vmem [#allocation5], 24
        %v3058 = vld [vmem:[%s3057] ss:$2 sm:$0xff]
        %s3059 = scalar_lea.vmem [#allocation5], 48
        %v3060 = vld [vmem:[%s3059] ss:$2 sm:$0xff]
        %s3061 = scalar_lea.vmem [#allocation5], 72
        %v3062 = vld [vmem:[%s3061] ss:$2 sm:$0xff]
        %s3063 = scalar_lea.vmem [#allocation5], 96
        %v3064 = vld [vmem:[%s3063] ss:$2 sm:$0xff]
        %s3065 = scalar_lea.vmem [#allocation5], 120
        %v3066 = vld [vmem:[%s3065] ss:$2 sm:$0xff]
        %s3067 = scalar_lea.vmem [#allocation5], 144
        %v3068 = vld [vmem:[%s3067] ss:$2 sm:$0xff]
        %s3069 = scalar_lea.vmem [#allocation5], 168
        %v3070 = vld [vmem:[%s3069] ss:$2 sm:$0xff]
        %s3071 = scalar_lea.vmem [#allocation5], 1
        %v3072 = vld [vmem:[%s3071] ss:$2 sm:$0xff]
        %s3073 = scalar_lea.vmem [#allocation5], 25
        %v3074 = vld [vmem:[%s3073] ss:$2 sm:$0xff]
        %s3075 = scalar_lea.vmem [#allocation5], 49
        %v3076 = vld [vmem:[%s3075] ss:$2 sm:$0xff]
        %s3077 = scalar_lea.vmem [#allocation5], 73
        %v3078 = vld [vmem:[%s3077] ss:$2 sm:$0xff]
        %s3079 = scalar_lea.vmem [#allocation5], 97
        %v3080 = vld [vmem:[%s3079] ss:$2 sm:$0xff]
        %s3081 = scalar_lea.vmem [#allocation5], 121
        %v3082 = vld [vmem:[%s3081] ss:$2 sm:$0xff]
        %s3083 = scalar_lea.vmem [#allocation5], 145
        %v3084 = vld [vmem:[%s3083] ss:$2 sm:$0xff]
        %s3085 = scalar_lea.vmem [#allocation5], 169
        %v3086 = vld [vmem:[%s3085] ss:$2 sm:$0xff]
        %v3087 = vmax.f32 %v3056, %v3072
        %v3088 = vmax.f32 %v3058, %v3074
        %v3089 = vmax.f32 %v3060, %v3076
        %v3090 = vmax.f32 %v3062, %v3078
        %v3091 = vmax.f32 %v3064, %v3080
        %v3092 = vmax.f32 %v3066, %v3082
        %v3093 = vmax.f32 %v3068, %v3084
        %v3094 = vmax.f32 %v3070, %v3086
        %s3095 = scalar_lea.vmem [#allocation5], 2
        %v3096 = vld [vmem:[%s3095] ss:$2 sm:$0xff]
        %s3097 = scalar_lea.vmem [#allocation5], 26
        %v3098 = vld [vmem:[%s3097] ss:$2 sm:$0xff]
        %s3099 = scalar_lea.vmem [#allocation5], 50
        %v3100 = vld [vmem:[%s3099] ss:$2 sm:$0xff]
        %s3101 = scalar_lea.vmem [#allocation5], 74
        %v3102 = vld [vmem:[%s3101] ss:$2 sm:$0xff]
        %s3103 = scalar_lea.vmem [#allocation5], 98
        %v3104 = vld [vmem:[%s3103] ss:$2 sm:$0xff]
        %s3105 = scalar_lea.vmem [#allocation5], 122
        %v3106 = vld [vmem:[%s3105] ss:$2 sm:$0xff]
        %s3107 = scalar_lea.vmem [#allocation5], 146
        %v3108 = vld [vmem:[%s3107] ss:$2 sm:$0xff]
        %s3109 = scalar_lea.vmem [#allocation5], 170
        %v3110 = vld [vmem:[%s3109] ss:$2 sm:$0xff]
        %v3111 = vmax.f32 %v3087, %v3096
        %v3112 = vmax.f32 %v3088, %v3098
        %v3113 = vmax.f32 %v3089, %v3100
        %v3114 = vmax.f32 %v3090, %v3102
        %v3115 = vmax.f32 %v3091, %v3104
        %v3116 = vmax.f32 %v3092, %v3106
        %v3117 = vmax.f32 %v3093, %v3108
        %v3118 = vmax.f32 %v3094, %v3110
        %3119 = vst.msk [vmem:[#allocation6 + $0xb] sm:$0xff] %vm2661, %v3111
        %3120 = vst.msk [vmem:[#allocation6 + $0x15] sm:$0xff] %vm2661, %v3112
        %3121 = vst.msk [vmem:[#allocation6 + $0x1f] sm:$0xff] %vm2661, %v3113
        %3122 = vst.msk [vmem:[#allocation6 + $0x29] sm:$0xff] %vm2661, %v3114
        %3123 = vst.msk [vmem:[#allocation6 + $0x33] sm:$0xff] %vm2661, %v3115
        %3124 = vst.msk [vmem:[#allocation6 + $0x3d] sm:$0xff] %vm2661, %v3116
        %3125 = vst.msk [vmem:[#allocation6 + $0x47] sm:$0xff] %vm2661, %v3117
        %3126 = vst.msk [vmem:[#allocation6 + $0x51] sm:$0xff] %vm2661, %v3118
        %v3127 = vld [vmem:[#allocation6] sm:$0xff]
        %v3128 = vld [vmem:[#allocation6 + $0x8] sm:$0xff]
        %v3129 = vld [vmem:[#allocation6 + $0x10] sm:$0xff]
        %v3130 = vld [vmem:[#allocation6 + $0x18] sm:$0xff]
        %v3131 = vld [vmem:[#allocation6 + $0x20] sm:$0xff]
        %v3132 = vld [vmem:[#allocation6 + $0x28] sm:$0xff]
        %v3133 = vld [vmem:[#allocation6 + $0x30] sm:$0xff]
        %v3134 = vld [vmem:[#allocation6 + $0x38] sm:$0xff]
        %v3135 = vld [vmem:[#allocation6 + $0x40] sm:$0xff]
        %v3136 = vld [vmem:[#allocation6 + $0x48] sm:$0xff]
        %3137 = vst.msk [vmem:[#allocation7] sm:$0xff] %vm2661, %v3127
        %3138 = vst.msk [vmem:[#allocation7 + $0x8] sm:$0xff] %vm2661, %v3128
        %3139 = vst.msk [vmem:[#allocation7 + $0x10] sm:$0xff] %vm2661, %v3129
        %3140 = vst.msk [vmem:[#allocation7 + $0x18] sm:$0xff] %vm2661, %v3130
        %3141 = vst.msk [vmem:[#allocation7 + $0x20] sm:$0xff] %vm2661, %v3131
        %3142 = vst.msk [vmem:[#allocation7 + $0x28] sm:$0xff] %vm2661, %v3132
        %3143 = vst.msk [vmem:[#allocation7 + $0x30] sm:$0xff] %vm2661, %v3133
        %3144 = vst.msk [vmem:[#allocation7 + $0x38] sm:$0xff] %vm2661, %v3134
        %3145 = vst.msk [vmem:[#allocation7 + $0x40] sm:$0xff] %vm2661, %v3135
        %3146 = vst.msk [vmem:[#allocation7 + $0x48] sm:$0xff] %vm2661, %v3136
        %v3147 = vld [vmem:[#allocation6 + $0x1] sm:$0xff]
        %v3148 = vld [vmem:[#allocation6 + $0x9] sm:$0xff]
        %v3149 = vld [vmem:[#allocation6 + $0x11] sm:$0xff]
        %v3150 = vld [vmem:[#allocation6 + $0x19] sm:$0xff]
        %v3151 = vld [vmem:[#allocation6 + $0x21] sm:$0xff]
        %v3152 = vld [vmem:[#allocation6 + $0x29] sm:$0xff]
        %v3153 = vld [vmem:[#allocation6 + $0x31] sm:$0xff]
        %v3154 = vld [vmem:[#allocation6 + $0x39] sm:$0xff]
        %v3155 = vld [vmem:[#allocation6 + $0x41] sm:$0xff]
        %v3156 = vld [vmem:[#allocation6 + $0x49] sm:$0xff]
        %3167 = vrot.lane.b32.xlu0 %v3147, 4
        %v3168 = vpop.permute.xlu0 %3167
        %3169 = vrot.lane.b32.xlu0 %v3148, 4
        %v3170 = vpop.permute.xlu0 %3169
        %3171 = vrot.lane.b32.xlu0 %v3149, 4
        %v3172 = vpop.permute.xlu0 %3171
        %3173 = vrot.lane.b32.xlu0 %v3150, 4
        %v3174 = vpop.permute.xlu0 %3173
        %3175 = vrot.lane.b32.xlu0 %v3151, 4
        %v3176 = vpop.permute.xlu0 %3175
        %3177 = vrot.lane.b32.xlu0 %v3152, 4
        %v3178 = vpop.permute.xlu0 %3177
        %3179 = vrot.lane.b32.xlu0 %v3153, 4
        %v3180 = vpop.permute.xlu0 %3179
        %3181 = vrot.lane.b32.xlu0 %v3154, 4
        %v3182 = vpop.permute.xlu0 %3181
        %3183 = vrot.lane.b32.xlu0 %v3155, 4
        %v3184 = vpop.permute.xlu0 %3183
        %3185 = vrot.lane.b32.xlu0 %v3156, 4
        %v3186 = vpop.permute.xlu0 %3185
        %vm3197 = vcmask 64544
        %3198 = vst.msk [vmem:[#allocation7] sm:$0xff] %vm3197, %v3168
        %3199 = vst.msk [vmem:[#allocation7 + $0x8] sm:$0xff] %vm3197, %v3170
        %3200 = vst.msk [vmem:[#allocation7 + $0x10] sm:$0xff] %vm3197, %v3172
        %3201 = vst.msk [vmem:[#allocation7 + $0x18] sm:$0xff] %vm3197, %v3174
        %3202 = vst.msk [vmem:[#allocation7 + $0x20] sm:$0xff] %vm3197, %v3176
        %3203 = vst.msk [vmem:[#allocation7 + $0x28] sm:$0xff] %vm3197, %v3178
        %3204 = vst.msk [vmem:[#allocation7 + $0x30] sm:$0xff] %vm3197, %v3180
        %3205 = vst.msk [vmem:[#allocation7 + $0x38] sm:$0xff] %vm3197, %v3182
        %3206 = vst.msk [vmem:[#allocation7 + $0x40] sm:$0xff] %vm3197, %v3184
        %3207 = vst.msk [vmem:[#allocation7 + $0x48] sm:$0xff] %vm3197, %v3186
        %v3208 = vld [vmem:[#allocation6 + $0x2] sm:$0xff]
        %v3209 = vld [vmem:[#allocation6 + $0xa] sm:$0xff]
        %v3210 = vld [vmem:[#allocation6 + $0x12] sm:$0xff]
        %v3211 = vld [vmem:[#allocation6 + $0x1a] sm:$0xff]
        %v3212 = vld [vmem:[#allocation6 + $0x22] sm:$0xff]
        %v3213 = vld [vmem:[#allocation6 + $0x2a] sm:$0xff]
        %v3214 = vld [vmem:[#allocation6 + $0x32] sm:$0xff]
        %v3215 = vld [vmem:[#allocation6 + $0x3a] sm:$0xff]
        %v3216 = vld [vmem:[#allocation6 + $0x42] sm:$0xff]
        %v3217 = vld [vmem:[#allocation6 + $0x4a] sm:$0xff]
        %3228 = vrot.lane.b32.xlu0 %v3208, 8
        %v3229 = vpop.permute.xlu0 %3228
        %3230 = vrot.lane.b32.xlu0 %v3209, 8
        %v3231 = vpop.permute.xlu0 %3230
        %3232 = vrot.lane.b32.xlu0 %v3210, 8
        %v3233 = vpop.permute.xlu0 %3232
        %3234 = vrot.lane.b32.xlu0 %v3211, 8
        %v3235 = vpop.permute.xlu0 %3234
        %3236 = vrot.lane.b32.xlu0 %v3212, 8
        %v3237 = vpop.permute.xlu0 %3236
        %3238 = vrot.lane.b32.xlu0 %v3213, 8
        %v3239 = vpop.permute.xlu0 %3238
        %3240 = vrot.lane.b32.xlu0 %v3214, 8
        %v3241 = vpop.permute.xlu0 %3240
        %3242 = vrot.lane.b32.xlu0 %v3215, 8
        %v3243 = vpop.permute.xlu0 %3242
        %3244 = vrot.lane.b32.xlu0 %v3216, 8
        %v3245 = vpop.permute.xlu0 %3244
        %3246 = vrot.lane.b32.xlu0 %v3217, 8
        %v3247 = vpop.permute.xlu0 %3246
        %vm3258 = vcmask 97344
        %3259 = vst.msk [vmem:[#allocation7] sm:$0xff] %vm3258, %v3229
        %3260 = vst.msk [vmem:[#allocation7 + $0x8] sm:$0xff] %vm3258, %v3231
        %3261 = vst.msk [vmem:[#allocation7 + $0x10] sm:$0xff] %vm3258, %v3233
        %3262 = vst.msk [vmem:[#allocation7 + $0x18] sm:$0xff] %vm3258, %v3235
        %3263 = vst.msk [vmem:[#allocation7 + $0x20] sm:$0xff] %vm3258, %v3237
        %3264 = vst.msk [vmem:[#allocation7 + $0x28] sm:$0xff] %vm3258, %v3239
        %3265 = vst.msk [vmem:[#allocation7 + $0x30] sm:$0xff] %vm3258, %v3241
        %3266 = vst.msk [vmem:[#allocation7 + $0x38] sm:$0xff] %vm3258, %v3243
        %3267 = vst.msk [vmem:[#allocation7 + $0x40] sm:$0xff] %vm3258, %v3245
        %3268 = vst.msk [vmem:[#allocation7 + $0x48] sm:$0xff] %vm3258, %v3247
        %v3269 = vld [vmem:[#allocation6 + $0xa] sm:$0xff]
        %v3270 = vld [vmem:[#allocation6 + $0x12] sm:$0xff]
        %v3271 = vld [vmem:[#allocation6 + $0x1a] sm:$0xff]
        %v3272 = vld [vmem:[#allocation6 + $0x22] sm:$0xff]
        %v3273 = vld [vmem:[#allocation6 + $0x2a] sm:$0xff]
        %v3274 = vld [vmem:[#allocation6 + $0x32] sm:$0xff]
        %v3275 = vld [vmem:[#allocation6 + $0x3a] sm:$0xff]
        %v3276 = vld [vmem:[#allocation6 + $0x42] sm:$0xff]
        %v3277 = vld [vmem:[#allocation6 + $0x4a] sm:$0xff]
        %v3278 = vld [vmem:[#allocation6 + $0x52] sm:$0xff]
        %3289 = vrot.lane.b32.xlu0 %v3269, 12
        %v3290 = vpop.permute.xlu0 %3289
        %3291 = vrot.lane.b32.xlu0 %v3270, 12
        %v3292 = vpop.permute.xlu0 %3291
        %3293 = vrot.lane.b32.xlu0 %v3271, 12
        %v3294 = vpop.permute.xlu0 %3293
        %3295 = vrot.lane.b32.xlu0 %v3272, 12
        %v3296 = vpop.permute.xlu0 %3295
        %3297 = vrot.lane.b32.xlu0 %v3273, 12
        %v3298 = vpop.permute.xlu0 %3297
        %3299 = vrot.lane.b32.xlu0 %v3274, 12
        %v3300 = vpop.permute.xlu0 %3299
        %3301 = vrot.lane.b32.xlu0 %v3275, 12
        %v3302 = vpop.permute.xlu0 %3301
        %3303 = vrot.lane.b32.xlu0 %v3276, 12
        %v3304 = vpop.permute.xlu0 %3303
        %3305 = vrot.lane.b32.xlu0 %v3277, 12
        %v3306 = vpop.permute.xlu0 %3305
        %3307 = vrot.lane.b32.xlu0 %v3278, 12
        %v3308 = vpop.permute.xlu0 %3307
        %vm3319 = vcmask 130144
        %3320 = vst.msk [vmem:[#allocation7] sm:$0xff] %vm3319, %v3290
        %3321 = vst.msk [vmem:[#allocation7 + $0x8] sm:$0xff] %vm3319, %v3292
        %3322 = vst.msk [vmem:[#allocation7 + $0x10] sm:$0xff] %vm3319, %v3294
        %3323 = vst.msk [vmem:[#allocation7 + $0x18] sm:$0xff] %vm3319, %v3296
        %3324 = vst.msk [vmem:[#allocation7 + $0x20] sm:$0xff] %vm3319, %v3298
        %3325 = vst.msk [vmem:[#allocation7 + $0x28] sm:$0xff] %vm3319, %v3300
        %3326 = vst.msk [vmem:[#allocation7 + $0x30] sm:$0xff] %vm3319, %v3302
        %3327 = vst.msk [vmem:[#allocation7 + $0x38] sm:$0xff] %vm3319, %v3304
        %3328 = vst.msk [vmem:[#allocation7 + $0x40] sm:$0xff] %vm3319, %v3306
        %3329 = vst.msk [vmem:[#allocation7 + $0x48] sm:$0xff] %vm3319, %v3308
        %v3330 = vld [vmem:[#allocation6 + $0xb] sm:$0xff]
        %v3331 = vld [vmem:[#allocation6 + $0x13] sm:$0xff]
        %v3332 = vld [vmem:[#allocation6 + $0x1b] sm:$0xff]
        %v3333 = vld [vmem:[#allocation6 + $0x23] sm:$0xff]
        %v3334 = vld [vmem:[#allocation6 + $0x2b] sm:$0xff]
        %v3335 = vld [vmem:[#allocation6 + $0x33] sm:$0xff]
        %v3336 = vld [vmem:[#allocation6 + $0x3b] sm:$0xff]
        %v3337 = vld [vmem:[#allocation6 + $0x43] sm:$0xff]
        %v3338 = vld [vmem:[#allocation6 + $0x4b] sm:$0xff]
        %v3339 = vld [vmem:[#allocation6 + $0x53] sm:$0xff]
        %3350 = vrot.lane.b32.xlu0 %v3330, 16
        %v3351 = vpop.permute.xlu0 %3350
        %3352 = vrot.lane.b32.xlu0 %v3331, 16
        %v3353 = vpop.permute.xlu0 %3352
        %3354 = vrot.lane.b32.xlu0 %v3332, 16
        %v3355 = vpop.permute.xlu0 %3354
        %3356 = vrot.lane.b32.xlu0 %v3333, 16
        %v3357 = vpop.permute.xlu0 %3356
        %3358 = vrot.lane.b32.xlu0 %v3334, 16
        %v3359 = vpop.permute.xlu0 %3358
        %3360 = vrot.lane.b32.xlu0 %v3335, 16
        %v3361 = vpop.permute.xlu0 %3360
        %3362 = vrot.lane.b32.xlu0 %v3336, 16
        %v3363 = vpop.permute.xlu0 %3362
        %3364 = vrot.lane.b32.xlu0 %v3337, 16
        %v3365 = vpop.permute.xlu0 %3364
        %3366 = vrot.lane.b32.xlu0 %v3338, 16
        %v3367 = vpop.permute.xlu0 %3366
        %3368 = vrot.lane.b32.xlu0 %v3339, 16
        %v3369 = vpop.permute.xlu0 %3368
        %vm3380 = vcmask 162944
        %3381 = vst.msk [vmem:[#allocation7] sm:$0xff] %vm3380, %v3351
        %3382 = vst.msk [vmem:[#allocation7 + $0x8] sm:$0xff] %vm3380, %v3353
        %3383 = vst.msk [vmem:[#allocation7 + $0x10] sm:$0xff] %vm3380, %v3355
        %3384 = vst.msk [vmem:[#allocation7 + $0x18] sm:$0xff] %vm3380, %v3357
        %3385 = vst.msk [vmem:[#allocation7 + $0x20] sm:$0xff] %vm3380, %v3359
        %3386 = vst.msk [vmem:[#allocation7 + $0x28] sm:$0xff] %vm3380, %v3361
        %3387 = vst.msk [vmem:[#allocation7 + $0x30] sm:$0xff] %vm3380, %v3363
        %3388 = vst.msk [vmem:[#allocation7 + $0x38] sm:$0xff] %vm3380, %v3365
        %3389 = vst.msk [vmem:[#allocation7 + $0x40] sm:$0xff] %vm3380, %v3367
        %3390 = vst.msk [vmem:[#allocation7 + $0x48] sm:$0xff] %vm3380, %v3369
        %v3391 = vld [vmem:[#allocation6 + $0xc] sm:$0xff]
        %v3392 = vld [vmem:[#allocation6 + $0x14] sm:$0xff]
        %v3393 = vld [vmem:[#allocation6 + $0x1c] sm:$0xff]
        %v3394 = vld [vmem:[#allocation6 + $0x24] sm:$0xff]
        %v3395 = vld [vmem:[#allocation6 + $0x2c] sm:$0xff]
        %v3396 = vld [vmem:[#allocation6 + $0x34] sm:$0xff]
        %v3397 = vld [vmem:[#allocation6 + $0x3c] sm:$0xff]
        %v3398 = vld [vmem:[#allocation6 + $0x44] sm:$0xff]
        %v3399 = vld [vmem:[#allocation6 + $0x4c] sm:$0xff]
        %v3400 = vld [vmem:[#allocation6 + $0x54] sm:$0xff]
        %3411 = vrot.lane.b32.xlu0 %v3391, 20
        %v3412 = vpop.permute.xlu0 %3411
        %3413 = vrot.lane.b32.xlu0 %v3392, 20
        %v3414 = vpop.permute.xlu0 %3413
        %3415 = vrot.lane.b32.xlu0 %v3393, 20
        %v3416 = vpop.permute.xlu0 %3415
        %3417 = vrot.lane.b32.xlu0 %v3394, 20
        %v3418 = vpop.permute.xlu0 %3417
        %3419 = vrot.lane.b32.xlu0 %v3395, 20
        %v3420 = vpop.permute.xlu0 %3419
        %3421 = vrot.lane.b32.xlu0 %v3396, 20
        %v3422 = vpop.permute.xlu0 %3421
        %3423 = vrot.lane.b32.xlu0 %v3397, 20
        %v3424 = vpop.permute.xlu0 %3423
        %3425 = vrot.lane.b32.xlu0 %v3398, 20
        %v3426 = vpop.permute.xlu0 %3425
        %3427 = vrot.lane.b32.xlu0 %v3399, 20
        %v3428 = vpop.permute.xlu0 %3427
        %3429 = vrot.lane.b32.xlu0 %v3400, 20
        %v3430 = vpop.permute.xlu0 %3429
        %vm3441 = vcmask 195744
        %3442 = vst.msk [vmem:[#allocation7] sm:$0xff] %vm3441, %v3412
        %3443 = vst.msk [vmem:[#allocation7 + $0x8] sm:$0xff] %vm3441, %v3414
        %3444 = vst.msk [vmem:[#allocation7 + $0x10] sm:$0xff] %vm3441, %v3416
        %3445 = vst.msk [vmem:[#allocation7 + $0x18] sm:$0xff] %vm3441, %v3418
        %3446 = vst.msk [vmem:[#allocation7 + $0x20] sm:$0xff] %vm3441, %v3420
        %3447 = vst.msk [vmem:[#allocation7 + $0x28] sm:$0xff] %vm3441, %v3422
        %3448 = vst.msk [vmem:[#allocation7 + $0x30] sm:$0xff] %vm3441, %v3424
        %3449 = vst.msk [vmem:[#allocation7 + $0x38] sm:$0xff] %vm3441, %v3426
        %3450 = vst.msk [vmem:[#allocation7 + $0x40] sm:$0xff] %vm3441, %v3428
        %3451 = vst.msk [vmem:[#allocation7 + $0x48] sm:$0xff] %vm3441, %v3430
        %v3452 = vld [vmem:[#allocation6 + $0x14] sm:$0xff]
        %v3453 = vld [vmem:[#allocation6 + $0x1c] sm:$0xff]
        %v3454 = vld [vmem:[#allocation6 + $0x24] sm:$0xff]
        %v3455 = vld [vmem:[#allocation6 + $0x2c] sm:$0xff]
        %v3456 = vld [vmem:[#allocation6 + $0x34] sm:$0xff]
        %v3457 = vld [vmem:[#allocation6 + $0x3c] sm:$0xff]
        %v3458 = vld [vmem:[#allocation6 + $0x44] sm:$0xff]
        %v3459 = vld [vmem:[#allocation6 + $0x4c] sm:$0xff]
        %v3460 = vld [vmem:[#allocation6 + $0x54] sm:$0xff]
        %v3461 = vld [vmem:[#allocation6 + $0x5c] sm:$0xff]
        %3472 = vrot.lane.b32.xlu0 %v3452, 24
        %v3473 = vpop.permute.xlu0 %3472
        %3474 = vrot.lane.b32.xlu0 %v3453, 24
        %v3475 = vpop.permute.xlu0 %3474
        %3476 = vrot.lane.b32.xlu0 %v3454, 24
        %v3477 = vpop.permute.xlu0 %3476
        %3478 = vrot.lane.b32.xlu0 %v3455, 24
        %v3479 = vpop.permute.xlu0 %3478
        %3480 = vrot.lane.b32.xlu0 %v3456, 24
        %v3481 = vpop.permute.xlu0 %3480
        %3482 = vrot.lane.b32.xlu0 %v3457, 24
        %v3483 = vpop.permute.xlu0 %3482
        %3484 = vrot.lane.b32.xlu0 %v3458, 24
        %v3485 = vpop.permute.xlu0 %3484
        %3486 = vrot.lane.b32.xlu0 %v3459, 24
        %v3487 = vpop.permute.xlu0 %3486
        %3488 = vrot.lane.b32.xlu0 %v3460, 24
        %v3489 = vpop.permute.xlu0 %3488
        %3490 = vrot.lane.b32.xlu0 %v3461, 24
        %v3491 = vpop.permute.xlu0 %3490
        %vm3502 = vcmask 228544
        %3503 = vst.msk [vmem:[#allocation7] sm:$0xff] %vm3502, %v3473
        %3504 = vst.msk [vmem:[#allocation7 + $0x8] sm:$0xff] %vm3502, %v3475
        %3505 = vst.msk [vmem:[#allocation7 + $0x10] sm:$0xff] %vm3502, %v3477
        %3506 = vst.msk [vmem:[#allocation7 + $0x18] sm:$0xff] %vm3502, %v3479
        %3507 = vst.msk [vmem:[#allocation7 + $0x20] sm:$0xff] %vm3502, %v3481
        %3508 = vst.msk [vmem:[#allocation7 + $0x28] sm:$0xff] %vm3502, %v3483
        %3509 = vst.msk [vmem:[#allocation7 + $0x30] sm:$0xff] %vm3502, %v3485
        %3510 = vst.msk [vmem:[#allocation7 + $0x38] sm:$0xff] %vm3502, %v3487
        %3511 = vst.msk [vmem:[#allocation7 + $0x40] sm:$0xff] %vm3502, %v3489
        %3512 = vst.msk [vmem:[#allocation7 + $0x48] sm:$0xff] %vm3502, %v3491
        %v3513 = vld [vmem:[#allocation6 + $0x15] sm:$0xff]
        %v3514 = vld [vmem:[#allocation6 + $0x1d] sm:$0xff]
        %v3515 = vld [vmem:[#allocation6 + $0x25] sm:$0xff]
        %v3516 = vld [vmem:[#allocation6 + $0x2d] sm:$0xff]
        %v3517 = vld [vmem:[#allocation6 + $0x35] sm:$0xff]
        %v3518 = vld [vmem:[#allocation6 + $0x3d] sm:$0xff]
        %v3519 = vld [vmem:[#allocation6 + $0x45] sm:$0xff]
        %v3520 = vld [vmem:[#allocation6 + $0x4d] sm:$0xff]
        %v3521 = vld [vmem:[#allocation6 + $0x55] sm:$0xff]
        %v3522 = vld [vmem:[#allocation6 + $0x5d] sm:$0xff]
        %3533 = vrot.lane.b32.xlu0 %v3513, 28
        %v3534 = vpop.permute.xlu0 %3533
        %3535 = vrot.lane.b32.xlu0 %v3514, 28
        %v3536 = vpop.permute.xlu0 %3535
        %3537 = vrot.lane.b32.xlu0 %v3515, 28
        %v3538 = vpop.permute.xlu0 %3537
        %3539 = vrot.lane.b32.xlu0 %v3516, 28
        %v3540 = vpop.permute.xlu0 %3539
        %3541 = vrot.lane.b32.xlu0 %v3517, 28
        %v3542 = vpop.permute.xlu0 %3541
        %3543 = vrot.lane.b32.xlu0 %v3518, 28
        %v3544 = vpop.permute.xlu0 %3543
        %3545 = vrot.lane.b32.xlu0 %v3519, 28
        %v3546 = vpop.permute.xlu0 %3545
        %3547 = vrot.lane.b32.xlu0 %v3520, 28
        %v3548 = vpop.permute.xlu0 %3547
        %3549 = vrot.lane.b32.xlu0 %v3521, 28
        %v3550 = vpop.permute.xlu0 %3549
        %3551 = vrot.lane.b32.xlu0 %v3522, 28
        %v3552 = vpop.permute.xlu0 %3551
        %vm3563 = vcmask 261344
        %3564 = vst.msk [vmem:[#allocation7] sm:$0xff] %vm3563, %v3534
        %3565 = vst.msk [vmem:[#allocation7 + $0x8] sm:$0xff] %vm3563, %v3536
        %3566 = vst.msk [vmem:[#allocation7 + $0x10] sm:$0xff] %vm3563, %v3538
        %3567 = vst.msk [vmem:[#allocation7 + $0x18] sm:$0xff] %vm3563, %v3540
        %3568 = vst.msk [vmem:[#allocation7 + $0x20] sm:$0xff] %vm3563, %v3542
        %3569 = vst.msk [vmem:[#allocation7 + $0x28] sm:$0xff] %vm3563, %v3544
        %3570 = vst.msk [vmem:[#allocation7 + $0x30] sm:$0xff] %vm3563, %v3546
        %3571 = vst.msk [vmem:[#allocation7 + $0x38] sm:$0xff] %vm3563, %v3548
        %3572 = vst.msk [vmem:[#allocation7 + $0x40] sm:$0xff] %vm3563, %v3550
        %3573 = vst.msk [vmem:[#allocation7 + $0x48] sm:$0xff] %vm3563, %v3552
        %v3574 = vld [vmem:[#allocation6 + $0x16] sm:$0xff]
        %v3575 = vld [vmem:[#allocation6 + $0x1e] sm:$0xff]
        %v3576 = vld [vmem:[#allocation6 + $0x26] sm:$0xff]
        %v3577 = vld [vmem:[#allocation6 + $0x2e] sm:$0xff]
        %v3578 = vld [vmem:[#allocation6 + $0x36] sm:$0xff]
        %v3579 = vld [vmem:[#allocation6 + $0x3e] sm:$0xff]
        %v3580 = vld [vmem:[#allocation6 + $0x46] sm:$0xff]
        %v3581 = vld [vmem:[#allocation6 + $0x4e] sm:$0xff]
        %v3582 = vld [vmem:[#allocation6 + $0x56] sm:$0xff]
        %v3583 = vld [vmem:[#allocation6 + $0x5e] sm:$0xff]
        %3594 = vrot.lane.b32.xlu0 %v3574, 32
        %v3595 = vpop.permute.xlu0 %3594
        %3596 = vrot.lane.b32.xlu0 %v3575, 32
        %v3597 = vpop.permute.xlu0 %3596
        %3598 = vrot.lane.b32.xlu0 %v3576, 32
        %v3599 = vpop.permute.xlu0 %3598
        %3600 = vrot.lane.b32.xlu0 %v3577, 32
        %v3601 = vpop.permute.xlu0 %3600
        %3602 = vrot.lane.b32.xlu0 %v3578, 32
        %v3603 = vpop.permute.xlu0 %3602
        %3604 = vrot.lane.b32.xlu0 %v3579, 32
        %v3605 = vpop.permute.xlu0 %3604
        %3606 = vrot.lane.b32.xlu0 %v3580, 32
        %v3607 = vpop.permute.xlu0 %3606
        %3608 = vrot.lane.b32.xlu0 %v3581, 32
        %v3609 = vpop.permute.xlu0 %3608
        %3610 = vrot.lane.b32.xlu0 %v3582, 32
        %v3611 = vpop.permute.xlu0 %3610
        %3612 = vrot.lane.b32.xlu0 %v3583, 32
        %v3613 = vpop.permute.xlu0 %3612
        %vm3624 = vcmask 294144
        %3625 = vst.msk [vmem:[#allocation7] sm:$0xff] %vm3624, %v3595
        %3626 = vst.msk [vmem:[#allocation7 + $0x8] sm:$0xff] %vm3624, %v3597
        %3627 = vst.msk [vmem:[#allocation7 + $0x10] sm:$0xff] %vm3624, %v3599
        %3628 = vst.msk [vmem:[#allocation7 + $0x18] sm:$0xff] %vm3624, %v3601
        %3629 = vst.msk [vmem:[#allocation7 + $0x20] sm:$0xff] %vm3624, %v3603
        %3630 = vst.msk [vmem:[#allocation7 + $0x28] sm:$0xff] %vm3624, %v3605
        %3631 = vst.msk [vmem:[#allocation7 + $0x30] sm:$0xff] %vm3624, %v3607
        %3632 = vst.msk [vmem:[#allocation7 + $0x38] sm:$0xff] %vm3624, %v3609
        %3633 = vst.msk [vmem:[#allocation7 + $0x40] sm:$0xff] %vm3624, %v3611
        %3634 = vst.msk [vmem:[#allocation7 + $0x48] sm:$0xff] %vm3624, %v3613
        %v3635 = vld [vmem:[#allocation7] sm:$0xff]
        %v3636 = vld [vmem:[#allocation7 + $0x8] sm:$0xff]
        %v3637 = vld [vmem:[#allocation7 + $0x10] sm:$0xff]
        %v3638 = vld [vmem:[#allocation7 + $0x18] sm:$0xff]
        %v3639 = vld [vmem:[#allocation7 + $0x20] sm:$0xff]
        %v3640 = vld [vmem:[#allocation7 + $0x28] sm:$0xff]
        %v3641 = vld [vmem:[#allocation7 + $0x30] sm:$0xff]
        %v3642 = vld [vmem:[#allocation7 + $0x38] sm:$0xff]
        %v3643 = vld [vmem:[#allocation7 + $0x40] sm:$0xff]
        %v3644 = vld [vmem:[#allocation7 + $0x48] sm:$0xff]
        %v3645 = vld [vmem:[%s3] sm:$0xff]
        %v3646 = vld [vmem:[%s3 + $0x8] sm:$0xff]
        %v3647 = vld [vmem:[%s3 + $0x10] sm:$0xff]
        %v3648 = vld [vmem:[%s3 + $0x18] sm:$0xff]
        %v3649 = vld [vmem:[%s3 + $0x20] sm:$0xf]
        %v3650 = vld [vmem:[%s4] sm:$0x1]
        %v3652 = vlaneseq
        %v3653 = vshrl.u32 %v3652, 7
        %v3654 = vsub.s32 0, %v3653
        %v3655 = vrot.slane %v3650, %v3654
        %vm3657 = vcmask 293888
        %v3659 = vsel %vm3657, %v3635, 0
        %v3662 = vsel %vm3657, %v3636, 0
        %v3665 = vsel %vm3657, %v3637, 0
        %v3668 = vsel %vm3657, %v3638, 0
        %v3671 = vsel %vm3657, %v3639, 0
        %v3674 = vsel %vm3657, %v3640, 0
        %v3677 = vsel %vm3657, %v3641, 0
        %v3680 = vsel %vm3657, %v3642, 0
        %v3683 = vsel %vm3657, %v3643, 0
        %v3686 = vsel %vm3657, %v3644, 0
        %vm3688 = vcmask 1043456
        %v3690 = vsel %vm3688, %v3649, 0
        %3692 = vmatprep.subr.mxu0 0.0
        %3693 = vmatpush1.msra.mxu0 %v3645
        %3694 = vmatprep.subr.mxu0 0.0
        %3695 = vmatpush1.msra.mxu0 %v3646
        %3696 = vmatprep.subr.mxu0 0.0
        %3697 = vmatpush1.msra.mxu0 %v3647
        %3698 = vmatprep.subr.mxu0 0.0
        %3699 = vmatpush1.msra.mxu0 %v3648
        %3700 = vmatprep.subr.mxu0 0.0
        %3701 = vmatpush1.msra.mxu0 %v3690
        %3702 = vmatprep.subr.mxu0 0.0
        %3703 = vmatpush1.msra.mxu0 0.0
        %3704 = vmatprep.subr.mxu0 0.0
        %3705 = vmatpush1.msra.mxu0 0.0
        %3706 = vmatprep.subr.mxu0 0.0
        %3707 = vmatpush1.msra.mxu0 0.0
        %3708 = vmatprep.subr.mxu0 0.0
        %3709 = vmatpush1.msra.mxu0 0.0
        %3710 = vmatprep.subr.mxu0 0.0
        %3711 = vmatpush1.msra.mxu0 0.0
        %3712 = vmatprep.subr.mxu0 0.0
        %3713 = vmatpush1.msra.mxu0 0.0
        %3714 = vmatprep.subr.mxu0 0.0
        %3715 = vmatpush1.msra.mxu0 0.0
        %3716 = vmatprep.subr.mxu0 0.0
        %3717 = vmatpush1.msra.mxu0 0.0
        %3718 = vmatprep.subr.mxu0 0.0
        %3719 = vmatpush1.msra.mxu0 0.0
        %3720 = vmatprep.subr.mxu0 0.0
        %3721 = vmatpush1.msra.mxu0 0.0
        %3722 = vmatprep.subr.mxu0 0.0
        %3723 = vmatpush1.msra.mxu0 0.0
        %3724 = vmatprep.subr.mxu0 0.0
        %3725 = vmatpush1.msra.mxu0 0.0
        %3726 = vmatprep.subr.mxu0 0.0
        %3727 = vmatpush1.msra.mxu0 0.0
        %3728 = vmatprep.subr.mxu0 0.0
        %3729 = vmatpush1.msra.mxu0 0.0
        %3730 = vmatprep.subr.mxu0 0.0
        %3731 = vmatpush1.msra.mxu0 0.0
        %3732 = vmatprep.subr.mxu0 0.0
        %3733 = vmatpush1.msra.mxu0 0.0
        %3734 = vmatprep.subr.mxu0 0.0
        %3735 = vmatpush1.msra.mxu0 0.0
        %3736 = vmatprep.subr.mxu0 0.0
        %3737 = vmatpush1.msra.mxu0 0.0
        %3738 = vmatprep.subr.mxu0 0.0
        %3739 = vmatpush1.msra.mxu0 0.0
        %3740 = vmatprep.subr.mxu0 0.0
        %3741 = vmatpush1.msra.mxu0 0.0
        %3742 = vmatprep.subr.mxu0 0.0
        %3743 = vmatpush1.msra.mxu0 0.0
        %3744 = vmatprep.subr.mxu0 0.0
        %3745 = vmatpush1.msra.mxu0 0.0
        %3746 = vmatprep.subr.mxu0 0.0
        %3747 = vmatpush1.msra.mxu0 0.0
        %3748 = vmatprep.subr.mxu0 0.0
        %3749 = vmatpush1.msra.mxu0 0.0
        %3750 = vmatprep.subr.mxu0 0.0
        %3751 = vmatpush1.msra.mxu0 0.0
        %3752 = vmatprep.subr.mxu0 0.0
        %3753 = vmatpush1.msra.mxu0 0.0
        %3754 = vmatprep.subr.mxu0 0.0
        %3755 = vmatpush1.msra.mxu0 0.0
        %3756 = vmatprep.mubr.f32.mxu0 0.0
        %3757 = vmatmul.mubr.f32.gmra.mrb[0].mxu0 %v3659
        %v3758 = vpop.f32.mrb[0].mxu0
        %v3759 = vadd.f32 %v3655, %v3758
        %v3760 = vpop.f32.mrb[0].mxu0
        %3761 = vmatprep.mubr.f32.mxu0 0.0
        %3762 = vmatmul.mubr.f32.gmra.mrb[0].mxu0 %v3662
        %v3763 = vpop.f32.mrb[0].mxu0
        %v3764 = vadd.f32 %v3655, %v3763
        %v3765 = vpop.f32.mrb[0].mxu0
        %3766 = vmatprep.mubr.f32.mxu0 0.0
        %3767 = vmatmul.mubr.f32.gmra.mrb[0].mxu0 %v3665
        %v3768 = vpop.f32.mrb[0].mxu0
        %v3769 = vadd.f32 %v3655, %v3768
        %v3770 = vpop.f32.mrb[0].mxu0
        %3771 = vmatprep.mubr.f32.mxu0 0.0
        %3772 = vmatmul.mubr.f32.gmra.mrb[0].mxu0 %v3668
        %v3773 = vpop.f32.mrb[0].mxu0
        %v3774 = vadd.f32 %v3655, %v3773
        %v3775 = vpop.f32.mrb[0].mxu0
        %3776 = vmatprep.mubr.f32.mxu0 0.0
        %3777 = vmatmul.mubr.f32.gmra.mrb[0].mxu0 %v3671
        %v3778 = vpop.f32.mrb[0].mxu0
        %v3779 = vadd.f32 %v3655, %v3778
        %v3780 = vpop.f32.mrb[0].mxu0
        %3781 = vmatprep.mubr.f32.mxu0 0.0
        %3782 = vmatmul.mubr.f32.gmra.mrb[0].mxu0 %v3674
        %v3783 = vpop.f32.mrb[0].mxu0
        %v3784 = vadd.f32 %v3655, %v3783
        %v3785 = vpop.f32.mrb[0].mxu0
        %3786 = vmatprep.mubr.f32.mxu0 0.0
        %3787 = vmatmul.mubr.f32.gmra.mrb[0].mxu0 %v3677
        %v3788 = vpop.f32.mrb[0].mxu0
        %v3789 = vadd.f32 %v3655, %v3788
        %v3790 = vpop.f32.mrb[0].mxu0
        %3791 = vmatprep.mubr.f32.mxu0 0.0
        %3792 = vmatmul.mubr.f32.gmra.mrb[0].mxu0 %v3680
        %v3793 = vpop.f32.mrb[0].mxu0
        %v3794 = vadd.f32 %v3655, %v3793
        %v3795 = vpop.f32.mrb[0].mxu0
        %3796 = vmatprep.mubr.f32.mxu0 0.0
        %3797 = vmatmul.mubr.f32.gmra.mrb[0].mxu0 %v3683
        %v3798 = vpop.f32.mrb[0].mxu0
        %v3799 = vadd.f32 %v3655, %v3798
        %v3800 = vpop.f32.mrb[0].mxu0
        %3801 = vmatprep.mubr.f32.mxu0 0.0
        %3802 = vmatmul.mubr.f32.gmra.mrb[0].mxu0 %v3686
        %v3803 = vpop.f32.mrb[0].mxu0
        %v3804 = vadd.f32 %v3655, %v3803
        %v3805 = vpop.f32.mrb[0].mxu0
        %3806 = vdwg.mxu0
        %vm3807 = vcmask 64512
        %3808 = vst.msk [vmem:[#allocation8] sm:$0xff] %vm3807, %v3759
        %3809 = vst.msk [vmem:[#allocation8 + $0x8] sm:$0xff] %vm3807, %v3764
        %3810 = vst.msk [vmem:[#allocation8 + $0x10] sm:$0xff] %vm3807, %v3769
        %3811 = vst.msk [vmem:[#allocation8 + $0x18] sm:$0xff] %vm3807, %v3774
        %3812 = vst.msk [vmem:[#allocation8 + $0x20] sm:$0xff] %vm3807, %v3779
        %3813 = vst.msk [vmem:[#allocation8 + $0x28] sm:$0xff] %vm3807, %v3784
        %3814 = vst.msk [vmem:[#allocation8 + $0x30] sm:$0xff] %vm3807, %v3789
        %3815 = vst.msk [vmem:[#allocation8 + $0x38] sm:$0xff] %vm3807, %v3794
        %3816 = vst.msk [vmem:[#allocation8 + $0x40] sm:$0xff] %vm3807, %v3799
        %3817 = vst.msk [vmem:[#allocation8 + $0x48] sm:$0xff] %vm3807, %v3804
        %3818 = vst.msk [vmem:[#allocation9] sm:$0xff] %vm3807, 0.0
        %vm3819 = vcmask 58368
        %3820 = vst.msk [vmem:[#allocation9 + $0x8] sm:$0x3] %vm3819, 0.0
        %3821 = vst.msk [vmem:[#allocation9 + $0x10] sm:$0xff] %vm3807, 0.0
        %3822 = vst.msk [vmem:[#allocation9 + $0x18] sm:$0x3] %vm3819, 0.0
        %3823 = vst.msk [vmem:[#allocation9 + $0x20] sm:$0xff] %vm3807, 0.0
        %3824 = vst.msk [vmem:[#allocation9 + $0x28] sm:$0x3] %vm3819, 0.0
        %3825 = vst.msk [vmem:[#allocation9 + $0x30] sm:$0xff] %vm3807, 0.0
        %3826 = vst.msk [vmem:[#allocation9 + $0x38] sm:$0x3] %vm3819, 0.0
        %3827 = vst.msk [vmem:[#allocation9 + $0x40] sm:$0xff] %vm3807, 0.0
        %3828 = vst.msk [vmem:[#allocation9 + $0x48] sm:$0x3] %vm3819, 0.0
        %3829 = vst.msk [vmem:[#allocation9 + $0x50] sm:$0xff] %vm3807, 0.0
        %3830 = vst.msk [vmem:[#allocation9 + $0x58] sm:$0x3] %vm3819, 0.0
        %3831 = vst.msk [vmem:[#allocation9 + $0x60] sm:$0xff] %vm3807, 0.0
        %3832 = vst.msk [vmem:[#allocation9 + $0x68] sm:$0x3] %vm3819, 0.0
        %3833 = vst.msk [vmem:[#allocation9 + $0x70] sm:$0xff] %vm3807, 0.0
        %3834 = vst.msk [vmem:[#allocation9 + $0x78] sm:$0x3] %vm3819, 0.0
        %3835 = vst.msk [vmem:[#allocation9 + $0x80] sm:$0xff] %vm3807, 0.0
        %3836 = vst.msk [vmem:[#allocation9 + $0x88] sm:$0x3] %vm3819, 0.0
        %3837 = vst.msk [vmem:[#allocation9 + $0x90] sm:$0xff] %vm3807, 0.0
        %3838 = vst.msk [vmem:[#allocation9 + $0x98] sm:$0x3] %vm3819, 0.0
        %3839 = vst.msk [vmem:[#allocation11] sm:$0xff] %vm3807, 0.0
        %3840 = vst.msk [vmem:[#allocation11 + $0x8] sm:$0xff] %vm3807, 0.0
        %3841 = vst.msk [vmem:[#allocation11 + $0x10] sm:$0xff] %vm3807, 0.0
        %3842 = vst.msk [vmem:[#allocation11 + $0x18] sm:$0xff] %vm3807, 0.0
        %3843 = vst.msk [vmem:[#allocation11 + $0x20] sm:$0xff] %vm3807, 0.0
        %vm3844 = vcmask 60416
        %3845 = vst.msk [vmem:[#allocation11 + $0x28] sm:$0xf] %vm3844, 0.0
        %v3846 = vld [vmem:[#allocation8] sm:$0xff]
        %3847 = vst.msk [vmem:[%s446] sm:$0xff] %vm3807, %v3846
        %v3848 = vmax.f32 %v3846, 0.0
        %s3849 = scalar_lea.vmem [#allocation9], 16
        %3850 = vst.msk [vmem:[%s3849 + $0x1] sm:$0xff] %vm3807, %v3848
        %v3851 = vld [vmem:[#allocation8 + $0xa] sm:$0xff]
        %3852 = vst.msk [vmem:[%s446 + $0x8] sm:$0xff] %vm3807, %v3851
        %v3853 = vmax.f32 %v3851, 0.0
        %s3854 = scalar_lea.vmem [#allocation9], 32
        %3855 = vst.msk [vmem:[%s3854 + $0x1] sm:$0xff] %vm3807, %v3853
        %v3856 = vld [vmem:[#allocation8 + $0x14] sm:$0xff]
        %3857 = vst.msk [vmem:[%s446 + $0x10] sm:$0xff] %vm3807, %v3856
        %v3858 = vmax.f32 %v3856, 0.0
        %s3859 = scalar_lea.vmem [#allocation9], 48
        %3860 = vst.msk [vmem:[%s3859 + $0x1] sm:$0xff] %vm3807, %v3858
        %v3861 = vld [vmem:[#allocation8 + $0x1e] sm:$0xff]
        %3862 = vst.msk [vmem:[%s446 + $0x18] sm:$0xff] %vm3807, %v3861
        %v3863 = vmax.f32 %v3861, 0.0
        %s3864 = scalar_lea.vmem [#allocation9], 64
        %3865 = vst.msk [vmem:[%s3864 + $0x1] sm:$0xff] %vm3807, %v3863
        %v3866 = vld [vmem:[#allocation8 + $0x28] sm:$0xff]
        %3867 = vst.msk [vmem:[%s446 + $0x20] sm:$0xff] %vm3807, %v3866
        %v3868 = vmax.f32 %v3866, 0.0
        %s3869 = scalar_lea.vmem [#allocation9], 80
        %3870 = vst.msk [vmem:[%s3869 + $0x1] sm:$0xff] %vm3807, %v3868
        %v3871 = vld [vmem:[#allocation8 + $0x32] sm:$0xff]
        %3872 = vst.msk [vmem:[%s446 + $0x28] sm:$0xff] %vm3807, %v3871
        %v3873 = vmax.f32 %v3871, 0.0
        %s3874 = scalar_lea.vmem [#allocation9], 96
        %3875 = vst.msk [vmem:[%s3874 + $0x1] sm:$0xff] %vm3807, %v3873
        %v3876 = vld [vmem:[#allocation8 + $0x3c] sm:$0xff]
        %3877 = vst.msk [vmem:[%s446 + $0x30] sm:$0xff] %vm3807, %v3876
        %v3878 = vmax.f32 %v3876, 0.0
        %s3879 = scalar_lea.vmem [#allocation9], 112
        %3880 = vst.msk [vmem:[%s3879 + $0x1] sm:$0xff] %vm3807, %v3878
        %v3881 = vld [vmem:[#allocation8 + $0x46] sm:$0xff]
        %3882 = vst.msk [vmem:[%s446 + $0x38] sm:$0xff] %vm3807, %v3881
        %v3883 = vmax.f32 %v3881, 0.0
        %s3884 = scalar_lea.vmem [#allocation9], 128
        %3885 = vst.msk [vmem:[%s3884 + $0x1] sm:$0xff] %vm3807, %v3883
        %v3886 = vld [vmem:[#allocation9] sm:$0xff]
        %v3887 = vld [vmem:[#allocation9 + $0x8] sm:$0x3]
        %v3888 = vld [vmem:[#allocation9 + $0x20] sm:$0xff]
        %v3889 = vld [vmem:[#allocation9 + $0x28] sm:$0x3]
        %v3890 = vld [vmem:[#allocation9 + $0x40] sm:$0xff]
        %v3891 = vld [vmem:[#allocation9 + $0x48] sm:$0x3]
        %v3892 = vld [vmem:[#allocation9 + $0x60] sm:$0xff]
        %v3893 = vld [vmem:[#allocation9 + $0x68] sm:$0x3]
        %v3894 = vld [vmem:[%s3849] sm:$0xff]
        %v3895 = vld [vmem:[%s3849 + $0x8] sm:$0x3]
        %v3896 = vld [vmem:[%s3849 + $0x20] sm:$0xff]
        %v3897 = vld [vmem:[%s3849 + $0x28] sm:$0x3]
        %v3898 = vld [vmem:[%s3849 + $0x40] sm:$0xff]
        %v3899 = vld [vmem:[%s3849 + $0x48] sm:$0x3]
        %v3900 = vld [vmem:[%s3849 + $0x60] sm:$0xff]
        %v3901 = vld [vmem:[%s3849 + $0x68] sm:$0x3]
        %v3902 = vmax.f32 %v3886, %v3894
        %v3903 = vmax.f32 %v3887, %v3895
        %v3904 = vmax.f32 %v3888, %v3896
        %v3905 = vmax.f32 %v3889, %v3897
        %v3906 = vmax.f32 %v3890, %v3898
        %v3907 = vmax.f32 %v3891, %v3899
        %v3908 = vmax.f32 %v3892, %v3900
        %v3909 = vmax.f32 %v3893, %v3901
        %v3910 = vld [vmem:[%s3854] sm:$0xff]
        %v3911 = vld [vmem:[%s3854 + $0x8] sm:$0x3]
        %v3912 = vld [vmem:[%s3854 + $0x20] sm:$0xff]
        %v3913 = vld [vmem:[%s3854 + $0x28] sm:$0x3]
        %v3914 = vld [vmem:[%s3854 + $0x40] sm:$0xff]
        %v3915 = vld [vmem:[%s3854 + $0x48] sm:$0x3]
        %v3916 = vld [vmem:[%s3854 + $0x60] sm:$0xff]
        %v3917 = vld [vmem:[%s3854 + $0x68] sm:$0x3]
        %v3918 = vmax.f32 %v3902, %v3910
        %v3919 = vmax.f32 %v3903, %v3911
        %v3920 = vmax.f32 %v3904, %v3912
        %v3921 = vmax.f32 %v3905, %v3913
        %v3922 = vmax.f32 %v3906, %v3914
        %v3923 = vmax.f32 %v3907, %v3915
        %v3924 = vmax.f32 %v3908, %v3916
        %v3925 = vmax.f32 %v3909, %v3917
        %3926 = vst.msk [vmem:[#allocation10] sm:$0xff] %vm3807, %v3918
        %3927 = vst.msk [vmem:[#allocation10 + $0x8] sm:$0x3] %vm3819, %v3919
        %3928 = vst.msk [vmem:[#allocation10 + $0x10] sm:$0xff] %vm3807, %v3920
        %3929 = vst.msk [vmem:[#allocation10 + $0x18] sm:$0x3] %vm3819, %v3921
        %3930 = vst.msk [vmem:[#allocation10 + $0x20] sm:$0xff] %vm3807, %v3922
        %3931 = vst.msk [vmem:[#allocation10 + $0x28] sm:$0x3] %vm3819, %v3923
        %3932 = vst.msk [vmem:[#allocation10 + $0x30] sm:$0xff] %vm3807, %v3924
        %3933 = vst.msk [vmem:[#allocation10 + $0x38] sm:$0x3] %vm3819, %v3925
        %v3934 = vld [vmem:[#allocation10] ss:$2 sm:$0xf]
        %s3935 = scalar_lea.vmem [#allocation10], 16
        %v3936 = vld [vmem:[%s3935] ss:$2 sm:$0xf]
        %s3937 = scalar_lea.vmem [#allocation10], 32
        %v3938 = vld [vmem:[%s3937] ss:$2 sm:$0xf]
        %s3939 = scalar_lea.vmem [#allocation10], 48
        %v3940 = vld [vmem:[%s3939] ss:$2 sm:$0xf]
        %s3941 = scalar_lea.vmem [#allocation10], 1
        %v3942 = vld [vmem:[%s3941] ss:$2 sm:$0xf]
        %s3943 = scalar_lea.vmem [#allocation10], 17
        %v3944 = vld [vmem:[%s3943] ss:$2 sm:$0xf]
        %s3945 = scalar_lea.vmem [#allocation10], 33
        %v3946 = vld [vmem:[%s3945] ss:$2 sm:$0xf]
        %s3947 = scalar_lea.vmem [#allocation10], 49
        %v3948 = vld [vmem:[%s3947] ss:$2 sm:$0xf]
        %v3949 = vmax.f32 %v3934, %v3942
        %v3950 = vmax.f32 %v3936, %v3944
        %v3951 = vmax.f32 %v3938, %v3946
        %v3952 = vmax.f32 %v3940, %v3948
        %s3953 = scalar_lea.vmem [#allocation10], 2
        %v3954 = vld [vmem:[%s3953] ss:$2 sm:$0xf]
        %s3955 = scalar_lea.vmem [#allocation10], 18
        %v3956 = vld [vmem:[%s3955] ss:$2 sm:$0xf]
        %s3957 = scalar_lea.vmem [#allocation10], 34
        %v3958 = vld [vmem:[%s3957] ss:$2 sm:$0xf]
        %s3959 = scalar_lea.vmem [#allocation10], 50
        %v3960 = vld [vmem:[%s3959] ss:$2 sm:$0xf]
        %v3961 = vmax.f32 %v3949, %v3954
        %v3962 = vmax.f32 %v3950, %v3956
        %v3963 = vmax.f32 %v3951, %v3958
        %v3964 = vmax.f32 %v3952, %v3960
        %3965 = vst.msk [vmem:[#allocation11 + $0x7] sm:$0xf] %vm3844, %v3961
        %3966 = vst.msk [vmem:[#allocation11 + $0xd] sm:$0xf] %vm3844, %v3962
        %3967 = vst.msk [vmem:[#allocation11 + $0x13] sm:$0xf] %vm3844, %v3963
        %3968 = vst.msk [vmem:[#allocation11 + $0x19] sm:$0xf] %vm3844, %v3964
        %v3969 = vld [vmem:[#allocation11] sm:$0xff]
        %v3970 = vld [vmem:[#allocation11 + $0x8] sm:$0xff]
        %v3971 = vld [vmem:[#allocation11 + $0x10] sm:$0xff]
        %3972 = vst.msk [vmem:[#allocation12] sm:$0xff] %vm3807, %v3969
        %3973 = vst.msk [vmem:[#allocation12 + $0x8] sm:$0xff] %vm3807, %v3970
        %3974 = vst.msk [vmem:[#allocation12 + $0x10] sm:$0xff] %vm3807, %v3971
        %v3975 = vld [vmem:[#allocation11 + $0x1] sm:$0xff]
        %v3976 = vld [vmem:[#allocation11 + $0x9] sm:$0xff]
        %v3977 = vld [vmem:[#allocation11 + $0x11] sm:$0xff]
        %3981 = vrot.lane.b32.xlu0 %v3975, 8
        %v3982 = vpop.permute.xlu0 %3981
        %3983 = vrot.lane.b32.xlu0 %v3976, 8
        %v3984 = vpop.permute.xlu0 %3983
        %3985 = vrot.lane.b32.xlu0 %v3977, 8
        %v3986 = vpop.permute.xlu0 %3985
        %vm3990 = vcmask 130112
        %3991 = vst.msk [vmem:[#allocation12] sm:$0xff] %vm3990, %v3982
        %3992 = vst.msk [vmem:[#allocation12 + $0x8] sm:$0xff] %vm3990, %v3984
        %3993 = vst.msk [vmem:[#allocation12 + $0x10] sm:$0xff] %vm3990, %v3986
        %v3994 = vld [vmem:[#allocation11 + $0x2] sm:$0xff]
        %v3995 = vld [vmem:[#allocation11 + $0xa] sm:$0xff]
        %v3996 = vld [vmem:[#allocation11 + $0x12] sm:$0xff]
        %4000 = vrot.lane.b32.xlu0 %v3994, 16
        %v4001 = vpop.permute.xlu0 %4000
        %4002 = vrot.lane.b32.xlu0 %v3995, 16
        %v4003 = vpop.permute.xlu0 %4002
        %4004 = vrot.lane.b32.xlu0 %v3996, 16
        %v4005 = vpop.permute.xlu0 %4004
        %vm4009 = vcmask 195712
        %4010 = vst.msk [vmem:[#allocation12] sm:$0xff] %vm4009, %v4001
        %4011 = vst.msk [vmem:[#allocation12 + $0x8] sm:$0xff] %vm4009, %v4003
        %4012 = vst.msk [vmem:[#allocation12 + $0x10] sm:$0xff] %vm4009, %v4005
        %v4013 = vld [vmem:[#allocation11 + $0x6] sm:$0xff]
        %v4014 = vld [vmem:[#allocation11 + $0xe] sm:$0xff]
        %v4015 = vld [vmem:[#allocation11 + $0x16] sm:$0xff]
        %4019 = vrot.lane.b32.xlu0 %v4013, 24
        %v4020 = vpop.permute.xlu0 %4019
        %4021 = vrot.lane.b32.xlu0 %v4014, 24
        %v4022 = vpop.permute.xlu0 %4021
        %4023 = vrot.lane.b32.xlu0 %v4015, 24
        %v4024 = vpop.permute.xlu0 %4023
        %vm4028 = vcmask 261312
        %4029 = vst.msk [vmem:[#allocation12] sm:$0xff] %vm4028, %v4020
        %4030 = vst.msk [vmem:[#allocation12 + $0x8] sm:$0xff] %vm4028, %v4022
        %4031 = vst.msk [vmem:[#allocation12 + $0x10] sm:$0xff] %vm4028, %v4024
        %v4032 = vld [vmem:[#allocation11 + $0x7] sm:$0xff]
        %v4033 = vld [vmem:[#allocation11 + $0xf] sm:$0xff]
        %v4034 = vld [vmem:[#allocation11 + $0x17] sm:$0xff]
        %4038 = vrot.lane.b32.xlu0 %v4032, 32
        %v4039 = vpop.permute.xlu0 %4038
        %4040 = vrot.lane.b32.xlu0 %v4033, 32
        %v4041 = vpop.permute.xlu0 %4040
        %4042 = vrot.lane.b32.xlu0 %v4034, 32
        %v4043 = vpop.permute.xlu0 %4042
        %vm4047 = vcmask 326912
        %4048 = vst.msk [vmem:[#allocation12] sm:$0xff] %vm4047, %v4039
        %4049 = vst.msk [vmem:[#allocation12 + $0x8] sm:$0xff] %vm4047, %v4041
        %4050 = vst.msk [vmem:[#allocation12 + $0x10] sm:$0xff] %vm4047, %v4043
        %v4051 = vld [vmem:[#allocation11 + $0x8] sm:$0xff]
        %v4052 = vld [vmem:[#allocation11 + $0x10] sm:$0xff]
        %v4053 = vld [vmem:[#allocation11 + $0x18] sm:$0xff]
        %4057 = vrot.lane.b32.xlu0 %v4051, 40
        %v4058 = vpop.permute.xlu0 %4057
        %4059 = vrot.lane.b32.xlu0 %v4052, 40
        %v4060 = vpop.permute.xlu0 %4059
        %4061 = vrot.lane.b32.xlu0 %v4053, 40
        %v4062 = vpop.permute.xlu0 %4061
        %vm4066 = vcmask 392512
        %4067 = vst.msk [vmem:[#allocation12] sm:$0xff] %vm4066, %v4058
        %4068 = vst.msk [vmem:[#allocation12 + $0x8] sm:$0xff] %vm4066, %v4060
        %4069 = vst.msk [vmem:[#allocation12 + $0x10] sm:$0xff] %vm4066, %v4062
        %v4070 = vld [vmem:[#allocation11 + $0xc] sm:$0xff]
        %v4071 = vld [vmem:[#allocation11 + $0x14] sm:$0xff]
        %v4072 = vld [vmem:[#allocation11 + $0x1c] sm:$0xff]
        %4076 = vrot.lane.b32.xlu0 %v4070, 48
        %v4077 = vpop.permute.xlu0 %4076
        %4078 = vrot.lane.b32.xlu0 %v4071, 48
        %v4079 = vpop.permute.xlu0 %4078
        %4080 = vrot.lane.b32.xlu0 %v4072, 48
        %v4081 = vpop.permute.xlu0 %4080
        %vm4085 = vcmask 458112
        %4086 = vst.msk [vmem:[#allocation12] sm:$0xff] %vm4085, %v4077
        %4087 = vst.msk [vmem:[#allocation12 + $0x8] sm:$0xff] %vm4085, %v4079
        %4088 = vst.msk [vmem:[#allocation12 + $0x10] sm:$0xff] %vm4085, %v4081
        %v4089 = vld [vmem:[#allocation11 + $0xd] sm:$0xff]
        %v4090 = vld [vmem:[#allocation11 + $0x15] sm:$0xff]
        %v4091 = vld [vmem:[#allocation11 + $0x1d] sm:$0xff]
        %4095 = vrot.lane.b32.xlu0 %v4089, 56
        %v4096 = vpop.permute.xlu0 %4095
        %4097 = vrot.lane.b32.xlu0 %v4090, 56
        %v4098 = vpop.permute.xlu0 %4097
        %4099 = vrot.lane.b32.xlu0 %v4091, 56
        %v4100 = vpop.permute.xlu0 %4099
        %vm4104 = vcmask 523712
        %4105 = vst.msk [vmem:[#allocation12] sm:$0xff] %vm4104, %v4096
        %4106 = vst.msk [vmem:[#allocation12 + $0x8] sm:$0xff] %vm4104, %v4098
        %4107 = vst.msk [vmem:[#allocation12 + $0x10] sm:$0xff] %vm4104, %v4100
        %v4108 = vld [vmem:[#allocation11 + $0xe] sm:$0xff]
        %v4109 = vld [vmem:[#allocation11 + $0x16] sm:$0xff]
        %v4110 = vld [vmem:[#allocation11 + $0x1e] sm:$0xff]
        %4114 = vrot.lane.b32.xlu0 %v4108, 64
        %v4115 = vpop.permute.xlu0 %4114
        %4116 = vrot.lane.b32.xlu0 %v4109, 64
        %v4117 = vpop.permute.xlu0 %4116
        %4118 = vrot.lane.b32.xlu0 %v4110, 64
        %v4119 = vpop.permute.xlu0 %4118
        %vm4123 = vcmask 589312
        %4124 = vst.msk [vmem:[#allocation12] sm:$0xff] %vm4123, %v4115
        %4125 = vst.msk [vmem:[#allocation12 + $0x8] sm:$0xff] %vm4123, %v4117
        %4126 = vst.msk [vmem:[#allocation12 + $0x10] sm:$0xff] %vm4123, %v4119
        %v4127 = vld [vmem:[#allocation12] sm:$0xff]
        %v4128 = vld [vmem:[#allocation12 + $0x8] sm:$0xff]
        %v4129 = vld [vmem:[#allocation12 + $0x10] sm:$0xff]
        %v4130 = vld [vmem:[%s5] sm:$0xff]
        %v4131 = vld [vmem:[%s5 + $0x8] sm:$0xff]
        %v4132 = vld [vmem:[%s5 + $0x10] sm:$0xff]
        %v4133 = vld [vmem:[%s5 + $0x18] sm:$0xff]
        %v4134 = vld [vmem:[%s5 + $0x20] sm:$0xff]
        %v4135 = vld [vmem:[%s5 + $0x28] sm:$0xff]
        %v4136 = vld [vmem:[%s5 + $0x30] sm:$0xff]
        %v4137 = vld [vmem:[%s5 + $0x38] sm:$0xff]
        %v4138 = vld [vmem:[%s5 + $0x40] sm:$0xff]
        %v4139 = vld [vmem:[%s6] sm:$0x1]
        %v4141 = vlaneseq
        %v4142 = vshrl.u32 %v4141, 7
        %v4143 = vsub.s32 0, %v4142
        %v4144 = vrot.slane %v4139, %v4143
        %vm4146 = vcmask 588800
        %v4148 = vsel %vm4146, %v4127, 0
        %v4151 = vsel %vm4146, %v4128, 0
        %v4154 = vsel %vm4146, %v4129, 0
        %4156 = vmatprep.subr.mxu0 0.0
        %4157 = vmatpush1.msra.mxu0 %v4130
        %4158 = vmatprep.subr.mxu0 0.0
        %4159 = vmatpush1.msra.mxu0 %v4131
        %4160 = vmatprep.subr.mxu0 0.0
        %4161 = vmatpush1.msra.mxu0 %v4132
        %4162 = vmatprep.subr.mxu0 0.0
        %4163 = vmatpush1.msra.mxu0 %v4133
        %4164 = vmatprep.subr.mxu0 0.0
        %4165 = vmatpush1.msra.mxu0 %v4134
        %4166 = vmatprep.subr.mxu0 0.0
        %4167 = vmatpush1.msra.mxu0 %v4135
        %4168 = vmatprep.subr.mxu0 0.0
        %4169 = vmatpush1.msra.mxu0 %v4136
        %4170 = vmatprep.subr.mxu0 0.0
        %4171 = vmatpush1.msra.mxu0 %v4137
        %4172 = vmatprep.subr.mxu0 0.0
        %4173 = vmatpush1.msra.mxu0 %v4138
        %4174 = vmatprep.subr.mxu0 0.0
        %4175 = vmatpush1.msra.mxu0 0.0
        %4176 = vmatprep.subr.mxu0 0.0
        %4177 = vmatpush1.msra.mxu0 0.0
        %4178 = vmatprep.subr.mxu0 0.0
        %4179 = vmatpush1.msra.mxu0 0.0
        %4180 = vmatprep.subr.mxu0 0.0
        %4181 = vmatpush1.msra.mxu0 0.0
        %4182 = vmatprep.subr.mxu0 0.0
        %4183 = vmatpush1.msra.mxu0 0.0
        %4184 = vmatprep.subr.mxu0 0.0
        %4185 = vmatpush1.msra.mxu0 0.0
        %4186 = vmatprep.subr.mxu0 0.0
        %4187 = vmatpush1.msra.mxu0 0.0
        %4188 = vmatprep.subr.mxu0 0.0
        %4189 = vmatpush1.msra.mxu0 0.0
        %4190 = vmatprep.subr.mxu0 0.0
        %4191 = vmatpush1.msra.mxu0 0.0
        %4192 = vmatprep.subr.mxu0 0.0
        %4193 = vmatpush1.msra.mxu0 0.0
        %4194 = vmatprep.subr.mxu0 0.0
        %4195 = vmatpush1.msra.mxu0 0.0
        %4196 = vmatprep.subr.mxu0 0.0
        %4197 = vmatpush1.msra.mxu0 0.0
        %4198 = vmatprep.subr.mxu0 0.0
        %4199 = vmatpush1.msra.mxu0 0.0
        %4200 = vmatprep.subr.mxu0 0.0
        %4201 = vmatpush1.msra.mxu0 0.0
        %4202 = vmatprep.subr.mxu0 0.0
        %4203 = vmatpush1.msra.mxu0 0.0
        %4204 = vmatprep.subr.mxu0 0.0
        %4205 = vmatpush1.msra.mxu0 0.0
        %4206 = vmatprep.subr.mxu0 0.0
        %4207 = vmatpush1.msra.mxu0 0.0
        %4208 = vmatprep.subr.mxu0 0.0
        %4209 = vmatpush1.msra.mxu0 0.0
        %4210 = vmatprep.subr.mxu0 0.0
        %4211 = vmatpush1.msra.mxu0 0.0
        %4212 = vmatprep.subr.mxu0 0.0
        %4213 = vmatpush1.msra.mxu0 0.0
        %4214 = vmatprep.subr.mxu0 0.0
        %4215 = vmatpush1.msra.mxu0 0.0
        %4216 = vmatprep.subr.mxu0 0.0
        %4217 = vmatpush1.msra.mxu0 0.0
        %4218 = vmatprep.subr.mxu0 0.0
        %4219 = vmatpush1.msra.mxu0 0.0
        %4220 = vmatprep.mubr.f32.mxu0 0.0
        %4221 = vmatmul.mubr.f32.gmra.mrb[0].mxu0 %v4148
        %v4222 = vpop.f32.mrb[0].mxu0
        %v4223 = vadd.f32 %v4144, %v4222
        %v4224 = vpop.f32.mrb[0].mxu0
        %4225 = vmatprep.mubr.f32.mxu0 0.0
        %4226 = vmatmul.mubr.f32.gmra.mrb[0].mxu0 %v4151
        %v4227 = vpop.f32.mrb[0].mxu0
        %v4228 = vadd.f32 %v4144, %v4227
        %v4229 = vpop.f32.mrb[0].mxu0
        %4230 = vmatprep.mubr.f32.mxu0 0.0
        %4231 = vmatmul.mubr.f32.gmra.mrb[0].mxu0 %v4154
        %v4232 = vpop.f32.mrb[0].mxu0
        %v4233 = vadd.f32 %v4144, %v4232
        %v4234 = vpop.f32.mrb[0].mxu0
        %4235 = vdwg.mxu0
        %vm4236 = vcmask 130048
        %4237 = vst.msk [vmem:[#allocation13] sm:$0xff] %vm4236, %v4223
        %4238 = vst.msk [vmem:[#allocation13 + $0x8] sm:$0xff] %vm4236, %v4228
        %4239 = vst.msk [vmem:[#allocation13 + $0x10] sm:$0xff] %vm4236, %v4233
        %vm4240 = vcmask 128000
        %4241 = vst.msk [vmem:[#allocation14] sm:$0x3f] %vm4240, 0.0
        %4242 = vst.msk [vmem:[#allocation14 + $0x8] sm:$0x3f] %vm4240, 0.0
        %4243 = vst.msk [vmem:[#allocation14 + $0x10] sm:$0x3f] %vm4240, 0.0
        %4244 = vst.msk [vmem:[#allocation14 + $0x18] sm:$0x3f] %vm4240, 0.0
        %4245 = vst.msk [vmem:[#allocation14 + $0x20] sm:$0x3f] %vm4240, 0.0
        %4246 = vst.msk [vmem:[#allocation14 + $0x28] sm:$0x3f] %vm4240, 0.0
        %4247 = vst.msk [vmem:[#allocation16] sm:$0xff] %vm4236, 0.0
        %4248 = vst.msk [vmem:[#allocation16 + $0x8] sm:$0xff] %vm4236, 0.0
        %4249 = vst.msk [vmem:[#allocation16 + $0x10] sm:$0xff] %vm4236, 0.0
        %v4250 = vld [vmem:[#allocation13] sm:$0xf]
        %vm4251 = vcmask 125952
        %4252 = vst.msk [vmem:[%s424] sm:$0xf] %vm4251, %v4250
        %v4253 = vmax.f32 %v4250, 0.0
        %s4254 = scalar_lea.vmem [#allocation14], 8
        %4255 = vst.msk [vmem:[%s4254 + $0x1] sm:$0xf] %vm4251, %v4253
        %v4256 = vld [vmem:[#allocation13 + $0x6] sm:$0xf]
        %4257 = vst.msk [vmem:[%s424 + $0x4] sm:$0xf] %vm4251, %v4256
        %v4258 = vmax.f32 %v4256, 0.0
        %s4259 = scalar_lea.vmem [#allocation14], 16
        %4260 = vst.msk [vmem:[%s4259 + $0x1] sm:$0xf] %vm4251, %v4258
        %v4261 = vld [vmem:[#allocation13 + $0xc] sm:$0xf]
        %4262 = vst.msk [vmem:[%s424 + $0x8] sm:$0xf] %vm4251, %v4261
        %v4263 = vmax.f32 %v4261, 0.0
        %s4264 = scalar_lea.vmem [#allocation14], 24
        %4265 = vst.msk [vmem:[%s4264 + $0x1] sm:$0xf] %vm4251, %v4263
        %v4266 = vld [vmem:[#allocation13 + $0x12] sm:$0xf]
        %4267 = vst.msk [vmem:[%s424 + $0xc] sm:$0xf] %vm4251, %v4266
        %v4268 = vmax.f32 %v4266, 0.0
        %s4269 = scalar_lea.vmem [#allocation14], 32
        %4270 = vst.msk [vmem:[%s4269 + $0x1] sm:$0xf] %vm4251, %v4268
        %v4271 = vld [vmem:[#allocation14] sm:$0x3f]
        %v4272 = vld [vmem:[#allocation14 + $0x10] sm:$0x3f]
        %v4273 = vld [vmem:[%s4254] sm:$0x3f]
        %v4274 = vld [vmem:[%s4254 + $0x10] sm:$0x3f]
        %v4275 = vmax.f32 %v4271, %v4273
        %v4276 = vmax.f32 %v4272, %v4274
        %v4277 = vld [vmem:[%s4259] sm:$0x3f]
        %v4278 = vld [vmem:[%s4259 + $0x10] sm:$0x3f]
        %v4279 = vmax.f32 %v4275, %v4277
        %v4280 = vmax.f32 %v4276, %v4278
        %4281 = vst.msk [vmem:[#allocation15] sm:$0x3f] %vm4240, %v4279
        %4282 = vst.msk [vmem:[#allocation15 + $0x8] sm:$0x3f] %vm4240, %v4280
        %v4283 = vld [vmem:[#allocation15] ss:$2 sm:$0x3]
        %s4284 = scalar_lea.vmem [#allocation15], 8
        %v4285 = vld [vmem:[%s4284] ss:$2 sm:$0x3]
        %s4286 = scalar_lea.vmem [#allocation15], 1
        %v4287 = vld [vmem:[%s4286] ss:$2 sm:$0x3]
        %s4288 = scalar_lea.vmem [#allocation15], 9
        %v4289 = vld [vmem:[%s4288] ss:$2 sm:$0x3]
        %v4290 = vmax.f32 %v4283, %v4287
        %v4291 = vmax.f32 %v4285, %v4289
        %s4292 = scalar_lea.vmem [#allocation15], 2
        %v4293 = vld [vmem:[%s4292] ss:$2 sm:$0x3]
        %s4294 = scalar_lea.vmem [#allocation15], 10
        %v4295 = vld [vmem:[%s4294] ss:$2 sm:$0x3]
        %v4296 = vmax.f32 %v4290, %v4293
        %v4297 = vmax.f32 %v4291, %v4295
        %vm4298 = vcmask 123904
        %4299 = vst.msk [vmem:[#allocation16 + $0x5] sm:$0x3] %vm4298, %v4296
        %4300 = vst.msk [vmem:[#allocation16 + $0x9] sm:$0x3] %vm4298, %v4297
        %v4301 = vld [vmem:[#allocation16] sm:$0xff]
        %4302 = vst.msk [vmem:[#allocation17] sm:$0xff] %vm4236, %v4301
        %v4303 = vld [vmem:[#allocation16 + $0x1] sm:$0xff]
        %4305 = vrot.lane.b32.xlu0 %v4303, 16
        %v4306 = vpop.permute.xlu0 %4305
        %vm4308 = vcmask 261248
        %4309 = vst.msk [vmem:[#allocation17] sm:$0xff] %vm4308, %v4306
        %v4310 = vld [vmem:[#allocation16 + $0x2] sm:$0xff]
        %4312 = vrot.lane.b32.xlu0 %v4310, 32
        %v4313 = vpop.permute.xlu0 %4312
        %vm4315 = vcmask 392448
        %4316 = vst.msk [vmem:[#allocation17] sm:$0xff] %vm4315, %v4313
        %v4317 = vld [vmem:[#allocation16 + $0x4] sm:$0xff]
        %4319 = vrot.lane.b32.xlu0 %v4317, 48
        %v4320 = vpop.permute.xlu0 %4319
        %vm4322 = vcmask 523648
        %4323 = vst.msk [vmem:[#allocation17] sm:$0xff] %vm4322, %v4320
        %v4324 = vld [vmem:[#allocation16 + $0x5] sm:$0xff]
        %4326 = vrot.lane.b32.xlu0 %v4324, 64
        %v4327 = vpop.permute.xlu0 %4326
        %vm4329 = vcmask 654848
        %4330 = vst.msk [vmem:[#allocation17] sm:$0xff] %vm4329, %v4327
        %v4331 = vld [vmem:[#allocation16 + $0x6] sm:$0xff]
        %4333 = vrot.lane.b32.xlu0 %v4331, 80
        %v4334 = vpop.permute.xlu0 %4333
        %vm4336 = vcmask 786048
        %4337 = vst.msk [vmem:[#allocation17] sm:$0xff] %vm4336, %v4334
        %v4338 = vld [vmem:[#allocation16 + $0x8] sm:$0xff]
        %4340 = vrot.lane.b32.xlu0 %v4338, 96
        %v4341 = vpop.permute.xlu0 %4340
        %vm4343 = vcmask 917248
        %4344 = vst.msk [vmem:[#allocation17] sm:$0xff] %vm4343, %v4341
        %v4345 = vld [vmem:[#allocation16 + $0x9] sm:$0xff]
        %4347 = vrot.lane.b32.xlu0 %v4345, 112
        %v4348 = vpop.permute.xlu0 %4347
        %vm4350 = vcmask 1048448
        %4351 = vst.msk [vmem:[#allocation17] sm:$0xff] %vm4350, %v4348
        %v4352 = vld [vmem:[#allocation16 + $0xa] sm:$0xff]
        %4353 = vst.msk [vmem:[#allocation17 + $0x8] sm:$0xff] %vm4236, %v4352
        %v4354 = vld [vmem:[#allocation17] sm:$0xff]
        %v4355 = vld [vmem:[#allocation17 + $0x8] sm:$0xff]
        %v4356 = vld [vmem:[%s7] sm:$0xff]
        %v4357 = vld [vmem:[%s7 + $0x8] sm:$0xff]
        %v4358 = vld [vmem:[%s7 + $0x10] sm:$0xff]
        %v4359 = vld [vmem:[%s7 + $0x18] sm:$0xff]
        %v4360 = vld [vmem:[%s7 + $0x20] sm:$0xff]
        %v4361 = vld [vmem:[%s7 + $0x28] sm:$0xff]
        %v4362 = vld [vmem:[%s7 + $0x30] sm:$0xff]
        %v4363 = vld [vmem:[%s7 + $0x38] sm:$0xff]
        %v4364 = vld [vmem:[%s7 + $0x40] sm:$0xff]
        %v4365 = vld [vmem:[%s7 + $0x48] sm:$0xff]
        %v4366 = vld [vmem:[%s7 + $0x50] sm:$0xff]
        %v4367 = vld [vmem:[%s7 + $0x58] sm:$0xff]
        %v4368 = vld [vmem:[%s7 + $0x60] sm:$0xff]
        %v4369 = vld [vmem:[%s7 + $0x68] sm:$0xff]
        %v4370 = vld [vmem:[%s7 + $0x70] sm:$0xff]
        %v4371 = vld [vmem:[%s7 + $0x78] sm:$0xff]
        %v4372 = vld [vmem:[%s7 + $0x80] sm:$0xff]
        %v4373 = vld [vmem:[%s7 + $0x88] sm:$0xff]
        %v4374 = vld [vmem:[%s8] sm:$0x1]
        %v4376 = vlaneseq
        %v4377 = vshrl.u32 %v4376, 7
        %v4378 = vsub.s32 0, %v4377
        %v4379 = vrot.slane %v4374, %v4378
        %v4382 = vsel %vm4236, %v4355, 0
        %4384 = vmatprep.subr.mxu0 0.0
        %4385 = vmatpush1.msra.mxu0 %v4356
        %4386 = vmatprep.subr.mxu0 0.0
        %4387 = vmatpush1.msra.mxu0 %v4357
        %4388 = vmatprep.subr.mxu0 0.0
        %4389 = vmatpush1.msra.mxu0 %v4358
        %4390 = vmatprep.subr.mxu0 0.0
        %4391 = vmatpush1.msra.mxu0 %v4359
        %4392 = vmatprep.subr.mxu0 0.0
        %4393 = vmatpush1.msra.mxu0 %v4360
        %4394 = vmatprep.subr.mxu0 0.0
        %4395 = vmatpush1.msra.mxu0 %v4361
        %4396 = vmatprep.subr.mxu0 0.0
        %4397 = vmatpush1.msra.mxu0 %v4362
        %4398 = vmatprep.subr.mxu0 0.0
        %4399 = vmatpush1.msra.mxu0 %v4363
        %4400 = vmatprep.subr.mxu0 0.0
        %4401 = vmatpush1.msra.mxu0 %v4364
        %4402 = vmatprep.subr.mxu0 0.0
        %4403 = vmatpush1.msra.mxu0 %v4365
        %4404 = vmatprep.subr.mxu0 0.0
        %4405 = vmatpush1.msra.mxu0 %v4366
        %4406 = vmatprep.subr.mxu0 0.0
        %4407 = vmatpush1.msra.mxu0 %v4367
        %4408 = vmatprep.subr.mxu0 0.0
        %4409 = vmatpush1.msra.mxu0 %v4368
        %4410 = vmatprep.subr.mxu0 0.0
        %4411 = vmatpush1.msra.mxu0 %v4369
        %4412 = vmatprep.subr.mxu0 0.0
        %4413 = vmatpush1.msra.mxu0 %v4370
        %4414 = vmatprep.subr.mxu0 0.0
        %4415 = vmatpush1.msra.mxu0 %v4371
        %4416 = vmatprep.subr.mxu0 0.0
        %4417 = vmatpush1.msra.mxu0 %v4372
        %4418 = vmatprep.subr.mxu0 0.0
        %4419 = vmatpush1.msra.mxu0 %v4373
        %4420 = vmatprep.subr.mxu0 0.0
        %4421 = vmatpush1.msra.mxu0 0.0
        %4422 = vmatprep.subr.mxu0 0.0
        %4423 = vmatpush1.msra.mxu0 0.0
        %4424 = vmatprep.subr.mxu0 0.0
        %4425 = vmatpush1.msra.mxu0 0.0
        %4426 = vmatprep.subr.mxu0 0.0
        %4427 = vmatpush1.msra.mxu0 0.0
        %4428 = vmatprep.subr.mxu0 0.0
        %4429 = vmatpush1.msra.mxu0 0.0
        %4430 = vmatprep.subr.mxu0 0.0
        %4431 = vmatpush1.msra.mxu0 0.0
        %4432 = vmatprep.subr.mxu0 0.0
        %4433 = vmatpush1.msra.mxu0 0.0
        %4434 = vmatprep.subr.mxu0 0.0
        %4435 = vmatpush1.msra.mxu0 0.0
        %4436 = vmatprep.subr.mxu0 0.0
        %4437 = vmatpush1.msra.mxu0 0.0
        %4438 = vmatprep.subr.mxu0 0.0
        %4439 = vmatpush1.msra.mxu0 0.0
        %4440 = vmatprep.subr.mxu0 0.0
        %4441 = vmatpush1.msra.mxu0 0.0
        %4442 = vmatprep.subr.mxu0 0.0
        %4443 = vmatpush1.msra.mxu0 0.0
        %4444 = vmatprep.subr.mxu0 0.0
        %4445 = vmatpush1.msra.mxu0 0.0
        %4446 = vmatprep.subr.mxu0 0.0
        %4447 = vmatpush1.msra.mxu0 0.0
        %4448 = vmatprep.mubr.f32.mxu0 %v4382
        %4449 = vmatmul.mubr.f32.gmra.mrb[0].mxu0 %v4354
        %v4450 = vpop.f32.mrb[0].mxu0
        %v4451 = vadd.f32 %v4379, %v4450
        %v4452 = vpop.f32.mrb[0].mxu0
        %4453 = vdwg.mxu0
        %vm4454 = vcmask 261120
        %4455 = vst.msk [vmem:[#allocation18] sm:$0xff] %vm4454, %v4451
        %v4456 = vld [vmem:[#allocation18] sm:$0x3]
        %vm4457 = vcmask 254976
        %4458 = vst.msk [vmem:[%s431] sm:$0x3] %vm4457, %v4456
        %v4459 = vld [vmem:[#allocation18 + $0x4] sm:$0x3]
        %4460 = vst.msk [vmem:[%s431 + $0x2] sm:$0x3] %vm4457, %v4459
        %p4461 = scmp.lt.s32.totalorder %s30, 1
        %s4462 = scalar_select %p4461, %s30, 1
        %s4463 = smul.addr %s4462, 32
        %s4464 = smul.addr %s4463, 8
        %s4465 = scalar_lea.vmem %s9, %s4464
        %p4466 = scmp.lt.s32.totalorder %s30, 1
        %s4467 = scalar_select %p4466, %s30, 1
        %s4468 = smul.addr %s4467, 8
        %s4469 = smul.addr %s4468, 8
        %s4470 = scalar_lea.vmem %s10, %s4469
        %s4471 = sand.u32 %s284, 1
        %s4472 = scalar_lea.sflag [#allocation20], %s4471
        %s4473 = sand.u32 %s284, 1
        %s4474 = smul.addr %s4473, 16
        %s4475 = scalar_lea.vmem [#allocation19], %s4474
        %s4476 = sand.u32 %s310, 1
        %s4477 = scalar_lea.sflag [#allocation22], %s4476
        %s4478 = sand.u32 %s310, 1
        %s4479 = smul.addr %s4478, 4
        %s4480 = scalar_lea.vmem [#allocation21], %s4479
        // Predicated region
        $region57: #{encoder_forward.1} parent=55 // pred_check
          %p4481 = pneg %p242
        $region58: #{encoder_forward.1} parent=55 // pred_check_branch
          %4483 = sbr.rel (%p4481) target = $region60
        $region59: #{encoder_forward.1} parent=55 // pred_region
          _
        $region60: #{encoder_forward.1} parent=55 // pred_fallthru
          _
        // Predicated region
        $region61: #{encoder_forward.1} parent=55 // pred_check
          %p4484 = pneg %p268
        $region62: #{encoder_forward.1} parent=55 // pred_check_branch
          %4486 = sbr.rel (%p4484) target = $region64
        $region63: #{encoder_forward.1} parent=55 // pred_region
          _
        $region64: #{encoder_forward.1} parent=55 // pred_fallthru
          _
        // Predicated region
        $region65: #{encoder_forward.1} parent=55 // pred_check
          %p4487 = pneg %p294
        $region66: #{encoder_forward.1} parent=55 // pred_check_branch
          %4489 = sbr.rel (%p4487) target = $region68
        $region67: #{encoder_forward.1} parent=55 // pred_region
          %s4491 = ssub.s32 256, 256
          %4492 = vsyncadd %s4472, %s4491
          %s4493 = smul.addr %s30, 2
          %s4494 = smul.addr %s4493, 128
          %s4495 = scalar_lea.hbm %s11, %s4494
          %s4496 = sshll.u32 %s4475, 4
          %s4497 = int_to_ptr.vmem [resolvable:$true] %s4496
          %4502 = dma.vmem_to_hbm [thread:$0]  %s4497, 256, %s4495, %s4472, 128, 128, 8
        $region68: #{encoder_forward.1} parent=55 // pred_fallthru
          _
        // Predicated region
        $region69: #{encoder_forward.1} parent=55 // pred_check
          %p4503 = pneg %p320
        $region70: #{encoder_forward.1} parent=55 // pred_check_branch
          %4505 = sbr.rel (%p4503) target = $region72
        $region71: #{encoder_forward.1} parent=55 // pred_region
          %s4507 = ssub.s32 64, 64
          %4508 = vsyncadd %s4477, %s4507
          %s4509 = smul.addr %s30, 64
          %s4510 = scalar_lea.hbm %s12, %s4509
          %s4512 = sshll.u32 %s4480, 4
          %s4513 = int_to_ptr.vmem [resolvable:$true] %s4512
          %4515 = dma.vmem_to_hbm [thread:$0]  %s4513, 64, %s4510, %s4477
        $region72: #{encoder_forward.1} parent=55 // pred_fallthru
          _
      $region56: #{encoder_forward.1} parent=5 // pred_fallthru
        _
      %p4516 = scmp.le.s32.totalorder 2, %s25
      // Predicated region
      $region73: #{encoder_forward.1} parent=5 // pred_check
        %p4517 = pneg %p4516
      $region74: #{encoder_forward.1} parent=5 // pred_check_branch
        %4519 = sbr.rel (%p4517) target = $region76
      $region75: #{encoder_forward.1} parent=5 // pred_region
        %s4520 = ssub.s32 %s25, 2
        // Predicated region
        $region77: #{encoder_forward.1} parent=75 // pred_check
          %p4521 = pneg %p248
        $region78: #{encoder_forward.1} parent=75 // pred_check_branch
          %4523 = sbr.rel (%p4521) target = $region80
        $region79: #{encoder_forward.1} parent=75 // pred_region
          %p4524 = scmp.lt.s32.totalorder %s31, 1
          %s4525 = scalar_select %p4524, %s31, 1
          %s4526 = smul.addr %s4525, 32
          %s4527 = smul.addr %s4526, 8
          %s4528 = scalar_lea.vmem %s9, %s4527
        $region80: #{encoder_forward.1} parent=75 // pred_fallthru
          _
        // Predicated region
        $region81: #{encoder_forward.1} parent=75 // pred_check
          %p4529 = pneg %p274
        $region82: #{encoder_forward.1} parent=75 // pred_check_branch
          %4531 = sbr.rel (%p4529) target = $region84
        $region83: #{encoder_forward.1} parent=75 // pred_region
          %p4532 = scmp.lt.s32.totalorder %s31, 1
          %s4533 = scalar_select %p4532, %s31, 1
          %s4534 = smul.addr %s4533, 8
          %s4535 = smul.addr %s4534, 8
          %s4536 = scalar_lea.vmem %s10, %s4535
        $region84: #{encoder_forward.1} parent=75 // pred_fallthru
          _
        // Predicated region
        $region85: #{encoder_forward.1} parent=75 // pred_check
          %p4537 = pneg %p300
        $region86: #{encoder_forward.1} parent=75 // pred_check_branch
          %4539 = sbr.rel (%p4537) target = $region88
        $region87: #{encoder_forward.1} parent=75 // pred_region
          %s4540 = sand.u32 %s285, 1
          %s4541 = scalar_lea.sflag [#allocation20], %s4540
          %s4542 = sand.u32 %s285, 1
          %s4543 = smul.addr %s4542, 16
          %s4544 = scalar_lea.vmem [#allocation19], %s4543
          %4545 = dma.done %s4541, 256
        $region88: #{encoder_forward.1} parent=75 // pred_fallthru
          _
        // Predicated region
        $region89: #{encoder_forward.1} parent=75 // pred_check
          %p4546 = pneg %p326
        $region90: #{encoder_forward.1} parent=75 // pred_check_branch
          %4548 = sbr.rel (%p4546) target = $region92
        $region91: #{encoder_forward.1} parent=75 // pred_region
          %s4549 = sand.u32 %s311, 1
          %s4550 = scalar_lea.sflag [#allocation22], %s4549
          %s4551 = sand.u32 %s311, 1
          %s4552 = smul.addr %s4551, 4
          %s4553 = scalar_lea.vmem [#allocation21], %s4552
          %4554 = dma.done %s4550, 64
        $region92: #{encoder_forward.1} parent=75 // pred_fallthru
          _
      $region76: #{encoder_forward.1} parent=5 // pred_fallthru
        _
    $region6: #{encoder_forward.1} parent=1 // loop_footer
      %s29 = sadd.s32 1, %s25
    $region7: #{encoder_forward.1} parent=1 // loop_footer_branch
      %24 = sbr.rel target = $region3
    $region8: #{encoder_forward.1} parent=1 // loop_exit
      _
    %4555 = vsyncpa [#allocation20], 1
    %s4556 = scalar_lea.sflag [#allocation20], 1
    %4557 = vsyncpa %s4556, 1
    %4558 = vsyncpa [#allocation22], 1
    %s4559 = scalar_lea.sflag [#allocation22], 1
    %4560 = vsyncpa %s4559, 1

</llo_original>
